<compile_context>
chip_gen: v7x
topology: tpu7x:2x2x1
jax: 0.10.0
libtpu: 0.0.40
codegen_flags: <defaults>
</compile_context>

<pallas_src>
import jax
import jax.numpy as jnp
from jax import lax
from jax.experimental import pallas as pl
from jax.experimental.pallas import tpu as pltpu


# ----------------------------------------------------------------------------
# Pallas kernels (all operate on lane-dense (C, hw) blocks, one sample / step)
# ----------------------------------------------------------------------------
def _matmul_kernel(w_ref, a_ref, o_ref):
    # Plain conv-as-matmul: w (Cout, K) bf16, a (K, hw) bf16 -> o (Cout, hw) bf16.
    y = jnp.dot(w_ref[...], a_ref[...], preferred_element_type=jnp.float32)
    o_ref[...] = y.astype(o_ref.dtype)


def _conv_gn_prelu_kernel(w_ref, a_ref, alpha_ref, o_ref):
    # w: (Ct, Kt) bf16, a: (Kt, hw) bf16, alpha: (Ct, 1) f32 -> o: (Ct, hw) bf16.
    y = jnp.dot(w_ref[...], a_ref[...], preferred_element_type=jnp.float32)
    # GroupNorm(num_groups=1): per-sample stats over all C*H*W elements.
    # Centered two-pass variance (no E[x^2]-mean^2 cancellation).
    mean = jnp.mean(y)
    c = y - mean
    var = jnp.mean(c * c)
    yn = c * lax.rsqrt(var + 1e-5)                 # gamma=1, beta=0 (init values)
    al = alpha_ref[...]                            # (Ct, 1) broadcasts over lanes
    o_ref[...] = jnp.where(yn > 0, yn, al * yn).astype(o_ref.dtype)


def _conv_gn_res_prelu_kernel(w_ref, a_ref, r_ref, alpha_ref, o_ref):
    # Same as above, residual added AFTER the norm and BEFORE PReLU (MRB stage 3).
    y = jnp.dot(w_ref[...], a_ref[...], preferred_element_type=jnp.float32)
    mean = jnp.mean(y)
    c = y - mean
    var = jnp.mean(c * c)
    yn = c * lax.rsqrt(var + 1e-5) + r_ref[...].astype(jnp.float32)
    al = alpha_ref[...]
    o_ref[...] = jnp.where(yn > 0, yn, al * yn).astype(o_ref.dtype)


# ----------------------------------------------------------------------------
# im2col / weight packing helpers (NCHW, channel-major / transposed im2col)
# ----------------------------------------------------------------------------
def _im2col_t(x, kh, kw, padding, dilation):
    """x: [N,Cin,H,W] (bf16) -> A^T [N, kh*kw*Cin, Ho*Wo]; K order (kh,kw,cin)."""
    N, Cin, H, W = x.shape
    if kh == 1 and kw == 1:
        return x.reshape(N, Cin, H * W), H, W
    xp = jnp.pad(x, ((0, 0), (0, 0), (padding, padding), (padding, padding)))
    Ho = H + 2 * padding - dilation * (kh - 1)
    Wo = W + 2 * padding - dilation * (kw - 1)
    cols = [xp[:, :, i * dilation:i * dilation + Ho,
                     j * dilation:j * dilation + Wo]
            for i in range(kh) for j in range(kw)]
    a = jnp.concatenate(cols, axis=1)              # [N, kh*kw*Cin, Ho, Wo]
    return a.reshape(N, kh * kw * Cin, Ho * Wo), Ho, Wo


def _w_mat(w):
    """PyTorch conv weight [Cout,Cin,kh,kw] -> matmul weight [kh*kw*Cin, Cout]."""
    Cout, Cin, kh, kw = w.shape
    return w.transpose(2, 3, 1, 0).reshape(kh * kw * Cin, Cout)


def _block_diag(wms):
    """Block-diagonal pack of per-branch weight matrices (tiny, computed per call)."""
    if len(wms) == 1:
        return wms[0]
    Kt = sum(w.shape[0] for w in wms)
    Ct = sum(w.shape[1] for w in wms)
    out = jnp.zeros((Kt, Ct), jnp.float32)
    ko = co = 0
    for w in wms:
        out = out.at[ko:ko + w.shape[0], co:co + w.shape[1]].set(w)
        ko += w.shape[0]
        co += w.shape[1]
    return out


# ----------------------------------------------------------------------------
# Layer wrappers (Pallas calls)
# ----------------------------------------------------------------------------
def conv2d(x, w, padding=0, dilation=1):
    """Plain conv (bias-free, stride 1), NCHW in/out, bf16 out. Grid over batch."""
    N, Cin, H, W_ = x.shape
    Cout, _, kh, kw = w.shape
    A, Ho, Wo = _im2col_t(x.astype(jnp.bfloat16), kh, kw, padding, dilation)
    K = A.shape[1]
    hw = Ho * Wo
    WmT = _w_mat(w).T.astype(jnp.bfloat16)         # (Cout, K)
    out = pl.pallas_call(
        _matmul_kernel,
        out_shape=jax.ShapeDtypeStruct((N, Cout, hw), jnp.bfloat16),
        grid=(N,),
        in_specs=[
            pl.BlockSpec((Cout, K), lambda n: (0, 0)),
            pl.BlockSpec((None, K, hw), lambda n: (n, 0, 0)),
        ],
        out_specs=pl.BlockSpec((None, Cout, hw), lambda n: (n, 0, 0)),
        compiler_params=pltpu.CompilerParams(
            dimension_semantics=("parallel",)),
    )(WmT, A)
    return out.reshape(N, Cout, Ho, Wo)


def fused_conv_gn_prelu(x, branch_specs, alpha, residual=None):
    """Fused [multi-branch conv -> concat] + GroupNorm(1) (+residual) + PReLU.

    x: [N,Cin,H,W] NCHW.  branch_specs: list of (weight, padding, dilation);
    branch outputs are concatenated on the channel axis via a block-diagonal
    weight matrix, so the whole stage is a single lane-dense MXU matmul.
    """
    N, Cin, H, W_ = x.shape
    hw = H * W_
    xb = x.astype(jnp.bfloat16)                    # cast BEFORE im2col (half bytes)
    a_list, w_list = [], []
    for (w, padding, dilation) in branch_specs:
        kh, kw = w.shape[2], w.shape[3]
        a, Ho, Wo = _im2col_t(xb, kh, kw, padding, dilation)
        assert Ho == H and Wo == W_, "fused path requires same-size conv output"
        a_list.append(a)
        w_list.append(_w_mat(w))
    A = a_list[0] if len(a_list) == 1 else jnp.concatenate(a_list, axis=1)
    Wm = _block_diag(w_list)                       # (Kt, Ct) f32
    Kt, Ct = Wm.shape
    WmT = Wm.T.astype(jnp.bfloat16)                # (Ct, Kt)
    alpha2 = jnp.asarray(alpha, jnp.float32).reshape(Ct, 1)

    in_arrays = [WmT, A]
    in_specs = [
        pl.BlockSpec((Ct, Kt), lambda n: (0, 0)),
        pl.BlockSpec((None, Kt, hw), lambda n: (n, 0, 0)),
    ]
    if residual is not None:
        in_arrays.append(residual.reshape(N, Ct, hw).astype(jnp.bfloat16))
        in_specs.append(pl.BlockSpec((None, Ct, hw), lambda n: (n, 0, 0)))
        kernel = _conv_gn_res_prelu_kernel
    else:
        kernel = _conv_gn_prelu_kernel
    in_arrays.append(alpha2)
    in_specs.append(pl.BlockSpec((Ct, 1), lambda n: (0, 0)))

    out = pl.pallas_call(
        kernel,
        out_shape=jax.ShapeDtypeStruct((N, Ct, hw), jnp.bfloat16),
        grid=(N,),
        in_specs=in_specs,
        out_specs=pl.BlockSpec((None, Ct, hw), lambda n: (n, 0, 0)),
        compiler_params=pltpu.CompilerParams(
            dimension_semantics=("parallel",)),
    )(*in_arrays)
    return out.reshape(N, Ct, H, W_)


def maxpool3x3s2p1(x):
    # TODO(synk): max-pool runs via lax.reduce_window (glue), not a Pallas kernel.
    return lax.reduce_window(
        x, jnp.asarray(-jnp.inf, x.dtype), lax.max,
        window_dimensions=(1, 1, 3, 3),
        window_strides=(1, 1, 2, 2),
        padding=((0, 0), (0, 0), (1, 1), (1, 1)))


def upsample_to(x, ref):
    # TODO(synk): bilinear upsample uses jax.image.resize (align_corners=False), not Pallas.
    N, C, _, _ = x.shape
    H, W = ref.shape[2], ref.shape[3]
    return jax.image.resize(x, (N, C, H, W), method='bilinear').astype(x.dtype)


# ----------------------------------------------------------------------------
# Parameter construction (deterministic, matches PyTorch __init__ shapes)
# ----------------------------------------------------------------------------
class ParamGen:
    def __init__(self, key):
        self.key = key

    def _next(self):
        self.key, sub = jax.random.split(self.key)
        return sub

    def conv(self, cin, cout, k):
        fan_in = cin * k * k
        return (jax.random.normal(self._next(), (cout, cin, k, k), jnp.float32)
                * (1.0 / jnp.sqrt(fan_in)))

    def prelu(self, c):
        return jnp.full((c,), 0.25, jnp.float32)   # PyTorch PReLU default init


def make_mrb(pg, channel, rate):
    half = int(0.5 * channel)
    return dict(
        rate=rate,                                 # Python int, never traced
        conv_1_1=pg.conv(channel, half, 3),
        conv_1_2=pg.conv(channel, half, 3),
        conv_2_1=pg.conv(channel, half, 3),
        conv_2_2=pg.conv(channel, half, 3),
        conv_3=pg.conv(channel, channel, 3),       # defined but unused in forward
        conv_out=pg.conv(channel, channel, 3),
        alpha=pg.prelu(channel),
    )


def mrb_forward(p, x):
    r = p['rate']
    x_1 = fused_conv_gn_prelu(
        x, [(p['conv_1_1'], 1, 1), (p['conv_1_2'], r, r)], p['alpha'])
    x_2 = fused_conv_gn_prelu(
        x_1, [(p['conv_2_1'], 1, 1), (p['conv_2_2'], r, r)], p['alpha'])
    x_out = fused_conv_gn_prelu(
        x_2, [(p['conv_out'], 1, 1)], p['alpha'], residual=x)
    return x_out


def make_convl(pg, inchannel, channel):
    return dict(conv=pg.conv(inchannel, channel, 3), alpha=pg.prelu(channel))


def convl_forward(p, x):
    return fused_conv_gn_prelu(x, [(p['conv'], 1, 1)], p['alpha'])


def make_ed(pg, inchannel, channel):
    return dict(
        el=make_mrb(pg, channel, 12),
        em=make_mrb(pg, channel * 2, 6),
        es=make_mrb(pg, channel * 4, 3),
        ds=make_mrb(pg, channel * 4, 3),
        dm=make_mrb(pg, channel * 2, 6),
        dl=make_mrb(pg, channel, 12),
        conv_eltem=pg.conv(channel, 2 * channel, 1),
        conv_emtes=pg.conv(2 * channel, 4 * channel, 1),
        conv_dstdm=pg.conv(4 * channel, 2 * channel, 1),
        conv_dmtdl=pg.conv(2 * channel, channel, 1),
        conv_in=pg.conv(inchannel, channel, 3),
        conv_out=pg.conv(channel, 3, 3),           # defined but unused in forward
    )


def ed_forward(p, x1, x2, x3):
    x_elin = conv2d(jnp.concatenate([x1, x2, x3], axis=1), p['conv_in'], padding=1)
    elout = mrb_forward(p['el'], x_elin)
    emout = mrb_forward(p['em'], conv2d(maxpool3x3s2p1(elout), p['conv_eltem']))
    esout = mrb_forward(p['es'], conv2d(maxpool3x3s2p1(emout), p['conv_emtes']))
    dsout = mrb_forward(p['ds'], esout)
    dmout = mrb_forward(p['dm'],
                        upsample_to(conv2d(dsout, p['conv_dstdm']), emout) + emout)
    dlout = mrb_forward(p['dl'],
                        upsample_to(conv2d(dmout, p['conv_dmtdl']), elout) + elout)
    return dlout


def make_fhlfgm(pg, channel):
    d = {k: make_mrb(pg, channel, 6)
         for k in ('hr1', 'hr2', 'hr3', 'lr1', 'lr2', 'lr3', 'ir1', 'ir2', 'ir3')}
    d['convI_out'] = pg.conv(channel, 1, 3)
    d['convH_out'] = pg.conv(channel, 1, 3)
    d['convL_out'] = pg.conv(channel, 1, 3)
    return d


def fhlfgm_forward(p, x_ihl):
    x_hr1 = mrb_forward(p['hr1'], x_ihl)
    x_hr2 = mrb_forward(p['hr2'], x_hr1)
    x_hr3 = mrb_forward(p['hr3'], x_hr2)
    x_lr1 = mrb_forward(p['lr1'], x_ihl)
    x_lr2 = mrb_forward(p['lr2'], x_lr1)
    x_lr3 = mrb_forward(p['lr3'], x_lr2)
    x_ir1 = mrb_forward(p['ir1'], x_ihl + x_hr1 + x_lr1)
    x_ir2 = mrb_forward(p['ir2'], x_ir1 + x_hr2 + x_lr2)
    x_ir3 = mrb_forward(p['ir3'], x_ir2 + x_hr3 + x_lr3)
    x_hout = conv2d(x_hr3, p['convH_out'], padding=1)
    x_lout = conv2d(x_lr3, p['convL_out'], padding=1)
    x_iout = conv2d(x_ir3, p['convI_out'], padding=1)
    return x_hout, x_lout, x_iout, x_hr3, x_lr3, x_ir3


def make_bhlfgm(pg, channel):
    d = {k: make_mrb(pg, channel, 3)
         for k in ('hr1', 'hr2', 'hr3', 'lr1', 'lr2', 'lr3', 'ir1', 'ir2', 'ir3')}
    d['convI_in'] = pg.conv(1, channel, 3)
    d['convH_in'] = pg.conv(1, channel, 3)
    d['convL_in'] = pg.conv(1, channel, 3)
    d['convF_out'] = pg.conv(channel, 3, 3)        # defined but unused in forward
    return d


def bhlfgm_forward(p, xed, x_fhout, x_flout, x_fiout, x_fhr2, x_flr2, x_fir2):
    x_bhr1 = mrb_forward(p['hr1'], conv2d(x_fhout, p['convH_in'], padding=1) + x_fhr2)
    x_bhr2 = mrb_forward(p['hr2'], x_bhr1)
    x_bhr3 = mrb_forward(p['hr2'], x_bhr2)         # hr2 reused (matches PyTorch code)
    x_blr1 = mrb_forward(p['lr1'], conv2d(x_flout, p['convL_in'], padding=1) + x_flr2)
    x_blr2 = mrb_forward(p['lr2'], x_blr1)
    x_blr3 = mrb_forward(p['lr2'], x_blr2)         # lr2 reused
    x_bir1 = mrb_forward(p['ir1'],
                         conv2d(x_fiout, p['convI_in'], padding=1)
                         + xed + x_fir2 + x_bhr1 + x_blr1)
    x_bir2 = mrb_forward(p['ir2'], x_bir1 + x_bhr2 + x_blr2)
    x_bir3 = mrb_forward(p['ir2'], x_bir2 + x_bhr3 + x_blr3)   # ir2 reused
    return x_bhr3, x_blr3, x_bir3


def make_mns(pg, inchannel, channel):
    return dict(
        conv_in=pg.conv(3, channel, 1),            # defined but unused in forward
        bb_1=make_convl(pg, channel, channel),
        bb_2=make_convl(pg, channel, channel),
        bb_3=make_convl(pg, channel, channel),
        conv_out=pg.conv(channel, 3, 3),
        fhlfgm=make_fhlfgm(pg, channel),
        bhlfgm=make_bhlfgm(pg, channel),
        ed=make_ed(pg, 9, channel),
    )


def mns_forward(p, x_i, x_h, x_l):
    x_ed = ed_forward(p['ed'], x_i, x_h, x_l)
    x_hout, x_lout, x_iout, x_hr2, x_lr2, x_ir2 = fhlfgm_forward(p['fhlfgm'], x_ed)
    x_bhr2, x_blr2, x_bir2 = bhlfgm_forward(
        p['bhlfgm'], x_ed, x_hout, x_lout, x_iout, x_hr2, x_lr2, x_ir2)
    y = convl_forward(p['bb_1'], x_bhr2 + x_blr2)
    y = convl_forward(p['bb_2'], y + x_bir2)
    y = convl_forward(p['bb_3'], y)
    x_out = conv2d(y, p['conv_out'], padding=1)
    return x_hout, x_lout, x_iout, x_out


def make_mvksr_params(key):
    pg = ParamGen(key)
    return dict(mns=make_mns(pg, 3, 16))


def mvksr_forward(params, x, x_h, x_l):
    """Inputs/outputs NCHW (PyTorch layout); internals stay NCHW (lane = hw)."""
    FIout, Hout, Lout, Iout = mns_forward(params['mns'], x, x_h, x_l)
    f32 = lambda t: t.astype(jnp.float32)
    return f32(FIout), f32(Hout), f32(Lout), f32(Iout)


# ----------------------------------------------------------------------------
if __name__ == "__main__":
    key = jax.random.PRNGKey(0)
    k_p, k_x, k_h, k_l = jax.random.split(key, 4)

    params = make_mvksr_params(k_p)

    B, Cin, H, W = 2, 3, 16, 16
    x = jax.random.normal(k_x, (B, Cin, H, W), jnp.float32)
    x_h = jax.random.normal(k_h, (B, Cin, H, W), jnp.float32)
    x_l = jax.random.normal(k_l, (B, Cin, H, W), jnp.float32)

    # Params (including Python-int dilation rates) are closed over, so nothing
    # static ever becomes a tracer.
    fwd = jax.jit(lambda a, b, c: mvksr_forward(params, a, b, c))
    FIout, Hout, Lout, Iout = fwd(x, x_h, x_l)
    jax.block_until_ready((FIout, Hout, Lout, Iout))

    assert FIout.shape == (B, 1, H, W)
    assert Hout.shape == (B, 1, H, W)
    assert Lout.shape == (B, 1, H, W)
    assert Iout.shape == (B, 3, H, W)
    assert all(bool(jnp.all(jnp.isfinite(t))) for t in (FIout, Hout, Lout, Iout))
    print("KERNEL_OK")
</pallas_src>

<mosaic_0001>
module attributes {stable_mosaic.version = 11 : i64} {
  func.func @_matmul_kernel(%arg0: i32, %arg1: memref<16x81xbf16, #tpu.memory_space<vmem>>, %arg2: memref<1x81x256xbf16, #tpu.memory_space<vmem>>, %arg3: memref<1x16x256xbf16, #tpu.memory_space<vmem>>) attributes {dimension_semantics = [#tpu.dimension_semantics<parallel>], iteration_bounds = array<i64: 2>, scalar_prefetch = 0 : i64, scratch_operands = 0 : i64, tpu.core_type = #tpu.core_type<tc>, window_params = [{pipeline_mode = #tpu.pipeline_mode<synchronous>, transform_indices = @transform_0, window_bounds = array<i64: 16, 81>}, {transform_indices = @transform_1, window_bounds = array<i64: 1, 81, 256>}, {transform_indices = @transform_2, window_bounds = array<i64: 1, 16, 256>}]} {
    %c0 = arith.constant 0 : index
    %c0_0 = arith.constant 0 : index
    %0 = vector.load %arg1[%c0, %c0_0] : memref<16x81xbf16, #tpu.memory_space<vmem>>, vector<16x81xbf16>
    %c0_1 = arith.constant 0 : index
    %c0_2 = arith.constant 0 : index
    %c0_3 = arith.constant 0 : index
    %1 = vector.load %arg2[%c0_1, %c0_2, %c0_3] : memref<1x81x256xbf16, #tpu.memory_space<vmem>>, vector<1x81x256xbf16>
    %2 = vector.shape_cast %1 : vector<1x81x256xbf16> to vector<81x256xbf16>
    %cst = arith.constant dense<0.000000e+00> : vector<16x256xf32>
    %3 = tpu.matmul %0, %2, %cst {dimension_numbers = #tpu.dot_dimension_numbers<[1], [0], [0], [1], [0, 0, 1, 1], [], []>} : vector<16x81xbf16>, vector<81x256xbf16>, vector<16x256xf32> -> vector<16x256xf32>
    %4 = arith.truncf %3 : vector<16x256xf32> to vector<16x256xbf16>
    %c0_4 = arith.constant 0 : index
    %c0_5 = arith.constant 0 : index
    %c0_6 = arith.constant 0 : index
    %5 = vector.load %arg3[%c0_4, %c0_5, %c0_6] : memref<1x16x256xbf16, #tpu.memory_space<vmem>>, vector<1x16x256xbf16>
    %6 = vector.shape_cast %5 : vector<1x16x256xbf16> to vector<16x256xbf16>
    %7 = vector.shape_cast %4 : vector<16x256xbf16> to vector<1x16x256xbf16>
    tpu.vector_store %arg3[%c0_4, %c0_5, %c0_6], %7 {strides = array<i32>} : memref<1x16x256xbf16, #tpu.memory_space<vmem>>, vector<1x16x256xbf16>,
    return
  }
  func.func @transform_0(%arg0: i32) -> (i32, i32) {
    %c0_i32 = arith.constant 0 : i32
    %c0_i32_0 = arith.constant 0 : i32
    %c0_i32_1 = arith.constant 0 : i32
    return %c0_i32, %c0_i32_0 : i32, i32
  }
  func.func @transform_1(%arg0: i32) -> (i32, i32, i32) {
    %c0_i32 = arith.constant 0 : i32
    %c0_i32_0 = arith.constant 0 : i32
    %c0_i32_1 = arith.constant 0 : i32
    return %arg0, %c0_i32, %c0_i32_0 : i32, i32, i32
  }
  func.func @transform_2(%arg0: i32) -> (i32, i32, i32) {
    %c0_i32 = arith.constant 0 : i32
    %c0_i32_0 = arith.constant 0 : i32
    %c0_i32_1 = arith.constant 0 : i32
    return %arg0, %c0_i32, %c0_i32_0 : i32, i32, i32
  }
}

module attributes {stable_mosaic.version = 11 : i64} {
  func.func @_conv_gn_prelu_kernel(%arg0: i32, %arg1: memref<16x288xbf16, #tpu.memory_space<vmem>>, %arg2: memref<1x288x256xbf16, #tpu.memory_space<vmem>>, %arg3: memref<16x1xf32, #tpu.memory_space<vmem>>, %arg4: memref<1x16x256xbf16, #tpu.memory_space<vmem>>) attributes {dimension_semantics = [#tpu.dimension_semantics<parallel>], iteration_bounds = array<i64: 2>, scalar_prefetch = 0 : i64, scratch_operands = 0 : i64, tpu.core_type = #tpu.core_type<tc>, window_params = [{pipeline_mode = #tpu.pipeline_mode<synchronous>, transform_indices = @transform_0, window_bounds = array<i64: 16, 288>}, {transform_indices = @transform_1, window_bounds = array<i64: 1, 288, 256>}, {pipeline_mode = #tpu.pipeline_mode<synchronous>, transform_indices = @transform_2, window_bounds = array<i64: 16, 1>}, {transform_indices = @transform_3, window_bounds = array<i64: 1, 16, 256>}]} {
    %c0 = arith.constant 0 : index
    %c0_0 = arith.constant 0 : index
    %0 = vector.load %arg1[%c0, %c0_0] : memref<16x288xbf16, #tpu.memory_space<vmem>>, vector<16x288xbf16>
    %c0_1 = arith.constant 0 : index
    %c0_2 = arith.constant 0 : index
    %c0_3 = arith.constant 0 : index
    %1 = vector.load %arg2[%c0_1, %c0_2, %c0_3] : memref<1x288x256xbf16, #tpu.memory_space<vmem>>, vector<1x288x256xbf16>
    %2 = vector.shape_cast %1 : vector<1x288x256xbf16> to vector<288x256xbf16>
    %cst = arith.constant dense<0.000000e+00> : vector<16x256xf32>
    %3 = tpu.matmul %0, %2, %cst {dimension_numbers = #tpu.dot_dimension_numbers<[1], [0], [0], [1], [0, 0, 1, 1], [], []>} : vector<16x288xbf16>, vector<288x256xbf16>, vector<16x256xf32> -> vector<16x256xf32>
    %4 = vector.shape_cast %3 : vector<16x256xf32> to vector<1x16x256xf32>
    %cst_4 = arith.constant dense<0.000000e+00> : vector<1xf32>
    %5 = vector.multi_reduction <add>, %4, %cst_4 [1, 2] : vector<1x16x256xf32> to vector<1xf32>
    %6 = vector.shape_cast %5 : vector<1xf32> to vector<1x1x1xf32>
    %7 = vector.extract %6[0, 0, 0] : f32 from vector<1x1x1xf32>
    %cst_5 = arith.constant 4.096000e+03 : f32
    %8 = arith.divf %7, %cst_5 : f32
    %9 = vector.broadcast %8 : f32 to vector<16x256xf32>
    %10 = arith.subf %3, %9 : vector<16x256xf32>
    %11 = arith.mulf %10, %10 : vector<16x256xf32>
    %12 = vector.shape_cast %11 : vector<16x256xf32> to vector<1x16x256xf32>
    %cst_6 = arith.constant dense<0.000000e+00> : vector<1xf32>
    %13 = vector.multi_reduction <add>, %12, %cst_6 [1, 2] : vector<1x16x256xf32> to vector<1xf32>
    %14 = vector.shape_cast %13 : vector<1xf32> to vector<1x1x1xf32>
    %15 = vector.extract %14[0, 0, 0] : f32 from vector<1x1x1xf32>
    %cst_7 = arith.constant 4.096000e+03 : f32
    %16 = arith.divf %15, %cst_7 : f32
    %cst_8 = arith.constant 9.99999974E-6 : f32
    %17 = arith.addf %16, %cst_8 : f32
    %18 = math.rsqrt %17 : f32
    %19 = vector.broadcast %18 : f32 to vector<16x256xf32>
    %20 = arith.mulf %10, %19 : vector<16x256xf32>
    %c0_9 = arith.constant 0 : index
    %c0_10 = arith.constant 0 : index
    %21 = vector.load %arg3[%c0_9, %c0_10] : memref<16x1xf32, #tpu.memory_space<vmem>>, vector<16x1xf32>
    %cst_11 = arith.constant 0.000000e+00 : f32
    %22 = vector.broadcast %cst_11 : f32 to vector<16x256xf32>
    %23 = arith.cmpf ogt, %20, %22 : vector<16x256xf32>
    %24 = vector.broadcast %21 : vector<16x1xf32> to vector<16x256xf32>
    %25 = arith.mulf %24, %20 : vector<16x256xf32>
    %26 = arith.select %23, %20, %25 : vector<16x256xi1>, vector<16x256xf32>
    %27 = arith.truncf %26 : vector<16x256xf32> to vector<16x256xbf16>
    %c0_12 = arith.constant 0 : index
    %c0_13 = arith.constant 0 : index
    %c0_14 = arith.constant 0 : index
    %28 = vector.load %arg4[%c0_12, %c0_13, %c0_14] : memref<1x16x256xbf16, #tpu.memory_space<vmem>>, vector<1x16x256xbf16>
    %29 = vector.shape_cast %28 : vector<1x16x256xbf16> to vector<16x256xbf16>
    %30 = vector.shape_cast %27 : vector<16x256xbf16> to vector<1x16x256xbf16>
    tpu.vector_store %arg4[%c0_12, %c0_13, %c0_14], %30 {strides = array<i32>} : memref<1x16x256xbf16, #tpu.memory_space<vmem>>, vector<1x16x256xbf16>,
    return
  }
  func.func @transform_0(%arg0: i32) -> (i32, i32) {
    %c0_i32 = arith.constant 0 : i32
    %c0_i32_0 = arith.constant 0 : i32
    %c0_i32_1 = arith.constant 0 : i32
    return %c0_i32, %c0_i32_0 : i32, i32
  }
  func.func @transform_1(%arg0: i32) -> (i32, i32, i32) {
    %c0_i32 = arith.constant 0 : i32
    %c0_i32_0 = arith.constant 0 : i32
    %c0_i32_1 = arith.constant 0 : i32
    return %arg0, %c0_i32, %c0_i32_0 : i32, i32, i32
  }
  func.func @transform_2(%arg0: i32) -> (i32, i32) {
    %c0_i32 = arith.constant 0 : i32
    %c0_i32_0 = arith.constant 0 : i32
    %c0_i32_1 = arith.constant 0 : i32
    return %c0_i32, %c0_i32_0 : i32, i32
  }
  func.func @transform_3(%arg0: i32) -> (i32, i32, i32) {
    %c0_i32 = arith.constant 0 : i32
    %c0_i32_0 = arith.constant 0 : i32
    %c0_i32_1 = arith.constant 0 : i32
    return %arg0, %c0_i32, %c0_i32_0 : i32, i32, i32
  }
}

module attributes {stable_mosaic.version = 11 : i64} {
  func.func @_conv_gn_res_prelu_kernel(%arg0: i32, %arg1: memref<16x144xbf16, #tpu.memory_space<vmem>>, %arg2: memref<1x144x256xbf16, #tpu.memory_space<vmem>>, %arg3: memref<1x16x256xbf16, #tpu.memory_space<vmem>>, %arg4: memref<16x1xf32, #tpu.memory_space<vmem>>, %arg5: memref<1x16x256xbf16, #tpu.memory_space<vmem>>) attributes {dimension_semantics = [#tpu.dimension_semantics<parallel>], iteration_bounds = array<i64: 2>, scalar_prefetch = 0 : i64, scratch_operands = 0 : i64, tpu.core_type = #tpu.core_type<tc>, window_params = [{pipeline_mode = #tpu.pipeline_mode<synchronous>, transform_indices = @transform_0, window_bounds = array<i64: 16, 144>}, {transform_indices = @transform_1, window_bounds = array<i64: 1, 144, 256>}, {transform_indices = @transform_2, window_bounds = array<i64: 1, 16, 256>}, {pipeline_mode = #tpu.pipeline_mode<synchronous>, transform_indices = @transform_3, window_bounds = array<i64: 16, 1>}, {transform_indices = @transform_4, window_bounds = array<i64: 1, 16, 256>}]} {
    %c0 = arith.constant 0 : index
    %c0_0 = arith.constant 0 : index
    %0 = vector.load %arg1[%c0, %c0_0] : memref<16x144xbf16, #tpu.memory_space<vmem>>, vector<16x144xbf16>
    %c0_1 = arith.constant 0 : index
    %c0_2 = arith.constant 0 : index
    %c0_3 = arith.constant 0 : index
    %1 = vector.load %arg2[%c0_1, %c0_2, %c0_3] : memref<1x144x256xbf16, #tpu.memory_space<vmem>>, vector<1x144x256xbf16>
    %2 = vector.shape_cast %1 : vector<1x144x256xbf16> to vector<144x256xbf16>
    %cst = arith.constant dense<0.000000e+00> : vector<16x256xf32>
    %3 = tpu.matmul %0, %2, %cst {dimension_numbers = #tpu.dot_dimension_numbers<[1], [0], [0], [1], [0, 0, 1, 1], [], []>} : vector<16x144xbf16>, vector<144x256xbf16>, vector<16x256xf32> -> vector<16x256xf32>
    %4 = vector.shape_cast %3 : vector<16x256xf32> to vector<1x16x256xf32>
    %cst_4 = arith.constant dense<0.000000e+00> : vector<1xf32>
    %5 = vector.multi_reduction <add>, %4, %cst_4 [1, 2] : vector<1x16x256xf32> to vector<1xf32>
    %6 = vector.shape_cast %5 : vector<1xf32> to vector<1x1x1xf32>
    %7 = vector.extract %6[0, 0, 0] : f32 from vector<1x1x1xf32>
    %cst_5 = arith.constant 4.096000e+03 : f32
    %8 = arith.divf %7, %cst_5 : f32
    %9 = vector.broadcast %8 : f32 to vector<16x256xf32>
    %10 = arith.subf %3, %9 : vector<16x256xf32>
    %11 = arith.mulf %10, %10 : vector<16x256xf32>
    %12 = vector.shape_cast %11 : vector<16x256xf32> to vector<1x16x256xf32>
    %cst_6 = arith.constant dense<0.000000e+00> : vector<1xf32>
    %13 = vector.multi_reduction <add>, %12, %cst_6 [1, 2] : vector<1x16x256xf32> to vector<1xf32>
    %14 = vector.shape_cast %13 : vector<1xf32> to vector<1x1x1xf32>
    %15 = vector.extract %14[0, 0, 0] : f32 from vector<1x1x1xf32>
    %cst_7 = arith.constant 4.096000e+03 : f32
    %16 = arith.divf %15, %cst_7 : f32
    %cst_8 = arith.constant 9.99999974E-6 : f32
    %17 = arith.addf %16, %cst_8 : f32
    %18 = math.rsqrt %17 : f32
    %19 = vector.broadcast %18 : f32 to vector<16x256xf32>
    %20 = arith.mulf %10, %19 : vector<16x256xf32>
    %c0_9 = arith.constant 0 : index
    %c0_10 = arith.constant 0 : index
    %c0_11 = arith.constant 0 : index
    %21 = vector.load %arg3[%c0_9, %c0_10, %c0_11] : memref<1x16x256xbf16, #tpu.memory_space<vmem>>, vector<1x16x256xbf16>
    %22 = vector.shape_cast %21 : vector<1x16x256xbf16> to vector<16x256xbf16>
    %23 = arith.extf %22 : vector<16x256xbf16> to vector<16x256xf32>
    %24 = arith.addf %20, %23 : vector<16x256xf32>
    %c0_12 = arith.constant 0 : index
    %c0_13 = arith.constant 0 : index
    %25 = vector.load %arg4[%c0_12, %c0_13] : memref<16x1xf32, #tpu.memory_space<vmem>>, vector<16x1xf32>
    %cst_14 = arith.constant 0.000000e+00 : f32
    %26 = vector.broadcast %cst_14 : f32 to vector<16x256xf32>
    %27 = arith.cmpf ogt, %24, %26 : vector<16x256xf32>
    %28 = vector.broadcast %25 : vector<16x1xf32> to vector<16x256xf32>
    %29 = arith.mulf %28, %24 : vector<16x256xf32>
    %30 = arith.select %27, %24, %29 : vector<16x256xi1>, vector<16x256xf32>
    %31 = arith.truncf %30 : vector<16x256xf32> to vector<16x256xbf16>
    %c0_15 = arith.constant 0 : index
    %c0_16 = arith.constant 0 : index
    %c0_17 = arith.constant 0 : index
    %32 = vector.load %arg5[%c0_15, %c0_16, %c0_17] : memref<1x16x256xbf16, #tpu.memory_space<vmem>>, vector<1x16x256xbf16>
    %33 = vector.shape_cast %32 : vector<1x16x256xbf16> to vector<16x256xbf16>
    %34 = vector.shape_cast %31 : vector<16x256xbf16> to vector<1x16x256xbf16>
    tpu.vector_store %arg5[%c0_15, %c0_16, %c0_17], %34 {strides = array<i32>} : memref<1x16x256xbf16, #tpu.memory_space<vmem>>, vector<1x16x256xbf16>,
    return
  }
  func.func @transform_0(%arg0: i32) -> (i32, i32) {
    %c0_i32 = arith.constant 0 : i32
    %c0_i32_0 = arith.constant 0 : i32
    %c0_i32_1 = arith.constant 0 : i32
    return %c0_i32, %c0_i32_0 : i32, i32
  }
  func.func @transform_1(%arg0: i32) -> (i32, i32, i32) {
    %c0_i32 = arith.constant 0 : i32
    %c0_i32_0 = arith.constant 0 : i32
    %c0_i32_1 = arith.constant 0 : i32
    return %arg0, %c0_i32, %c0_i32_0 : i32, i32, i32
  }
  func.func @transform_2(%arg0: i32) -> (i32, i32, i32) {
    %c0_i32 = arith.constant 0 : i32
    %c0_i32_0 = arith.constant 0 : i32
    %c0_i32_1 = arith.constant 0 : i32
    return %arg0, %c0_i32, %c0_i32_0 : i32, i32, i32
  }
  func.func @transform_3(%arg0: i32) -> (i32, i32) {
    %c0_i32 = arith.constant 0 : i32
    %c0_i32_0 = arith.constant 0 : i32
    %c0_i32_1 = arith.constant 0 : i32
    return %c0_i32, %c0_i32_0 : i32, i32
  }
  func.func @transform_4(%arg0: i32) -> (i32, i32, i32) {
    %c0_i32 = arith.constant 0 : i32
    %c0_i32_0 = arith.constant 0 : i32
    %c0_i32_1 = arith.constant 0 : i32
    return %arg0, %c0_i32, %c0_i32_0 : i32, i32, i32
  }
}

module attributes {stable_mosaic.version = 11 : i64} {
  func.func @_matmul_kernel(%arg0: i32, %arg1: memref<32x16xbf16, #tpu.memory_space<vmem>>, %arg2: memref<1x16x64xbf16, #tpu.memory_space<vmem>>, %arg3: memref<1x32x64xbf16, #tpu.memory_space<vmem>>) attributes {dimension_semantics = [#tpu.dimension_semantics<parallel>], iteration_bounds = array<i64: 2>, scalar_prefetch = 0 : i64, scratch_operands = 0 : i64, tpu.core_type = #tpu.core_type<tc>, window_params = [{pipeline_mode = #tpu.pipeline_mode<synchronous>, transform_indices = @transform_0, window_bounds = array<i64: 32, 16>}, {transform_indices = @transform_1, window_bounds = array<i64: 1, 16, 64>}, {transform_indices = @transform_2, window_bounds = array<i64: 1, 32, 64>}]} {
    %c0 = arith.constant 0 : index
    %c0_0 = arith.constant 0 : index
    %0 = vector.load %arg1[%c0, %c0_0] : memref<32x16xbf16, #tpu.memory_space<vmem>>, vector<32x16xbf16>
    %c0_1 = arith.constant 0 : index
    %c0_2 = arith.constant 0 : index
    %c0_3 = arith.constant 0 : index
    %1 = vector.load %arg2[%c0_1, %c0_2, %c0_3] : memref<1x16x64xbf16, #tpu.memory_space<vmem>>, vector<1x16x64xbf16>
    %2 = vector.shape_cast %1 : vector<1x16x64xbf16> to vector<16x64xbf16>
    %cst = arith.constant dense<0.000000e+00> : vector<32x64xf32>
    %3 = tpu.matmul %0, %2, %cst {dimension_numbers = #tpu.dot_dimension_numbers<[1], [0], [0], [1], [0, 0, 1, 1], [], []>} : vector<32x16xbf16>, vector<16x64xbf16>, vector<32x64xf32> -> vector<32x64xf32>
    %4 = arith.truncf %3 : vector<32x64xf32> to vector<32x64xbf16>
    %c0_4 = arith.constant 0 : index
    %c0_5 = arith.constant 0 : index
    %c0_6 = arith.constant 0 : index
    %5 = vector.load %arg3[%c0_4, %c0_5, %c0_6] : memref<1x32x64xbf16, #tpu.memory_space<vmem>>, vector<1x32x64xbf16>
    %6 = vector.shape_cast %5 : vector<1x32x64xbf16> to vector<32x64xbf16>
    %7 = vector.shape_cast %4 : vector<32x64xbf16> to vector<1x32x64xbf16>
    tpu.vector_store %arg3[%c0_4, %c0_5, %c0_6], %7 {strides = array<i32>} : memref<1x32x64xbf16, #tpu.memory_space<vmem>>, vector<1x32x64xbf16>,
    return
  }
  func.func @transform_0(%arg0: i32) -> (i32, i32) {
    %c0_i32 = arith.constant 0 : i32
    %c0_i32_0 = arith.constant 0 : i32
    %c0_i32_1 = arith.constant 0 : i32
    return %c0_i32, %c0_i32_0 : i32, i32
  }
  func.func @transform_1(%arg0: i32) -> (i32, i32, i32) {
    %c0_i32 = arith.constant 0 : i32
    %c0_i32_0 = arith.constant 0 : i32
    %c0_i32_1 = arith.constant 0 : i32
    return %arg0, %c0_i32, %c0_i32_0 : i32, i32, i32
  }
  func.func @transform_2(%arg0: i32) -> (i32, i32, i32) {
    %c0_i32 = arith.constant 0 : i32
    %c0_i32_0 = arith.constant 0 : i32
    %c0_i32_1 = arith.constant 0 : i32
    return %arg0, %c0_i32, %c0_i32_0 : i32, i32, i32
  }
}

module attributes {stable_mosaic.version = 11 : i64} {
  func.func @_conv_gn_prelu_kernel(%arg0: i32, %arg1: memref<32x576xbf16, #tpu.memory_space<vmem>>, %arg2: memref<1x576x64xbf16, #tpu.memory_space<vmem>>, %arg3: memref<32x1xf32, #tpu.memory_space<vmem>>, %arg4: memref<1x32x64xbf16, #tpu.memory_space<vmem>>) attributes {dimension_semantics = [#tpu.dimension_semantics<parallel>], iteration_bounds = array<i64: 2>, scalar_prefetch = 0 : i64, scratch_operands = 0 : i64, tpu.core_type = #tpu.core_type<tc>, window_params = [{pipeline_mode = #tpu.pipeline_mode<synchronous>, transform_indices = @transform_0, window_bounds = array<i64: 32, 576>}, {transform_indices = @transform_1, window_bounds = array<i64: 1, 576, 64>}, {pipeline_mode = #tpu.pipeline_mode<synchronous>, transform_indices = @transform_2, window_bounds = array<i64: 32, 1>}, {transform_indices = @transform_3, window_bounds = array<i64: 1, 32, 64>}]} {
    %c0 = arith.constant 0 : index
    %c0_0 = arith.constant 0 : index
    %0 = vector.load %arg1[%c0, %c0_0] : memref<32x576xbf16, #tpu.memory_space<vmem>>, vector<32x576xbf16>
    %c0_1 = arith.constant 0 : index
    %c0_2 = arith.constant 0 : index
    %c0_3 = arith.constant 0 : index
    %1 = vector.load %arg2[%c0_1, %c0_2, %c0_3] : memref<1x576x64xbf16, #tpu.memory_space<vmem>>, vector<1x576x64xbf16>
    %2 = vector.shape_cast %1 : vector<1x576x64xbf16> to vector<576x64xbf16>
    %cst = arith.constant dense<0.000000e+00> : vector<32x64xf32>
    %3 = tpu.matmul %0, %2, %cst {dimension_numbers = #tpu.dot_dimension_numbers<[1], [0], [0], [1], [0, 0, 1, 1], [], []>} : vector<32x576xbf16>, vector<576x64xbf16>, vector<32x64xf32> -> vector<32x64xf32>
    %4 = vector.shape_cast %3 : vector<32x64xf32> to vector<1x32x64xf32>
    %cst_4 = arith.constant dense<0.000000e+00> : vector<1xf32>
    %5 = vector.multi_reduction <add>, %4, %cst_4 [1, 2] : vector<1x32x64xf32> to vector<1xf32>
    %6 = vector.shape_cast %5 : vector<1xf32> to vector<1x1x1xf32>
    %7 = vector.extract %6[0, 0, 0] : f32 from vector<1x1x1xf32>
    %cst_5 = arith.constant 2.048000e+03 : f32
    %8 = arith.divf %7, %cst_5 : f32
    %9 = vector.broadcast %8 : f32 to vector<32x64xf32>
    %10 = arith.subf %3, %9 : vector<32x64xf32>
    %11 = arith.mulf %10, %10 : vector<32x64xf32>
    %12 = vector.shape_cast %11 : vector<32x64xf32> to vector<1x32x64xf32>
    %cst_6 = arith.constant dense<0.000000e+00> : vector<1xf32>
    %13 = vector.multi_reduction <add>, %12, %cst_6 [1, 2] : vector<1x32x64xf32> to vector<1xf32>
    %14 = vector.shape_cast %13 : vector<1xf32> to vector<1x1x1xf32>
    %15 = vector.extract %14[0, 0, 0] : f32 from vector<1x1x1xf32>
    %cst_7 = arith.constant 2.048000e+03 : f32
    %16 = arith.divf %15, %cst_7 : f32
    %cst_8 = arith.constant 9.99999974E-6 : f32
    %17 = arith.addf %16, %cst_8 : f32
    %18 = math.rsqrt %17 : f32
    %19 = vector.broadcast %18 : f32 to vector<32x64xf32>
    %20 = arith.mulf %10, %19 : vector<32x64xf32>
    %c0_9 = arith.constant 0 : index
    %c0_10 = arith.constant 0 : index
    %21 = vector.load %arg3[%c0_9, %c0_10] : memref<32x1xf32, #tpu.memory_space<vmem>>, vector<32x1xf32>
    %cst_11 = arith.constant 0.000000e+00 : f32
    %22 = vector.broadcast %cst_11 : f32 to vector<32x64xf32>
    %23 = arith.cmpf ogt, %20, %22 : vector<32x64xf32>
    %24 = vector.broadcast %21 : vector<32x1xf32> to vector<32x64xf32>
    %25 = arith.mulf %24, %20 : vector<32x64xf32>
    %26 = arith.select %23, %20, %25 : vector<32x64xi1>, vector<32x64xf32>
    %27 = arith.truncf %26 : vector<32x64xf32> to vector<32x64xbf16>
    %c0_12 = arith.constant 0 : index
    %c0_13 = arith.constant 0 : index
    %c0_14 = arith.constant 0 : index
    %28 = vector.load %arg4[%c0_12, %c0_13, %c0_14] : memref<1x32x64xbf16, #tpu.memory_space<vmem>>, vector<1x32x64xbf16>
    %29 = vector.shape_cast %28 : vector<1x32x64xbf16> to vector<32x64xbf16>
    %30 = vector.shape_cast %27 : vector<32x64xbf16> to vector<1x32x64xbf16>
    tpu.vector_store %arg4[%c0_12, %c0_13, %c0_14], %30 {strides = array<i32>} : memref<1x32x64xbf16, #tpu.memory_space<vmem>>, vector<1x32x64xbf16>,
    return
  }
  func.func @transform_0(%arg0: i32) -> (i32, i32) {
    %c0_i32 = arith.constant 0 : i32
    %c0_i32_0 = arith.constant 0 : i32
    %c0_i32_1 = arith.constant 0 : i32
    return %c0_i32, %c0_i32_0 : i32, i32
  }
  func.func @transform_1(%arg0: i32) -> (i32, i32, i32) {
    %c0_i32 = arith.constant 0 : i32
    %c0_i32_0 = arith.constant 0 : i32
    %c0_i32_1 = arith.constant 0 : i32
    return %arg0, %c0_i32, %c0_i32_0 : i32, i32, i32
  }
  func.func @transform_2(%arg0: i32) -> (i32, i32) {
    %c0_i32 = arith.constant 0 : i32
    %c0_i32_0 = arith.constant 0 : i32
    %c0_i32_1 = arith.constant 0 : i32
    return %c0_i32, %c0_i32_0 : i32, i32
  }
  func.func @transform_3(%arg0: i32) -> (i32, i32, i32) {
    %c0_i32 = arith.constant 0 : i32
    %c0_i32_0 = arith.constant 0 : i32
    %c0_i32_1 = arith.constant 0 : i32
    return %arg0, %c0_i32, %c0_i32_0 : i32, i32, i32
  }
}

module attributes {stable_mosaic.version = 11 : i64} {
  func.func @_conv_gn_res_prelu_kernel(%arg0: i32, %arg1: memref<32x288xbf16, #tpu.memory_space<vmem>>, %arg2: memref<1x288x64xbf16, #tpu.memory_space<vmem>>, %arg3: memref<1x32x64xbf16, #tpu.memory_space<vmem>>, %arg4: memref<32x1xf32, #tpu.memory_space<vmem>>, %arg5: memref<1x32x64xbf16, #tpu.memory_space<vmem>>) attributes {dimension_semantics = [#tpu.dimension_semantics<parallel>], iteration_bounds = array<i64: 2>, scalar_prefetch = 0 : i64, scratch_operands = 0 : i64, tpu.core_type = #tpu.core_type<tc>, window_params = [{pipeline_mode = #tpu.pipeline_mode<synchronous>, transform_indices = @transform_0, window_bounds = array<i64: 32, 288>}, {transform_indices = @transform_1, window_bounds = array<i64: 1, 288, 64>}, {transform_indices = @transform_2, window_bounds = array<i64: 1, 32, 64>}, {pipeline_mode = #tpu.pipeline_mode<synchronous>, transform_indices = @transform_3, window_bounds = array<i64: 32, 1>}, {transform_indices = @transform_4, window_bounds = array<i64: 1, 32, 64>}]} {
    %c0 = arith.constant 0 : index
    %c0_0 = arith.constant 0 : index
    %0 = vector.load %arg1[%c0, %c0_0] : memref<32x288xbf16, #tpu.memory_space<vmem>>, vector<32x288xbf16>
    %c0_1 = arith.constant 0 : index
    %c0_2 = arith.constant 0 : index
    %c0_3 = arith.constant 0 : index
    %1 = vector.load %arg2[%c0_1, %c0_2, %c0_3] : memref<1x288x64xbf16, #tpu.memory_space<vmem>>, vector<1x288x64xbf16>
    %2 = vector.shape_cast %1 : vector<1x288x64xbf16> to vector<288x64xbf16>
    %cst = arith.constant dense<0.000000e+00> : vector<32x64xf32>
    %3 = tpu.matmul %0, %2, %cst {dimension_numbers = #tpu.dot_dimension_numbers<[1], [0], [0], [1], [0, 0, 1, 1], [], []>} : vector<32x288xbf16>, vector<288x64xbf16>, vector<32x64xf32> -> vector<32x64xf32>
    %4 = vector.shape_cast %3 : vector<32x64xf32> to vector<1x32x64xf32>
    %cst_4 = arith.constant dense<0.000000e+00> : vector<1xf32>
    %5 = vector.multi_reduction <add>, %4, %cst_4 [1, 2] : vector<1x32x64xf32> to vector<1xf32>
    %6 = vector.shape_cast %5 : vector<1xf32> to vector<1x1x1xf32>
    %7 = vector.extract %6[0, 0, 0] : f32 from vector<1x1x1xf32>
    %cst_5 = arith.constant 2.048000e+03 : f32
    %8 = arith.divf %7, %cst_5 : f32
    %9 = vector.broadcast %8 : f32 to vector<32x64xf32>
    %10 = arith.subf %3, %9 : vector<32x64xf32>
    %11 = arith.mulf %10, %10 : vector<32x64xf32>
    %12 = vector.shape_cast %11 : vector<32x64xf32> to vector<1x32x64xf32>
    %cst_6 = arith.constant dense<0.000000e+00> : vector<1xf32>
    %13 = vector.multi_reduction <add>, %12, %cst_6 [1, 2] : vector<1x32x64xf32> to vector<1xf32>
    %14 = vector.shape_cast %13 : vector<1xf32> to vector<1x1x1xf32>
    %15 = vector.extract %14[0, 0, 0] : f32 from vector<1x1x1xf32>
    %cst_7 = arith.constant 2.048000e+03 : f32
    %16 = arith.divf %15, %cst_7 : f32
    %cst_8 = arith.constant 9.99999974E-6 : f32
    %17 = arith.addf %16, %cst_8 : f32
    %18 = math.rsqrt %17 : f32
    %19 = vector.broadcast %18 : f32 to vector<32x64xf32>
    %20 = arith.mulf %10, %19 : vector<32x64xf32>
    %c0_9 = arith.constant 0 : index
    %c0_10 = arith.constant 0 : index
    %c0_11 = arith.constant 0 : index
    %21 = vector.load %arg3[%c0_9, %c0_10, %c0_11] : memref<1x32x64xbf16, #tpu.memory_space<vmem>>, vector<1x32x64xbf16>
    %22 = vector.shape_cast %21 : vector<1x32x64xbf16> to vector<32x64xbf16>
    %23 = arith.extf %22 : vector<32x64xbf16> to vector<32x64xf32>
    %24 = arith.addf %20, %23 : vector<32x64xf32>
    %c0_12 = arith.constant 0 : index
    %c0_13 = arith.constant 0 : index
    %25 = vector.load %arg4[%c0_12, %c0_13] : memref<32x1xf32, #tpu.memory_space<vmem>>, vector<32x1xf32>
    %cst_14 = arith.constant 0.000000e+00 : f32
    %26 = vector.broadcast %cst_14 : f32 to vector<32x64xf32>
    %27 = arith.cmpf ogt, %24, %26 : vector<32x64xf32>
    %28 = vector.broadcast %25 : vector<32x1xf32> to vector<32x64xf32>
    %29 = arith.mulf %28, %24 : vector<32x64xf32>
    %30 = arith.select %27, %24, %29 : vector<32x64xi1>, vector<32x64xf32>
    %31 = arith.truncf %30 : vector<32x64xf32> to vector<32x64xbf16>
    %c0_15 = arith.constant 0 : index
    %c0_16 = arith.constant 0 : index
    %c0_17 = arith.constant 0 : index
    %32 = vector.load %arg5[%c0_15, %c0_16, %c0_17] : memref<1x32x64xbf16, #tpu.memory_space<vmem>>, vector<1x32x64xbf16>
    %33 = vector.shape_cast %32 : vector<1x32x64xbf16> to vector<32x64xbf16>
    %34 = vector.shape_cast %31 : vector<32x64xbf16> to vector<1x32x64xbf16>
    tpu.vector_store %arg5[%c0_15, %c0_16, %c0_17], %34 {strides = array<i32>} : memref<1x32x64xbf16, #tpu.memory_space<vmem>>, vector<1x32x64xbf16>,
    return
  }
  func.func @transform_0(%arg0: i32) -> (i32, i32) {
    %c0_i32 = arith.constant 0 : i32
    %c0_i32_0 = arith.constant 0 : i32
    %c0_i32_1 = arith.constant 0 : i32
    return %c0_i32, %c0_i32_0 : i32, i32
  }
  func.func @transform_1(%arg0: i32) -> (i32, i32, i32) {
    %c0_i32 = arith.constant 0 : i32
    %c0_i32_0 = arith.constant 0 : i32
    %c0_i32_1 = arith.constant 0 : i32
    return %arg0, %c0_i32, %c0_i32_0 : i32, i32, i32
  }
  func.func @transform_2(%arg0: i32) -> (i32, i32, i32) {
    %c0_i32 = arith.constant 0 : i32
    %c0_i32_0 = arith.constant 0 : i32
    %c0_i32_1 = arith.constant 0 : i32
    return %arg0, %c0_i32, %c0_i32_0 : i32, i32, i32
  }
  func.func @transform_3(%arg0: i32) -> (i32, i32) {
    %c0_i32 = arith.constant 0 : i32
    %c0_i32_0 = arith.constant 0 : i32
    %c0_i32_1 = arith.constant 0 : i32
    return %c0_i32, %c0_i32_0 : i32, i32
  }
  func.func @transform_4(%arg0: i32) -> (i32, i32, i32) {
    %c0_i32 = arith.constant 0 : i32
    %c0_i32_0 = arith.constant 0 : i32
    %c0_i32_1 = arith.constant 0 : i32
    return %arg0, %c0_i32, %c0_i32_0 : i32, i32, i32
  }
}

module attributes {stable_mosaic.version = 11 : i64} {
  func.func @_matmul_kernel(%arg0: i32, %arg1: memref<64x32xbf16, #tpu.memory_space<vmem>>, %arg2: memref<1x32x16xbf16, #tpu.memory_space<vmem>>, %arg3: memref<1x64x16xbf16, #tpu.memory_space<vmem>>) attributes {dimension_semantics = [#tpu.dimension_semantics<parallel>], iteration_bounds = array<i64: 2>, scalar_prefetch = 0 : i64, scratch_operands = 0 : i64, tpu.core_type = #tpu.core_type<tc>, window_params = [{pipeline_mode = #tpu.pipeline_mode<synchronous>, transform_indices = @transform_0, window_bounds = array<i64: 64, 32>}, {transform_indices = @transform_1, window_bounds = array<i64: 1, 32, 16>}, {transform_indices = @transform_2, window_bounds = array<i64: 1, 64, 16>}]} {
    %c0 = arith.constant 0 : index
    %c0_0 = arith.constant 0 : index
    %0 = vector.load %arg1[%c0, %c0_0] : memref<64x32xbf16, #tpu.memory_space<vmem>>, vector<64x32xbf16>
    %c0_1 = arith.constant 0 : index
    %c0_2 = arith.constant 0 : index
    %c0_3 = arith.constant 0 : index
    %1 = vector.load %arg2[%c0_1, %c0_2, %c0_3] : memref<1x32x16xbf16, #tpu.memory_space<vmem>>, vector<1x32x16xbf16>
    %2 = vector.shape_cast %1 : vector<1x32x16xbf16> to vector<32x16xbf16>
    %cst = arith.constant dense<0.000000e+00> : vector<64x16xf32>
    %3 = tpu.matmul %0, %2, %cst {dimension_numbers = #tpu.dot_dimension_numbers<[1], [0], [0], [1], [0, 0, 1, 1], [], []>} : vector<64x32xbf16>, vector<32x16xbf16>, vector<64x16xf32> -> vector<64x16xf32>
    %4 = arith.truncf %3 : vector<64x16xf32> to vector<64x16xbf16>
    %c0_4 = arith.constant 0 : index
    %c0_5 = arith.constant 0 : index
    %c0_6 = arith.constant 0 : index
    %5 = vector.load %arg3[%c0_4, %c0_5, %c0_6] : memref<1x64x16xbf16, #tpu.memory_space<vmem>>, vector<1x64x16xbf16>
    %6 = vector.shape_cast %5 : vector<1x64x16xbf16> to vector<64x16xbf16>
    %7 = vector.shape_cast %4 : vector<64x16xbf16> to vector<1x64x16xbf16>
    tpu.vector_store %arg3[%c0_4, %c0_5, %c0_6], %7 {strides = array<i32>} : memref<1x64x16xbf16, #tpu.memory_space<vmem>>, vector<1x64x16xbf16>,
    return
  }
  func.func @transform_0(%arg0: i32) -> (i32, i32) {
    %c0_i32 = arith.constant 0 : i32
    %c0_i32_0 = arith.constant 0 : i32
    %c0_i32_1 = arith.constant 0 : i32
    return %c0_i32, %c0_i32_0 : i32, i32
  }
  func.func @transform_1(%arg0: i32) -> (i32, i32, i32) {
    %c0_i32 = arith.constant 0 : i32
    %c0_i32_0 = arith.constant 0 : i32
    %c0_i32_1 = arith.constant 0 : i32
    return %arg0, %c0_i32, %c0_i32_0 : i32, i32, i32
  }
  func.func @transform_2(%arg0: i32) -> (i32, i32, i32) {
    %c0_i32 = arith.constant 0 : i32
    %c0_i32_0 = arith.constant 0 : i32
    %c0_i32_1 = arith.constant 0 : i32
    return %arg0, %c0_i32, %c0_i32_0 : i32, i32, i32
  }
}

module attributes {stable_mosaic.version = 11 : i64} {
  func.func @_conv_gn_prelu_kernel(%arg0: i32, %arg1: memref<64x1152xbf16, #tpu.memory_space<vmem>>, %arg2: memref<1x1152x16xbf16, #tpu.memory_space<vmem>>, %arg3: memref<64x1xf32, #tpu.memory_space<vmem>>, %arg4: memref<1x64x16xbf16, #tpu.memory_space<vmem>>) attributes {dimension_semantics = [#tpu.dimension_semantics<parallel>], iteration_bounds = array<i64: 2>, scalar_prefetch = 0 : i64, scratch_operands = 0 : i64, tpu.core_type = #tpu.core_type<tc>, window_params = [{pipeline_mode = #tpu.pipeline_mode<synchronous>, transform_indices = @transform_0, window_bounds = array<i64: 64, 1152>}, {transform_indices = @transform_1, window_bounds = array<i64: 1, 1152, 16>}, {pipeline_mode = #tpu.pipeline_mode<synchronous>, transform_indices = @transform_2, window_bounds = array<i64: 64, 1>}, {transform_indices = @transform_3, window_bounds = array<i64: 1, 64, 16>}]} {
    %c0 = arith.constant 0 : index
    %c0_0 = arith.constant 0 : index
    %0 = vector.load %arg1[%c0, %c0_0] : memref<64x1152xbf16, #tpu.memory_space<vmem>>, vector<64x1152xbf16>
    %c0_1 = arith.constant 0 : index
    %c0_2 = arith.constant 0 : index
    %c0_3 = arith.constant 0 : index
    %1 = vector.load %arg2[%c0_1, %c0_2, %c0_3] : memref<1x1152x16xbf16, #tpu.memory_space<vmem>>, vector<1x1152x16xbf16>
    %2 = vector.shape_cast %1 : vector<1x1152x16xbf16> to vector<1152x16xbf16>
    %cst = arith.constant dense<0.000000e+00> : vector<64x16xf32>
    %3 = tpu.matmul %0, %2, %cst {dimension_numbers = #tpu.dot_dimension_numbers<[1], [0], [0], [1], [0, 0, 1, 1], [], []>} : vector<64x1152xbf16>, vector<1152x16xbf16>, vector<64x16xf32> -> vector<64x16xf32>
    %4 = vector.shape_cast %3 : vector<64x16xf32> to vector<1x64x16xf32>
    %cst_4 = arith.constant dense<0.000000e+00> : vector<1xf32>
    %5 = vector.multi_reduction <add>, %4, %cst_4 [1, 2] : vector<1x64x16xf32> to vector<1xf32>
    %6 = vector.shape_cast %5 : vector<1xf32> to vector<1x1x1xf32>
    %7 = vector.extract %6[0, 0, 0] : f32 from vector<1x1x1xf32>
    %cst_5 = arith.constant 1.024000e+03 : f32
    %8 = arith.divf %7, %cst_5 : f32
    %9 = vector.broadcast %8 : f32 to vector<64x16xf32>
    %10 = arith.subf %3, %9 : vector<64x16xf32>
    %11 = arith.mulf %10, %10 : vector<64x16xf32>
    %12 = vector.shape_cast %11 : vector<64x16xf32> to vector<1x64x16xf32>
    %cst_6 = arith.constant dense<0.000000e+00> : vector<1xf32>
    %13 = vector.multi_reduction <add>, %12, %cst_6 [1, 2] : vector<1x64x16xf32> to vector<1xf32>
    %14 = vector.shape_cast %13 : vector<1xf32> to vector<1x1x1xf32>
    %15 = vector.extract %14[0, 0, 0] : f32 from vector<1x1x1xf32>
    %cst_7 = arith.constant 1.024000e+03 : f32
    %16 = arith.divf %15, %cst_7 : f32
    %cst_8 = arith.constant 9.99999974E-6 : f32
    %17 = arith.addf %16, %cst_8 : f32
    %18 = math.rsqrt %17 : f32
    %19 = vector.broadcast %18 : f32 to vector<64x16xf32>
    %20 = arith.mulf %10, %19 : vector<64x16xf32>
    %c0_9 = arith.constant 0 : index
    %c0_10 = arith.constant 0 : index
    %21 = vector.load %arg3[%c0_9, %c0_10] : memref<64x1xf32, #tpu.memory_space<vmem>>, vector<64x1xf32>
    %cst_11 = arith.constant 0.000000e+00 : f32
    %22 = vector.broadcast %cst_11 : f32 to vector<64x16xf32>
    %23 = arith.cmpf ogt, %20, %22 : vector<64x16xf32>
    %24 = vector.broadcast %21 : vector<64x1xf32> to vector<64x16xf32>
    %25 = arith.mulf %24, %20 : vector<64x16xf32>
    %26 = arith.select %23, %20, %25 : vector<64x16xi1>, vector<64x16xf32>
    %27 = arith.truncf %26 : vector<64x16xf32> to vector<64x16xbf16>
    %c0_12 = arith.constant 0 : index
    %c0_13 = arith.constant 0 : index
    %c0_14 = arith.constant 0 : index
    %28 = vector.load %arg4[%c0_12, %c0_13, %c0_14] : memref<1x64x16xbf16, #tpu.memory_space<vmem>>, vector<1x64x16xbf16>
    %29 = vector.shape_cast %28 : vector<1x64x16xbf16> to vector<64x16xbf16>
    %30 = vector.shape_cast %27 : vector<64x16xbf16> to vector<1x64x16xbf16>
    tpu.vector_store %arg4[%c0_12, %c0_13, %c0_14], %30 {strides = array<i32>} : memref<1x64x16xbf16, #tpu.memory_space<vmem>>, vector<1x64x16xbf16>,
    return
  }
  func.func @transform_0(%arg0: i32) -> (i32, i32) {
    %c0_i32 = arith.constant 0 : i32
    %c0_i32_0 = arith.constant 0 : i32
    %c0_i32_1 = arith.constant 0 : i32
    return %c0_i32, %c0_i32_0 : i32, i32
  }
  func.func @transform_1(%arg0: i32) -> (i32, i32, i32) {
    %c0_i32 = arith.constant 0 : i32
    %c0_i32_0 = arith.constant 0 : i32
    %c0_i32_1 = arith.constant 0 : i32
    return %arg0, %c0_i32, %c0_i32_0 : i32, i32, i32
  }
  func.func @transform_2(%arg0: i32) -> (i32, i32) {
    %c0_i32 = arith.constant 0 : i32
    %c0_i32_0 = arith.constant 0 : i32
    %c0_i32_1 = arith.constant 0 : i32
    return %c0_i32, %c0_i32_0 : i32, i32
  }
  func.func @transform_3(%arg0: i32) -> (i32, i32, i32) {
    %c0_i32 = arith.constant 0 : i32
    %c0_i32_0 = arith.constant 0 : i32
    %c0_i32_1 = arith.constant 0 : i32
    return %arg0, %c0_i32, %c0_i32_0 : i32, i32, i32
  }
}

module attributes {stable_mosaic.version = 11 : i64} {
  func.func @_conv_gn_res_prelu_kernel(%arg0: i32, %arg1: memref<64x576xbf16, #tpu.memory_space<vmem>>, %arg2: memref<1x576x16xbf16, #tpu.memory_space<vmem>>, %arg3: memref<1x64x16xbf16, #tpu.memory_space<vmem>>, %arg4: memref<64x1xf32, #tpu.memory_space<vmem>>, %arg5: memref<1x64x16xbf16, #tpu.memory_space<vmem>>) attributes {dimension_semantics = [#tpu.dimension_semantics<parallel>], iteration_bounds = array<i64: 2>, scalar_prefetch = 0 : i64, scratch_operands = 0 : i64, tpu.core_type = #tpu.core_type<tc>, window_params = [{pipeline_mode = #tpu.pipeline_mode<synchronous>, transform_indices = @transform_0, window_bounds = array<i64: 64, 576>}, {transform_indices = @transform_1, window_bounds = array<i64: 1, 576, 16>}, {transform_indices = @transform_2, window_bounds = array<i64: 1, 64, 16>}, {pipeline_mode = #tpu.pipeline_mode<synchronous>, transform_indices = @transform_3, window_bounds = array<i64: 64, 1>}, {transform_indices = @transform_4, window_bounds = array<i64: 1, 64, 16>}]} {
    %c0 = arith.constant 0 : index
    %c0_0 = arith.constant 0 : index
    %0 = vector.load %arg1[%c0, %c0_0] : memref<64x576xbf16, #tpu.memory_space<vmem>>, vector<64x576xbf16>
    %c0_1 = arith.constant 0 : index
    %c0_2 = arith.constant 0 : index
    %c0_3 = arith.constant 0 : index
    %1 = vector.load %arg2[%c0_1, %c0_2, %c0_3] : memref<1x576x16xbf16, #tpu.memory_space<vmem>>, vector<1x576x16xbf16>
    %2 = vector.shape_cast %1 : vector<1x576x16xbf16> to vector<576x16xbf16>
    %cst = arith.constant dense<0.000000e+00> : vector<64x16xf32>
    %3 = tpu.matmul %0, %2, %cst {dimension_numbers = #tpu.dot_dimension_numbers<[1], [0], [0], [1], [0, 0, 1, 1], [], []>} : vector<64x576xbf16>, vector<576x16xbf16>, vector<64x16xf32> -> vector<64x16xf32>
    %4 = vector.shape_cast %3 : vector<64x16xf32> to vector<1x64x16xf32>
    %cst_4 = arith.constant dense<0.000000e+00> : vector<1xf32>
    %5 = vector.multi_reduction <add>, %4, %cst_4 [1, 2] : vector<1x64x16xf32> to vector<1xf32>
    %6 = vector.shape_cast %5 : vector<1xf32> to vector<1x1x1xf32>
    %7 = vector.extract %6[0, 0, 0] : f32 from vector<1x1x1xf32>
    %cst_5 = arith.constant 1.024000e+03 : f32
    %8 = arith.divf %7, %cst_5 : f32
    %9 = vector.broadcast %8 : f32 to vector<64x16xf32>
    %10 = arith.subf %3, %9 : vector<64x16xf32>
    %11 = arith.mulf %10, %10 : vector<64x16xf32>
    %12 = vector.shape_cast %11 : vector<64x16xf32> to vector<1x64x16xf32>
    %cst_6 = arith.constant dense<0.000000e+00> : vector<1xf32>
    %13 = vector.multi_reduction <add>, %12, %cst_6 [1, 2] : vector<1x64x16xf32> to vector<1xf32>
    %14 = vector.shape_cast %13 : vector<1xf32> to vector<1x1x1xf32>
    %15 = vector.extract %14[0, 0, 0] : f32 from vector<1x1x1xf32>
    %cst_7 = arith.constant 1.024000e+03 : f32
    %16 = arith.divf %15, %cst_7 : f32
    %cst_8 = arith.constant 9.99999974E-6 : f32
    %17 = arith.addf %16, %cst_8 : f32
    %18 = math.rsqrt %17 : f32
    %19 = vector.broadcast %18 : f32 to vector<64x16xf32>
    %20 = arith.mulf %10, %19 : vector<64x16xf32>
    %c0_9 = arith.constant 0 : index
    %c0_10 = arith.constant 0 : index
    %c0_11 = arith.constant 0 : index
    %21 = vector.load %arg3[%c0_9, %c0_10, %c0_11] : memref<1x64x16xbf16, #tpu.memory_space<vmem>>, vector<1x64x16xbf16>
    %22 = vector.shape_cast %21 : vector<1x64x16xbf16> to vector<64x16xbf16>
    %23 = arith.extf %22 : vector<64x16xbf16> to vector<64x16xf32>
    %24 = arith.addf %20, %23 : vector<64x16xf32>
    %c0_12 = arith.constant 0 : index
    %c0_13 = arith.constant 0 : index
    %25 = vector.load %arg4[%c0_12, %c0_13] : memref<64x1xf32, #tpu.memory_space<vmem>>, vector<64x1xf32>
    %cst_14 = arith.constant 0.000000e+00 : f32
    %26 = vector.broadcast %cst_14 : f32 to vector<64x16xf32>
    %27 = arith.cmpf ogt, %24, %26 : vector<64x16xf32>
    %28 = vector.broadcast %25 : vector<64x1xf32> to vector<64x16xf32>
    %29 = arith.mulf %28, %24 : vector<64x16xf32>
    %30 = arith.select %27, %24, %29 : vector<64x16xi1>, vector<64x16xf32>
    %31 = arith.truncf %30 : vector<64x16xf32> to vector<64x16xbf16>
    %c0_15 = arith.constant 0 : index
    %c0_16 = arith.constant 0 : index
    %c0_17 = arith.constant 0 : index
    %32 = vector.load %arg5[%c0_15, %c0_16, %c0_17] : memref<1x64x16xbf16, #tpu.memory_space<vmem>>, vector<1x64x16xbf16>
    %33 = vector.shape_cast %32 : vector<1x64x16xbf16> to vector<64x16xbf16>
    %34 = vector.shape_cast %31 : vector<64x16xbf16> to vector<1x64x16xbf16>
    tpu.vector_store %arg5[%c0_15, %c0_16, %c0_17], %34 {strides = array<i32>} : memref<1x64x16xbf16, #tpu.memory_space<vmem>>, vector<1x64x16xbf16>,
    return
  }
  func.func @transform_0(%arg0: i32) -> (i32, i32) {
    %c0_i32 = arith.constant 0 : i32
    %c0_i32_0 = arith.constant 0 : i32
    %c0_i32_1 = arith.constant 0 : i32
    return %c0_i32, %c0_i32_0 : i32, i32
  }
  func.func @transform_1(%arg0: i32) -> (i32, i32, i32) {
    %c0_i32 = arith.constant 0 : i32
    %c0_i32_0 = arith.constant 0 : i32
    %c0_i32_1 = arith.constant 0 : i32
    return %arg0, %c0_i32, %c0_i32_0 : i32, i32, i32
  }
  func.func @transform_2(%arg0: i32) -> (i32, i32, i32) {
    %c0_i32 = arith.constant 0 : i32
    %c0_i32_0 = arith.constant 0 : i32
    %c0_i32_1 = arith.constant 0 : i32
    return %arg0, %c0_i32, %c0_i32_0 : i32, i32, i32
  }
  func.func @transform_3(%arg0: i32) -> (i32, i32) {
    %c0_i32 = arith.constant 0 : i32
    %c0_i32_0 = arith.constant 0 : i32
    %c0_i32_1 = arith.constant 0 : i32
    return %c0_i32, %c0_i32_0 : i32, i32
  }
  func.func @transform_4(%arg0: i32) -> (i32, i32, i32) {
    %c0_i32 = arith.constant 0 : i32
    %c0_i32_0 = arith.constant 0 : i32
    %c0_i32_1 = arith.constant 0 : i32
    return %arg0, %c0_i32, %c0_i32_0 : i32, i32, i32
  }
}

module attributes {stable_mosaic.version = 11 : i64} {
  func.func @_matmul_kernel(%arg0: i32, %arg1: memref<32x64xbf16, #tpu.memory_space<vmem>>, %arg2: memref<1x64x16xbf16, #tpu.memory_space<vmem>>, %arg3: memref<1x32x16xbf16, #tpu.memory_space<vmem>>) attributes {dimension_semantics = [#tpu.dimension_semantics<parallel>], iteration_bounds = array<i64: 2>, scalar_prefetch = 0 : i64, scratch_operands = 0 : i64, tpu.core_type = #tpu.core_type<tc>, window_params = [{pipeline_mode = #tpu.pipeline_mode<synchronous>, transform_indices = @transform_0, window_bounds = array<i64: 32, 64>}, {transform_indices = @transform_1, window_bounds = array<i64: 1, 64, 16>}, {transform_indices = @transform_2, window_bounds = array<i64: 1, 32, 16>}]} {
    %c0 = arith.constant 0 : index
    %c0_0 = arith.constant 0 : index
    %0 = vector.load %arg1[%c0, %c0_0] : memref<32x64xbf16, #tpu.memory_space<vmem>>, vector<32x64xbf16>
    %c0_1 = arith.constant 0 : index
    %c0_2 = arith.constant 0 : index
    %c0_3 = arith.constant 0 : index
    %1 = vector.load %arg2[%c0_1, %c0_2, %c0_3] : memref<1x64x16xbf16, #tpu.memory_space<vmem>>, vector<1x64x16xbf16>
    %2 = vector.shape_cast %1 : vector<1x64x16xbf16> to vector<64x16xbf16>
    %cst = arith.constant dense<0.000000e+00> : vector<32x16xf32>
    %3 = tpu.matmul %0, %2, %cst {dimension_numbers = #tpu.dot_dimension_numbers<[1], [0], [0], [1], [0, 0, 1, 1], [], []>} : vector<32x64xbf16>, vector<64x16xbf16>, vector<32x16xf32> -> vector<32x16xf32>
    %4 = arith.truncf %3 : vector<32x16xf32> to vector<32x16xbf16>
    %c0_4 = arith.constant 0 : index
    %c0_5 = arith.constant 0 : index
    %c0_6 = arith.constant 0 : index
    %5 = vector.load %arg3[%c0_4, %c0_5, %c0_6] : memref<1x32x16xbf16, #tpu.memory_space<vmem>>, vector<1x32x16xbf16>
    %6 = vector.shape_cast %5 : vector<1x32x16xbf16> to vector<32x16xbf16>
    %7 = vector.shape_cast %4 : vector<32x16xbf16> to vector<1x32x16xbf16>
    tpu.vector_store %arg3[%c0_4, %c0_5, %c0_6], %7 {strides = array<i32>} : memref<1x32x16xbf16, #tpu.memory_space<vmem>>, vector<1x32x16xbf16>,
    return
  }
  func.func @transform_0(%arg0: i32) -> (i32, i32) {
    %c0_i32 = arith.constant 0 : i32
    %c0_i32_0 = arith.constant 0 : i32
    %c0_i32_1 = arith.constant 0 : i32
    return %c0_i32, %c0_i32_0 : i32, i32
  }
  func.func @transform_1(%arg0: i32) -> (i32, i32, i32) {
    %c0_i32 = arith.constant 0 : i32
    %c0_i32_0 = arith.constant 0 : i32
    %c0_i32_1 = arith.constant 0 : i32
    return %arg0, %c0_i32, %c0_i32_0 : i32, i32, i32
  }
  func.func @transform_2(%arg0: i32) -> (i32, i32, i32) {
    %c0_i32 = arith.constant 0 : i32
    %c0_i32_0 = arith.constant 0 : i32
    %c0_i32_1 = arith.constant 0 : i32
    return %arg0, %c0_i32, %c0_i32_0 : i32, i32, i32
  }
}

module attributes {stable_mosaic.version = 11 : i64} {
  func.func @_matmul_kernel(%arg0: i32, %arg1: memref<16x32xbf16, #tpu.memory_space<vmem>>, %arg2: memref<1x32x64xbf16, #tpu.memory_space<vmem>>, %arg3: memref<1x16x64xbf16, #tpu.memory_space<vmem>>) attributes {dimension_semantics = [#tpu.dimension_semantics<parallel>], iteration_bounds = array<i64: 2>, scalar_prefetch = 0 : i64, scratch_operands = 0 : i64, tpu.core_type = #tpu.core_type<tc>, window_params = [{pipeline_mode = #tpu.pipeline_mode<synchronous>, transform_indices = @transform_0, window_bounds = array<i64: 16, 32>}, {transform_indices = @transform_1, window_bounds = array<i64: 1, 32, 64>}, {transform_indices = @transform_2, window_bounds = array<i64: 1, 16, 64>}]} {
    %c0 = arith.constant 0 : index
    %c0_0 = arith.constant 0 : index
    %0 = vector.load %arg1[%c0, %c0_0] : memref<16x32xbf16, #tpu.memory_space<vmem>>, vector<16x32xbf16>
    %c0_1 = arith.constant 0 : index
    %c0_2 = arith.constant 0 : index
    %c0_3 = arith.constant 0 : index
    %1 = vector.load %arg2[%c0_1, %c0_2, %c0_3] : memref<1x32x64xbf16, #tpu.memory_space<vmem>>, vector<1x32x64xbf16>
    %2 = vector.shape_cast %1 : vector<1x32x64xbf16> to vector<32x64xbf16>
    %cst = arith.constant dense<0.000000e+00> : vector<16x64xf32>
    %3 = tpu.matmul %0, %2, %cst {dimension_numbers = #tpu.dot_dimension_numbers<[1], [0], [0], [1], [0, 0, 1, 1], [], []>} : vector<16x32xbf16>, vector<32x64xbf16>, vector<16x64xf32> -> vector<16x64xf32>
    %4 = arith.truncf %3 : vector<16x64xf32> to vector<16x64xbf16>
    %c0_4 = arith.constant 0 : index
    %c0_5 = arith.constant 0 : index
    %c0_6 = arith.constant 0 : index
    %5 = vector.load %arg3[%c0_4, %c0_5, %c0_6] : memref<1x16x64xbf16, #tpu.memory_space<vmem>>, vector<1x16x64xbf16>
    %6 = vector.shape_cast %5 : vector<1x16x64xbf16> to vector<16x64xbf16>
    %7 = vector.shape_cast %4 : vector<16x64xbf16> to vector<1x16x64xbf16>
    tpu.vector_store %arg3[%c0_4, %c0_5, %c0_6], %7 {strides = array<i32>} : memref<1x16x64xbf16, #tpu.memory_space<vmem>>, vector<1x16x64xbf16>,
    return
  }
  func.func @transform_0(%arg0: i32) -> (i32, i32) {
    %c0_i32 = arith.constant 0 : i32
    %c0_i32_0 = arith.constant 0 : i32
    %c0_i32_1 = arith.constant 0 : i32
    return %c0_i32, %c0_i32_0 : i32, i32
  }
  func.func @transform_1(%arg0: i32) -> (i32, i32, i32) {
    %c0_i32 = arith.constant 0 : i32
    %c0_i32_0 = arith.constant 0 : i32
    %c0_i32_1 = arith.constant 0 : i32
    return %arg0, %c0_i32, %c0_i32_0 : i32, i32, i32
  }
  func.func @transform_2(%arg0: i32) -> (i32, i32, i32) {
    %c0_i32 = arith.constant 0 : i32
    %c0_i32_0 = arith.constant 0 : i32
    %c0_i32_1 = arith.constant 0 : i32
    return %arg0, %c0_i32, %c0_i32_0 : i32, i32, i32
  }
}

module attributes {stable_mosaic.version = 11 : i64} {
  func.func @_matmul_kernel(%arg0: i32, %arg1: memref<1x144xbf16, #tpu.memory_space<vmem>>, %arg2: memref<1x144x256xbf16, #tpu.memory_space<vmem>>, %arg3: memref<1x1x256xbf16, #tpu.memory_space<vmem>>) attributes {dimension_semantics = [#tpu.dimension_semantics<parallel>], iteration_bounds = array<i64: 2>, scalar_prefetch = 0 : i64, scratch_operands = 0 : i64, tpu.core_type = #tpu.core_type<tc>, window_params = [{pipeline_mode = #tpu.pipeline_mode<synchronous>, transform_indices = @transform_0, window_bounds = array<i64: 1, 144>}, {transform_indices = @transform_1, window_bounds = array<i64: 1, 144, 256>}, {transform_indices = @transform_2, window_bounds = array<i64: 1, 1, 256>}]} {
    %c0 = arith.constant 0 : index
    %c0_0 = arith.constant 0 : index
    %0 = vector.load %arg1[%c0, %c0_0] : memref<1x144xbf16, #tpu.memory_space<vmem>>, vector<1x144xbf16>
    %c0_1 = arith.constant 0 : index
    %c0_2 = arith.constant 0 : index
    %c0_3 = arith.constant 0 : index
    %1 = vector.load %arg2[%c0_1, %c0_2, %c0_3] : memref<1x144x256xbf16, #tpu.memory_space<vmem>>, vector<1x144x256xbf16>
    %2 = vector.shape_cast %1 : vector<1x144x256xbf16> to vector<144x256xbf16>
    %cst = arith.constant dense<0.000000e+00> : vector<1x256xf32>
    %3 = tpu.matmul %0, %2, %cst {dimension_numbers = #tpu.dot_dimension_numbers<[1], [0], [0], [1], [0, 0, 1, 1], [], []>} : vector<1x144xbf16>, vector<144x256xbf16>, vector<1x256xf32> -> vector<1x256xf32>
    %4 = arith.truncf %3 : vector<1x256xf32> to vector<1x256xbf16>
    %c0_4 = arith.constant 0 : index
    %c0_5 = arith.constant 0 : index
    %c0_6 = arith.constant 0 : index
    %5 = vector.load %arg3[%c0_4, %c0_5, %c0_6] : memref<1x1x256xbf16, #tpu.memory_space<vmem>>, vector<1x1x256xbf16>
    %6 = vector.shape_cast %5 : vector<1x1x256xbf16> to vector<1x256xbf16>
    %7 = vector.shape_cast %4 : vector<1x256xbf16> to vector<1x1x256xbf16>
    tpu.vector_store %arg3[%c0_4, %c0_5, %c0_6], %7 {strides = array<i32>} : memref<1x1x256xbf16, #tpu.memory_space<vmem>>, vector<1x1x256xbf16>,
    return
  }
  func.func @transform_0(%arg0: i32) -> (i32, i32) {
    %c0_i32 = arith.constant 0 : i32
    %c0_i32_0 = arith.constant 0 : i32
    %c0_i32_1 = arith.constant 0 : i32
    return %c0_i32, %c0_i32_0 : i32, i32
  }
  func.func @transform_1(%arg0: i32) -> (i32, i32, i32) {
    %c0_i32 = arith.constant 0 : i32
    %c0_i32_0 = arith.constant 0 : i32
    %c0_i32_1 = arith.constant 0 : i32
    return %arg0, %c0_i32, %c0_i32_0 : i32, i32, i32
  }
  func.func @transform_2(%arg0: i32) -> (i32, i32, i32) {
    %c0_i32 = arith.constant 0 : i32
    %c0_i32_0 = arith.constant 0 : i32
    %c0_i32_1 = arith.constant 0 : i32
    return %arg0, %c0_i32, %c0_i32_0 : i32, i32, i32
  }
}

module attributes {stable_mosaic.version = 11 : i64} {
  func.func @_matmul_kernel(%arg0: i32, %arg1: memref<16x9xbf16, #tpu.memory_space<vmem>>, %arg2: memref<1x9x256xbf16, #tpu.memory_space<vmem>>, %arg3: memref<1x16x256xbf16, #tpu.memory_space<vmem>>) attributes {dimension_semantics = [#tpu.dimension_semantics<parallel>], iteration_bounds = array<i64: 2>, scalar_prefetch = 0 : i64, scratch_operands = 0 : i64, tpu.core_type = #tpu.core_type<tc>, window_params = [{pipeline_mode = #tpu.pipeline_mode<synchronous>, transform_indices = @transform_0, window_bounds = array<i64: 16, 9>}, {transform_indices = @transform_1, window_bounds = array<i64: 1, 9, 256>}, {transform_indices = @transform_2, window_bounds = array<i64: 1, 16, 256>}]} {
    %c0 = arith.constant 0 : index
    %c0_0 = arith.constant 0 : index
    %0 = vector.load %arg1[%c0, %c0_0] : memref<16x9xbf16, #tpu.memory_space<vmem>>, vector<16x9xbf16>
    %c0_1 = arith.constant 0 : index
    %c0_2 = arith.constant 0 : index
    %c0_3 = arith.constant 0 : index
    %1 = vector.load %arg2[%c0_1, %c0_2, %c0_3] : memref<1x9x256xbf16, #tpu.memory_space<vmem>>, vector<1x9x256xbf16>
    %2 = vector.shape_cast %1 : vector<1x9x256xbf16> to vector<9x256xbf16>
    %cst = arith.constant dense<0.000000e+00> : vector<16x256xf32>
    %3 = tpu.matmul %0, %2, %cst {dimension_numbers = #tpu.dot_dimension_numbers<[1], [0], [0], [1], [0, 0, 1, 1], [], []>} : vector<16x9xbf16>, vector<9x256xbf16>, vector<16x256xf32> -> vector<16x256xf32>
    %4 = arith.truncf %3 : vector<16x256xf32> to vector<16x256xbf16>
    %c0_4 = arith.constant 0 : index
    %c0_5 = arith.constant 0 : index
    %c0_6 = arith.constant 0 : index
    %5 = vector.load %arg3[%c0_4, %c0_5, %c0_6] : memref<1x16x256xbf16, #tpu.memory_space<vmem>>, vector<1x16x256xbf16>
    %6 = vector.shape_cast %5 : vector<1x16x256xbf16> to vector<16x256xbf16>
    %7 = vector.shape_cast %4 : vector<16x256xbf16> to vector<1x16x256xbf16>
    tpu.vector_store %arg3[%c0_4, %c0_5, %c0_6], %7 {strides = array<i32>} : memref<1x16x256xbf16, #tpu.memory_space<vmem>>, vector<1x16x256xbf16>,
    return
  }
  func.func @transform_0(%arg0: i32) -> (i32, i32) {
    %c0_i32 = arith.constant 0 : i32
    %c0_i32_0 = arith.constant 0 : i32
    %c0_i32_1 = arith.constant 0 : i32
    return %c0_i32, %c0_i32_0 : i32, i32
  }
  func.func @transform_1(%arg0: i32) -> (i32, i32, i32) {
    %c0_i32 = arith.constant 0 : i32
    %c0_i32_0 = arith.constant 0 : i32
    %c0_i32_1 = arith.constant 0 : i32
    return %arg0, %c0_i32, %c0_i32_0 : i32, i32, i32
  }
  func.func @transform_2(%arg0: i32) -> (i32, i32, i32) {
    %c0_i32 = arith.constant 0 : i32
    %c0_i32_0 = arith.constant 0 : i32
    %c0_i32_1 = arith.constant 0 : i32
    return %arg0, %c0_i32, %c0_i32_0 : i32, i32, i32
  }
}

module attributes {stable_mosaic.version = 11 : i64} {
  func.func @_conv_gn_prelu_kernel(%arg0: i32, %arg1: memref<16x144xbf16, #tpu.memory_space<vmem>>, %arg2: memref<1x144x256xbf16, #tpu.memory_space<vmem>>, %arg3: memref<16x1xf32, #tpu.memory_space<vmem>>, %arg4: memref<1x16x256xbf16, #tpu.memory_space<vmem>>) attributes {dimension_semantics = [#tpu.dimension_semantics<parallel>], iteration_bounds = array<i64: 2>, scalar_prefetch = 0 : i64, scratch_operands = 0 : i64, tpu.core_type = #tpu.core_type<tc>, window_params = [{pipeline_mode = #tpu.pipeline_mode<synchronous>, transform_indices = @transform_0, window_bounds = array<i64: 16, 144>}, {transform_indices = @transform_1, window_bounds = array<i64: 1, 144, 256>}, {pipeline_mode = #tpu.pipeline_mode<synchronous>, transform_indices = @transform_2, window_bounds = array<i64: 16, 1>}, {transform_indices = @transform_3, window_bounds = array<i64: 1, 16, 256>}]} {
    %c0 = arith.constant 0 : index
    %c0_0 = arith.constant 0 : index
    %0 = vector.load %arg1[%c0, %c0_0] : memref<16x144xbf16, #tpu.memory_space<vmem>>, vector<16x144xbf16>
    %c0_1 = arith.constant 0 : index
    %c0_2 = arith.constant 0 : index
    %c0_3 = arith.constant 0 : index
    %1 = vector.load %arg2[%c0_1, %c0_2, %c0_3] : memref<1x144x256xbf16, #tpu.memory_space<vmem>>, vector<1x144x256xbf16>
    %2 = vector.shape_cast %1 : vector<1x144x256xbf16> to vector<144x256xbf16>
    %cst = arith.constant dense<0.000000e+00> : vector<16x256xf32>
    %3 = tpu.matmul %0, %2, %cst {dimension_numbers = #tpu.dot_dimension_numbers<[1], [0], [0], [1], [0, 0, 1, 1], [], []>} : vector<16x144xbf16>, vector<144x256xbf16>, vector<16x256xf32> -> vector<16x256xf32>
    %4 = vector.shape_cast %3 : vector<16x256xf32> to vector<1x16x256xf32>
    %cst_4 = arith.constant dense<0.000000e+00> : vector<1xf32>
    %5 = vector.multi_reduction <add>, %4, %cst_4 [1, 2] : vector<1x16x256xf32> to vector<1xf32>
    %6 = vector.shape_cast %5 : vector<1xf32> to vector<1x1x1xf32>
    %7 = vector.extract %6[0, 0, 0] : f32 from vector<1x1x1xf32>
    %cst_5 = arith.constant 4.096000e+03 : f32
    %8 = arith.divf %7, %cst_5 : f32
    %9 = vector.broadcast %8 : f32 to vector<16x256xf32>
    %10 = arith.subf %3, %9 : vector<16x256xf32>
    %11 = arith.mulf %10, %10 : vector<16x256xf32>
    %12 = vector.shape_cast %11 : vector<16x256xf32> to vector<1x16x256xf32>
    %cst_6 = arith.constant dense<0.000000e+00> : vector<1xf32>
    %13 = vector.multi_reduction <add>, %12, %cst_6 [1, 2] : vector<1x16x256xf32> to vector<1xf32>
    %14 = vector.shape_cast %13 : vector<1xf32> to vector<1x1x1xf32>
    %15 = vector.extract %14[0, 0, 0] : f32 from vector<1x1x1xf32>
    %cst_7 = arith.constant 4.096000e+03 : f32
    %16 = arith.divf %15, %cst_7 : f32
    %cst_8 = arith.constant 9.99999974E-6 : f32
    %17 = arith.addf %16, %cst_8 : f32
    %18 = math.rsqrt %17 : f32
    %19 = vector.broadcast %18 : f32 to vector<16x256xf32>
    %20 = arith.mulf %10, %19 : vector<16x256xf32>
    %c0_9 = arith.constant 0 : index
    %c0_10 = arith.constant 0 : index
    %21 = vector.load %arg3[%c0_9, %c0_10] : memref<16x1xf32, #tpu.memory_space<vmem>>, vector<16x1xf32>
    %cst_11 = arith.constant 0.000000e+00 : f32
    %22 = vector.broadcast %cst_11 : f32 to vector<16x256xf32>
    %23 = arith.cmpf ogt, %20, %22 : vector<16x256xf32>
    %24 = vector.broadcast %21 : vector<16x1xf32> to vector<16x256xf32>
    %25 = arith.mulf %24, %20 : vector<16x256xf32>
    %26 = arith.select %23, %20, %25 : vector<16x256xi1>, vector<16x256xf32>
    %27 = arith.truncf %26 : vector<16x256xf32> to vector<16x256xbf16>
    %c0_12 = arith.constant 0 : index
    %c0_13 = arith.constant 0 : index
    %c0_14 = arith.constant 0 : index
    %28 = vector.load %arg4[%c0_12, %c0_13, %c0_14] : memref<1x16x256xbf16, #tpu.memory_space<vmem>>, vector<1x16x256xbf16>
    %29 = vector.shape_cast %28 : vector<1x16x256xbf16> to vector<16x256xbf16>
    %30 = vector.shape_cast %27 : vector<16x256xbf16> to vector<1x16x256xbf16>
    tpu.vector_store %arg4[%c0_12, %c0_13, %c0_14], %30 {strides = array<i32>} : memref<1x16x256xbf16, #tpu.memory_space<vmem>>, vector<1x16x256xbf16>,
    return
  }
  func.func @transform_0(%arg0: i32) -> (i32, i32) {
    %c0_i32 = arith.constant 0 : i32
    %c0_i32_0 = arith.constant 0 : i32
    %c0_i32_1 = arith.constant 0 : i32
    return %c0_i32, %c0_i32_0 : i32, i32
  }
  func.func @transform_1(%arg0: i32) -> (i32, i32, i32) {
    %c0_i32 = arith.constant 0 : i32
    %c0_i32_0 = arith.constant 0 : i32
    %c0_i32_1 = arith.constant 0 : i32
    return %arg0, %c0_i32, %c0_i32_0 : i32, i32, i32
  }
  func.func @transform_2(%arg0: i32) -> (i32, i32) {
    %c0_i32 = arith.constant 0 : i32
    %c0_i32_0 = arith.constant 0 : i32
    %c0_i32_1 = arith.constant 0 : i32
    return %c0_i32, %c0_i32_0 : i32, i32
  }
  func.func @transform_3(%arg0: i32) -> (i32, i32, i32) {
    %c0_i32 = arith.constant 0 : i32
    %c0_i32_0 = arith.constant 0 : i32
    %c0_i32_1 = arith.constant 0 : i32
    return %arg0, %c0_i32, %c0_i32_0 : i32, i32, i32
  }
}

module attributes {stable_mosaic.version = 11 : i64} {
  func.func @_matmul_kernel(%arg0: i32, %arg1: memref<3x144xbf16, #tpu.memory_space<vmem>>, %arg2: memref<1x144x256xbf16, #tpu.memory_space<vmem>>, %arg3: memref<1x3x256xbf16, #tpu.memory_space<vmem>>) attributes {dimension_semantics = [#tpu.dimension_semantics<parallel>], iteration_bounds = array<i64: 2>, scalar_prefetch = 0 : i64, scratch_operands = 0 : i64, tpu.core_type = #tpu.core_type<tc>, window_params = [{pipeline_mode = #tpu.pipeline_mode<synchronous>, transform_indices = @transform_0, window_bounds = array<i64: 3, 144>}, {transform_indices = @transform_1, window_bounds = array<i64: 1, 144, 256>}, {transform_indices = @transform_2, window_bounds = array<i64: 1, 3, 256>}]} {
    %c0 = arith.constant 0 : index
    %c0_0 = arith.constant 0 : index
    %0 = vector.load %arg1[%c0, %c0_0] : memref<3x144xbf16, #tpu.memory_space<vmem>>, vector<3x144xbf16>
    %c0_1 = arith.constant 0 : index
    %c0_2 = arith.constant 0 : index
    %c0_3 = arith.constant 0 : index
    %1 = vector.load %arg2[%c0_1, %c0_2, %c0_3] : memref<1x144x256xbf16, #tpu.memory_space<vmem>>, vector<1x144x256xbf16>
    %2 = vector.shape_cast %1 : vector<1x144x256xbf16> to vector<144x256xbf16>
    %cst = arith.constant dense<0.000000e+00> : vector<3x256xf32>
    %3 = tpu.matmul %0, %2, %cst {dimension_numbers = #tpu.dot_dimension_numbers<[1], [0], [0], [1], [0, 0, 1, 1], [], []>} : vector<3x144xbf16>, vector<144x256xbf16>, vector<3x256xf32> -> vector<3x256xf32>
    %4 = arith.truncf %3 : vector<3x256xf32> to vector<3x256xbf16>
    %c0_4 = arith.constant 0 : index
    %c0_5 = arith.constant 0 : index
    %c0_6 = arith.constant 0 : index
    %5 = vector.load %arg3[%c0_4, %c0_5, %c0_6] : memref<1x3x256xbf16, #tpu.memory_space<vmem>>, vector<1x3x256xbf16>
    %6 = vector.shape_cast %5 : vector<1x3x256xbf16> to vector<3x256xbf16>
    %7 = vector.shape_cast %4 : vector<3x256xbf16> to vector<1x3x256xbf16>
    tpu.vector_store %arg3[%c0_4, %c0_5, %c0_6], %7 {strides = array<i32>} : memref<1x3x256xbf16, #tpu.memory_space<vmem>>, vector<1x3x256xbf16>,
    return
  }
  func.func @transform_0(%arg0: i32) -> (i32, i32) {
    %c0_i32 = arith.constant 0 : i32
    %c0_i32_0 = arith.constant 0 : i32
    %c0_i32_1 = arith.constant 0 : i32
    return %c0_i32, %c0_i32_0 : i32, i32
  }
  func.func @transform_1(%arg0: i32) -> (i32, i32, i32) {
    %c0_i32 = arith.constant 0 : i32
    %c0_i32_0 = arith.constant 0 : i32
    %c0_i32_1 = arith.constant 0 : i32
    return %arg0, %c0_i32, %c0_i32_0 : i32, i32, i32
  }
  func.func @transform_2(%arg0: i32) -> (i32, i32, i32) {
    %c0_i32 = arith.constant 0 : i32
    %c0_i32_0 = arith.constant 0 : i32
    %c0_i32_1 = arith.constant 0 : i32
    return %arg0, %c0_i32, %c0_i32_0 : i32, i32, i32
  }
}

</mosaic_0001>

<llo_original>
// kernel: _lambda_.87
$region0: #{_lambda_.87}
  #allocation0 [shape = 'u32[]', space=smem, size = 0x4, offset = 0x4, fixed_abs, tag = 'smem constant byte address 0x4 - core index']
  #allocation1 [shape = 'u32[144,128]{1,0:T(1,128)}', space=vmem, size = 0x12000, scoped, tag = 'internal scratch']
  %s0 = inlined_call_operand.vmem [shape: bf16[16,81], index: 0, kind: input, shape index: {}]
  %s1 = inlined_call_operand.vmem [shape: bf16[2,81,256], index: 1, kind: input, shape index: {}]
  %s2 = inlined_call_operand.vmem [shape: bf16[2,16,256], index: 2, kind: output, shape index: {}]
  %s3 = sld [smem:[#allocation0]]
  $region41: #{_lambda_.87} parent=0
    _
  %s5 = ssub.s32 1, %s3
  %s6 = scalar_select 0, %s5, %s3
  loop: start=0, step=1, limit=4
  $region2: #{_lambda_.87} parent=0 // loop_pre_header
    _
  $region3: #{_lambda_.87} parent=0 // loop_header
    %s8 = sphi 0, %s12
    %p9 = scmp.ge.s32.totalorder %s8, 4
    %s16 = sphi 0, %s16
    %s18 = sphi 0, %s16
    %s19 = sphi 0, %s18
    %s33 = sphi 0, %s19
    %s39 = sphi 0, %s41
    %s42 = sphi 0, %s39
    %s43 = sphi 0, %s42
    %s59 = sphi 0, %s43
    %s65 = sphi 0, %s67
    %s68 = sphi 0, %s65
    %s69 = sphi 0, %s68
    %s85 = sphi 0, %s69
  $region4: #{_lambda_.87} parent=0 // loop_header_branch
    %11 = sbr.rel (%p9) target = $region8
  $region5: #{_lambda_.87} parent=0 // loop_body
    %s13 = ssub.s32 %s8, 1
    %s14 = ssub.s32 %s8, 2
    %s15 = sadd.s32 %s8, 1
    %s17 = sadd.s32 %s16, 1
    %p20 = scmp.eq.s32.totalorder %s8, 1
    %p21 = scmp.ne.s32.totalorder %s16, %s18
    %p22 = scmp.eq.s32.totalorder %s8, 0
    %p23 = por %p21, %p22
    %p24 = scmp.ne.s32.totalorder %s16, %s18
    %p25 = scmp.eq.s32.totalorder %s13, 1
    %p26 = por %p24, %p25
    %p27 = scmp.ne.s32.totalorder %s18, %s19
    %p28 = scmp.eq.s32.totalorder %s13, 0
    %p29 = por %p27, %p28
    %p30 = scmp.ne.s32.totalorder %s18, %s19
    %p31 = scmp.eq.s32.totalorder %s14, 1
    %p32 = por %p30, %p31
    %p34 = scmp.ne.s32.totalorder %s19, %s33
    %p35 = scmp.eq.s32.totalorder %s14, 0
    %p36 = por %p34, %p35
    %s37 = ssub.s32 %s8, %s15
    %p38 = scmp.eq.s32.totalorder %s37, 0
    %s40 = sadd.s32 %s39, 1
    %s41 = scalar_select %p38, %s39, %s40
    %p44 = pneg %p38
    %p45 = scmp.eq.s32.totalorder %s8, 1
    %p46 = por %p44, %p45
    %p47 = scmp.ne.s32.totalorder %s39, %s42
    %p48 = scmp.eq.s32.totalorder %s8, 0
    %p49 = por %p47, %p48
    %p50 = scmp.ne.s32.totalorder %s39, %s42
    %p51 = scmp.eq.s32.totalorder %s13, 1
    %p52 = por %p50, %p51
    %p53 = scmp.ne.s32.totalorder %s42, %s43
    %p54 = scmp.eq.s32.totalorder %s13, 0
    %p55 = por %p53, %p54
    %p56 = scmp.ne.s32.totalorder %s42, %s43
    %p57 = scmp.eq.s32.totalorder %s14, 1
    %p58 = por %p56, %p57
    %p60 = scmp.ne.s32.totalorder %s43, %s59
    %p61 = scmp.eq.s32.totalorder %s14, 0
    %p62 = por %p60, %p61
    %s63 = ssub.s32 %s8, %s15
    %p64 = scmp.eq.s32.totalorder %s63, 0
    %s66 = sadd.s32 %s65, 1
    %s67 = scalar_select %p64, %s65, %s66
    %p70 = pneg %p64
    %p71 = scmp.eq.s32.totalorder %s8, 1
    %p72 = por %p70, %p71
    %p73 = scmp.ne.s32.totalorder %s65, %s68
    %p74 = scmp.eq.s32.totalorder %s8, 0
    %p75 = por %p73, %p74
    %p76 = scmp.ne.s32.totalorder %s65, %s68
    %p77 = scmp.eq.s32.totalorder %s13, 1
    %p78 = por %p76, %p77
    %p79 = scmp.ne.s32.totalorder %s68, %s69
    %p80 = scmp.eq.s32.totalorder %s13, 0
    %p81 = por %p79, %p80
    %p82 = scmp.ne.s32.totalorder %s68, %s69
    %p83 = scmp.eq.s32.totalorder %s14, 1
    %p84 = por %p82, %p83
    %p86 = scmp.ne.s32.totalorder %s69, %s85
    %p87 = scmp.eq.s32.totalorder %s14, 0
    %p88 = por %p86, %p87
    %p89 = scmp.le.s32.totalorder 1, %s8
    %p90 = scmp.lt.s32.totalorder %s8, 3
    %p91 = pnand %p89, %p90
    %p92 = pneg %p91
    // Predicated region
    $region9: #{_lambda_.87} parent=5 // pred_check
      _
    $region10: #{_lambda_.87} parent=5 // pred_check_branch
      %94 = sbr.rel (%p91) target = $region12
    $region11: #{_lambda_.87} parent=5 // pred_region
      %s95 = ssub.s32 %s8, 1
      // Predicated region
      $region13: #{_lambda_.87} parent=11 // pred_check
        %p96 = pneg %p29
      $region14: #{_lambda_.87} parent=11 // pred_check_branch
        %98 = sbr.rel (%p96) target = $region16
      $region15: #{_lambda_.87} parent=11 // pred_region
        _
      $region16: #{_lambda_.87} parent=11 // pred_fallthru
        _
    $region12: #{_lambda_.87} parent=5 // pred_fallthru
      _
    %p99 = scmp.lt.s32.totalorder %s8, 2
    // Predicated region
    $region17: #{_lambda_.87} parent=5 // pred_check
      %p100 = pneg %p99
    $region18: #{_lambda_.87} parent=5 // pred_check_branch
      %102 = sbr.rel (%p100) target = $region20
    $region19: #{_lambda_.87} parent=5 // pred_region
      // Predicated region
      $region21: #{_lambda_.87} parent=19 // pred_check
        %p103 = pneg %p49
      $region22: #{_lambda_.87} parent=19 // pred_check_branch
        %105 = sbr.rel (%p103) target = $region24
      $region23: #{_lambda_.87} parent=19 // pred_region
        %p106 = scmp.lt.s32.totalorder %s8, 1
        %s107 = scalar_select %p106, %s8, 1
        %s108 = smul.addr %s107, 22
        %s109 = smul.addr %s108, 4
        %s110 = scalar_lea.vmem %s1, %s109
      $region24: #{_lambda_.87} parent=19 // pred_fallthru
        _
    $region20: #{_lambda_.87} parent=5 // pred_fallthru
      _
    %p111 = scmp.le.s32.totalorder 1, %s8
    %p112 = scmp.lt.s32.totalorder %s8, 3
    %p113 = pnand %p111, %p112
    %p114 = pneg %p113
    // Predicated region
    $region25: #{_lambda_.87} parent=5 // pred_check
      _
    $region26: #{_lambda_.87} parent=5 // pred_check_branch
      %116 = sbr.rel (%p113) target = $region28
    $region27: #{_lambda_.87} parent=5 // pred_region
      %s117 = ssub.s32 %s8, 1
      %p118 = pneg %p29
      %p119 = pneg %p26
      %p120 = scmp.lt.s32.totalorder %s13, 1
      %s121 = scalar_select %p120, %s13, 1
      %s122 = smul.addr %s121, 22
      %s123 = smul.addr %s122, 4
      %s124 = scalar_lea.vmem %s1, %s123
      %p125 = pneg %p55
      %p126 = pneg %p52
      %p127 = pneg %p81
      %p128 = pneg %p78
      %p129 = scmp.lt.s32.totalorder %s13, 1
      %s130 = scalar_select %p129, %s13, 1
      %s131 = smul.addr %s130, 4
      %s132 = smul.addr %s131, 4
      %s133 = scalar_lea.vmem %s2, %s132
      %p134 = scmp.lt.s32.totalorder %s13, 1
      %s135 = scalar_select %p134, %s13, 1
      %s136 = smul.addr %s135, 22
      %s137 = smul.addr %s136, 4
      %s138 = scalar_lea.vmem %s1, %s137
      %p139 = scmp.lt.s32.totalorder %s13, 1
      %s140 = scalar_select %p139, %s13, 1
      %s141 = smul.addr %s140, 4
      %s142 = smul.addr %s141, 4
      %s143 = scalar_lea.vmem %s2, %s142
      %v145 = vld [vmem:[%s0] sm:$0xf]
      %v146 = vld [vmem:[%s0 + $0x4] sm:$0xf]
      %v147 = vld [vmem:[%s138] sm:$0xff]
      %v148 = vld [vmem:[%s138 + $0x8] sm:$0xff]
      %v149 = vld [vmem:[%s138 + $0x10] sm:$0xff]
      %v150 = vld [vmem:[%s138 + $0x18] sm:$0xff]
      %v151 = vld [vmem:[%s138 + $0x20] sm:$0xff]
      %v152 = vld [vmem:[%s138 + $0x28] sm:$0xff]
      %v153 = vld [vmem:[%s138 + $0x30] sm:$0xff]
      %v154 = vld [vmem:[%s138 + $0x38] sm:$0xff]
      %v155 = vld [vmem:[%s138 + $0x40] sm:$0xff]
      %v156 = vld [vmem:[%s138 + $0x48] sm:$0xff]
      %v157 = vld [vmem:[%s138 + $0x50] sm:$0x11]
      %v160 = vunpack.c.l.b16 %v145
      %v161 = vunpack.c.l.b16 %v146
      %v162 = vpack.c.b16 %v161, %v160
      %v174 = vunpack.c.l.b16 %v147
      %v175 = vunpack.c.h.b16 %v147
      %v176 = vunpack.c.l.b16 %v148
      %v177 = vunpack.c.h.b16 %v148
      %v178 = vunpack.c.l.b16 %v149
      %v179 = vunpack.c.h.b16 %v149
      %v180 = vunpack.c.l.b16 %v150
      %v181 = vunpack.c.h.b16 %v150
      %v182 = vunpack.c.l.b16 %v151
      %v183 = vunpack.c.h.b16 %v151
      %v184 = vunpack.c.l.b16 %v152
      %v185 = vunpack.c.h.b16 %v152
      %v186 = vunpack.c.l.b16 %v153
      %v187 = vunpack.c.h.b16 %v153
      %v188 = vunpack.c.l.b16 %v154
      %v189 = vunpack.c.h.b16 %v154
      %v190 = vunpack.c.l.b16 %v155
      %v191 = vunpack.c.h.b16 %v155
      %v192 = vunpack.c.l.b16 %v156
      %v193 = vunpack.c.h.b16 %v156
      %v194 = vunpack.c.l.b16 %v157
      %v195 = vunpack.c.h.b16 %v157
      %v196 = vpack.c.b16 %v176, %v174
      %v197 = vpack.c.b16 %v177, %v175
      %v198 = vpack.c.b16 %v180, %v178
      %v199 = vpack.c.b16 %v181, %v179
      %v200 = vpack.c.b16 %v184, %v182
      %v201 = vpack.c.b16 %v185, %v183
      %v202 = vpack.c.b16 %v188, %v186
      %v203 = vpack.c.b16 %v189, %v187
      %v204 = vpack.c.b16 %v192, %v190
      %v205 = vpack.c.b16 %v193, %v191
      %v206 = vpack.c.b16 %v194, %v194
      %v207 = vpack.c.b16 %v195, %v195
      %vm218 = vcmask 662528
      %v220 = vsel %vm218, %v162, 0
      %vm222 = vcmask 1040384
      %v223 = vsel 0, 4294967295, 65535
      %v224 = vsel %vm222, %v223, 0
      %v226 = vand.u32 %v206, %v224
      %v229 = vand.u32 %v207, %v224
      %231 = vmatprep.subr.bf16.mxu0 %v197
      %232 = vmatpush1.bf16.msra.mxu0 %v196
      %233 = vmatprep.subr.bf16.mxu0 %v199
      %234 = vmatpush1.bf16.msra.mxu0 %v198
      %235 = vmatprep.subr.bf16.mxu0 %v201
      %236 = vmatpush1.bf16.msra.mxu0 %v200
      %237 = vmatprep.subr.bf16.mxu0 %v203
      %238 = vmatpush1.bf16.msra.mxu0 %v202
      %239 = vmatprep.subr.bf16.mxu0 %v205
      %240 = vmatpush1.bf16.msra.mxu0 %v204
      %241 = vmatprep.subr.bf16.mxu0 %v229
      %242 = vmatpush1.bf16.msra.mxu0 %v226
      %243 = vmatprep.subr.bf16.mxu0 0
      %244 = vmatpush1.bf16.msra.mxu0 0
      %245 = vmatprep.subr.bf16.mxu0 0
      %246 = vmatpush1.bf16.msra.mxu0 0
      %247 = vmatprep.subr.bf16.mxu0 0
      %248 = vmatpush1.bf16.msra.mxu0 0
      %249 = vmatprep.subr.bf16.mxu0 0
      %250 = vmatpush1.bf16.msra.mxu0 0
      %251 = vmatprep.subr.bf16.mxu0 0
      %252 = vmatpush1.bf16.msra.mxu0 0
      %253 = vmatprep.subr.bf16.mxu0 0
      %254 = vmatpush1.bf16.msra.mxu0 0
      %255 = vmatprep.subr.bf16.mxu0 0
      %256 = vmatpush1.bf16.msra.mxu0 0
      %257 = vmatprep.subr.bf16.mxu0 0
      %258 = vmatpush1.bf16.msra.mxu0 0
      %259 = vmatprep.subr.bf16.mxu0 0
      %260 = vmatpush1.bf16.msra.mxu0 0
      %261 = vmatprep.subr.bf16.mxu0 0
      %262 = vmatpush1.bf16.msra.mxu0 0
      %263 = vmatprep.mubr.bf16.mxu0 0
      %264 = vmatmul.mubr.bf16.gmra.mrb[0].mxu0 %v220
      %v265 = vpop.f32.mrb[0].mxu0
      %v266 = vadd.f32 0.0, %v265
      %v267 = vpop.f32.mrb[0].mxu0
      %v268 = vadd.f32 0.0, %v267
      %v269 = vpop.f32.mrb[0].mxu0
      %v270 = vadd.f32 0.0, %v269
      %v271 = vpop.f32.mrb[0].mxu0
      %v272 = vadd.f32 0.0, %v271
      %273 = vdwg.mxu0
      %v274 = vpack.c.bf16 %v270, %v266
      %v275 = vpack.c.bf16 %v272, %v268
      %v278 = vunpack.c.l.b16 %v274
      %v279 = vunpack.c.l.b16 %v275
      %v280 = vunpack.c.h.b16 %v274
      %v281 = vunpack.c.h.b16 %v275
      %v282 = vpack.c.b16 %v279, %v278
      %v283 = vpack.c.b16 %v281, %v280
      %286 = vst [vmem:[%s143] sm:$0xff] %v282
      %287 = vst [vmem:[%s143 + $0x8] sm:$0xff] %v283
      %p288 = scmp.lt.s32.totalorder %s13, 1
      %s289 = scalar_select %p288, %s13, 1
      %s290 = smul.addr %s289, 4
      %s291 = smul.addr %s290, 4
      %s292 = scalar_lea.vmem %s2, %s291
      // Predicated region
      $region29: #{_lambda_.87} parent=27 // pred_check
        %p293 = pneg %p78
      $region30: #{_lambda_.87} parent=27 // pred_check_branch
        %295 = sbr.rel (%p293) target = $region32
      $region31: #{_lambda_.87} parent=27 // pred_region
        _
      $region32: #{_lambda_.87} parent=27 // pred_fallthru
        _
    $region28: #{_lambda_.87} parent=5 // pred_fallthru
      _
    %p296 = scmp.le.s32.totalorder 2, %s8
    // Predicated region
    $region33: #{_lambda_.87} parent=5 // pred_check
      %p297 = pneg %p296
    $region34: #{_lambda_.87} parent=5 // pred_check_branch
      %299 = sbr.rel (%p297) target = $region36
    $region35: #{_lambda_.87} parent=5 // pred_region
      %s300 = ssub.s32 %s8, 2
      // Predicated region
      $region37: #{_lambda_.87} parent=35 // pred_check
        %p301 = pneg %p84
      $region38: #{_lambda_.87} parent=35 // pred_check_branch
        %303 = sbr.rel (%p301) target = $region40
      $region39: #{_lambda_.87} parent=35 // pred_region
        %p304 = scmp.lt.s32.totalorder %s14, 1
        %s305 = scalar_select %p304, %s14, 1
        %s306 = smul.addr %s305, 4
        %s307 = smul.addr %s306, 4
        %s308 = scalar_lea.vmem %s2, %s307
      $region40: #{_lambda_.87} parent=35 // pred_fallthru
        _
    $region36: #{_lambda_.87} parent=5 // pred_fallthru
      _
  $region6: #{_lambda_.87} parent=0 // loop_footer
    %s12 = sadd.s32 1, %s8
  $region7: #{_lambda_.87} parent=0 // loop_footer_branch
    %7 = sbr.rel target = $region3
  $region8: #{_lambda_.87} parent=0 // loop_exit
    _

// kernel: _lambda_.88
$region0: #{_lambda_.88}
  #allocation0 [shape = 'u32[]', space=smem, size = 0x4, offset = 0x4, fixed_abs, tag = 'smem constant byte address 0x4 - core index']
  #allocation1 [shape = 'u32[144,128]{1,0:T(1,128)}', space=vmem, size = 0x12000, scoped, tag = 'internal scratch']
  %s0 = inlined_call_operand.vmem [shape: bf16[16,288], index: 0, kind: input, shape index: {}]
  %s1 = inlined_call_operand.vmem [shape: bf16[2,288,256], index: 1, kind: input, shape index: {}]
  %s2 = inlined_call_operand.vmem [shape: f32[16,1], index: 2, kind: input, shape index: {}]
  %s3 = inlined_call_operand.vmem [shape: bf16[2,16,256], index: 3, kind: output, shape index: {}]
  %s4 = sld [smem:[#allocation0]]
  $region45: #{_lambda_.88} parent=0
    _
  %s6 = ssub.s32 1, %s4
  %s7 = scalar_select 0, %s6, %s4
  loop: start=0, step=1, limit=4
  $region2: #{_lambda_.88} parent=0 // loop_pre_header
    _
  $region3: #{_lambda_.88} parent=0 // loop_header
    %s9 = sphi 0, %s13
    %p10 = scmp.ge.s32.totalorder %s9, 4
    %s17 = sphi 0, %s17
    %s19 = sphi 0, %s17
    %s20 = sphi 0, %s19
    %s34 = sphi 0, %s20
    %s40 = sphi 0, %s42
    %s43 = sphi 0, %s40
    %s44 = sphi 0, %s43
    %s60 = sphi 0, %s44
    %s64 = sphi 0, %s64
    %s66 = sphi 0, %s64
    %s67 = sphi 0, %s66
    %s81 = sphi 0, %s67
    %s87 = sphi 0, %s89
    %s90 = sphi 0, %s87
    %s91 = sphi 0, %s90
    %s107 = sphi 0, %s91
  $region4: #{_lambda_.88} parent=0 // loop_header_branch
    %12 = sbr.rel (%p10) target = $region8
  $region5: #{_lambda_.88} parent=0 // loop_body
    %s14 = ssub.s32 %s9, 1
    %s15 = ssub.s32 %s9, 2
    %s16 = sadd.s32 %s9, 1
    %s18 = sadd.s32 %s17, 1
    %p21 = scmp.eq.s32.totalorder %s9, 1
    %p22 = scmp.ne.s32.totalorder %s17, %s19
    %p23 = scmp.eq.s32.totalorder %s9, 0
    %p24 = por %p22, %p23
    %p25 = scmp.ne.s32.totalorder %s17, %s19
    %p26 = scmp.eq.s32.totalorder %s14, 1
    %p27 = por %p25, %p26
    %p28 = scmp.ne.s32.totalorder %s19, %s20
    %p29 = scmp.eq.s32.totalorder %s14, 0
    %p30 = por %p28, %p29
    %p31 = scmp.ne.s32.totalorder %s19, %s20
    %p32 = scmp.eq.s32.totalorder %s15, 1
    %p33 = por %p31, %p32
    %p35 = scmp.ne.s32.totalorder %s20, %s34
    %p36 = scmp.eq.s32.totalorder %s15, 0
    %p37 = por %p35, %p36
    %s38 = ssub.s32 %s9, %s16
    %p39 = scmp.eq.s32.totalorder %s38, 0
    %s41 = sadd.s32 %s40, 1
    %s42 = scalar_select %p39, %s40, %s41
    %p45 = pneg %p39
    %p46 = scmp.eq.s32.totalorder %s9, 1
    %p47 = por %p45, %p46
    %p48 = scmp.ne.s32.totalorder %s40, %s43
    %p49 = scmp.eq.s32.totalorder %s9, 0
    %p50 = por %p48, %p49
    %p51 = scmp.ne.s32.totalorder %s40, %s43
    %p52 = scmp.eq.s32.totalorder %s14, 1
    %p53 = por %p51, %p52
    %p54 = scmp.ne.s32.totalorder %s43, %s44
    %p55 = scmp.eq.s32.totalorder %s14, 0
    %p56 = por %p54, %p55
    %p57 = scmp.ne.s32.totalorder %s43, %s44
    %p58 = scmp.eq.s32.totalorder %s15, 1
    %p59 = por %p57, %p58
    %p61 = scmp.ne.s32.totalorder %s44, %s60
    %p62 = scmp.eq.s32.totalorder %s15, 0
    %p63 = por %p61, %p62
    %s65 = sadd.s32 %s64, 1
    %p68 = scmp.eq.s32.totalorder %s9, 1
    %p69 = scmp.ne.s32.totalorder %s64, %s66
    %p70 = scmp.eq.s32.totalorder %s9, 0
    %p71 = por %p69, %p70
    %p72 = scmp.ne.s32.totalorder %s64, %s66
    %p73 = scmp.eq.s32.totalorder %s14, 1
    %p74 = por %p72, %p73
    %p75 = scmp.ne.s32.totalorder %s66, %s67
    %p76 = scmp.eq.s32.totalorder %s14, 0
    %p77 = por %p75, %p76
    %p78 = scmp.ne.s32.totalorder %s66, %s67
    %p79 = scmp.eq.s32.totalorder %s15, 1
    %p80 = por %p78, %p79
    %p82 = scmp.ne.s32.totalorder %s67, %s81
    %p83 = scmp.eq.s32.totalorder %s15, 0
    %p84 = por %p82, %p83
    %s85 = ssub.s32 %s9, %s16
    %p86 = scmp.eq.s32.totalorder %s85, 0
    %s88 = sadd.s32 %s87, 1
    %s89 = scalar_select %p86, %s87, %s88
    %p92 = pneg %p86
    %p93 = scmp.eq.s32.totalorder %s9, 1
    %p94 = por %p92, %p93
    %p95 = scmp.ne.s32.totalorder %s87, %s90
    %p96 = scmp.eq.s32.totalorder %s9, 0
    %p97 = por %p95, %p96
    %p98 = scmp.ne.s32.totalorder %s87, %s90
    %p99 = scmp.eq.s32.totalorder %s14, 1
    %p100 = por %p98, %p99
    %p101 = scmp.ne.s32.totalorder %s90, %s91
    %p102 = scmp.eq.s32.totalorder %s14, 0
    %p103 = por %p101, %p102
    %p104 = scmp.ne.s32.totalorder %s90, %s91
    %p105 = scmp.eq.s32.totalorder %s15, 1
    %p106 = por %p104, %p105
    %p108 = scmp.ne.s32.totalorder %s91, %s107
    %p109 = scmp.eq.s32.totalorder %s15, 0
    %p110 = por %p108, %p109
    %p111 = scmp.le.s32.totalorder 1, %s9
    %p112 = scmp.lt.s32.totalorder %s9, 3
    %p113 = pnand %p111, %p112
    %p114 = pneg %p113
    // Predicated region
    $region9: #{_lambda_.88} parent=5 // pred_check
      _
    $region10: #{_lambda_.88} parent=5 // pred_check_branch
      %116 = sbr.rel (%p113) target = $region12
    $region11: #{_lambda_.88} parent=5 // pred_region
      %s117 = ssub.s32 %s9, 1
      // Predicated region
      $region13: #{_lambda_.88} parent=11 // pred_check
        %p118 = pneg %p30
      $region14: #{_lambda_.88} parent=11 // pred_check_branch
        %120 = sbr.rel (%p118) target = $region16
      $region15: #{_lambda_.88} parent=11 // pred_region
        _
      $region16: #{_lambda_.88} parent=11 // pred_fallthru
        _
      // Predicated region
      $region17: #{_lambda_.88} parent=11 // pred_check
        %p121 = pneg %p77
      $region18: #{_lambda_.88} parent=11 // pred_check_branch
        %123 = sbr.rel (%p121) target = $region20
      $region19: #{_lambda_.88} parent=11 // pred_region
        _
      $region20: #{_lambda_.88} parent=11 // pred_fallthru
        _
    $region12: #{_lambda_.88} parent=5 // pred_fallthru
      _
    %p124 = scmp.lt.s32.totalorder %s9, 2
    // Predicated region
    $region21: #{_lambda_.88} parent=5 // pred_check
      %p125 = pneg %p124
    $region22: #{_lambda_.88} parent=5 // pred_check_branch
      %127 = sbr.rel (%p125) target = $region24
    $region23: #{_lambda_.88} parent=5 // pred_region
      // Predicated region
      $region25: #{_lambda_.88} parent=23 // pred_check
        %p128 = pneg %p50
      $region26: #{_lambda_.88} parent=23 // pred_check_branch
        %130 = sbr.rel (%p128) target = $region28
      $region27: #{_lambda_.88} parent=23 // pred_region
        %p131 = scmp.lt.s32.totalorder %s9, 1
        %s132 = scalar_select %p131, %s9, 1
        %s133 = smul.addr %s132, 72
        %s134 = smul.addr %s133, 4
        %s135 = scalar_lea.vmem %s1, %s134
      $region28: #{_lambda_.88} parent=23 // pred_fallthru
        _
    $region24: #{_lambda_.88} parent=5 // pred_fallthru
      _
    %p136 = scmp.le.s32.totalorder 1, %s9
    %p137 = scmp.lt.s32.totalorder %s9, 3
    %p138 = pnand %p136, %p137
    %p139 = pneg %p138
    // Predicated region
    $region29: #{_lambda_.88} parent=5 // pred_check
      _
    $region30: #{_lambda_.88} parent=5 // pred_check_branch
      %141 = sbr.rel (%p138) target = $region32
    $region31: #{_lambda_.88} parent=5 // pred_region
      %s142 = ssub.s32 %s9, 1
      %p143 = pneg %p30
      %p144 = pneg %p27
      %p145 = scmp.lt.s32.totalorder %s14, 1
      %s146 = scalar_select %p145, %s14, 1
      %s147 = smul.addr %s146, 72
      %s148 = smul.addr %s147, 4
      %s149 = scalar_lea.vmem %s1, %s148
      %p150 = pneg %p56
      %p151 = pneg %p53
      %p152 = pneg %p77
      %p153 = pneg %p74
      %p154 = pneg %p103
      %p155 = pneg %p100
      %p156 = scmp.lt.s32.totalorder %s14, 1
      %s157 = scalar_select %p156, %s14, 1
      %s158 = smul.addr %s157, 4
      %s159 = smul.addr %s158, 4
      %s160 = scalar_lea.vmem %s3, %s159
      %p161 = scmp.lt.s32.totalorder %s14, 1
      %s162 = scalar_select %p161, %s14, 1
      %s163 = smul.addr %s162, 72
      %s164 = smul.addr %s163, 4
      %s165 = scalar_lea.vmem %s1, %s164
      %p166 = scmp.lt.s32.totalorder %s14, 1
      %s167 = scalar_select %p166, %s14, 1
      %s168 = smul.addr %s167, 4
      %s169 = smul.addr %s168, 4
      %s170 = scalar_lea.vmem %s3, %s169
      %v172 = vld [vmem:[%s0] sm:$0xff]
      %v173 = vld [vmem:[%s0 + $0x8] sm:$0xf]
      %v174 = vld [vmem:[%s0 + $0xc] sm:$0xff]
      %v175 = vld [vmem:[%s0 + $0x14] sm:$0xf]
      %v176 = vld [vmem:[%s165] sm:$0xff]
      %v177 = vld [vmem:[%s165 + $0x8] sm:$0xff]
      %v178 = vld [vmem:[%s165 + $0x10] sm:$0xff]
      %v179 = vld [vmem:[%s165 + $0x18] sm:$0xff]
      %v180 = vld [vmem:[%s165 + $0x20] sm:$0xff]
      %v181 = vld [vmem:[%s165 + $0x28] sm:$0xff]
      %v182 = vld [vmem:[%s165 + $0x30] sm:$0xff]
      %v183 = vld [vmem:[%s165 + $0x38] sm:$0xff]
      %v184 = vld [vmem:[%s165 + $0x40] sm:$0xff]
      %v185 = vld [vmem:[%s165 + $0x48] sm:$0xff]
      %v186 = vld [vmem:[%s165 + $0x50] sm:$0xff]
      %v187 = vld [vmem:[%s165 + $0x58] sm:$0xff]
      %v188 = vld [vmem:[%s165 + $0x60] sm:$0xff]
      %v189 = vld [vmem:[%s165 + $0x68] sm:$0xff]
      %v190 = vld [vmem:[%s165 + $0x70] sm:$0xff]
      %v191 = vld [vmem:[%s165 + $0x78] sm:$0xff]
      %v192 = vld [vmem:[%s165 + $0x80] sm:$0xff]
      %v193 = vld [vmem:[%s165 + $0x88] sm:$0xff]
      %v194 = vld [vmem:[%s165 + $0x90] sm:$0xff]
      %v195 = vld [vmem:[%s165 + $0x98] sm:$0xff]
      %v196 = vld [vmem:[%s165 + $0xa0] sm:$0xff]
      %v197 = vld [vmem:[%s165 + $0xa8] sm:$0xff]
      %v198 = vld [vmem:[%s165 + $0xb0] sm:$0xff]
      %v199 = vld [vmem:[%s165 + $0xb8] sm:$0xff]
      %v200 = vld [vmem:[%s165 + $0xc0] sm:$0xff]
      %v201 = vld [vmem:[%s165 + $0xc8] sm:$0xff]
      %v202 = vld [vmem:[%s165 + $0xd0] sm:$0xff]
      %v203 = vld [vmem:[%s165 + $0xd8] sm:$0xff]
      %v204 = vld [vmem:[%s165 + $0xe0] sm:$0xff]
      %v205 = vld [vmem:[%s165 + $0xe8] sm:$0xff]
      %v206 = vld [vmem:[%s165 + $0xf0] sm:$0xff]
      %v207 = vld [vmem:[%s165 + $0xf8] sm:$0xff]
      %v208 = vld [vmem:[%s165 + $0x100] sm:$0xff]
      %v209 = vld [vmem:[%s165 + $0x108] sm:$0xff]
      %v210 = vld [vmem:[%s165 + $0x110] sm:$0xff]
      %v211 = vld [vmem:[%s165 + $0x118] sm:$0xff]
      %v216 = vunpack.c.l.b16 %v172
      %v217 = vunpack.c.h.b16 %v172
      %v218 = vunpack.c.l.b16 %v173
      %v219 = vunpack.c.l.b16 %v174
      %v220 = vunpack.c.h.b16 %v174
      %v221 = vunpack.c.l.b16 %v175
      %v222 = vpack.c.b16 %v219, %v216
      %v223 = vpack.c.b16 %v220, %v217
      %v224 = vpack.c.b16 %v221, %v218
      %v263 = vunpack.c.l.b16 %v176
      %v264 = vunpack.c.h.b16 %v176
      %v265 = vunpack.c.l.b16 %v177
      %v266 = vunpack.c.h.b16 %v177
      %v267 = vunpack.c.l.b16 %v178
      %v268 = vunpack.c.h.b16 %v178
      %v269 = vunpack.c.l.b16 %v179
      %v270 = vunpack.c.h.b16 %v179
      %v271 = vunpack.c.l.b16 %v180
      %v272 = vunpack.c.h.b16 %v180
      %v273 = vunpack.c.l.b16 %v181
      %v274 = vunpack.c.h.b16 %v181
      %v275 = vunpack.c.l.b16 %v182
      %v276 = vunpack.c.h.b16 %v182
      %v277 = vunpack.c.l.b16 %v183
      %v278 = vunpack.c.h.b16 %v183
      %v279 = vunpack.c.l.b16 %v184
      %v280 = vunpack.c.h.b16 %v184
      %v281 = vunpack.c.l.b16 %v185
      %v282 = vunpack.c.h.b16 %v185
      %v283 = vunpack.c.l.b16 %v186
      %v284 = vunpack.c.h.b16 %v186
      %v285 = vunpack.c.l.b16 %v187
      %v286 = vunpack.c.h.b16 %v187
      %v287 = vunpack.c.l.b16 %v188
      %v288 = vunpack.c.h.b16 %v188
      %v289 = vunpack.c.l.b16 %v189
      %v290 = vunpack.c.h.b16 %v189
      %v291 = vunpack.c.l.b16 %v190
      %v292 = vunpack.c.h.b16 %v190
      %v293 = vunpack.c.l.b16 %v191
      %v294 = vunpack.c.h.b16 %v191
      %v295 = vunpack.c.l.b16 %v192
      %v296 = vunpack.c.h.b16 %v192
      %v297 = vunpack.c.l.b16 %v193
      %v298 = vunpack.c.h.b16 %v193
      %v299 = vunpack.c.l.b16 %v194
      %v300 = vunpack.c.h.b16 %v194
      %v301 = vunpack.c.l.b16 %v195
      %v302 = vunpack.c.h.b16 %v195
      %v303 = vunpack.c.l.b16 %v196
      %v304 = vunpack.c.h.b16 %v196
      %v305 = vunpack.c.l.b16 %v197
      %v306 = vunpack.c.h.b16 %v197
      %v307 = vunpack.c.l.b16 %v198
      %v308 = vunpack.c.h.b16 %v198
      %v309 = vunpack.c.l.b16 %v199
      %v310 = vunpack.c.h.b16 %v199
      %v311 = vunpack.c.l.b16 %v200
      %v312 = vunpack.c.h.b16 %v200
      %v313 = vunpack.c.l.b16 %v201
      %v314 = vunpack.c.h.b16 %v201
      %v315 = vunpack.c.l.b16 %v202
      %v316 = vunpack.c.h.b16 %v202
      %v317 = vunpack.c.l.b16 %v203
      %v318 = vunpack.c.h.b16 %v203
      %v319 = vunpack.c.l.b16 %v204
      %v320 = vunpack.c.h.b16 %v204
      %v321 = vunpack.c.l.b16 %v205
      %v322 = vunpack.c.h.b16 %v205
      %v323 = vunpack.c.l.b16 %v206
      %v324 = vunpack.c.h.b16 %v206
      %v325 = vunpack.c.l.b16 %v207
      %v326 = vunpack.c.h.b16 %v207
      %v327 = vunpack.c.l.b16 %v208
      %v328 = vunpack.c.h.b16 %v208
      %v329 = vunpack.c.l.b16 %v209
      %v330 = vunpack.c.h.b16 %v209
      %v331 = vunpack.c.l.b16 %v210
      %v332 = vunpack.c.h.b16 %v210
      %v333 = vunpack.c.l.b16 %v211
      %v334 = vunpack.c.h.b16 %v211
      %v335 = vpack.c.b16 %v265, %v263
      %v336 = vpack.c.b16 %v266, %v264
      %v337 = vpack.c.b16 %v269, %v267
      %v338 = vpack.c.b16 %v270, %v268
      %v339 = vpack.c.b16 %v273, %v271
      %v340 = vpack.c.b16 %v274, %v272
      %v341 = vpack.c.b16 %v277, %v275
      %v342 = vpack.c.b16 %v278, %v276
      %v343 = vpack.c.b16 %v281, %v279
      %v344 = vpack.c.b16 %v282, %v280
      %v345 = vpack.c.b16 %v285, %v283
      %v346 = vpack.c.b16 %v286, %v284
      %v347 = vpack.c.b16 %v289, %v287
      %v348 = vpack.c.b16 %v290, %v288
      %v349 = vpack.c.b16 %v293, %v291
      %v350 = vpack.c.b16 %v294, %v292
      %v351 = vpack.c.b16 %v297, %v295
      %v352 = vpack.c.b16 %v298, %v296
      %v353 = vpack.c.b16 %v301, %v299
      %v354 = vpack.c.b16 %v302, %v300
      %v355 = vpack.c.b16 %v305, %v303
      %v356 = vpack.c.b16 %v306, %v304
      %v357 = vpack.c.b16 %v309, %v307
      %v358 = vpack.c.b16 %v310, %v308
      %v359 = vpack.c.b16 %v313, %v311
      %v360 = vpack.c.b16 %v314, %v312
      %v361 = vpack.c.b16 %v317, %v315
      %v362 = vpack.c.b16 %v318, %v316
      %v363 = vpack.c.b16 %v321, %v319
      %v364 = vpack.c.b16 %v322, %v320
      %v365 = vpack.c.b16 %v325, %v323
      %v366 = vpack.c.b16 %v326, %v324
      %v367 = vpack.c.b16 %v329, %v327
      %v368 = vpack.c.b16 %v330, %v328
      %v369 = vpack.c.b16 %v333, %v331
      %v370 = vpack.c.b16 %v334, %v332
      %vm407 = vcmask 261120
      %v409 = vsel %vm407, %v224, 0
      %411 = vmatprep.subr.bf16.mxu0 %v336
      %412 = vmatpush1.bf16.msra.mxu0 %v335
      %413 = vmatprep.subr.bf16.mxu0 %v338
      %414 = vmatpush1.bf16.msra.mxu0 %v337
      %415 = vmatprep.subr.bf16.mxu0 %v340
      %416 = vmatpush1.bf16.msra.mxu0 %v339
      %417 = vmatprep.subr.bf16.mxu0 %v342
      %418 = vmatpush1.bf16.msra.mxu0 %v341
      %419 = vmatprep.subr.bf16.mxu0 %v344
      %420 = vmatpush1.bf16.msra.mxu0 %v343
      %421 = vmatprep.subr.bf16.mxu0 %v346
      %422 = vmatpush1.bf16.msra.mxu0 %v345
      %423 = vmatprep.subr.bf16.mxu0 %v348
      %424 = vmatpush1.bf16.msra.mxu0 %v347
      %425 = vmatprep.subr.bf16.mxu0 %v350
      %426 = vmatpush1.bf16.msra.mxu0 %v349
      %427 = vmatprep.subr.bf16.mxu0 %v352
      %428 = vmatpush1.bf16.msra.mxu0 %v351
      %429 = vmatprep.subr.bf16.mxu0 %v354
      %430 = vmatpush1.bf16.msra.mxu0 %v353
      %431 = vmatprep.subr.bf16.mxu0 %v356
      %432 = vmatpush1.bf16.msra.mxu0 %v355
      %433 = vmatprep.subr.bf16.mxu0 %v358
      %434 = vmatpush1.bf16.msra.mxu0 %v357
      %435 = vmatprep.subr.bf16.mxu0 %v360
      %436 = vmatpush1.bf16.msra.mxu0 %v359
      %437 = vmatprep.subr.bf16.mxu0 %v362
      %438 = vmatpush1.bf16.msra.mxu0 %v361
      %439 = vmatprep.subr.bf16.mxu0 %v364
      %440 = vmatpush1.bf16.msra.mxu0 %v363
      %441 = vmatprep.subr.bf16.mxu0 %v366
      %442 = vmatpush1.bf16.msra.mxu0 %v365
      %443 = vmatprep.mubr.bf16.mxu0 %v223
      %444 = vmatmul.mubr.bf16.gmra.mrb[0].mxu0 %v222
      %v445 = vpop.f32.mrb[0].mxu0
      %v446 = vadd.f32 0.0, %v445
      %v447 = vpop.f32.mrb[0].mxu0
      %v448 = vadd.f32 0.0, %v447
      %v449 = vpop.f32.mrb[0].mxu0
      %v450 = vadd.f32 0.0, %v449
      %v451 = vpop.f32.mrb[0].mxu0
      %v452 = vadd.f32 0.0, %v451
      %453 = vdwg.mxu0
      %454 = vmatprep.subr.bf16.mxu0 %v368
      %455 = vmatpush1.bf16.msra.mxu0 %v367
      %456 = vmatprep.subr.bf16.mxu0 %v370
      %457 = vmatpush1.bf16.msra.mxu0 %v369
      %458 = vmatprep.subr.bf16.mxu0 0
      %459 = vmatpush1.bf16.msra.mxu0 0
      %460 = vmatprep.subr.bf16.mxu0 0
      %461 = vmatpush1.bf16.msra.mxu0 0
      %462 = vmatprep.subr.bf16.mxu0 0
      %463 = vmatpush1.bf16.msra.mxu0 0
      %464 = vmatprep.subr.bf16.mxu0 0
      %465 = vmatpush1.bf16.msra.mxu0 0
      %466 = vmatprep.subr.bf16.mxu0 0
      %467 = vmatpush1.bf16.msra.mxu0 0
      %468 = vmatprep.subr.bf16.mxu0 0
      %469 = vmatpush1.bf16.msra.mxu0 0
      %470 = vmatprep.subr.bf16.mxu0 0
      %471 = vmatpush1.bf16.msra.mxu0 0
      %472 = vmatprep.subr.bf16.mxu0 0
      %473 = vmatpush1.bf16.msra.mxu0 0
      %474 = vmatprep.subr.bf16.mxu0 0
      %475 = vmatpush1.bf16.msra.mxu0 0
      %476 = vmatprep.subr.bf16.mxu0 0
      %477 = vmatpush1.bf16.msra.mxu0 0
      %478 = vmatprep.subr.bf16.mxu0 0
      %479 = vmatpush1.bf16.msra.mxu0 0
      %480 = vmatprep.subr.bf16.mxu0 0
      %481 = vmatpush1.bf16.msra.mxu0 0
      %482 = vmatprep.subr.bf16.mxu0 0
      %483 = vmatpush1.bf16.msra.mxu0 0
      %484 = vmatprep.subr.bf16.mxu0 0
      %485 = vmatpush1.bf16.msra.mxu0 0
      %486 = vmatprep.mubr.bf16.mxu0 0
      %487 = vmatmul.mubr.bf16.gmra.mrb[0].mxu0 %v409
      %v488 = vpop.f32.mrb[0].mxu0
      %v489 = vadd.f32 %v446, %v488
      %v490 = vpop.f32.mrb[0].mxu0
      %v491 = vadd.f32 %v448, %v490
      %v492 = vpop.f32.mrb[0].mxu0
      %v493 = vadd.f32 %v450, %v492
      %v494 = vpop.f32.mrb[0].mxu0
      %v495 = vadd.f32 %v452, %v494
      %496 = vdwg.mxu0
      %v497 = vadd.f32 %v489, %v491
      %v498 = vadd.f32 %v497, %v493
      %v499 = vadd.f32 %v498, %v495
      %500 = vadd.xlane.f32.xlu0 %v499
      %v501 = vpop.xlane.xlu0 %500
      %v502 = vrot.slane %v501, 4
      %v503 = vadd.f32 %v501, %v502
      %v504 = vrot.slane %v503, 2
      %v505 = vadd.f32 %v503, %v504
      %v506 = vrot.slane %v505, 1
      %v507 = vadd.f32 %v505, %v506
      %s508 = vtos %v507
      %v509 = vrcp.pop 4096.0
      %s510 = vtos %v509
      %s511 = smul.f32 %s508, %s510
      %v512 = vstv %s511
      %v513 = vsub.f32 %v489, %v512
      %v514 = vsub.f32 %v491, %v512
      %v515 = vsub.f32 %v493, %v512
      %v516 = vsub.f32 %v495, %v512
      %v517 = vmul.f32 %v513, %v513
      %v518 = vmul.f32 %v514, %v514
      %v519 = vmul.f32 %v515, %v515
      %v520 = vmul.f32 %v516, %v516
      %v521 = vadd.f32 %v517, %v518
      %v522 = vadd.f32 %v521, %v519
      %v523 = vadd.f32 %v522, %v520
      %524 = vadd.xlane.f32.xlu0 %v523
      %v525 = vpop.xlane.xlu0 %524
      %v526 = vrot.slane %v525, 4
      %v527 = vadd.f32 %v525, %v526
      %v528 = vrot.slane %v527, 2
      %v529 = vadd.f32 %v527, %v528
      %v530 = vrot.slane %v529, 1
      %v531 = vadd.f32 %v529, %v530
      %s532 = vtos %v531
      %v533 = vrcp.pop 4096.0
      %s534 = vtos %v533
      %s535 = smul.f32 %s532, %s534
      %s536 = sadd.f32 %s535, 1e-05
      %v537 = vstv %s536
      %v538 = vrsqrt.pop %v537
      %s539 = vtos %v538
      %v540 = vstv %s539
      %v541 = vmul.f32 %v513, %v540
      %v542 = vmul.f32 %v514, %v540
      %v543 = vmul.f32 %v515, %v540
      %v544 = vmul.f32 %v516, %v540
      %v545 = vld [vmem:[%s2] sm:$0xff]
      %v546 = vld [vmem:[%s2 + $0x8] sm:$0xff]
      %vm547 = vcmp.gt.f32.partialorder %v541, 0.0
      %vm548 = vcmp.gt.f32.partialorder %v542, 0.0
      %vm549 = vcmp.gt.f32.partialorder %v543, 0.0
      %vm550 = vcmp.gt.f32.partialorder %v544, 0.0
      %552 = vset.pattern.permute.xlu0 0
      %553 = vperm.xlu0 %552, %v545
      %v554 = vpop.permute.xlu0 %553
      %557 = vset.pattern.permute.xlu0 0
      %558 = vperm.xlu0 %557, %v546
      %v559 = vpop.permute.xlu0 %558
      %v561 = vmul.f32 %v554, %v541
      %v562 = vmul.f32 %v554, %v542
      %v563 = vmul.f32 %v559, %v543
      %v564 = vmul.f32 %v559, %v544
      %v565 = vsel %vm547, %v541, %v561
      %v566 = vsel %vm548, %v542, %v562
      %v567 = vsel %vm549, %v543, %v563
      %v568 = vsel %vm550, %v544, %v564
      %v569 = vpack.c.bf16 %v567, %v565
      %v570 = vpack.c.bf16 %v568, %v566
      %v573 = vunpack.c.l.b16 %v569
      %v574 = vunpack.c.l.b16 %v570
      %v575 = vunpack.c.h.b16 %v569
      %v576 = vunpack.c.h.b16 %v570
      %v577 = vpack.c.b16 %v574, %v573
      %v578 = vpack.c.b16 %v576, %v575
      %581 = vst [vmem:[%s170] sm:$0xff] %v577
      %582 = vst [vmem:[%s170 + $0x8] sm:$0xff] %v578
      %p583 = scmp.lt.s32.totalorder %s14, 1
      %s584 = scalar_select %p583, %s14, 1
      %s585 = smul.addr %s584, 4
      %s586 = smul.addr %s585, 4
      %s587 = scalar_lea.vmem %s3, %s586
      // Predicated region
      $region33: #{_lambda_.88} parent=31 // pred_check
        %p588 = pneg %p100
      $region34: #{_lambda_.88} parent=31 // pred_check_branch
        %590 = sbr.rel (%p588) target = $region36
      $region35: #{_lambda_.88} parent=31 // pred_region
        _
      $region36: #{_lambda_.88} parent=31 // pred_fallthru
        _
    $region32: #{_lambda_.88} parent=5 // pred_fallthru
      _
    %p591 = scmp.le.s32.totalorder 2, %s9
    // Predicated region
    $region37: #{_lambda_.88} parent=5 // pred_check
      %p592 = pneg %p591
    $region38: #{_lambda_.88} parent=5 // pred_check_branch
      %594 = sbr.rel (%p592) target = $region40
    $region39: #{_lambda_.88} parent=5 // pred_region
      %s595 = ssub.s32 %s9, 2
      // Predicated region
      $region41: #{_lambda_.88} parent=39 // pred_check
        %p596 = pneg %p106
      $region42: #{_lambda_.88} parent=39 // pred_check_branch
        %598 = sbr.rel (%p596) target = $region44
      $region43: #{_lambda_.88} parent=39 // pred_region
        %p599 = scmp.lt.s32.totalorder %s15, 1
        %s600 = scalar_select %p599, %s15, 1
        %s601 = smul.addr %s600, 4
        %s602 = smul.addr %s601, 4
        %s603 = scalar_lea.vmem %s3, %s602
      $region44: #{_lambda_.88} parent=39 // pred_fallthru
        _
    $region40: #{_lambda_.88} parent=5 // pred_fallthru
      _
  $region6: #{_lambda_.88} parent=0 // loop_footer
    %s13 = sadd.s32 1, %s9
  $region7: #{_lambda_.88} parent=0 // loop_footer_branch
    %8 = sbr.rel target = $region3
  $region8: #{_lambda_.88} parent=0 // loop_exit
    _

// kernel: _lambda_.90
$region0: #{_lambda_.90}
  #allocation0 [shape = 'u32[]', space=smem, size = 0x4, offset = 0x4, fixed_abs, tag = 'smem constant byte address 0x4 - core index']
  #allocation1 [shape = 'u32[144,128]{1,0:T(1,128)}', space=vmem, size = 0x12000, scoped, tag = 'internal scratch']
  %s0 = inlined_call_operand.vmem [shape: bf16[16,144], index: 0, kind: input, shape index: {}]
  %s1 = inlined_call_operand.vmem [shape: bf16[2,144,256], index: 1, kind: input, shape index: {}]
  %s2 = inlined_call_operand.vmem [shape: bf16[2,16,256], index: 2, kind: input, shape index: {}]
  %s3 = inlined_call_operand.vmem [shape: f32[16,1], index: 3, kind: input, shape index: {}]
  %s4 = inlined_call_operand.vmem [shape: bf16[2,16,256], index: 4, kind: output, shape index: {}]
  %s5 = sld [smem:[#allocation0]]
  $region49: #{_lambda_.90} parent=0
    _
  %s7 = ssub.s32 1, %s5
  %s8 = scalar_select 0, %s7, %s5
  loop: start=0, step=1, limit=4
  $region2: #{_lambda_.90} parent=0 // loop_pre_header
    _
  $region3: #{_lambda_.90} parent=0 // loop_header
    %s10 = sphi 0, %s14
    %p11 = scmp.ge.s32.totalorder %s10, 4
    %s18 = sphi 0, %s18
    %s20 = sphi 0, %s18
    %s21 = sphi 0, %s20
    %s35 = sphi 0, %s21
    %s41 = sphi 0, %s43
    %s44 = sphi 0, %s41
    %s45 = sphi 0, %s44
    %s61 = sphi 0, %s45
    %s67 = sphi 0, %s69
    %s70 = sphi 0, %s67
    %s71 = sphi 0, %s70
    %s87 = sphi 0, %s71
    %s91 = sphi 0, %s91
    %s93 = sphi 0, %s91
    %s94 = sphi 0, %s93
    %s108 = sphi 0, %s94
    %s114 = sphi 0, %s116
    %s117 = sphi 0, %s114
    %s118 = sphi 0, %s117
    %s134 = sphi 0, %s118
  $region4: #{_lambda_.90} parent=0 // loop_header_branch
    %13 = sbr.rel (%p11) target = $region8
  $region5: #{_lambda_.90} parent=0 // loop_body
    %s15 = ssub.s32 %s10, 1
    %s16 = ssub.s32 %s10, 2
    %s17 = sadd.s32 %s10, 1
    %s19 = sadd.s32 %s18, 1
    %p22 = scmp.eq.s32.totalorder %s10, 1
    %p23 = scmp.ne.s32.totalorder %s18, %s20
    %p24 = scmp.eq.s32.totalorder %s10, 0
    %p25 = por %p23, %p24
    %p26 = scmp.ne.s32.totalorder %s18, %s20
    %p27 = scmp.eq.s32.totalorder %s15, 1
    %p28 = por %p26, %p27
    %p29 = scmp.ne.s32.totalorder %s20, %s21
    %p30 = scmp.eq.s32.totalorder %s15, 0
    %p31 = por %p29, %p30
    %p32 = scmp.ne.s32.totalorder %s20, %s21
    %p33 = scmp.eq.s32.totalorder %s16, 1
    %p34 = por %p32, %p33
    %p36 = scmp.ne.s32.totalorder %s21, %s35
    %p37 = scmp.eq.s32.totalorder %s16, 0
    %p38 = por %p36, %p37
    %s39 = ssub.s32 %s10, %s17
    %p40 = scmp.eq.s32.totalorder %s39, 0
    %s42 = sadd.s32 %s41, 1
    %s43 = scalar_select %p40, %s41, %s42
    %p46 = pneg %p40
    %p47 = scmp.eq.s32.totalorder %s10, 1
    %p48 = por %p46, %p47
    %p49 = scmp.ne.s32.totalorder %s41, %s44
    %p50 = scmp.eq.s32.totalorder %s10, 0
    %p51 = por %p49, %p50
    %p52 = scmp.ne.s32.totalorder %s41, %s44
    %p53 = scmp.eq.s32.totalorder %s15, 1
    %p54 = por %p52, %p53
    %p55 = scmp.ne.s32.totalorder %s44, %s45
    %p56 = scmp.eq.s32.totalorder %s15, 0
    %p57 = por %p55, %p56
    %p58 = scmp.ne.s32.totalorder %s44, %s45
    %p59 = scmp.eq.s32.totalorder %s16, 1
    %p60 = por %p58, %p59
    %p62 = scmp.ne.s32.totalorder %s45, %s61
    %p63 = scmp.eq.s32.totalorder %s16, 0
    %p64 = por %p62, %p63
    %s65 = ssub.s32 %s10, %s17
    %p66 = scmp.eq.s32.totalorder %s65, 0
    %s68 = sadd.s32 %s67, 1
    %s69 = scalar_select %p66, %s67, %s68
    %p72 = pneg %p66
    %p73 = scmp.eq.s32.totalorder %s10, 1
    %p74 = por %p72, %p73
    %p75 = scmp.ne.s32.totalorder %s67, %s70
    %p76 = scmp.eq.s32.totalorder %s10, 0
    %p77 = por %p75, %p76
    %p78 = scmp.ne.s32.totalorder %s67, %s70
    %p79 = scmp.eq.s32.totalorder %s15, 1
    %p80 = por %p78, %p79
    %p81 = scmp.ne.s32.totalorder %s70, %s71
    %p82 = scmp.eq.s32.totalorder %s15, 0
    %p83 = por %p81, %p82
    %p84 = scmp.ne.s32.totalorder %s70, %s71
    %p85 = scmp.eq.s32.totalorder %s16, 1
    %p86 = por %p84, %p85
    %p88 = scmp.ne.s32.totalorder %s71, %s87
    %p89 = scmp.eq.s32.totalorder %s16, 0
    %p90 = por %p88, %p89
    %s92 = sadd.s32 %s91, 1
    %p95 = scmp.eq.s32.totalorder %s10, 1
    %p96 = scmp.ne.s32.totalorder %s91, %s93
    %p97 = scmp.eq.s32.totalorder %s10, 0
    %p98 = por %p96, %p97
    %p99 = scmp.ne.s32.totalorder %s91, %s93
    %p100 = scmp.eq.s32.totalorder %s15, 1
    %p101 = por %p99, %p100
    %p102 = scmp.ne.s32.totalorder %s93, %s94
    %p103 = scmp.eq.s32.totalorder %s15, 0
    %p104 = por %p102, %p103
    %p105 = scmp.ne.s32.totalorder %s93, %s94
    %p106 = scmp.eq.s32.totalorder %s16, 1
    %p107 = por %p105, %p106
    %p109 = scmp.ne.s32.totalorder %s94, %s108
    %p110 = scmp.eq.s32.totalorder %s16, 0
    %p111 = por %p109, %p110
    %s112 = ssub.s32 %s10, %s17
    %p113 = scmp.eq.s32.totalorder %s112, 0
    %s115 = sadd.s32 %s114, 1
    %s116 = scalar_select %p113, %s114, %s115
    %p119 = pneg %p113
    %p120 = scmp.eq.s32.totalorder %s10, 1
    %p121 = por %p119, %p120
    %p122 = scmp.ne.s32.totalorder %s114, %s117
    %p123 = scmp.eq.s32.totalorder %s10, 0
    %p124 = por %p122, %p123
    %p125 = scmp.ne.s32.totalorder %s114, %s117
    %p126 = scmp.eq.s32.totalorder %s15, 1
    %p127 = por %p125, %p126
    %p128 = scmp.ne.s32.totalorder %s117, %s118
    %p129 = scmp.eq.s32.totalorder %s15, 0
    %p130 = por %p128, %p129
    %p131 = scmp.ne.s32.totalorder %s117, %s118
    %p132 = scmp.eq.s32.totalorder %s16, 1
    %p133 = por %p131, %p132
    %p135 = scmp.ne.s32.totalorder %s118, %s134
    %p136 = scmp.eq.s32.totalorder %s16, 0
    %p137 = por %p135, %p136
    %p138 = scmp.le.s32.totalorder 1, %s10
    %p139 = scmp.lt.s32.totalorder %s10, 3
    %p140 = pnand %p138, %p139
    %p141 = pneg %p140
    // Predicated region
    $region9: #{_lambda_.90} parent=5 // pred_check
      _
    $region10: #{_lambda_.90} parent=5 // pred_check_branch
      %143 = sbr.rel (%p140) target = $region12
    $region11: #{_lambda_.90} parent=5 // pred_region
      %s144 = ssub.s32 %s10, 1
      // Predicated region
      $region13: #{_lambda_.90} parent=11 // pred_check
        %p145 = pneg %p31
      $region14: #{_lambda_.90} parent=11 // pred_check_branch
        %147 = sbr.rel (%p145) target = $region16
      $region15: #{_lambda_.90} parent=11 // pred_region
        _
      $region16: #{_lambda_.90} parent=11 // pred_fallthru
        _
      // Predicated region
      $region17: #{_lambda_.90} parent=11 // pred_check
        %p148 = pneg %p104
      $region18: #{_lambda_.90} parent=11 // pred_check_branch
        %150 = sbr.rel (%p148) target = $region20
      $region19: #{_lambda_.90} parent=11 // pred_region
        _
      $region20: #{_lambda_.90} parent=11 // pred_fallthru
        _
    $region12: #{_lambda_.90} parent=5 // pred_fallthru
      _
    %p151 = scmp.lt.s32.totalorder %s10, 2
    // Predicated region
    $region21: #{_lambda_.90} parent=5 // pred_check
      %p152 = pneg %p151
    $region22: #{_lambda_.90} parent=5 // pred_check_branch
      %154 = sbr.rel (%p152) target = $region24
    $region23: #{_lambda_.90} parent=5 // pred_region
      // Predicated region
      $region25: #{_lambda_.90} parent=23 // pred_check
        %p155 = pneg %p51
      $region26: #{_lambda_.90} parent=23 // pred_check_branch
        %157 = sbr.rel (%p155) target = $region28
      $region27: #{_lambda_.90} parent=23 // pred_region
        %p158 = scmp.lt.s32.totalorder %s10, 1
        %s159 = scalar_select %p158, %s10, 1
        %s160 = smul.addr %s159, 36
        %s161 = smul.addr %s160, 4
        %s162 = scalar_lea.vmem %s1, %s161
      $region28: #{_lambda_.90} parent=23 // pred_fallthru
        _
      // Predicated region
      $region29: #{_lambda_.90} parent=23 // pred_check
        %p163 = pneg %p77
      $region30: #{_lambda_.90} parent=23 // pred_check_branch
        %165 = sbr.rel (%p163) target = $region32
      $region31: #{_lambda_.90} parent=23 // pred_region
        %p166 = scmp.lt.s32.totalorder %s10, 1
        %s167 = scalar_select %p166, %s10, 1
        %s168 = smul.addr %s167, 4
        %s169 = smul.addr %s168, 4
        %s170 = scalar_lea.vmem %s2, %s169
      $region32: #{_lambda_.90} parent=23 // pred_fallthru
        _
    $region24: #{_lambda_.90} parent=5 // pred_fallthru
      _
    %p171 = scmp.le.s32.totalorder 1, %s10
    %p172 = scmp.lt.s32.totalorder %s10, 3
    %p173 = pnand %p171, %p172
    %p174 = pneg %p173
    // Predicated region
    $region33: #{_lambda_.90} parent=5 // pred_check
      _
    $region34: #{_lambda_.90} parent=5 // pred_check_branch
      %176 = sbr.rel (%p173) target = $region36
    $region35: #{_lambda_.90} parent=5 // pred_region
      %s177 = ssub.s32 %s10, 1
      %p178 = pneg %p31
      %p179 = pneg %p28
      %p180 = scmp.lt.s32.totalorder %s15, 1
      %s181 = scalar_select %p180, %s15, 1
      %s182 = smul.addr %s181, 36
      %s183 = smul.addr %s182, 4
      %s184 = scalar_lea.vmem %s1, %s183
      %p185 = pneg %p57
      %p186 = pneg %p54
      %p187 = scmp.lt.s32.totalorder %s15, 1
      %s188 = scalar_select %p187, %s15, 1
      %s189 = smul.addr %s188, 4
      %s190 = smul.addr %s189, 4
      %s191 = scalar_lea.vmem %s2, %s190
      %p192 = pneg %p83
      %p193 = pneg %p80
      %p194 = pneg %p104
      %p195 = pneg %p101
      %p196 = pneg %p130
      %p197 = pneg %p127
      %p198 = scmp.lt.s32.totalorder %s15, 1
      %s199 = scalar_select %p198, %s15, 1
      %s200 = smul.addr %s199, 4
      %s201 = smul.addr %s200, 4
      %s202 = scalar_lea.vmem %s4, %s201
      %p203 = scmp.lt.s32.totalorder %s15, 1
      %s204 = scalar_select %p203, %s15, 1
      %s205 = smul.addr %s204, 36
      %s206 = smul.addr %s205, 4
      %s207 = scalar_lea.vmem %s1, %s206
      %p208 = scmp.lt.s32.totalorder %s15, 1
      %s209 = scalar_select %p208, %s15, 1
      %s210 = smul.addr %s209, 4
      %s211 = smul.addr %s210, 4
      %s212 = scalar_lea.vmem %s2, %s211
      %p213 = scmp.lt.s32.totalorder %s15, 1
      %s214 = scalar_select %p213, %s15, 1
      %s215 = smul.addr %s214, 4
      %s216 = smul.addr %s215, 4
      %s217 = scalar_lea.vmem %s4, %s216
      %v219 = vld [vmem:[%s0] sm:$0xff]
      %v220 = vld [vmem:[%s0 + $0x8] sm:$0xff]
      %v221 = vld [vmem:[%s207] sm:$0xff]
      %v222 = vld [vmem:[%s207 + $0x8] sm:$0xff]
      %v223 = vld [vmem:[%s207 + $0x10] sm:$0xff]
      %v224 = vld [vmem:[%s207 + $0x18] sm:$0xff]
      %v225 = vld [vmem:[%s207 + $0x20] sm:$0xff]
      %v226 = vld [vmem:[%s207 + $0x28] sm:$0xff]
      %v227 = vld [vmem:[%s207 + $0x30] sm:$0xff]
      %v228 = vld [vmem:[%s207 + $0x38] sm:$0xff]
      %v229 = vld [vmem:[%s207 + $0x40] sm:$0xff]
      %v230 = vld [vmem:[%s207 + $0x48] sm:$0xff]
      %v231 = vld [vmem:[%s207 + $0x50] sm:$0xff]
      %v232 = vld [vmem:[%s207 + $0x58] sm:$0xff]
      %v233 = vld [vmem:[%s207 + $0x60] sm:$0xff]
      %v234 = vld [vmem:[%s207 + $0x68] sm:$0xff]
      %v235 = vld [vmem:[%s207 + $0x70] sm:$0xff]
      %v236 = vld [vmem:[%s207 + $0x78] sm:$0xff]
      %v237 = vld [vmem:[%s207 + $0x80] sm:$0xff]
      %v238 = vld [vmem:[%s207 + $0x88] sm:$0xff]
      %v241 = vunpack.c.l.b16 %v219
      %v242 = vunpack.c.h.b16 %v219
      %v243 = vunpack.c.l.b16 %v220
      %v244 = vunpack.c.h.b16 %v220
      %v245 = vpack.c.b16 %v243, %v241
      %v246 = vpack.c.b16 %v244, %v242
      %v266 = vunpack.c.l.b16 %v221
      %v267 = vunpack.c.h.b16 %v221
      %v268 = vunpack.c.l.b16 %v222
      %v269 = vunpack.c.h.b16 %v222
      %v270 = vunpack.c.l.b16 %v223
      %v271 = vunpack.c.h.b16 %v223
      %v272 = vunpack.c.l.b16 %v224
      %v273 = vunpack.c.h.b16 %v224
      %v274 = vunpack.c.l.b16 %v225
      %v275 = vunpack.c.h.b16 %v225
      %v276 = vunpack.c.l.b16 %v226
      %v277 = vunpack.c.h.b16 %v226
      %v278 = vunpack.c.l.b16 %v227
      %v279 = vunpack.c.h.b16 %v227
      %v280 = vunpack.c.l.b16 %v228
      %v281 = vunpack.c.h.b16 %v228
      %v282 = vunpack.c.l.b16 %v229
      %v283 = vunpack.c.h.b16 %v229
      %v284 = vunpack.c.l.b16 %v230
      %v285 = vunpack.c.h.b16 %v230
      %v286 = vunpack.c.l.b16 %v231
      %v287 = vunpack.c.h.b16 %v231
      %v288 = vunpack.c.l.b16 %v232
      %v289 = vunpack.c.h.b16 %v232
      %v290 = vunpack.c.l.b16 %v233
      %v291 = vunpack.c.h.b16 %v233
      %v292 = vunpack.c.l.b16 %v234
      %v293 = vunpack.c.h.b16 %v234
      %v294 = vunpack.c.l.b16 %v235
      %v295 = vunpack.c.h.b16 %v235
      %v296 = vunpack.c.l.b16 %v236
      %v297 = vunpack.c.h.b16 %v236
      %v298 = vunpack.c.l.b16 %v237
      %v299 = vunpack.c.h.b16 %v237
      %v300 = vunpack.c.l.b16 %v238
      %v301 = vunpack.c.h.b16 %v238
      %v302 = vpack.c.b16 %v268, %v266
      %v303 = vpack.c.b16 %v269, %v267
      %v304 = vpack.c.b16 %v272, %v270
      %v305 = vpack.c.b16 %v273, %v271
      %v306 = vpack.c.b16 %v276, %v274
      %v307 = vpack.c.b16 %v277, %v275
      %v308 = vpack.c.b16 %v280, %v278
      %v309 = vpack.c.b16 %v281, %v279
      %v310 = vpack.c.b16 %v284, %v282
      %v311 = vpack.c.b16 %v285, %v283
      %v312 = vpack.c.b16 %v288, %v286
      %v313 = vpack.c.b16 %v289, %v287
      %v314 = vpack.c.b16 %v292, %v290
      %v315 = vpack.c.b16 %v293, %v291
      %v316 = vpack.c.b16 %v296, %v294
      %v317 = vpack.c.b16 %v297, %v295
      %v318 = vpack.c.b16 %v300, %v298
      %v319 = vpack.c.b16 %v301, %v299
      %vm338 = vcmask 130048
      %v340 = vsel %vm338, %v246, 0
      %342 = vmatprep.subr.bf16.mxu0 %v303
      %343 = vmatpush1.bf16.msra.mxu0 %v302
      %344 = vmatprep.subr.bf16.mxu0 %v305
      %345 = vmatpush1.bf16.msra.mxu0 %v304
      %346 = vmatprep.subr.bf16.mxu0 %v307
      %347 = vmatpush1.bf16.msra.mxu0 %v306
      %348 = vmatprep.subr.bf16.mxu0 %v309
      %349 = vmatpush1.bf16.msra.mxu0 %v308
      %350 = vmatprep.subr.bf16.mxu0 %v311
      %351 = vmatpush1.bf16.msra.mxu0 %v310
      %352 = vmatprep.subr.bf16.mxu0 %v313
      %353 = vmatpush1.bf16.msra.mxu0 %v312
      %354 = vmatprep.subr.bf16.mxu0 %v315
      %355 = vmatpush1.bf16.msra.mxu0 %v314
      %356 = vmatprep.subr.bf16.mxu0 %v317
      %357 = vmatpush1.bf16.msra.mxu0 %v316
      %358 = vmatprep.subr.bf16.mxu0 %v319
      %359 = vmatpush1.bf16.msra.mxu0 %v318
      %360 = vmatprep.subr.bf16.mxu0 0
      %361 = vmatpush1.bf16.msra.mxu0 0
      %362 = vmatprep.subr.bf16.mxu0 0
      %363 = vmatpush1.bf16.msra.mxu0 0
      %364 = vmatprep.subr.bf16.mxu0 0
      %365 = vmatpush1.bf16.msra.mxu0 0
      %366 = vmatprep.subr.bf16.mxu0 0
      %367 = vmatpush1.bf16.msra.mxu0 0
      %368 = vmatprep.subr.bf16.mxu0 0
      %369 = vmatpush1.bf16.msra.mxu0 0
      %370 = vmatprep.subr.bf16.mxu0 0
      %371 = vmatpush1.bf16.msra.mxu0 0
      %372 = vmatprep.subr.bf16.mxu0 0
      %373 = vmatpush1.bf16.msra.mxu0 0
      %374 = vmatprep.mubr.bf16.mxu0 %v340
      %375 = vmatmul.mubr.bf16.gmra.mrb[0].mxu0 %v245
      %v376 = vpop.f32.mrb[0].mxu0
      %v377 = vadd.f32 0.0, %v376
      %v378 = vpop.f32.mrb[0].mxu0
      %v379 = vadd.f32 0.0, %v378
      %v380 = vpop.f32.mrb[0].mxu0
      %v381 = vadd.f32 0.0, %v380
      %v382 = vpop.f32.mrb[0].mxu0
      %v383 = vadd.f32 0.0, %v382
      %384 = vdwg.mxu0
      %v385 = vadd.f32 %v377, %v379
      %v386 = vadd.f32 %v385, %v381
      %v387 = vadd.f32 %v386, %v383
      %388 = vadd.xlane.f32.xlu0 %v387
      %v389 = vpop.xlane.xlu0 %388
      %v390 = vrot.slane %v389, 4
      %v391 = vadd.f32 %v389, %v390
      %v392 = vrot.slane %v391, 2
      %v393 = vadd.f32 %v391, %v392
      %v394 = vrot.slane %v393, 1
      %v395 = vadd.f32 %v393, %v394
      %s396 = vtos %v395
      %v397 = vrcp.pop 4096.0
      %s398 = vtos %v397
      %s399 = smul.f32 %s396, %s398
      %v400 = vstv %s399
      %v401 = vsub.f32 %v377, %v400
      %v402 = vsub.f32 %v379, %v400
      %v403 = vsub.f32 %v381, %v400
      %v404 = vsub.f32 %v383, %v400
      %v405 = vmul.f32 %v401, %v401
      %v406 = vmul.f32 %v402, %v402
      %v407 = vmul.f32 %v403, %v403
      %v408 = vmul.f32 %v404, %v404
      %v409 = vadd.f32 %v405, %v406
      %v410 = vadd.f32 %v409, %v407
      %v411 = vadd.f32 %v410, %v408
      %412 = vadd.xlane.f32.xlu0 %v411
      %v413 = vpop.xlane.xlu0 %412
      %v414 = vrot.slane %v413, 4
      %v415 = vadd.f32 %v413, %v414
      %v416 = vrot.slane %v415, 2
      %v417 = vadd.f32 %v415, %v416
      %v418 = vrot.slane %v417, 1
      %v419 = vadd.f32 %v417, %v418
      %s420 = vtos %v419
      %v421 = vrcp.pop 4096.0
      %s422 = vtos %v421
      %s423 = smul.f32 %s420, %s422
      %s424 = sadd.f32 %s423, 1e-05
      %v425 = vstv %s424
      %v426 = vrsqrt.pop %v425
      %s427 = vtos %v426
      %v428 = vstv %s427
      %v429 = vmul.f32 %v401, %v428
      %v430 = vmul.f32 %v402, %v428
      %v431 = vmul.f32 %v403, %v428
      %v432 = vmul.f32 %v404, %v428
      %v433 = vld [vmem:[%s212] sm:$0xff]
      %v434 = vld [vmem:[%s212 + $0x8] sm:$0xff]
      %v435 = vunpack.c.l.bf16 %v433
      %v436 = vunpack.c.h.bf16 %v433
      %v437 = vunpack.c.l.bf16 %v434
      %v438 = vunpack.c.h.bf16 %v434
      %v439 = vadd.f32 %v429, %v435
      %v440 = vadd.f32 %v430, %v436
      %v441 = vadd.f32 %v431, %v437
      %v442 = vadd.f32 %v432, %v438
      %v443 = vld [vmem:[%s3] sm:$0xff]
      %v444 = vld [vmem:[%s3 + $0x8] sm:$0xff]
      %vm445 = vcmp.gt.f32.partialorder %v439, 0.0
      %vm446 = vcmp.gt.f32.partialorder %v440, 0.0
      %vm447 = vcmp.gt.f32.partialorder %v441, 0.0
      %vm448 = vcmp.gt.f32.partialorder %v442, 0.0
      %450 = vset.pattern.permute.xlu0 0
      %451 = vperm.xlu0 %450, %v443
      %v452 = vpop.permute.xlu0 %451
      %455 = vset.pattern.permute.xlu0 0
      %456 = vperm.xlu0 %455, %v444
      %v457 = vpop.permute.xlu0 %456
      %v459 = vmul.f32 %v452, %v439
      %v460 = vmul.f32 %v452, %v440
      %v461 = vmul.f32 %v457, %v441
      %v462 = vmul.f32 %v457, %v442
      %v463 = vsel %vm445, %v439, %v459
      %v464 = vsel %vm446, %v440, %v460
      %v465 = vsel %vm447, %v441, %v461
      %v466 = vsel %vm448, %v442, %v462
      %v467 = vpack.c.bf16 %v465, %v463
      %v468 = vpack.c.bf16 %v466, %v464
      %v471 = vunpack.c.l.b16 %v467
      %v472 = vunpack.c.l.b16 %v468
      %v473 = vunpack.c.h.b16 %v467
      %v474 = vunpack.c.h.b16 %v468
      %v475 = vpack.c.b16 %v472, %v471
      %v476 = vpack.c.b16 %v474, %v473
      %479 = vst [vmem:[%s217] sm:$0xff] %v475
      %480 = vst [vmem:[%s217 + $0x8] sm:$0xff] %v476
      %p481 = scmp.lt.s32.totalorder %s15, 1
      %s482 = scalar_select %p481, %s15, 1
      %s483 = smul.addr %s482, 4
      %s484 = smul.addr %s483, 4
      %s485 = scalar_lea.vmem %s4, %s484
      // Predicated region
      $region37: #{_lambda_.90} parent=35 // pred_check
        %p486 = pneg %p127
      $region38: #{_lambda_.90} parent=35 // pred_check_branch
        %488 = sbr.rel (%p486) target = $region40
      $region39: #{_lambda_.90} parent=35 // pred_region
        _
      $region40: #{_lambda_.90} parent=35 // pred_fallthru
        _
    $region36: #{_lambda_.90} parent=5 // pred_fallthru
      _
    %p489 = scmp.le.s32.totalorder 2, %s10
    // Predicated region
    $region41: #{_lambda_.90} parent=5 // pred_check
      %p490 = pneg %p489
    $region42: #{_lambda_.90} parent=5 // pred_check_branch
      %492 = sbr.rel (%p490) target = $region44
    $region43: #{_lambda_.90} parent=5 // pred_region
      %s493 = ssub.s32 %s10, 2
      // Predicated region
      $region45: #{_lambda_.90} parent=43 // pred_check
        %p494 = pneg %p133
      $region46: #{_lambda_.90} parent=43 // pred_check_branch
        %496 = sbr.rel (%p494) target = $region48
      $region47: #{_lambda_.90} parent=43 // pred_region
        %p497 = scmp.lt.s32.totalorder %s16, 1
        %s498 = scalar_select %p497, %s16, 1
        %s499 = smul.addr %s498, 4
        %s500 = smul.addr %s499, 4
        %s501 = scalar_lea.vmem %s4, %s500
      $region48: #{_lambda_.90} parent=43 // pred_fallthru
        _
    $region44: #{_lambda_.90} parent=5 // pred_fallthru
      _
  $region6: #{_lambda_.90} parent=0 // loop_footer
    %s14 = sadd.s32 1, %s10
  $region7: #{_lambda_.90} parent=0 // loop_footer_branch
    %9 = sbr.rel target = $region3
  $region8: #{_lambda_.90} parent=0 // loop_exit
    _

// kernel: _lambda_.91
$region0: #{_lambda_.91}
  #allocation0 [shape = 'u32[]', space=smem, size = 0x4, offset = 0x4, fixed_abs, tag = 'smem constant byte address 0x4 - core index']
  #allocation1 [shape = 'u32[144,128]{1,0:T(1,128)}', space=vmem, size = 0x12000, scoped, tag = 'internal scratch']
  %s0 = inlined_call_operand.vmem [shape: bf16[32,16], index: 0, kind: input, shape index: {}]
  %s1 = inlined_call_operand.vmem [shape: bf16[2,16,64], index: 1, kind: input, shape index: {}]
  %s2 = inlined_call_operand.vmem [shape: bf16[2,32,64], index: 2, kind: output, shape index: {}]
  %s3 = sld [smem:[#allocation0]]
  $region41: #{_lambda_.91} parent=0
    _
  %s5 = ssub.s32 1, %s3
  %s6 = scalar_select 0, %s5, %s3
  loop: start=0, step=1, limit=4
  $region2: #{_lambda_.91} parent=0 // loop_pre_header
    _
  $region3: #{_lambda_.91} parent=0 // loop_header
    %s8 = sphi 0, %s12
    %p9 = scmp.ge.s32.totalorder %s8, 4
    %s16 = sphi 0, %s16
    %s18 = sphi 0, %s16
    %s19 = sphi 0, %s18
    %s33 = sphi 0, %s19
    %s39 = sphi 0, %s41
    %s42 = sphi 0, %s39
    %s43 = sphi 0, %s42
    %s59 = sphi 0, %s43
    %s65 = sphi 0, %s67
    %s68 = sphi 0, %s65
    %s69 = sphi 0, %s68
    %s85 = sphi 0, %s69
  $region4: #{_lambda_.91} parent=0 // loop_header_branch
    %11 = sbr.rel (%p9) target = $region8
  $region5: #{_lambda_.91} parent=0 // loop_body
    %s13 = ssub.s32 %s8, 1
    %s14 = ssub.s32 %s8, 2
    %s15 = sadd.s32 %s8, 1
    %s17 = sadd.s32 %s16, 1
    %p20 = scmp.eq.s32.totalorder %s8, 1
    %p21 = scmp.ne.s32.totalorder %s16, %s18
    %p22 = scmp.eq.s32.totalorder %s8, 0
    %p23 = por %p21, %p22
    %p24 = scmp.ne.s32.totalorder %s16, %s18
    %p25 = scmp.eq.s32.totalorder %s13, 1
    %p26 = por %p24, %p25
    %p27 = scmp.ne.s32.totalorder %s18, %s19
    %p28 = scmp.eq.s32.totalorder %s13, 0
    %p29 = por %p27, %p28
    %p30 = scmp.ne.s32.totalorder %s18, %s19
    %p31 = scmp.eq.s32.totalorder %s14, 1
    %p32 = por %p30, %p31
    %p34 = scmp.ne.s32.totalorder %s19, %s33
    %p35 = scmp.eq.s32.totalorder %s14, 0
    %p36 = por %p34, %p35
    %s37 = ssub.s32 %s8, %s15
    %p38 = scmp.eq.s32.totalorder %s37, 0
    %s40 = sadd.s32 %s39, 1
    %s41 = scalar_select %p38, %s39, %s40
    %p44 = pneg %p38
    %p45 = scmp.eq.s32.totalorder %s8, 1
    %p46 = por %p44, %p45
    %p47 = scmp.ne.s32.totalorder %s39, %s42
    %p48 = scmp.eq.s32.totalorder %s8, 0
    %p49 = por %p47, %p48
    %p50 = scmp.ne.s32.totalorder %s39, %s42
    %p51 = scmp.eq.s32.totalorder %s13, 1
    %p52 = por %p50, %p51
    %p53 = scmp.ne.s32.totalorder %s42, %s43
    %p54 = scmp.eq.s32.totalorder %s13, 0
    %p55 = por %p53, %p54
    %p56 = scmp.ne.s32.totalorder %s42, %s43
    %p57 = scmp.eq.s32.totalorder %s14, 1
    %p58 = por %p56, %p57
    %p60 = scmp.ne.s32.totalorder %s43, %s59
    %p61 = scmp.eq.s32.totalorder %s14, 0
    %p62 = por %p60, %p61
    %s63 = ssub.s32 %s8, %s15
    %p64 = scmp.eq.s32.totalorder %s63, 0
    %s66 = sadd.s32 %s65, 1
    %s67 = scalar_select %p64, %s65, %s66
    %p70 = pneg %p64
    %p71 = scmp.eq.s32.totalorder %s8, 1
    %p72 = por %p70, %p71
    %p73 = scmp.ne.s32.totalorder %s65, %s68
    %p74 = scmp.eq.s32.totalorder %s8, 0
    %p75 = por %p73, %p74
    %p76 = scmp.ne.s32.totalorder %s65, %s68
    %p77 = scmp.eq.s32.totalorder %s13, 1
    %p78 = por %p76, %p77
    %p79 = scmp.ne.s32.totalorder %s68, %s69
    %p80 = scmp.eq.s32.totalorder %s13, 0
    %p81 = por %p79, %p80
    %p82 = scmp.ne.s32.totalorder %s68, %s69
    %p83 = scmp.eq.s32.totalorder %s14, 1
    %p84 = por %p82, %p83
    %p86 = scmp.ne.s32.totalorder %s69, %s85
    %p87 = scmp.eq.s32.totalorder %s14, 0
    %p88 = por %p86, %p87
    %p89 = scmp.le.s32.totalorder 1, %s8
    %p90 = scmp.lt.s32.totalorder %s8, 3
    %p91 = pnand %p89, %p90
    %p92 = pneg %p91
    // Predicated region
    $region9: #{_lambda_.91} parent=5 // pred_check
      _
    $region10: #{_lambda_.91} parent=5 // pred_check_branch
      %94 = sbr.rel (%p91) target = $region12
    $region11: #{_lambda_.91} parent=5 // pred_region
      %s95 = ssub.s32 %s8, 1
      // Predicated region
      $region13: #{_lambda_.91} parent=11 // pred_check
        %p96 = pneg %p29
      $region14: #{_lambda_.91} parent=11 // pred_check_branch
        %98 = sbr.rel (%p96) target = $region16
      $region15: #{_lambda_.91} parent=11 // pred_region
        _
      $region16: #{_lambda_.91} parent=11 // pred_fallthru
        _
    $region12: #{_lambda_.91} parent=5 // pred_fallthru
      _
    %p99 = scmp.lt.s32.totalorder %s8, 2
    // Predicated region
    $region17: #{_lambda_.91} parent=5 // pred_check
      %p100 = pneg %p99
    $region18: #{_lambda_.91} parent=5 // pred_check_branch
      %102 = sbr.rel (%p100) target = $region20
    $region19: #{_lambda_.91} parent=5 // pred_region
      // Predicated region
      $region21: #{_lambda_.91} parent=19 // pred_check
        %p103 = pneg %p49
      $region22: #{_lambda_.91} parent=19 // pred_check_branch
        %105 = sbr.rel (%p103) target = $region24
      $region23: #{_lambda_.91} parent=19 // pred_region
        %p106 = scmp.lt.s32.totalorder %s8, 1
        %s107 = scalar_select %p106, %s8, 1
        %s108 = smul.addr %s107, 2
        %s109 = smul.addr %s108, 4
        %s110 = scalar_lea.vmem %s1, %s109
      $region24: #{_lambda_.91} parent=19 // pred_fallthru
        _
    $region20: #{_lambda_.91} parent=5 // pred_fallthru
      _
    %p111 = scmp.le.s32.totalorder 1, %s8
    %p112 = scmp.lt.s32.totalorder %s8, 3
    %p113 = pnand %p111, %p112
    %p114 = pneg %p113
    // Predicated region
    $region25: #{_lambda_.91} parent=5 // pred_check
      _
    $region26: #{_lambda_.91} parent=5 // pred_check_branch
      %116 = sbr.rel (%p113) target = $region28
    $region27: #{_lambda_.91} parent=5 // pred_region
      %s117 = ssub.s32 %s8, 1
      %p118 = pneg %p29
      %p119 = pneg %p26
      %p120 = scmp.lt.s32.totalorder %s13, 1
      %s121 = scalar_select %p120, %s13, 1
      %s122 = smul.addr %s121, 2
      %s123 = smul.addr %s122, 4
      %s124 = scalar_lea.vmem %s1, %s123
      %p125 = pneg %p55
      %p126 = pneg %p52
      %p127 = pneg %p81
      %p128 = pneg %p78
      %p129 = scmp.lt.s32.totalorder %s13, 1
      %s130 = scalar_select %p129, %s13, 1
      %s131 = smul.addr %s130, 4
      %s132 = smul.addr %s131, 4
      %s133 = scalar_lea.vmem %s2, %s132
      %p134 = scmp.lt.s32.totalorder %s13, 1
      %s135 = scalar_select %p134, %s13, 1
      %s136 = smul.addr %s135, 2
      %s137 = smul.addr %s136, 4
      %s138 = scalar_lea.vmem %s1, %s137
      %p139 = scmp.lt.s32.totalorder %s13, 1
      %s140 = scalar_select %p139, %s13, 1
      %s141 = smul.addr %s140, 4
      %s142 = smul.addr %s141, 4
      %s143 = scalar_lea.vmem %s2, %s142
      %v145 = vld [vmem:[%s0] sm:$0xf]
      %v146 = vld [vmem:[%s0 + $0x4] sm:$0xf]
      %v147 = vld [vmem:[%s0 + $0x8] sm:$0xf]
      %v148 = vld [vmem:[%s0 + $0xc] sm:$0xf]
      %v149 = vld [vmem:[%s138] sm:$0xf]
      %v150 = vld [vmem:[%s138 + $0x4] sm:$0xf]
      %v155 = vunpack.c.l.b16 %v145
      %v156 = vunpack.c.l.b16 %v146
      %v157 = vunpack.c.l.b16 %v147
      %v158 = vunpack.c.l.b16 %v148
      %v159 = vpack.c.b16 %v156, %v155
      %v160 = vpack.c.b16 %v158, %v157
      %v163 = vunpack.c.l.b16 %v149
      %v164 = vunpack.c.l.b16 %v150
      %v165 = vpack.c.b16 %v164, %v163
      %vm167 = vcmask 130048
      %v169 = vsel %vm167, %v159, 0
      %v172 = vsel %vm167, %v160, 0
      %174 = vmatprep.subr.bf16.mxu0 0
      %175 = vmatpush1.bf16.msra.mxu0 %v165
      %176 = vmatprep.subr.bf16.mxu0 0
      %177 = vmatpush1.bf16.msra.mxu0 0
      %178 = vmatprep.subr.bf16.mxu0 0
      %179 = vmatpush1.bf16.msra.mxu0 0
      %180 = vmatprep.subr.bf16.mxu0 0
      %181 = vmatpush1.bf16.msra.mxu0 0
      %182 = vmatprep.subr.bf16.mxu0 0
      %183 = vmatpush1.bf16.msra.mxu0 0
      %184 = vmatprep.subr.bf16.mxu0 0
      %185 = vmatpush1.bf16.msra.mxu0 0
      %186 = vmatprep.subr.bf16.mxu0 0
      %187 = vmatpush1.bf16.msra.mxu0 0
      %188 = vmatprep.subr.bf16.mxu0 0
      %189 = vmatpush1.bf16.msra.mxu0 0
      %190 = vmatprep.subr.bf16.mxu0 0
      %191 = vmatpush1.bf16.msra.mxu0 0
      %192 = vmatprep.subr.bf16.mxu0 0
      %193 = vmatpush1.bf16.msra.mxu0 0
      %194 = vmatprep.subr.bf16.mxu0 0
      %195 = vmatpush1.bf16.msra.mxu0 0
      %196 = vmatprep.subr.bf16.mxu0 0
      %197 = vmatpush1.bf16.msra.mxu0 0
      %198 = vmatprep.subr.bf16.mxu0 0
      %199 = vmatpush1.bf16.msra.mxu0 0
      %200 = vmatprep.subr.bf16.mxu0 0
      %201 = vmatpush1.bf16.msra.mxu0 0
      %202 = vmatprep.subr.bf16.mxu0 0
      %203 = vmatpush1.bf16.msra.mxu0 0
      %204 = vmatprep.subr.bf16.mxu0 0
      %205 = vmatpush1.bf16.msra.mxu0 0
      %206 = vmatprep.mubr.bf16.mxu0 0
      %207 = vmatmul.mubr.bf16.gmra.mrb[0].mxu0 %v169
      %v208 = vpop.f32.mrb[0].mxu0
      %v209 = vadd.f32 0.0, %v208
      %v210 = vpop.f32.mrb[0].mxu0
      %v211 = vpop.f32.mrb[0].mxu0
      %v212 = vadd.f32 0.0, %v211
      %v213 = vpop.f32.mrb[0].mxu0
      %214 = vmatprep.mubr.bf16.mxu0 0
      %215 = vmatmul.mubr.bf16.gmra.mrb[0].mxu0 %v172
      %v216 = vpop.f32.mrb[0].mxu0
      %v217 = vadd.f32 0.0, %v216
      %v218 = vpop.f32.mrb[0].mxu0
      %v219 = vpop.f32.mrb[0].mxu0
      %v220 = vadd.f32 0.0, %v219
      %v221 = vpop.f32.mrb[0].mxu0
      %222 = vdwg.mxu0
      %v223 = vpack.c.bf16 %v212, %v209
      %v224 = vpack.c.bf16 %v220, %v217
      %v227 = vunpack.c.l.b16 %v223
      %v228 = vunpack.c.h.b16 %v223
      %v229 = vunpack.c.l.b16 %v224
      %v230 = vunpack.c.h.b16 %v224
      %v231 = vpack.c.b16 %v227, %v227
      %v232 = vpack.c.b16 %v228, %v228
      %v233 = vpack.c.b16 %v229, %v229
      %v234 = vpack.c.b16 %v230, %v230
      %vm239 = vcmask 519168
      %240 = vst.msk [vmem:[%s143] sm:$0xf] %vm239, %v231
      %241 = vst.msk [vmem:[%s143 + $0x4] sm:$0xf] %vm239, %v232
      %242 = vst.msk [vmem:[%s143 + $0x8] sm:$0xf] %vm239, %v233
      %243 = vst.msk [vmem:[%s143 + $0xc] sm:$0xf] %vm239, %v234
      %p244 = scmp.lt.s32.totalorder %s13, 1
      %s245 = scalar_select %p244, %s13, 1
      %s246 = smul.addr %s245, 4
      %s247 = smul.addr %s246, 4
      %s248 = scalar_lea.vmem %s2, %s247
      // Predicated region
      $region29: #{_lambda_.91} parent=27 // pred_check
        %p249 = pneg %p78
      $region30: #{_lambda_.91} parent=27 // pred_check_branch
        %251 = sbr.rel (%p249) target = $region32
      $region31: #{_lambda_.91} parent=27 // pred_region
        _
      $region32: #{_lambda_.91} parent=27 // pred_fallthru
        _
    $region28: #{_lambda_.91} parent=5 // pred_fallthru
      _
    %p252 = scmp.le.s32.totalorder 2, %s8
    // Predicated region
    $region33: #{_lambda_.91} parent=5 // pred_check
      %p253 = pneg %p252
    $region34: #{_lambda_.91} parent=5 // pred_check_branch
      %255 = sbr.rel (%p253) target = $region36
    $region35: #{_lambda_.91} parent=5 // pred_region
      %s256 = ssub.s32 %s8, 2
      // Predicated region
      $region37: #{_lambda_.91} parent=35 // pred_check
        %p257 = pneg %p84
      $region38: #{_lambda_.91} parent=35 // pred_check_branch
        %259 = sbr.rel (%p257) target = $region40
      $region39: #{_lambda_.91} parent=35 // pred_region
        %p260 = scmp.lt.s32.totalorder %s14, 1
        %s261 = scalar_select %p260, %s14, 1
        %s262 = smul.addr %s261, 4
        %s263 = smul.addr %s262, 4
        %s264 = scalar_lea.vmem %s2, %s263
      $region40: #{_lambda_.91} parent=35 // pred_fallthru
        _
    $region36: #{_lambda_.91} parent=5 // pred_fallthru
      _
  $region6: #{_lambda_.91} parent=0 // loop_footer
    %s12 = sadd.s32 1, %s8
  $region7: #{_lambda_.91} parent=0 // loop_footer_branch
    %7 = sbr.rel target = $region3
  $region8: #{_lambda_.91} parent=0 // loop_exit
    _

// kernel: _lambda_.92
$region0: #{_lambda_.92}
  #allocation0 [shape = 'u32[]', space=smem, size = 0x4, offset = 0x4, fixed_abs, tag = 'smem constant byte address 0x4 - core index']
  #allocation1 [shape = 'u32[144,128]{1,0:T(1,128)}', space=vmem, size = 0x12000, scoped, tag = 'internal scratch']
  %s0 = inlined_call_operand.vmem [shape: bf16[32,576], index: 0, kind: input, shape index: {}]
  %s1 = inlined_call_operand.vmem [shape: bf16[2,576,64], index: 1, kind: input, shape index: {}]
  %s2 = inlined_call_operand.vmem [shape: f32[32,1], index: 2, kind: input, shape index: {}]
  %s3 = inlined_call_operand.vmem [shape: bf16[2,32,64], index: 3, kind: output, shape index: {}]
  %s4 = sld [smem:[#allocation0]]
  $region45: #{_lambda_.92} parent=0
    _
  %s6 = ssub.s32 1, %s4
  %s7 = scalar_select 0, %s6, %s4
  loop: start=0, step=1, limit=4
  $region2: #{_lambda_.92} parent=0 // loop_pre_header
    _
  $region3: #{_lambda_.92} parent=0 // loop_header
    %s9 = sphi 0, %s13
    %p10 = scmp.ge.s32.totalorder %s9, 4
    %s17 = sphi 0, %s17
    %s19 = sphi 0, %s17
    %s20 = sphi 0, %s19
    %s34 = sphi 0, %s20
    %s40 = sphi 0, %s42
    %s43 = sphi 0, %s40
    %s44 = sphi 0, %s43
    %s60 = sphi 0, %s44
    %s64 = sphi 0, %s64
    %s66 = sphi 0, %s64
    %s67 = sphi 0, %s66
    %s81 = sphi 0, %s67
    %s87 = sphi 0, %s89
    %s90 = sphi 0, %s87
    %s91 = sphi 0, %s90
    %s107 = sphi 0, %s91
  $region4: #{_lambda_.92} parent=0 // loop_header_branch
    %12 = sbr.rel (%p10) target = $region8
  $region5: #{_lambda_.92} parent=0 // loop_body
    %s14 = ssub.s32 %s9, 1
    %s15 = ssub.s32 %s9, 2
    %s16 = sadd.s32 %s9, 1
    %s18 = sadd.s32 %s17, 1
    %p21 = scmp.eq.s32.totalorder %s9, 1
    %p22 = scmp.ne.s32.totalorder %s17, %s19
    %p23 = scmp.eq.s32.totalorder %s9, 0
    %p24 = por %p22, %p23
    %p25 = scmp.ne.s32.totalorder %s17, %s19
    %p26 = scmp.eq.s32.totalorder %s14, 1
    %p27 = por %p25, %p26
    %p28 = scmp.ne.s32.totalorder %s19, %s20
    %p29 = scmp.eq.s32.totalorder %s14, 0
    %p30 = por %p28, %p29
    %p31 = scmp.ne.s32.totalorder %s19, %s20
    %p32 = scmp.eq.s32.totalorder %s15, 1
    %p33 = por %p31, %p32
    %p35 = scmp.ne.s32.totalorder %s20, %s34
    %p36 = scmp.eq.s32.totalorder %s15, 0
    %p37 = por %p35, %p36
    %s38 = ssub.s32 %s9, %s16
    %p39 = scmp.eq.s32.totalorder %s38, 0
    %s41 = sadd.s32 %s40, 1
    %s42 = scalar_select %p39, %s40, %s41
    %p45 = pneg %p39
    %p46 = scmp.eq.s32.totalorder %s9, 1
    %p47 = por %p45, %p46
    %p48 = scmp.ne.s32.totalorder %s40, %s43
    %p49 = scmp.eq.s32.totalorder %s9, 0
    %p50 = por %p48, %p49
    %p51 = scmp.ne.s32.totalorder %s40, %s43
    %p52 = scmp.eq.s32.totalorder %s14, 1
    %p53 = por %p51, %p52
    %p54 = scmp.ne.s32.totalorder %s43, %s44
    %p55 = scmp.eq.s32.totalorder %s14, 0
    %p56 = por %p54, %p55
    %p57 = scmp.ne.s32.totalorder %s43, %s44
    %p58 = scmp.eq.s32.totalorder %s15, 1
    %p59 = por %p57, %p58
    %p61 = scmp.ne.s32.totalorder %s44, %s60
    %p62 = scmp.eq.s32.totalorder %s15, 0
    %p63 = por %p61, %p62
    %s65 = sadd.s32 %s64, 1
    %p68 = scmp.eq.s32.totalorder %s9, 1
    %p69 = scmp.ne.s32.totalorder %s64, %s66
    %p70 = scmp.eq.s32.totalorder %s9, 0
    %p71 = por %p69, %p70
    %p72 = scmp.ne.s32.totalorder %s64, %s66
    %p73 = scmp.eq.s32.totalorder %s14, 1
    %p74 = por %p72, %p73
    %p75 = scmp.ne.s32.totalorder %s66, %s67
    %p76 = scmp.eq.s32.totalorder %s14, 0
    %p77 = por %p75, %p76
    %p78 = scmp.ne.s32.totalorder %s66, %s67
    %p79 = scmp.eq.s32.totalorder %s15, 1
    %p80 = por %p78, %p79
    %p82 = scmp.ne.s32.totalorder %s67, %s81
    %p83 = scmp.eq.s32.totalorder %s15, 0
    %p84 = por %p82, %p83
    %s85 = ssub.s32 %s9, %s16
    %p86 = scmp.eq.s32.totalorder %s85, 0
    %s88 = sadd.s32 %s87, 1
    %s89 = scalar_select %p86, %s87, %s88
    %p92 = pneg %p86
    %p93 = scmp.eq.s32.totalorder %s9, 1
    %p94 = por %p92, %p93
    %p95 = scmp.ne.s32.totalorder %s87, %s90
    %p96 = scmp.eq.s32.totalorder %s9, 0
    %p97 = por %p95, %p96
    %p98 = scmp.ne.s32.totalorder %s87, %s90
    %p99 = scmp.eq.s32.totalorder %s14, 1
    %p100 = por %p98, %p99
    %p101 = scmp.ne.s32.totalorder %s90, %s91
    %p102 = scmp.eq.s32.totalorder %s14, 0
    %p103 = por %p101, %p102
    %p104 = scmp.ne.s32.totalorder %s90, %s91
    %p105 = scmp.eq.s32.totalorder %s15, 1
    %p106 = por %p104, %p105
    %p108 = scmp.ne.s32.totalorder %s91, %s107
    %p109 = scmp.eq.s32.totalorder %s15, 0
    %p110 = por %p108, %p109
    %p111 = scmp.le.s32.totalorder 1, %s9
    %p112 = scmp.lt.s32.totalorder %s9, 3
    %p113 = pnand %p111, %p112
    %p114 = pneg %p113
    // Predicated region
    $region9: #{_lambda_.92} parent=5 // pred_check
      _
    $region10: #{_lambda_.92} parent=5 // pred_check_branch
      %116 = sbr.rel (%p113) target = $region12
    $region11: #{_lambda_.92} parent=5 // pred_region
      %s117 = ssub.s32 %s9, 1
      // Predicated region
      $region13: #{_lambda_.92} parent=11 // pred_check
        %p118 = pneg %p30
      $region14: #{_lambda_.92} parent=11 // pred_check_branch
        %120 = sbr.rel (%p118) target = $region16
      $region15: #{_lambda_.92} parent=11 // pred_region
        _
      $region16: #{_lambda_.92} parent=11 // pred_fallthru
        _
      // Predicated region
      $region17: #{_lambda_.92} parent=11 // pred_check
        %p121 = pneg %p77
      $region18: #{_lambda_.92} parent=11 // pred_check_branch
        %123 = sbr.rel (%p121) target = $region20
      $region19: #{_lambda_.92} parent=11 // pred_region
        _
      $region20: #{_lambda_.92} parent=11 // pred_fallthru
        _
    $region12: #{_lambda_.92} parent=5 // pred_fallthru
      _
    %p124 = scmp.lt.s32.totalorder %s9, 2
    // Predicated region
    $region21: #{_lambda_.92} parent=5 // pred_check
      %p125 = pneg %p124
    $region22: #{_lambda_.92} parent=5 // pred_check_branch
      %127 = sbr.rel (%p125) target = $region24
    $region23: #{_lambda_.92} parent=5 // pred_region
      // Predicated region
      $region25: #{_lambda_.92} parent=23 // pred_check
        %p128 = pneg %p50
      $region26: #{_lambda_.92} parent=23 // pred_check_branch
        %130 = sbr.rel (%p128) target = $region28
      $region27: #{_lambda_.92} parent=23 // pred_region
        %p131 = scmp.lt.s32.totalorder %s9, 1
        %s132 = scalar_select %p131, %s9, 1
        %s133 = smul.addr %s132, 72
        %s134 = smul.addr %s133, 4
        %s135 = scalar_lea.vmem %s1, %s134
      $region28: #{_lambda_.92} parent=23 // pred_fallthru
        _
    $region24: #{_lambda_.92} parent=5 // pred_fallthru
      _
    %p136 = scmp.le.s32.totalorder 1, %s9
    %p137 = scmp.lt.s32.totalorder %s9, 3
    %p138 = pnand %p136, %p137
    %p139 = pneg %p138
    // Predicated region
    $region29: #{_lambda_.92} parent=5 // pred_check
      _
    $region30: #{_lambda_.92} parent=5 // pred_check_branch
      %141 = sbr.rel (%p138) target = $region32
    $region31: #{_lambda_.92} parent=5 // pred_region
      %s142 = ssub.s32 %s9, 1
      %p143 = pneg %p30
      %p144 = pneg %p27
      %p145 = scmp.lt.s32.totalorder %s14, 1
      %s146 = scalar_select %p145, %s14, 1
      %s147 = smul.addr %s146, 72
      %s148 = smul.addr %s147, 4
      %s149 = scalar_lea.vmem %s1, %s148
      %p150 = pneg %p56
      %p151 = pneg %p53
      %p152 = pneg %p77
      %p153 = pneg %p74
      %p154 = pneg %p103
      %p155 = pneg %p100
      %p156 = scmp.lt.s32.totalorder %s14, 1
      %s157 = scalar_select %p156, %s14, 1
      %s158 = smul.addr %s157, 4
      %s159 = smul.addr %s158, 4
      %s160 = scalar_lea.vmem %s3, %s159
      %p161 = scmp.lt.s32.totalorder %s14, 1
      %s162 = scalar_select %p161, %s14, 1
      %s163 = smul.addr %s162, 72
      %s164 = smul.addr %s163, 4
      %s165 = scalar_lea.vmem %s1, %s164
      %p166 = scmp.lt.s32.totalorder %s14, 1
      %s167 = scalar_select %p166, %s14, 1
      %s168 = smul.addr %s167, 4
      %s169 = smul.addr %s168, 4
      %s170 = scalar_lea.vmem %s3, %s169
      %v172 = vld [vmem:[%s0] sm:$0xff]
      %v173 = vld [vmem:[%s0 + $0x8] sm:$0xff]
      %v174 = vld [vmem:[%s0 + $0x10] sm:$0xf]
      %v175 = vld [vmem:[%s0 + $0x14] sm:$0xff]
      %v176 = vld [vmem:[%s0 + $0x1c] sm:$0xff]
      %v177 = vld [vmem:[%s0 + $0x24] sm:$0xf]
      %v178 = vld [vmem:[%s0 + $0x28] sm:$0xff]
      %v179 = vld [vmem:[%s0 + $0x30] sm:$0xff]
      %v180 = vld [vmem:[%s0 + $0x38] sm:$0xf]
      %v181 = vld [vmem:[%s0 + $0x3c] sm:$0xff]
      %v182 = vld [vmem:[%s0 + $0x44] sm:$0xff]
      %v183 = vld [vmem:[%s0 + $0x4c] sm:$0xf]
      %v184 = vld [vmem:[%s165] sm:$0xf]
      %v185 = vld [vmem:[%s165 + $0x4] sm:$0xf]
      %v186 = vld [vmem:[%s165 + $0x8] sm:$0xf]
      %v187 = vld [vmem:[%s165 + $0xc] sm:$0xf]
      %v188 = vld [vmem:[%s165 + $0x10] sm:$0xf]
      %v189 = vld [vmem:[%s165 + $0x14] sm:$0xf]
      %v190 = vld [vmem:[%s165 + $0x18] sm:$0xf]
      %v191 = vld [vmem:[%s165 + $0x1c] sm:$0xf]
      %v192 = vld [vmem:[%s165 + $0x20] sm:$0xf]
      %v193 = vld [vmem:[%s165 + $0x24] sm:$0xf]
      %v194 = vld [vmem:[%s165 + $0x28] sm:$0xf]
      %v195 = vld [vmem:[%s165 + $0x2c] sm:$0xf]
      %v196 = vld [vmem:[%s165 + $0x30] sm:$0xf]
      %v197 = vld [vmem:[%s165 + $0x34] sm:$0xf]
      %v198 = vld [vmem:[%s165 + $0x38] sm:$0xf]
      %v199 = vld [vmem:[%s165 + $0x3c] sm:$0xf]
      %v200 = vld [vmem:[%s165 + $0x40] sm:$0xf]
      %v201 = vld [vmem:[%s165 + $0x44] sm:$0xf]
      %v202 = vld [vmem:[%s165 + $0x48] sm:$0xf]
      %v203 = vld [vmem:[%s165 + $0x4c] sm:$0xf]
      %v204 = vld [vmem:[%s165 + $0x50] sm:$0xf]
      %v205 = vld [vmem:[%s165 + $0x54] sm:$0xf]
      %v206 = vld [vmem:[%s165 + $0x58] sm:$0xf]
      %v207 = vld [vmem:[%s165 + $0x5c] sm:$0xf]
      %v208 = vld [vmem:[%s165 + $0x60] sm:$0xf]
      %v209 = vld [vmem:[%s165 + $0x64] sm:$0xf]
      %v210 = vld [vmem:[%s165 + $0x68] sm:$0xf]
      %v211 = vld [vmem:[%s165 + $0x6c] sm:$0xf]
      %v212 = vld [vmem:[%s165 + $0x70] sm:$0xf]
      %v213 = vld [vmem:[%s165 + $0x74] sm:$0xf]
      %v214 = vld [vmem:[%s165 + $0x78] sm:$0xf]
      %v215 = vld [vmem:[%s165 + $0x7c] sm:$0xf]
      %v216 = vld [vmem:[%s165 + $0x80] sm:$0xf]
      %v217 = vld [vmem:[%s165 + $0x84] sm:$0xf]
      %v218 = vld [vmem:[%s165 + $0x88] sm:$0xf]
      %v219 = vld [vmem:[%s165 + $0x8c] sm:$0xf]
      %v220 = vld [vmem:[%s165 + $0x90] sm:$0xf]
      %v221 = vld [vmem:[%s165 + $0x94] sm:$0xf]
      %v222 = vld [vmem:[%s165 + $0x98] sm:$0xf]
      %v223 = vld [vmem:[%s165 + $0x9c] sm:$0xf]
      %v224 = vld [vmem:[%s165 + $0xa0] sm:$0xf]
      %v225 = vld [vmem:[%s165 + $0xa4] sm:$0xf]
      %v226 = vld [vmem:[%s165 + $0xa8] sm:$0xf]
      %v227 = vld [vmem:[%s165 + $0xac] sm:$0xf]
      %v228 = vld [vmem:[%s165 + $0xb0] sm:$0xf]
      %v229 = vld [vmem:[%s165 + $0xb4] sm:$0xf]
      %v230 = vld [vmem:[%s165 + $0xb8] sm:$0xf]
      %v231 = vld [vmem:[%s165 + $0xbc] sm:$0xf]
      %v232 = vld [vmem:[%s165 + $0xc0] sm:$0xf]
      %v233 = vld [vmem:[%s165 + $0xc4] sm:$0xf]
      %v234 = vld [vmem:[%s165 + $0xc8] sm:$0xf]
      %v235 = vld [vmem:[%s165 + $0xcc] sm:$0xf]
      %v236 = vld [vmem:[%s165 + $0xd0] sm:$0xf]
      %v237 = vld [vmem:[%s165 + $0xd4] sm:$0xf]
      %v238 = vld [vmem:[%s165 + $0xd8] sm:$0xf]
      %v239 = vld [vmem:[%s165 + $0xdc] sm:$0xf]
      %v240 = vld [vmem:[%s165 + $0xe0] sm:$0xf]
      %v241 = vld [vmem:[%s165 + $0xe4] sm:$0xf]
      %v242 = vld [vmem:[%s165 + $0xe8] sm:$0xf]
      %v243 = vld [vmem:[%s165 + $0xec] sm:$0xf]
      %v244 = vld [vmem:[%s165 + $0xf0] sm:$0xf]
      %v245 = vld [vmem:[%s165 + $0xf4] sm:$0xf]
      %v246 = vld [vmem:[%s165 + $0xf8] sm:$0xf]
      %v247 = vld [vmem:[%s165 + $0xfc] sm:$0xf]
      %v248 = vld [vmem:[%s165 + $0x100] sm:$0xf]
      %v249 = vld [vmem:[%s165 + $0x104] sm:$0xf]
      %v250 = vld [vmem:[%s165 + $0x108] sm:$0xf]
      %v251 = vld [vmem:[%s165 + $0x10c] sm:$0xf]
      %v252 = vld [vmem:[%s165 + $0x110] sm:$0xf]
      %v253 = vld [vmem:[%s165 + $0x114] sm:$0xf]
      %v254 = vld [vmem:[%s165 + $0x118] sm:$0xf]
      %v255 = vld [vmem:[%s165 + $0x11c] sm:$0xf]
      %v268 = vunpack.c.l.b16 %v172
      %v269 = vunpack.c.h.b16 %v172
      %v270 = vunpack.c.l.b16 %v173
      %v271 = vunpack.c.h.b16 %v173
      %v272 = vunpack.c.l.b16 %v174
      %v273 = vunpack.c.l.b16 %v175
      %v274 = vunpack.c.h.b16 %v175
      %v275 = vunpack.c.l.b16 %v176
      %v276 = vunpack.c.h.b16 %v176
      %v277 = vunpack.c.l.b16 %v177
      %v278 = vunpack.c.l.b16 %v178
      %v279 = vunpack.c.h.b16 %v178
      %v280 = vunpack.c.l.b16 %v179
      %v281 = vunpack.c.h.b16 %v179
      %v282 = vunpack.c.l.b16 %v180
      %v283 = vunpack.c.l.b16 %v181
      %v284 = vunpack.c.h.b16 %v181
      %v285 = vunpack.c.l.b16 %v182
      %v286 = vunpack.c.h.b16 %v182
      %v287 = vunpack.c.l.b16 %v183
      %v288 = vpack.c.b16 %v273, %v268
      %v289 = vpack.c.b16 %v274, %v269
      %v290 = vpack.c.b16 %v275, %v270
      %v291 = vpack.c.b16 %v276, %v271
      %v292 = vpack.c.b16 %v277, %v272
      %v293 = vpack.c.b16 %v283, %v278
      %v294 = vpack.c.b16 %v284, %v279
      %v295 = vpack.c.b16 %v285, %v280
      %v296 = vpack.c.b16 %v286, %v281
      %v297 = vpack.c.b16 %v287, %v282
      %v378 = vunpack.c.l.b16 %v184
      %v379 = vunpack.c.l.b16 %v185
      %v380 = vunpack.c.l.b16 %v186
      %v381 = vunpack.c.l.b16 %v187
      %v382 = vunpack.c.l.b16 %v188
      %v383 = vunpack.c.l.b16 %v189
      %v384 = vunpack.c.l.b16 %v190
      %v385 = vunpack.c.l.b16 %v191
      %v386 = vunpack.c.l.b16 %v192
      %v387 = vunpack.c.l.b16 %v193
      %v388 = vunpack.c.l.b16 %v194
      %v389 = vunpack.c.l.b16 %v195
      %v390 = vunpack.c.l.b16 %v196
      %v391 = vunpack.c.l.b16 %v197
      %v392 = vunpack.c.l.b16 %v198
      %v393 = vunpack.c.l.b16 %v199
      %v394 = vunpack.c.l.b16 %v200
      %v395 = vunpack.c.l.b16 %v201
      %v396 = vunpack.c.l.b16 %v202
      %v397 = vunpack.c.l.b16 %v203
      %v398 = vunpack.c.l.b16 %v204
      %v399 = vunpack.c.l.b16 %v205
      %v400 = vunpack.c.l.b16 %v206
      %v401 = vunpack.c.l.b16 %v207
      %v402 = vunpack.c.l.b16 %v208
      %v403 = vunpack.c.l.b16 %v209
      %v404 = vunpack.c.l.b16 %v210
      %v405 = vunpack.c.l.b16 %v211
      %v406 = vunpack.c.l.b16 %v212
      %v407 = vunpack.c.l.b16 %v213
      %v408 = vunpack.c.l.b16 %v214
      %v409 = vunpack.c.l.b16 %v215
      %v410 = vunpack.c.l.b16 %v216
      %v411 = vunpack.c.l.b16 %v217
      %v412 = vunpack.c.l.b16 %v218
      %v413 = vunpack.c.l.b16 %v219
      %v414 = vunpack.c.l.b16 %v220
      %v415 = vunpack.c.l.b16 %v221
      %v416 = vunpack.c.l.b16 %v222
      %v417 = vunpack.c.l.b16 %v223
      %v418 = vunpack.c.l.b16 %v224
      %v419 = vunpack.c.l.b16 %v225
      %v420 = vunpack.c.l.b16 %v226
      %v421 = vunpack.c.l.b16 %v227
      %v422 = vunpack.c.l.b16 %v228
      %v423 = vunpack.c.l.b16 %v229
      %v424 = vunpack.c.l.b16 %v230
      %v425 = vunpack.c.l.b16 %v231
      %v426 = vunpack.c.l.b16 %v232
      %v427 = vunpack.c.l.b16 %v233
      %v428 = vunpack.c.l.b16 %v234
      %v429 = vunpack.c.l.b16 %v235
      %v430 = vunpack.c.l.b16 %v236
      %v431 = vunpack.c.l.b16 %v237
      %v432 = vunpack.c.l.b16 %v238
      %v433 = vunpack.c.l.b16 %v239
      %v434 = vunpack.c.l.b16 %v240
      %v435 = vunpack.c.l.b16 %v241
      %v436 = vunpack.c.l.b16 %v242
      %v437 = vunpack.c.l.b16 %v243
      %v438 = vunpack.c.l.b16 %v244
      %v439 = vunpack.c.l.b16 %v245
      %v440 = vunpack.c.l.b16 %v246
      %v441 = vunpack.c.l.b16 %v247
      %v442 = vunpack.c.l.b16 %v248
      %v443 = vunpack.c.l.b16 %v249
      %v444 = vunpack.c.l.b16 %v250
      %v445 = vunpack.c.l.b16 %v251
      %v446 = vunpack.c.l.b16 %v252
      %v447 = vunpack.c.l.b16 %v253
      %v448 = vunpack.c.l.b16 %v254
      %v449 = vunpack.c.l.b16 %v255
      %v450 = vpack.c.b16 %v379, %v378
      %v451 = vpack.c.b16 %v381, %v380
      %v452 = vpack.c.b16 %v383, %v382
      %v453 = vpack.c.b16 %v385, %v384
      %v454 = vpack.c.b16 %v387, %v386
      %v455 = vpack.c.b16 %v389, %v388
      %v456 = vpack.c.b16 %v391, %v390
      %v457 = vpack.c.b16 %v393, %v392
      %v458 = vpack.c.b16 %v395, %v394
      %v459 = vpack.c.b16 %v397, %v396
      %v460 = vpack.c.b16 %v399, %v398
      %v461 = vpack.c.b16 %v401, %v400
      %v462 = vpack.c.b16 %v403, %v402
      %v463 = vpack.c.b16 %v405, %v404
      %v464 = vpack.c.b16 %v407, %v406
      %v465 = vpack.c.b16 %v409, %v408
      %v466 = vpack.c.b16 %v411, %v410
      %v467 = vpack.c.b16 %v413, %v412
      %v468 = vpack.c.b16 %v415, %v414
      %v469 = vpack.c.b16 %v417, %v416
      %v470 = vpack.c.b16 %v419, %v418
      %v471 = vpack.c.b16 %v421, %v420
      %v472 = vpack.c.b16 %v423, %v422
      %v473 = vpack.c.b16 %v425, %v424
      %v474 = vpack.c.b16 %v427, %v426
      %v475 = vpack.c.b16 %v429, %v428
      %v476 = vpack.c.b16 %v431, %v430
      %v477 = vpack.c.b16 %v433, %v432
      %v478 = vpack.c.b16 %v435, %v434
      %v479 = vpack.c.b16 %v437, %v436
      %v480 = vpack.c.b16 %v439, %v438
      %v481 = vpack.c.b16 %v441, %v440
      %v482 = vpack.c.b16 %v443, %v442
      %v483 = vpack.c.b16 %v445, %v444
      %v484 = vpack.c.b16 %v447, %v446
      %v485 = vpack.c.b16 %v449, %v448
      %vm522 = vcmask 523264
      %v524 = vsel %vm522, %v292, 0
      %v527 = vsel %vm522, %v297, 0
      %529 = vmatprep.subr.bf16.mxu0 0
      %530 = vmatpush1.bf16.msra.mxu0 %v450
      %531 = vmatprep.subr.bf16.mxu0 0
      %532 = vmatpush1.bf16.msra.mxu0 %v451
      %533 = vmatprep.subr.bf16.mxu0 0
      %534 = vmatpush1.bf16.msra.mxu0 %v452
      %535 = vmatprep.subr.bf16.mxu0 0
      %536 = vmatpush1.bf16.msra.mxu0 %v453
      %537 = vmatprep.subr.bf16.mxu0 0
      %538 = vmatpush1.bf16.msra.mxu0 %v454
      %539 = vmatprep.subr.bf16.mxu0 0
      %540 = vmatpush1.bf16.msra.mxu0 %v455
      %541 = vmatprep.subr.bf16.mxu0 0
      %542 = vmatpush1.bf16.msra.mxu0 %v456
      %543 = vmatprep.subr.bf16.mxu0 0
      %544 = vmatpush1.bf16.msra.mxu0 %v457
      %545 = vmatprep.subr.bf16.mxu0 0
      %546 = vmatpush1.bf16.msra.mxu0 %v458
      %547 = vmatprep.subr.bf16.mxu0 0
      %548 = vmatpush1.bf16.msra.mxu0 %v459
      %549 = vmatprep.subr.bf16.mxu0 0
      %550 = vmatpush1.bf16.msra.mxu0 %v460
      %551 = vmatprep.subr.bf16.mxu0 0
      %552 = vmatpush1.bf16.msra.mxu0 %v461
      %553 = vmatprep.subr.bf16.mxu0 0
      %554 = vmatpush1.bf16.msra.mxu0 %v462
      %555 = vmatprep.subr.bf16.mxu0 0
      %556 = vmatpush1.bf16.msra.mxu0 %v463
      %557 = vmatprep.subr.bf16.mxu0 0
      %558 = vmatpush1.bf16.msra.mxu0 %v464
      %559 = vmatprep.subr.bf16.mxu0 0
      %560 = vmatpush1.bf16.msra.mxu0 %v465
      %561 = vmatprep.mubr.bf16.mxu0 %v289
      %562 = vmatmul.mubr.bf16.gmra.mrb[0].mxu0 %v288
      %v563 = vpop.f32.mrb[0].mxu0
      %v564 = vadd.f32 0.0, %v563
      %v565 = vpop.f32.mrb[0].mxu0
      %v566 = vpop.f32.mrb[0].mxu0
      %v567 = vadd.f32 0.0, %v566
      %v568 = vpop.f32.mrb[0].mxu0
      %569 = vmatprep.mubr.bf16.mxu0 %v294
      %570 = vmatmul.mubr.bf16.gmra.mrb[0].mxu0 %v293
      %v571 = vpop.f32.mrb[0].mxu0
      %v572 = vadd.f32 0.0, %v571
      %v573 = vpop.f32.mrb[0].mxu0
      %v574 = vpop.f32.mrb[0].mxu0
      %v575 = vadd.f32 0.0, %v574
      %v576 = vpop.f32.mrb[0].mxu0
      %577 = vdwg.mxu0
      %578 = vmatprep.subr.bf16.mxu0 0
      %579 = vmatpush1.bf16.msra.mxu0 %v466
      %580 = vmatprep.subr.bf16.mxu0 0
      %581 = vmatpush1.bf16.msra.mxu0 %v467
      %582 = vmatprep.subr.bf16.mxu0 0
      %583 = vmatpush1.bf16.msra.mxu0 %v468
      %584 = vmatprep.subr.bf16.mxu0 0
      %585 = vmatpush1.bf16.msra.mxu0 %v469
      %586 = vmatprep.subr.bf16.mxu0 0
      %587 = vmatpush1.bf16.msra.mxu0 %v470
      %588 = vmatprep.subr.bf16.mxu0 0
      %589 = vmatpush1.bf16.msra.mxu0 %v471
      %590 = vmatprep.subr.bf16.mxu0 0
      %591 = vmatpush1.bf16.msra.mxu0 %v472
      %592 = vmatprep.subr.bf16.mxu0 0
      %593 = vmatpush1.bf16.msra.mxu0 %v473
      %594 = vmatprep.subr.bf16.mxu0 0
      %595 = vmatpush1.bf16.msra.mxu0 %v474
      %596 = vmatprep.subr.bf16.mxu0 0
      %597 = vmatpush1.bf16.msra.mxu0 %v475
      %598 = vmatprep.subr.bf16.mxu0 0
      %599 = vmatpush1.bf16.msra.mxu0 %v476
      %600 = vmatprep.subr.bf16.mxu0 0
      %601 = vmatpush1.bf16.msra.mxu0 %v477
      %602 = vmatprep.subr.bf16.mxu0 0
      %603 = vmatpush1.bf16.msra.mxu0 %v478
      %604 = vmatprep.subr.bf16.mxu0 0
      %605 = vmatpush1.bf16.msra.mxu0 %v479
      %606 = vmatprep.subr.bf16.mxu0 0
      %607 = vmatpush1.bf16.msra.mxu0 %v480
      %608 = vmatprep.subr.bf16.mxu0 0
      %609 = vmatpush1.bf16.msra.mxu0 %v481
      %610 = vmatprep.mubr.bf16.mxu0 %v291
      %611 = vmatmul.mubr.bf16.gmra.mrb[0].mxu0 %v290
      %v612 = vpop.f32.mrb[0].mxu0
      %v613 = vadd.f32 %v564, %v612
      %v614 = vpop.f32.mrb[0].mxu0
      %v615 = vpop.f32.mrb[0].mxu0
      %v616 = vadd.f32 %v567, %v615
      %v617 = vpop.f32.mrb[0].mxu0
      %618 = vmatprep.mubr.bf16.mxu0 %v296
      %619 = vmatmul.mubr.bf16.gmra.mrb[0].mxu0 %v295
      %v620 = vpop.f32.mrb[0].mxu0
      %v621 = vadd.f32 %v572, %v620
      %v622 = vpop.f32.mrb[0].mxu0
      %v623 = vpop.f32.mrb[0].mxu0
      %v624 = vadd.f32 %v575, %v623
      %v625 = vpop.f32.mrb[0].mxu0
      %626 = vdwg.mxu0
      %627 = vmatprep.subr.bf16.mxu0 0
      %628 = vmatpush1.bf16.msra.mxu0 %v482
      %629 = vmatprep.subr.bf16.mxu0 0
      %630 = vmatpush1.bf16.msra.mxu0 %v483
      %631 = vmatprep.subr.bf16.mxu0 0
      %632 = vmatpush1.bf16.msra.mxu0 %v484
      %633 = vmatprep.subr.bf16.mxu0 0
      %634 = vmatpush1.bf16.msra.mxu0 %v485
      %635 = vmatprep.subr.bf16.mxu0 0
      %636 = vmatpush1.bf16.msra.mxu0 0
      %637 = vmatprep.subr.bf16.mxu0 0
      %638 = vmatpush1.bf16.msra.mxu0 0
      %639 = vmatprep.subr.bf16.mxu0 0
      %640 = vmatpush1.bf16.msra.mxu0 0
      %641 = vmatprep.subr.bf16.mxu0 0
      %642 = vmatpush1.bf16.msra.mxu0 0
      %643 = vmatprep.subr.bf16.mxu0 0
      %644 = vmatpush1.bf16.msra.mxu0 0
      %645 = vmatprep.subr.bf16.mxu0 0
      %646 = vmatpush1.bf16.msra.mxu0 0
      %647 = vmatprep.subr.bf16.mxu0 0
      %648 = vmatpush1.bf16.msra.mxu0 0
      %649 = vmatprep.subr.bf16.mxu0 0
      %650 = vmatpush1.bf16.msra.mxu0 0
      %651 = vmatprep.subr.bf16.mxu0 0
      %652 = vmatpush1.bf16.msra.mxu0 0
      %653 = vmatprep.subr.bf16.mxu0 0
      %654 = vmatpush1.bf16.msra.mxu0 0
      %655 = vmatprep.subr.bf16.mxu0 0
      %656 = vmatpush1.bf16.msra.mxu0 0
      %657 = vmatprep.subr.bf16.mxu0 0
      %658 = vmatpush1.bf16.msra.mxu0 0
      %659 = vmatprep.mubr.bf16.mxu0 0
      %660 = vmatmul.mubr.bf16.gmra.mrb[0].mxu0 %v524
      %v661 = vpop.f32.mrb[0].mxu0
      %v662 = vadd.f32 %v613, %v661
      %v663 = vpop.f32.mrb[0].mxu0
      %v664 = vpop.f32.mrb[0].mxu0
      %v665 = vadd.f32 %v616, %v664
      %v666 = vpop.f32.mrb[0].mxu0
      %667 = vmatprep.mubr.bf16.mxu0 0
      %668 = vmatmul.mubr.bf16.gmra.mrb[0].mxu0 %v527
      %v669 = vpop.f32.mrb[0].mxu0
      %v670 = vadd.f32 %v621, %v669
      %v671 = vpop.f32.mrb[0].mxu0
      %v672 = vpop.f32.mrb[0].mxu0
      %v673 = vadd.f32 %v624, %v672
      %v674 = vpop.f32.mrb[0].mxu0
      %675 = vdwg.mxu0
      %v676 = vsel %vm522, %v662, 0.0
      %v677 = vsel %vm522, %v665, 0.0
      %v678 = vadd.f32 %v676, %v677
      %v679 = vsel %vm522, %v670, 0.0
      %v680 = vadd.f32 %v678, %v679
      %v681 = vsel %vm522, %v673, 0.0
      %v682 = vadd.f32 %v680, %v681
      %683 = vadd.xlane.f32.xlu0 %v682
      %v684 = vpop.xlane.xlu0 %683
      %v685 = vrot.slane %v684, 4
      %v686 = vadd.f32 %v684, %v685
      %v687 = vrot.slane %v686, 2
      %v688 = vadd.f32 %v686, %v687
      %v689 = vrot.slane %v688, 1
      %v690 = vadd.f32 %v688, %v689
      %s691 = vtos %v690
      %v692 = vrcp.pop 2048.0
      %s693 = vtos %v692
      %s694 = smul.f32 %s691, %s693
      %v695 = vstv %s694
      %v696 = vsub.f32 %v662, %v695
      %v697 = vsub.f32 %v665, %v695
      %v698 = vsub.f32 %v670, %v695
      %v699 = vsub.f32 %v673, %v695
      %v700 = vmul.f32 %v696, %v696
      %v701 = vmul.f32 %v697, %v697
      %v702 = vmul.f32 %v698, %v698
      %v703 = vmul.f32 %v699, %v699
      %v704 = vsel %vm522, %v700, 0.0
      %v705 = vsel %vm522, %v701, 0.0
      %v706 = vadd.f32 %v704, %v705
      %v707 = vsel %vm522, %v702, 0.0
      %v708 = vadd.f32 %v706, %v707
      %v709 = vsel %vm522, %v703, 0.0
      %v710 = vadd.f32 %v708, %v709
      %711 = vadd.xlane.f32.xlu0 %v710
      %v712 = vpop.xlane.xlu0 %711
      %v713 = vrot.slane %v712, 4
      %v714 = vadd.f32 %v712, %v713
      %v715 = vrot.slane %v714, 2
      %v716 = vadd.f32 %v714, %v715
      %v717 = vrot.slane %v716, 1
      %v718 = vadd.f32 %v716, %v717
      %s719 = vtos %v718
      %v720 = vrcp.pop 2048.0
      %s721 = vtos %v720
      %s722 = smul.f32 %s719, %s721
      %s723 = sadd.f32 %s722, 1e-05
      %v724 = vstv %s723
      %v725 = vrsqrt.pop %v724
      %s726 = vtos %v725
      %v727 = vstv %s726
      %v728 = vmul.f32 %v696, %v727
      %v729 = vmul.f32 %v697, %v727
      %v730 = vmul.f32 %v698, %v727
      %v731 = vmul.f32 %v699, %v727
      %v732 = vld [vmem:[%s2] sm:$0xff]
      %v733 = vld [vmem:[%s2 + $0x8] sm:$0xff]
      %v734 = vld [vmem:[%s2 + $0x10] sm:$0xff]
      %v735 = vld [vmem:[%s2 + $0x18] sm:$0xff]
      %vm736 = vcmp.gt.f32.partialorder %v728, 0.0
      %vm737 = vcmp.gt.f32.partialorder %v729, 0.0
      %vm738 = vcmp.gt.f32.partialorder %v730, 0.0
      %vm739 = vcmp.gt.f32.partialorder %v731, 0.0
      %741 = vset.pattern.permute.xlu0 0
      %742 = vperm.xlu0 %741, %v732
      %v743 = vpop.permute.xlu0 %742
      %746 = vset.pattern.permute.xlu0 0
      %747 = vperm.xlu0 %746, %v733
      %v748 = vpop.permute.xlu0 %747
      %751 = vset.pattern.permute.xlu0 0
      %752 = vperm.xlu0 %751, %v734
      %v753 = vpop.permute.xlu0 %752
      %756 = vset.pattern.permute.xlu0 0
      %757 = vperm.xlu0 %756, %v735
      %v758 = vpop.permute.xlu0 %757
      %v760 = vmul.f32 %v743, %v728
      %v761 = vmul.f32 %v748, %v729
      %v762 = vmul.f32 %v753, %v730
      %v763 = vmul.f32 %v758, %v731
      %v764 = vsel %vm736, %v728, %v760
      %v765 = vsel %vm737, %v729, %v761
      %v766 = vsel %vm738, %v730, %v762
      %v767 = vsel %vm739, %v731, %v763
      %v768 = vpack.c.bf16 %v765, %v764
      %v769 = vpack.c.bf16 %v767, %v766
      %v772 = vunpack.c.l.b16 %v768
      %v773 = vunpack.c.h.b16 %v768
      %v774 = vunpack.c.l.b16 %v769
      %v775 = vunpack.c.h.b16 %v769
      %v776 = vpack.c.b16 %v772, %v772
      %v777 = vpack.c.b16 %v773, %v773
      %v778 = vpack.c.b16 %v774, %v774
      %v779 = vpack.c.b16 %v775, %v775
      %vm784 = vcmask 519168
      %785 = vst.msk [vmem:[%s170] sm:$0xf] %vm784, %v776
      %786 = vst.msk [vmem:[%s170 + $0x4] sm:$0xf] %vm784, %v777
      %787 = vst.msk [vmem:[%s170 + $0x8] sm:$0xf] %vm784, %v778
      %788 = vst.msk [vmem:[%s170 + $0xc] sm:$0xf] %vm784, %v779
      %p789 = scmp.lt.s32.totalorder %s14, 1
      %s790 = scalar_select %p789, %s14, 1
      %s791 = smul.addr %s790, 4
      %s792 = smul.addr %s791, 4
      %s793 = scalar_lea.vmem %s3, %s792
      // Predicated region
      $region33: #{_lambda_.92} parent=31 // pred_check
        %p794 = pneg %p100
      $region34: #{_lambda_.92} parent=31 // pred_check_branch
        %796 = sbr.rel (%p794) target = $region36
      $region35: #{_lambda_.92} parent=31 // pred_region
        _
      $region36: #{_lambda_.92} parent=31 // pred_fallthru
        _
    $region32: #{_lambda_.92} parent=5 // pred_fallthru
      _
    %p797 = scmp.le.s32.totalorder 2, %s9
    // Predicated region
    $region37: #{_lambda_.92} parent=5 // pred_check
      %p798 = pneg %p797
    $region38: #{_lambda_.92} parent=5 // pred_check_branch
      %800 = sbr.rel (%p798) target = $region40
    $region39: #{_lambda_.92} parent=5 // pred_region
      %s801 = ssub.s32 %s9, 2
      // Predicated region
      $region41: #{_lambda_.92} parent=39 // pred_check
        %p802 = pneg %p106
      $region42: #{_lambda_.92} parent=39 // pred_check_branch
        %804 = sbr.rel (%p802) target = $region44
      $region43: #{_lambda_.92} parent=39 // pred_region
        %p805 = scmp.lt.s32.totalorder %s15, 1
        %s806 = scalar_select %p805, %s15, 1
        %s807 = smul.addr %s806, 4
        %s808 = smul.addr %s807, 4
        %s809 = scalar_lea.vmem %s3, %s808
      $region44: #{_lambda_.92} parent=39 // pred_fallthru
        _
    $region40: #{_lambda_.92} parent=5 // pred_fallthru
      _
  $region6: #{_lambda_.92} parent=0 // loop_footer
    %s13 = sadd.s32 1, %s9
  $region7: #{_lambda_.92} parent=0 // loop_footer_branch
    %8 = sbr.rel target = $region3
  $region8: #{_lambda_.92} parent=0 // loop_exit
    _

// kernel: _lambda_.95
$region0: #{_lambda_.95}
  #allocation0 [shape = 'u32[]', space=smem, size = 0x4, offset = 0x4, fixed_abs, tag = 'smem constant byte address 0x4 - core index']
  #allocation1 [shape = 'u32[144,128]{1,0:T(1,128)}', space=vmem, size = 0x12000, scoped, tag = 'internal scratch']
  %s0 = inlined_call_operand.vmem [shape: bf16[64,32], index: 0, kind: input, shape index: {}]
  %s1 = inlined_call_operand.vmem [shape: bf16[2,32,16], index: 1, kind: input, shape index: {}]
  %s2 = inlined_call_operand.vmem [shape: bf16[2,64,16], index: 2, kind: output, shape index: {}]
  %s3 = sld [smem:[#allocation0]]
  $region41: #{_lambda_.95} parent=0
    _
  %s5 = ssub.s32 1, %s3
  %s6 = scalar_select 0, %s5, %s3
  loop: start=0, step=1, limit=4
  $region2: #{_lambda_.95} parent=0 // loop_pre_header
    _
  $region3: #{_lambda_.95} parent=0 // loop_header
    %s8 = sphi 0, %s12
    %p9 = scmp.ge.s32.totalorder %s8, 4
    %s16 = sphi 0, %s16
    %s18 = sphi 0, %s16
    %s19 = sphi 0, %s18
    %s33 = sphi 0, %s19
    %s39 = sphi 0, %s41
    %s42 = sphi 0, %s39
    %s43 = sphi 0, %s42
    %s59 = sphi 0, %s43
    %s65 = sphi 0, %s67
    %s68 = sphi 0, %s65
    %s69 = sphi 0, %s68
    %s85 = sphi 0, %s69
  $region4: #{_lambda_.95} parent=0 // loop_header_branch
    %11 = sbr.rel (%p9) target = $region8
  $region5: #{_lambda_.95} parent=0 // loop_body
    %s13 = ssub.s32 %s8, 1
    %s14 = ssub.s32 %s8, 2
    %s15 = sadd.s32 %s8, 1
    %s17 = sadd.s32 %s16, 1
    %p20 = scmp.eq.s32.totalorder %s8, 1
    %p21 = scmp.ne.s32.totalorder %s16, %s18
    %p22 = scmp.eq.s32.totalorder %s8, 0
    %p23 = por %p21, %p22
    %p24 = scmp.ne.s32.totalorder %s16, %s18
    %p25 = scmp.eq.s32.totalorder %s13, 1
    %p26 = por %p24, %p25
    %p27 = scmp.ne.s32.totalorder %s18, %s19
    %p28 = scmp.eq.s32.totalorder %s13, 0
    %p29 = por %p27, %p28
    %p30 = scmp.ne.s32.totalorder %s18, %s19
    %p31 = scmp.eq.s32.totalorder %s14, 1
    %p32 = por %p30, %p31
    %p34 = scmp.ne.s32.totalorder %s19, %s33
    %p35 = scmp.eq.s32.totalorder %s14, 0
    %p36 = por %p34, %p35
    %s37 = ssub.s32 %s8, %s15
    %p38 = scmp.eq.s32.totalorder %s37, 0
    %s40 = sadd.s32 %s39, 1
    %s41 = scalar_select %p38, %s39, %s40
    %p44 = pneg %p38
    %p45 = scmp.eq.s32.totalorder %s8, 1
    %p46 = por %p44, %p45
    %p47 = scmp.ne.s32.totalorder %s39, %s42
    %p48 = scmp.eq.s32.totalorder %s8, 0
    %p49 = por %p47, %p48
    %p50 = scmp.ne.s32.totalorder %s39, %s42
    %p51 = scmp.eq.s32.totalorder %s13, 1
    %p52 = por %p50, %p51
    %p53 = scmp.ne.s32.totalorder %s42, %s43
    %p54 = scmp.eq.s32.totalorder %s13, 0
    %p55 = por %p53, %p54
    %p56 = scmp.ne.s32.totalorder %s42, %s43
    %p57 = scmp.eq.s32.totalorder %s14, 1
    %p58 = por %p56, %p57
    %p60 = scmp.ne.s32.totalorder %s43, %s59
    %p61 = scmp.eq.s32.totalorder %s14, 0
    %p62 = por %p60, %p61
    %s63 = ssub.s32 %s8, %s15
    %p64 = scmp.eq.s32.totalorder %s63, 0
    %s66 = sadd.s32 %s65, 1
    %s67 = scalar_select %p64, %s65, %s66
    %p70 = pneg %p64
    %p71 = scmp.eq.s32.totalorder %s8, 1
    %p72 = por %p70, %p71
    %p73 = scmp.ne.s32.totalorder %s65, %s68
    %p74 = scmp.eq.s32.totalorder %s8, 0
    %p75 = por %p73, %p74
    %p76 = scmp.ne.s32.totalorder %s65, %s68
    %p77 = scmp.eq.s32.totalorder %s13, 1
    %p78 = por %p76, %p77
    %p79 = scmp.ne.s32.totalorder %s68, %s69
    %p80 = scmp.eq.s32.totalorder %s13, 0
    %p81 = por %p79, %p80
    %p82 = scmp.ne.s32.totalorder %s68, %s69
    %p83 = scmp.eq.s32.totalorder %s14, 1
    %p84 = por %p82, %p83
    %p86 = scmp.ne.s32.totalorder %s69, %s85
    %p87 = scmp.eq.s32.totalorder %s14, 0
    %p88 = por %p86, %p87
    %p89 = scmp.le.s32.totalorder 1, %s8
    %p90 = scmp.lt.s32.totalorder %s8, 3
    %p91 = pnand %p89, %p90
    %p92 = pneg %p91
    // Predicated region
    $region9: #{_lambda_.95} parent=5 // pred_check
      _
    $region10: #{_lambda_.95} parent=5 // pred_check_branch
      %94 = sbr.rel (%p91) target = $region12
    $region11: #{_lambda_.95} parent=5 // pred_region
      %s95 = ssub.s32 %s8, 1
      // Predicated region
      $region13: #{_lambda_.95} parent=11 // pred_check
        %p96 = pneg %p29
      $region14: #{_lambda_.95} parent=11 // pred_check_branch
        %98 = sbr.rel (%p96) target = $region16
      $region15: #{_lambda_.95} parent=11 // pred_region
        _
      $region16: #{_lambda_.95} parent=11 // pred_fallthru
        _
    $region12: #{_lambda_.95} parent=5 // pred_fallthru
      _
    %p99 = scmp.lt.s32.totalorder %s8, 2
    // Predicated region
    $region17: #{_lambda_.95} parent=5 // pred_check
      %p100 = pneg %p99
    $region18: #{_lambda_.95} parent=5 // pred_check_branch
      %102 = sbr.rel (%p100) target = $region20
    $region19: #{_lambda_.95} parent=5 // pred_region
      // Predicated region
      $region21: #{_lambda_.95} parent=19 // pred_check
        %p103 = pneg %p49
      $region22: #{_lambda_.95} parent=19 // pred_check_branch
        %105 = sbr.rel (%p103) target = $region24
      $region23: #{_lambda_.95} parent=19 // pred_region
        %p106 = scmp.lt.s32.totalorder %s8, 1
        %s107 = scalar_select %p106, %s8, 1
        %s108 = smul.addr %s107, 4
        %s109 = smul.addr %s108, 4
        %s110 = scalar_lea.vmem %s1, %s109
      $region24: #{_lambda_.95} parent=19 // pred_fallthru
        _
    $region20: #{_lambda_.95} parent=5 // pred_fallthru
      _
    %p111 = scmp.le.s32.totalorder 1, %s8
    %p112 = scmp.lt.s32.totalorder %s8, 3
    %p113 = pnand %p111, %p112
    %p114 = pneg %p113
    // Predicated region
    $region25: #{_lambda_.95} parent=5 // pred_check
      _
    $region26: #{_lambda_.95} parent=5 // pred_check_branch
      %116 = sbr.rel (%p113) target = $region28
    $region27: #{_lambda_.95} parent=5 // pred_region
      %s117 = ssub.s32 %s8, 1
      %p118 = pneg %p29
      %p119 = pneg %p26
      %p120 = scmp.lt.s32.totalorder %s13, 1
      %s121 = scalar_select %p120, %s13, 1
      %s122 = smul.addr %s121, 4
      %s123 = smul.addr %s122, 4
      %s124 = scalar_lea.vmem %s1, %s123
      %p125 = pneg %p55
      %p126 = pneg %p52
      %p127 = pneg %p81
      %p128 = pneg %p78
      %p129 = scmp.lt.s32.totalorder %s13, 1
      %s130 = scalar_select %p129, %s13, 1
      %s131 = smul.addr %s130, 8
      %s132 = smul.addr %s131, 4
      %s133 = scalar_lea.vmem %s2, %s132
      %p134 = scmp.lt.s32.totalorder %s13, 1
      %s135 = scalar_select %p134, %s13, 1
      %s136 = smul.addr %s135, 4
      %s137 = smul.addr %s136, 4
      %s138 = scalar_lea.vmem %s1, %s137
      %p139 = scmp.lt.s32.totalorder %s13, 1
      %s140 = scalar_select %p139, %s13, 1
      %s141 = smul.addr %s140, 8
      %s142 = smul.addr %s141, 4
      %s143 = scalar_lea.vmem %s2, %s142
      %v145 = vld [vmem:[%s0] sm:$0xf]
      %v146 = vld [vmem:[%s0 + $0x4] sm:$0xf]
      %v147 = vld [vmem:[%s0 + $0x8] sm:$0xf]
      %v148 = vld [vmem:[%s0 + $0xc] sm:$0xf]
      %v149 = vld [vmem:[%s0 + $0x10] sm:$0xf]
      %v150 = vld [vmem:[%s0 + $0x14] sm:$0xf]
      %v151 = vld [vmem:[%s0 + $0x18] sm:$0xf]
      %v152 = vld [vmem:[%s0 + $0x1c] sm:$0xf]
      %v153 = vld [vmem:[%s138] sm:$0xf]
      %v154 = vld [vmem:[%s138 + $0x4] sm:$0xf]
      %v155 = vld [vmem:[%s138 + $0x8] sm:$0xf]
      %v156 = vld [vmem:[%s138 + $0xc] sm:$0xf]
      %v165 = vunpack.c.l.b16 %v145
      %v166 = vunpack.c.l.b16 %v146
      %v167 = vunpack.c.l.b16 %v147
      %v168 = vunpack.c.l.b16 %v148
      %v169 = vunpack.c.l.b16 %v149
      %v170 = vunpack.c.l.b16 %v150
      %v171 = vunpack.c.l.b16 %v151
      %v172 = vunpack.c.l.b16 %v152
      %v173 = vpack.c.b16 %v166, %v165
      %v174 = vpack.c.b16 %v168, %v167
      %v175 = vpack.c.b16 %v170, %v169
      %v176 = vpack.c.b16 %v172, %v171
      %v181 = vunpack.c.l.b16 %v153
      %v182 = vunpack.c.l.b16 %v154
      %v183 = vunpack.c.l.b16 %v155
      %v184 = vunpack.c.l.b16 %v156
      %v185 = vpack.c.b16 %v182, %v181
      %v186 = vpack.c.b16 %v184, %v183
      %vm189 = vcmask 261120
      %v191 = vsel %vm189, %v173, 0
      %v194 = vsel %vm189, %v174, 0
      %v197 = vsel %vm189, %v175, 0
      %v200 = vsel %vm189, %v176, 0
      %202 = vmatprep.subr.bf16.mxu0 0
      %203 = vmatpush1.bf16.msra.mxu0 %v185
      %204 = vmatprep.subr.bf16.mxu0 0
      %205 = vmatpush1.bf16.msra.mxu0 %v186
      %206 = vmatprep.subr.bf16.mxu0 0
      %207 = vmatpush1.bf16.msra.mxu0 0
      %208 = vmatprep.subr.bf16.mxu0 0
      %209 = vmatpush1.bf16.msra.mxu0 0
      %210 = vmatprep.subr.bf16.mxu0 0
      %211 = vmatpush1.bf16.msra.mxu0 0
      %212 = vmatprep.subr.bf16.mxu0 0
      %213 = vmatpush1.bf16.msra.mxu0 0
      %214 = vmatprep.subr.bf16.mxu0 0
      %215 = vmatpush1.bf16.msra.mxu0 0
      %216 = vmatprep.subr.bf16.mxu0 0
      %217 = vmatpush1.bf16.msra.mxu0 0
      %218 = vmatprep.subr.bf16.mxu0 0
      %219 = vmatpush1.bf16.msra.mxu0 0
      %220 = vmatprep.subr.bf16.mxu0 0
      %221 = vmatpush1.bf16.msra.mxu0 0
      %222 = vmatprep.subr.bf16.mxu0 0
      %223 = vmatpush1.bf16.msra.mxu0 0
      %224 = vmatprep.subr.bf16.mxu0 0
      %225 = vmatpush1.bf16.msra.mxu0 0
      %226 = vmatprep.subr.bf16.mxu0 0
      %227 = vmatpush1.bf16.msra.mxu0 0
      %228 = vmatprep.subr.bf16.mxu0 0
      %229 = vmatpush1.bf16.msra.mxu0 0
      %230 = vmatprep.subr.bf16.mxu0 0
      %231 = vmatpush1.bf16.msra.mxu0 0
      %232 = vmatprep.subr.bf16.mxu0 0
      %233 = vmatpush1.bf16.msra.mxu0 0
      %234 = vmatprep.mubr.bf16.mxu0 0
      %235 = vmatmul.mubr.bf16.gmra.mrb[0].mxu0 %v191
      %v236 = vpop.f32.mrb[0].mxu0
      %v237 = vadd.f32 0.0, %v236
      %v238 = vpop.f32.mrb[0].mxu0
      %v239 = vpop.f32.mrb[0].mxu0
      %v240 = vadd.f32 0.0, %v239
      %v241 = vpop.f32.mrb[0].mxu0
      %242 = vmatprep.mubr.bf16.mxu0 0
      %243 = vmatmul.mubr.bf16.gmra.mrb[0].mxu0 %v194
      %v244 = vpop.f32.mrb[0].mxu0
      %v245 = vadd.f32 0.0, %v244
      %v246 = vpop.f32.mrb[0].mxu0
      %v247 = vpop.f32.mrb[0].mxu0
      %v248 = vadd.f32 0.0, %v247
      %v249 = vpop.f32.mrb[0].mxu0
      %250 = vmatprep.mubr.bf16.mxu0 0
      %251 = vmatmul.mubr.bf16.gmra.mrb[0].mxu0 %v197
      %v252 = vpop.f32.mrb[0].mxu0
      %v253 = vadd.f32 0.0, %v252
      %v254 = vpop.f32.mrb[0].mxu0
      %v255 = vpop.f32.mrb[0].mxu0
      %v256 = vadd.f32 0.0, %v255
      %v257 = vpop.f32.mrb[0].mxu0
      %258 = vmatprep.mubr.bf16.mxu0 0
      %259 = vmatmul.mubr.bf16.gmra.mrb[0].mxu0 %v200
      %v260 = vpop.f32.mrb[0].mxu0
      %v261 = vadd.f32 0.0, %v260
      %v262 = vpop.f32.mrb[0].mxu0
      %v263 = vpop.f32.mrb[0].mxu0
      %v264 = vadd.f32 0.0, %v263
      %v265 = vpop.f32.mrb[0].mxu0
      %266 = vdwg.mxu0
      %v267 = vpack.c.bf16 %v240, %v237
      %v268 = vpack.c.bf16 %v248, %v245
      %v269 = vpack.c.bf16 %v256, %v253
      %v270 = vpack.c.bf16 %v264, %v261
      %v275 = vunpack.c.l.b16 %v267
      %v276 = vunpack.c.h.b16 %v267
      %v277 = vunpack.c.l.b16 %v268
      %v278 = vunpack.c.h.b16 %v268
      %v279 = vunpack.c.l.b16 %v269
      %v280 = vunpack.c.h.b16 %v269
      %v281 = vunpack.c.l.b16 %v270
      %v282 = vunpack.c.h.b16 %v270
      %v283 = vpack.c.b16 %v275, %v275
      %v284 = vpack.c.b16 %v276, %v276
      %v285 = vpack.c.b16 %v277, %v277
      %v286 = vpack.c.b16 %v278, %v278
      %v287 = vpack.c.b16 %v279, %v279
      %v288 = vpack.c.b16 %v280, %v280
      %v289 = vpack.c.b16 %v281, %v281
      %v290 = vpack.c.b16 %v282, %v282
      %vm299 = vcmask 125952
      %300 = vst.msk [vmem:[%s143] sm:$0xf] %vm299, %v283
      %301 = vst.msk [vmem:[%s143 + $0x4] sm:$0xf] %vm299, %v284
      %302 = vst.msk [vmem:[%s143 + $0x8] sm:$0xf] %vm299, %v285
      %303 = vst.msk [vmem:[%s143 + $0xc] sm:$0xf] %vm299, %v286
      %304 = vst.msk [vmem:[%s143 + $0x10] sm:$0xf] %vm299, %v287
      %305 = vst.msk [vmem:[%s143 + $0x14] sm:$0xf] %vm299, %v288
      %306 = vst.msk [vmem:[%s143 + $0x18] sm:$0xf] %vm299, %v289
      %307 = vst.msk [vmem:[%s143 + $0x1c] sm:$0xf] %vm299, %v290
      %p308 = scmp.lt.s32.totalorder %s13, 1
      %s309 = scalar_select %p308, %s13, 1
      %s310 = smul.addr %s309, 8
      %s311 = smul.addr %s310, 4
      %s312 = scalar_lea.vmem %s2, %s311
      // Predicated region
      $region29: #{_lambda_.95} parent=27 // pred_check
        %p313 = pneg %p78
      $region30: #{_lambda_.95} parent=27 // pred_check_branch
        %315 = sbr.rel (%p313) target = $region32
      $region31: #{_lambda_.95} parent=27 // pred_region
        _
      $region32: #{_lambda_.95} parent=27 // pred_fallthru
        _
    $region28: #{_lambda_.95} parent=5 // pred_fallthru
      _
    %p316 = scmp.le.s32.totalorder 2, %s8
    // Predicated region
    $region33: #{_lambda_.95} parent=5 // pred_check
      %p317 = pneg %p316
    $region34: #{_lambda_.95} parent=5 // pred_check_branch
      %319 = sbr.rel (%p317) target = $region36
    $region35: #{_lambda_.95} parent=5 // pred_region
      %s320 = ssub.s32 %s8, 2
      // Predicated region
      $region37: #{_lambda_.95} parent=35 // pred_check
        %p321 = pneg %p84
      $region38: #{_lambda_.95} parent=35 // pred_check_branch
        %323 = sbr.rel (%p321) target = $region40
      $region39: #{_lambda_.95} parent=35 // pred_region
        %p324 = scmp.lt.s32.totalorder %s14, 1
        %s325 = scalar_select %p324, %s14, 1
        %s326 = smul.addr %s325, 8
        %s327 = smul.addr %s326, 4
        %s328 = scalar_lea.vmem %s2, %s327
      $region40: #{_lambda_.95} parent=35 // pred_fallthru
        _
    $region36: #{_lambda_.95} parent=5 // pred_fallthru
      _
  $region6: #{_lambda_.95} parent=0 // loop_footer
    %s12 = sadd.s32 1, %s8
  $region7: #{_lambda_.95} parent=0 // loop_footer_branch
    %7 = sbr.rel target = $region3
  $region8: #{_lambda_.95} parent=0 // loop_exit
    _

// kernel: _lambda_.94
$region0: #{_lambda_.94}
  #allocation0 [shape = 'u32[]', space=smem, size = 0x4, offset = 0x4, fixed_abs, tag = 'smem constant byte address 0x4 - core index']
  #allocation1 [shape = 'u32[144,128]{1,0:T(1,128)}', space=vmem, size = 0x12000, scoped, tag = 'internal scratch']
  %s0 = inlined_call_operand.vmem [shape: bf16[32,288], index: 0, kind: input, shape index: {}]
  %s1 = inlined_call_operand.vmem [shape: bf16[2,288,64], index: 1, kind: input, shape index: {}]
  %s2 = inlined_call_operand.vmem [shape: bf16[2,32,64], index: 2, kind: input, shape index: {}]
  %s3 = inlined_call_operand.vmem [shape: f32[32,1], index: 3, kind: input, shape index: {}]
  %s4 = inlined_call_operand.vmem [shape: bf16[2,32,64], index: 4, kind: output, shape index: {}]
  %s5 = sld [smem:[#allocation0]]
  $region49: #{_lambda_.94} parent=0
    _
  %s7 = ssub.s32 1, %s5
  %s8 = scalar_select 0, %s7, %s5
  loop: start=0, step=1, limit=4
  $region2: #{_lambda_.94} parent=0 // loop_pre_header
    _
  $region3: #{_lambda_.94} parent=0 // loop_header
    %s10 = sphi 0, %s14
    %p11 = scmp.ge.s32.totalorder %s10, 4
    %s18 = sphi 0, %s18
    %s20 = sphi 0, %s18
    %s21 = sphi 0, %s20
    %s35 = sphi 0, %s21
    %s41 = sphi 0, %s43
    %s44 = sphi 0, %s41
    %s45 = sphi 0, %s44
    %s61 = sphi 0, %s45
    %s67 = sphi 0, %s69
    %s70 = sphi 0, %s67
    %s71 = sphi 0, %s70
    %s87 = sphi 0, %s71
    %s91 = sphi 0, %s91
    %s93 = sphi 0, %s91
    %s94 = sphi 0, %s93
    %s108 = sphi 0, %s94
    %s114 = sphi 0, %s116
    %s117 = sphi 0, %s114
    %s118 = sphi 0, %s117
    %s134 = sphi 0, %s118
  $region4: #{_lambda_.94} parent=0 // loop_header_branch
    %13 = sbr.rel (%p11) target = $region8
  $region5: #{_lambda_.94} parent=0 // loop_body
    %s15 = ssub.s32 %s10, 1
    %s16 = ssub.s32 %s10, 2
    %s17 = sadd.s32 %s10, 1
    %s19 = sadd.s32 %s18, 1
    %p22 = scmp.eq.s32.totalorder %s10, 1
    %p23 = scmp.ne.s32.totalorder %s18, %s20
    %p24 = scmp.eq.s32.totalorder %s10, 0
    %p25 = por %p23, %p24
    %p26 = scmp.ne.s32.totalorder %s18, %s20
    %p27 = scmp.eq.s32.totalorder %s15, 1
    %p28 = por %p26, %p27
    %p29 = scmp.ne.s32.totalorder %s20, %s21
    %p30 = scmp.eq.s32.totalorder %s15, 0
    %p31 = por %p29, %p30
    %p32 = scmp.ne.s32.totalorder %s20, %s21
    %p33 = scmp.eq.s32.totalorder %s16, 1
    %p34 = por %p32, %p33
    %p36 = scmp.ne.s32.totalorder %s21, %s35
    %p37 = scmp.eq.s32.totalorder %s16, 0
    %p38 = por %p36, %p37
    %s39 = ssub.s32 %s10, %s17
    %p40 = scmp.eq.s32.totalorder %s39, 0
    %s42 = sadd.s32 %s41, 1
    %s43 = scalar_select %p40, %s41, %s42
    %p46 = pneg %p40
    %p47 = scmp.eq.s32.totalorder %s10, 1
    %p48 = por %p46, %p47
    %p49 = scmp.ne.s32.totalorder %s41, %s44
    %p50 = scmp.eq.s32.totalorder %s10, 0
    %p51 = por %p49, %p50
    %p52 = scmp.ne.s32.totalorder %s41, %s44
    %p53 = scmp.eq.s32.totalorder %s15, 1
    %p54 = por %p52, %p53
    %p55 = scmp.ne.s32.totalorder %s44, %s45
    %p56 = scmp.eq.s32.totalorder %s15, 0
    %p57 = por %p55, %p56
    %p58 = scmp.ne.s32.totalorder %s44, %s45
    %p59 = scmp.eq.s32.totalorder %s16, 1
    %p60 = por %p58, %p59
    %p62 = scmp.ne.s32.totalorder %s45, %s61
    %p63 = scmp.eq.s32.totalorder %s16, 0
    %p64 = por %p62, %p63
    %s65 = ssub.s32 %s10, %s17
    %p66 = scmp.eq.s32.totalorder %s65, 0
    %s68 = sadd.s32 %s67, 1
    %s69 = scalar_select %p66, %s67, %s68
    %p72 = pneg %p66
    %p73 = scmp.eq.s32.totalorder %s10, 1
    %p74 = por %p72, %p73
    %p75 = scmp.ne.s32.totalorder %s67, %s70
    %p76 = scmp.eq.s32.totalorder %s10, 0
    %p77 = por %p75, %p76
    %p78 = scmp.ne.s32.totalorder %s67, %s70
    %p79 = scmp.eq.s32.totalorder %s15, 1
    %p80 = por %p78, %p79
    %p81 = scmp.ne.s32.totalorder %s70, %s71
    %p82 = scmp.eq.s32.totalorder %s15, 0
    %p83 = por %p81, %p82
    %p84 = scmp.ne.s32.totalorder %s70, %s71
    %p85 = scmp.eq.s32.totalorder %s16, 1
    %p86 = por %p84, %p85
    %p88 = scmp.ne.s32.totalorder %s71, %s87
    %p89 = scmp.eq.s32.totalorder %s16, 0
    %p90 = por %p88, %p89
    %s92 = sadd.s32 %s91, 1
    %p95 = scmp.eq.s32.totalorder %s10, 1
    %p96 = scmp.ne.s32.totalorder %s91, %s93
    %p97 = scmp.eq.s32.totalorder %s10, 0
    %p98 = por %p96, %p97
    %p99 = scmp.ne.s32.totalorder %s91, %s93
    %p100 = scmp.eq.s32.totalorder %s15, 1
    %p101 = por %p99, %p100
    %p102 = scmp.ne.s32.totalorder %s93, %s94
    %p103 = scmp.eq.s32.totalorder %s15, 0
    %p104 = por %p102, %p103
    %p105 = scmp.ne.s32.totalorder %s93, %s94
    %p106 = scmp.eq.s32.totalorder %s16, 1
    %p107 = por %p105, %p106
    %p109 = scmp.ne.s32.totalorder %s94, %s108
    %p110 = scmp.eq.s32.totalorder %s16, 0
    %p111 = por %p109, %p110
    %s112 = ssub.s32 %s10, %s17
    %p113 = scmp.eq.s32.totalorder %s112, 0
    %s115 = sadd.s32 %s114, 1
    %s116 = scalar_select %p113, %s114, %s115
    %p119 = pneg %p113
    %p120 = scmp.eq.s32.totalorder %s10, 1
    %p121 = por %p119, %p120
    %p122 = scmp.ne.s32.totalorder %s114, %s117
    %p123 = scmp.eq.s32.totalorder %s10, 0
    %p124 = por %p122, %p123
    %p125 = scmp.ne.s32.totalorder %s114, %s117
    %p126 = scmp.eq.s32.totalorder %s15, 1
    %p127 = por %p125, %p126
    %p128 = scmp.ne.s32.totalorder %s117, %s118
    %p129 = scmp.eq.s32.totalorder %s15, 0
    %p130 = por %p128, %p129
    %p131 = scmp.ne.s32.totalorder %s117, %s118
    %p132 = scmp.eq.s32.totalorder %s16, 1
    %p133 = por %p131, %p132
    %p135 = scmp.ne.s32.totalorder %s118, %s134
    %p136 = scmp.eq.s32.totalorder %s16, 0
    %p137 = por %p135, %p136
    %p138 = scmp.le.s32.totalorder 1, %s10
    %p139 = scmp.lt.s32.totalorder %s10, 3
    %p140 = pnand %p138, %p139
    %p141 = pneg %p140
    // Predicated region
    $region9: #{_lambda_.94} parent=5 // pred_check
      _
    $region10: #{_lambda_.94} parent=5 // pred_check_branch
      %143 = sbr.rel (%p140) target = $region12
    $region11: #{_lambda_.94} parent=5 // pred_region
      %s144 = ssub.s32 %s10, 1
      // Predicated region
      $region13: #{_lambda_.94} parent=11 // pred_check
        %p145 = pneg %p31
      $region14: #{_lambda_.94} parent=11 // pred_check_branch
        %147 = sbr.rel (%p145) target = $region16
      $region15: #{_lambda_.94} parent=11 // pred_region
        _
      $region16: #{_lambda_.94} parent=11 // pred_fallthru
        _
      // Predicated region
      $region17: #{_lambda_.94} parent=11 // pred_check
        %p148 = pneg %p104
      $region18: #{_lambda_.94} parent=11 // pred_check_branch
        %150 = sbr.rel (%p148) target = $region20
      $region19: #{_lambda_.94} parent=11 // pred_region
        _
      $region20: #{_lambda_.94} parent=11 // pred_fallthru
        _
    $region12: #{_lambda_.94} parent=5 // pred_fallthru
      _
    %p151 = scmp.lt.s32.totalorder %s10, 2
    // Predicated region
    $region21: #{_lambda_.94} parent=5 // pred_check
      %p152 = pneg %p151
    $region22: #{_lambda_.94} parent=5 // pred_check_branch
      %154 = sbr.rel (%p152) target = $region24
    $region23: #{_lambda_.94} parent=5 // pred_region
      // Predicated region
      $region25: #{_lambda_.94} parent=23 // pred_check
        %p155 = pneg %p51
      $region26: #{_lambda_.94} parent=23 // pred_check_branch
        %157 = sbr.rel (%p155) target = $region28
      $region27: #{_lambda_.94} parent=23 // pred_region
        %p158 = scmp.lt.s32.totalorder %s10, 1
        %s159 = scalar_select %p158, %s10, 1
        %s160 = smul.addr %s159, 36
        %s161 = smul.addr %s160, 4
        %s162 = scalar_lea.vmem %s1, %s161
      $region28: #{_lambda_.94} parent=23 // pred_fallthru
        _
      // Predicated region
      $region29: #{_lambda_.94} parent=23 // pred_check
        %p163 = pneg %p77
      $region30: #{_lambda_.94} parent=23 // pred_check_branch
        %165 = sbr.rel (%p163) target = $region32
      $region31: #{_lambda_.94} parent=23 // pred_region
        %p166 = scmp.lt.s32.totalorder %s10, 1
        %s167 = scalar_select %p166, %s10, 1
        %s168 = smul.addr %s167, 4
        %s169 = smul.addr %s168, 4
        %s170 = scalar_lea.vmem %s2, %s169
      $region32: #{_lambda_.94} parent=23 // pred_fallthru
        _
    $region24: #{_lambda_.94} parent=5 // pred_fallthru
      _
    %p171 = scmp.le.s32.totalorder 1, %s10
    %p172 = scmp.lt.s32.totalorder %s10, 3
    %p173 = pnand %p171, %p172
    %p174 = pneg %p173
    // Predicated region
    $region33: #{_lambda_.94} parent=5 // pred_check
      _
    $region34: #{_lambda_.94} parent=5 // pred_check_branch
      %176 = sbr.rel (%p173) target = $region36
    $region35: #{_lambda_.94} parent=5 // pred_region
      %s177 = ssub.s32 %s10, 1
      %p178 = pneg %p31
      %p179 = pneg %p28
      %p180 = scmp.lt.s32.totalorder %s15, 1
      %s181 = scalar_select %p180, %s15, 1
      %s182 = smul.addr %s181, 36
      %s183 = smul.addr %s182, 4
      %s184 = scalar_lea.vmem %s1, %s183
      %p185 = pneg %p57
      %p186 = pneg %p54
      %p187 = scmp.lt.s32.totalorder %s15, 1
      %s188 = scalar_select %p187, %s15, 1
      %s189 = smul.addr %s188, 4
      %s190 = smul.addr %s189, 4
      %s191 = scalar_lea.vmem %s2, %s190
      %p192 = pneg %p83
      %p193 = pneg %p80
      %p194 = pneg %p104
      %p195 = pneg %p101
      %p196 = pneg %p130
      %p197 = pneg %p127
      %p198 = scmp.lt.s32.totalorder %s15, 1
      %s199 = scalar_select %p198, %s15, 1
      %s200 = smul.addr %s199, 4
      %s201 = smul.addr %s200, 4
      %s202 = scalar_lea.vmem %s4, %s201
      %p203 = scmp.lt.s32.totalorder %s15, 1
      %s204 = scalar_select %p203, %s15, 1
      %s205 = smul.addr %s204, 36
      %s206 = smul.addr %s205, 4
      %s207 = scalar_lea.vmem %s1, %s206
      %p208 = scmp.lt.s32.totalorder %s15, 1
      %s209 = scalar_select %p208, %s15, 1
      %s210 = smul.addr %s209, 4
      %s211 = smul.addr %s210, 4
      %s212 = scalar_lea.vmem %s2, %s211
      %p213 = scmp.lt.s32.totalorder %s15, 1
      %s214 = scalar_select %p213, %s15, 1
      %s215 = smul.addr %s214, 4
      %s216 = smul.addr %s215, 4
      %s217 = scalar_lea.vmem %s4, %s216
      %v219 = vld [vmem:[%s0] sm:$0xff]
      %v220 = vld [vmem:[%s0 + $0x8] sm:$0xf]
      %v221 = vld [vmem:[%s0 + $0xc] sm:$0xff]
      %v222 = vld [vmem:[%s0 + $0x14] sm:$0xf]
      %v223 = vld [vmem:[%s0 + $0x18] sm:$0xff]
      %v224 = vld [vmem:[%s0 + $0x20] sm:$0xf]
      %v225 = vld [vmem:[%s0 + $0x24] sm:$0xff]
      %v226 = vld [vmem:[%s0 + $0x2c] sm:$0xf]
      %v227 = vld [vmem:[%s207] sm:$0xf]
      %v228 = vld [vmem:[%s207 + $0x4] sm:$0xf]
      %v229 = vld [vmem:[%s207 + $0x8] sm:$0xf]
      %v230 = vld [vmem:[%s207 + $0xc] sm:$0xf]
      %v231 = vld [vmem:[%s207 + $0x10] sm:$0xf]
      %v232 = vld [vmem:[%s207 + $0x14] sm:$0xf]
      %v233 = vld [vmem:[%s207 + $0x18] sm:$0xf]
      %v234 = vld [vmem:[%s207 + $0x1c] sm:$0xf]
      %v235 = vld [vmem:[%s207 + $0x20] sm:$0xf]
      %v236 = vld [vmem:[%s207 + $0x24] sm:$0xf]
      %v237 = vld [vmem:[%s207 + $0x28] sm:$0xf]
      %v238 = vld [vmem:[%s207 + $0x2c] sm:$0xf]
      %v239 = vld [vmem:[%s207 + $0x30] sm:$0xf]
      %v240 = vld [vmem:[%s207 + $0x34] sm:$0xf]
      %v241 = vld [vmem:[%s207 + $0x38] sm:$0xf]
      %v242 = vld [vmem:[%s207 + $0x3c] sm:$0xf]
      %v243 = vld [vmem:[%s207 + $0x40] sm:$0xf]
      %v244 = vld [vmem:[%s207 + $0x44] sm:$0xf]
      %v245 = vld [vmem:[%s207 + $0x48] sm:$0xf]
      %v246 = vld [vmem:[%s207 + $0x4c] sm:$0xf]
      %v247 = vld [vmem:[%s207 + $0x50] sm:$0xf]
      %v248 = vld [vmem:[%s207 + $0x54] sm:$0xf]
      %v249 = vld [vmem:[%s207 + $0x58] sm:$0xf]
      %v250 = vld [vmem:[%s207 + $0x5c] sm:$0xf]
      %v251 = vld [vmem:[%s207 + $0x60] sm:$0xf]
      %v252 = vld [vmem:[%s207 + $0x64] sm:$0xf]
      %v253 = vld [vmem:[%s207 + $0x68] sm:$0xf]
      %v254 = vld [vmem:[%s207 + $0x6c] sm:$0xf]
      %v255 = vld [vmem:[%s207 + $0x70] sm:$0xf]
      %v256 = vld [vmem:[%s207 + $0x74] sm:$0xf]
      %v257 = vld [vmem:[%s207 + $0x78] sm:$0xf]
      %v258 = vld [vmem:[%s207 + $0x7c] sm:$0xf]
      %v259 = vld [vmem:[%s207 + $0x80] sm:$0xf]
      %v260 = vld [vmem:[%s207 + $0x84] sm:$0xf]
      %v261 = vld [vmem:[%s207 + $0x88] sm:$0xf]
      %v262 = vld [vmem:[%s207 + $0x8c] sm:$0xf]
      %v271 = vunpack.c.l.b16 %v219
      %v272 = vunpack.c.h.b16 %v219
      %v273 = vunpack.c.l.b16 %v220
      %v274 = vunpack.c.l.b16 %v221
      %v275 = vunpack.c.h.b16 %v221
      %v276 = vunpack.c.l.b16 %v222
      %v277 = vunpack.c.l.b16 %v223
      %v278 = vunpack.c.h.b16 %v223
      %v279 = vunpack.c.l.b16 %v224
      %v280 = vunpack.c.l.b16 %v225
      %v281 = vunpack.c.h.b16 %v225
      %v282 = vunpack.c.l.b16 %v226
      %v283 = vpack.c.b16 %v274, %v271
      %v284 = vpack.c.b16 %v275, %v272
      %v285 = vpack.c.b16 %v276, %v273
      %v286 = vpack.c.b16 %v280, %v277
      %v287 = vpack.c.b16 %v281, %v278
      %v288 = vpack.c.b16 %v282, %v279
      %v329 = vunpack.c.l.b16 %v227
      %v330 = vunpack.c.l.b16 %v228
      %v331 = vunpack.c.l.b16 %v229
      %v332 = vunpack.c.l.b16 %v230
      %v333 = vunpack.c.l.b16 %v231
      %v334 = vunpack.c.l.b16 %v232
      %v335 = vunpack.c.l.b16 %v233
      %v336 = vunpack.c.l.b16 %v234
      %v337 = vunpack.c.l.b16 %v235
      %v338 = vunpack.c.l.b16 %v236
      %v339 = vunpack.c.l.b16 %v237
      %v340 = vunpack.c.l.b16 %v238
      %v341 = vunpack.c.l.b16 %v239
      %v342 = vunpack.c.l.b16 %v240
      %v343 = vunpack.c.l.b16 %v241
      %v344 = vunpack.c.l.b16 %v242
      %v345 = vunpack.c.l.b16 %v243
      %v346 = vunpack.c.l.b16 %v244
      %v347 = vunpack.c.l.b16 %v245
      %v348 = vunpack.c.l.b16 %v246
      %v349 = vunpack.c.l.b16 %v247
      %v350 = vunpack.c.l.b16 %v248
      %v351 = vunpack.c.l.b16 %v249
      %v352 = vunpack.c.l.b16 %v250
      %v353 = vunpack.c.l.b16 %v251
      %v354 = vunpack.c.l.b16 %v252
      %v355 = vunpack.c.l.b16 %v253
      %v356 = vunpack.c.l.b16 %v254
      %v357 = vunpack.c.l.b16 %v255
      %v358 = vunpack.c.l.b16 %v256
      %v359 = vunpack.c.l.b16 %v257
      %v360 = vunpack.c.l.b16 %v258
      %v361 = vunpack.c.l.b16 %v259
      %v362 = vunpack.c.l.b16 %v260
      %v363 = vunpack.c.l.b16 %v261
      %v364 = vunpack.c.l.b16 %v262
      %v365 = vpack.c.b16 %v330, %v329
      %v366 = vpack.c.b16 %v332, %v331
      %v367 = vpack.c.b16 %v334, %v333
      %v368 = vpack.c.b16 %v336, %v335
      %v369 = vpack.c.b16 %v338, %v337
      %v370 = vpack.c.b16 %v340, %v339
      %v371 = vpack.c.b16 %v342, %v341
      %v372 = vpack.c.b16 %v344, %v343
      %v373 = vpack.c.b16 %v346, %v345
      %v374 = vpack.c.b16 %v348, %v347
      %v375 = vpack.c.b16 %v350, %v349
      %v376 = vpack.c.b16 %v352, %v351
      %v377 = vpack.c.b16 %v354, %v353
      %v378 = vpack.c.b16 %v356, %v355
      %v379 = vpack.c.b16 %v358, %v357
      %v380 = vpack.c.b16 %v360, %v359
      %v381 = vpack.c.b16 %v362, %v361
      %v382 = vpack.c.b16 %v364, %v363
      %vm401 = vcmask 261120
      %v403 = vsel %vm401, %v285, 0
      %v406 = vsel %vm401, %v288, 0
      %408 = vmatprep.subr.bf16.mxu0 0
      %409 = vmatpush1.bf16.msra.mxu0 %v365
      %410 = vmatprep.subr.bf16.mxu0 0
      %411 = vmatpush1.bf16.msra.mxu0 %v366
      %412 = vmatprep.subr.bf16.mxu0 0
      %413 = vmatpush1.bf16.msra.mxu0 %v367
      %414 = vmatprep.subr.bf16.mxu0 0
      %415 = vmatpush1.bf16.msra.mxu0 %v368
      %416 = vmatprep.subr.bf16.mxu0 0
      %417 = vmatpush1.bf16.msra.mxu0 %v369
      %418 = vmatprep.subr.bf16.mxu0 0
      %419 = vmatpush1.bf16.msra.mxu0 %v370
      %420 = vmatprep.subr.bf16.mxu0 0
      %421 = vmatpush1.bf16.msra.mxu0 %v371
      %422 = vmatprep.subr.bf16.mxu0 0
      %423 = vmatpush1.bf16.msra.mxu0 %v372
      %424 = vmatprep.subr.bf16.mxu0 0
      %425 = vmatpush1.bf16.msra.mxu0 %v373
      %426 = vmatprep.subr.bf16.mxu0 0
      %427 = vmatpush1.bf16.msra.mxu0 %v374
      %428 = vmatprep.subr.bf16.mxu0 0
      %429 = vmatpush1.bf16.msra.mxu0 %v375
      %430 = vmatprep.subr.bf16.mxu0 0
      %431 = vmatpush1.bf16.msra.mxu0 %v376
      %432 = vmatprep.subr.bf16.mxu0 0
      %433 = vmatpush1.bf16.msra.mxu0 %v377
      %434 = vmatprep.subr.bf16.mxu0 0
      %435 = vmatpush1.bf16.msra.mxu0 %v378
      %436 = vmatprep.subr.bf16.mxu0 0
      %437 = vmatpush1.bf16.msra.mxu0 %v379
      %438 = vmatprep.subr.bf16.mxu0 0
      %439 = vmatpush1.bf16.msra.mxu0 %v380
      %440 = vmatprep.mubr.bf16.mxu0 %v284
      %441 = vmatmul.mubr.bf16.gmra.mrb[0].mxu0 %v283
      %v442 = vpop.f32.mrb[0].mxu0
      %v443 = vadd.f32 0.0, %v442
      %v444 = vpop.f32.mrb[0].mxu0
      %v445 = vpop.f32.mrb[0].mxu0
      %v446 = vadd.f32 0.0, %v445
      %v447 = vpop.f32.mrb[0].mxu0
      %448 = vmatprep.mubr.bf16.mxu0 %v287
      %449 = vmatmul.mubr.bf16.gmra.mrb[0].mxu0 %v286
      %v450 = vpop.f32.mrb[0].mxu0
      %v451 = vadd.f32 0.0, %v450
      %v452 = vpop.f32.mrb[0].mxu0
      %v453 = vpop.f32.mrb[0].mxu0
      %v454 = vadd.f32 0.0, %v453
      %v455 = vpop.f32.mrb[0].mxu0
      %456 = vdwg.mxu0
      %457 = vmatprep.subr.bf16.mxu0 0
      %458 = vmatpush1.bf16.msra.mxu0 %v381
      %459 = vmatprep.subr.bf16.mxu0 0
      %460 = vmatpush1.bf16.msra.mxu0 %v382
      %461 = vmatprep.subr.bf16.mxu0 0
      %462 = vmatpush1.bf16.msra.mxu0 0
      %463 = vmatprep.subr.bf16.mxu0 0
      %464 = vmatpush1.bf16.msra.mxu0 0
      %465 = vmatprep.subr.bf16.mxu0 0
      %466 = vmatpush1.bf16.msra.mxu0 0
      %467 = vmatprep.subr.bf16.mxu0 0
      %468 = vmatpush1.bf16.msra.mxu0 0
      %469 = vmatprep.subr.bf16.mxu0 0
      %470 = vmatpush1.bf16.msra.mxu0 0
      %471 = vmatprep.subr.bf16.mxu0 0
      %472 = vmatpush1.bf16.msra.mxu0 0
      %473 = vmatprep.subr.bf16.mxu0 0
      %474 = vmatpush1.bf16.msra.mxu0 0
      %475 = vmatprep.subr.bf16.mxu0 0
      %476 = vmatpush1.bf16.msra.mxu0 0
      %477 = vmatprep.subr.bf16.mxu0 0
      %478 = vmatpush1.bf16.msra.mxu0 0
      %479 = vmatprep.subr.bf16.mxu0 0
      %480 = vmatpush1.bf16.msra.mxu0 0
      %481 = vmatprep.subr.bf16.mxu0 0
      %482 = vmatpush1.bf16.msra.mxu0 0
      %483 = vmatprep.subr.bf16.mxu0 0
      %484 = vmatpush1.bf16.msra.mxu0 0
      %485 = vmatprep.subr.bf16.mxu0 0
      %486 = vmatpush1.bf16.msra.mxu0 0
      %487 = vmatprep.subr.bf16.mxu0 0
      %488 = vmatpush1.bf16.msra.mxu0 0
      %489 = vmatprep.mubr.bf16.mxu0 0
      %490 = vmatmul.mubr.bf16.gmra.mrb[0].mxu0 %v403
      %v491 = vpop.f32.mrb[0].mxu0
      %v492 = vadd.f32 %v443, %v491
      %v493 = vpop.f32.mrb[0].mxu0
      %v494 = vpop.f32.mrb[0].mxu0
      %v495 = vadd.f32 %v446, %v494
      %v496 = vpop.f32.mrb[0].mxu0
      %497 = vmatprep.mubr.bf16.mxu0 0
      %498 = vmatmul.mubr.bf16.gmra.mrb[0].mxu0 %v406
      %v499 = vpop.f32.mrb[0].mxu0
      %v500 = vadd.f32 %v451, %v499
      %v501 = vpop.f32.mrb[0].mxu0
      %v502 = vpop.f32.mrb[0].mxu0
      %v503 = vadd.f32 %v454, %v502
      %v504 = vpop.f32.mrb[0].mxu0
      %505 = vdwg.mxu0
      %vm506 = vcmask 523264
      %v507 = vsel %vm506, %v492, 0.0
      %v508 = vsel %vm506, %v495, 0.0
      %v509 = vadd.f32 %v507, %v508
      %v510 = vsel %vm506, %v500, 0.0
      %v511 = vadd.f32 %v509, %v510
      %v512 = vsel %vm506, %v503, 0.0
      %v513 = vadd.f32 %v511, %v512
      %514 = vadd.xlane.f32.xlu0 %v513
      %v515 = vpop.xlane.xlu0 %514
      %v516 = vrot.slane %v515, 4
      %v517 = vadd.f32 %v515, %v516
      %v518 = vrot.slane %v517, 2
      %v519 = vadd.f32 %v517, %v518
      %v520 = vrot.slane %v519, 1
      %v521 = vadd.f32 %v519, %v520
      %s522 = vtos %v521
      %v523 = vrcp.pop 2048.0
      %s524 = vtos %v523
      %s525 = smul.f32 %s522, %s524
      %v526 = vstv %s525
      %v527 = vsub.f32 %v492, %v526
      %v528 = vsub.f32 %v495, %v526
      %v529 = vsub.f32 %v500, %v526
      %v530 = vsub.f32 %v503, %v526
      %v531 = vmul.f32 %v527, %v527
      %v532 = vmul.f32 %v528, %v528
      %v533 = vmul.f32 %v529, %v529
      %v534 = vmul.f32 %v530, %v530
      %v535 = vsel %vm506, %v531, 0.0
      %v536 = vsel %vm506, %v532, 0.0
      %v537 = vadd.f32 %v535, %v536
      %v538 = vsel %vm506, %v533, 0.0
      %v539 = vadd.f32 %v537, %v538
      %v540 = vsel %vm506, %v534, 0.0
      %v541 = vadd.f32 %v539, %v540
      %542 = vadd.xlane.f32.xlu0 %v541
      %v543 = vpop.xlane.xlu0 %542
      %v544 = vrot.slane %v543, 4
      %v545 = vadd.f32 %v543, %v544
      %v546 = vrot.slane %v545, 2
      %v547 = vadd.f32 %v545, %v546
      %v548 = vrot.slane %v547, 1
      %v549 = vadd.f32 %v547, %v548
      %s550 = vtos %v549
      %v551 = vrcp.pop 2048.0
      %s552 = vtos %v551
      %s553 = smul.f32 %s550, %s552
      %s554 = sadd.f32 %s553, 1e-05
      %v555 = vstv %s554
      %v556 = vrsqrt.pop %v555
      %s557 = vtos %v556
      %v558 = vstv %s557
      %v559 = vmul.f32 %v527, %v558
      %v560 = vmul.f32 %v528, %v558
      %v561 = vmul.f32 %v529, %v558
      %v562 = vmul.f32 %v530, %v558
      %v563 = vld [vmem:[%s212] sm:$0xf]
      %v564 = vld [vmem:[%s212 + $0x4] sm:$0xf]
      %v565 = vld [vmem:[%s212 + $0x8] sm:$0xf]
      %v566 = vld [vmem:[%s212 + $0xc] sm:$0xf]
      %v567 = vunpack.c.l.bf16 %v563
      %v568 = vunpack.c.l.bf16 %v564
      %v569 = vunpack.c.l.bf16 %v565
      %v570 = vunpack.c.l.bf16 %v566
      %v571 = vadd.f32 %v559, %v567
      %v572 = vadd.f32 %v560, %v568
      %v573 = vadd.f32 %v561, %v569
      %v574 = vadd.f32 %v562, %v570
      %v575 = vld [vmem:[%s3] sm:$0xff]
      %v576 = vld [vmem:[%s3 + $0x8] sm:$0xff]
      %v577 = vld [vmem:[%s3 + $0x10] sm:$0xff]
      %v578 = vld [vmem:[%s3 + $0x18] sm:$0xff]
      %vm579 = vcmp.gt.f32.partialorder %v571, 0.0
      %vm580 = vcmp.gt.f32.partialorder %v572, 0.0
      %vm581 = vcmp.gt.f32.partialorder %v573, 0.0
      %vm582 = vcmp.gt.f32.partialorder %v574, 0.0
      %584 = vset.pattern.permute.xlu0 0
      %585 = vperm.xlu0 %584, %v575
      %v586 = vpop.permute.xlu0 %585
      %589 = vset.pattern.permute.xlu0 0
      %590 = vperm.xlu0 %589, %v576
      %v591 = vpop.permute.xlu0 %590
      %594 = vset.pattern.permute.xlu0 0
      %595 = vperm.xlu0 %594, %v577
      %v596 = vpop.permute.xlu0 %595
      %599 = vset.pattern.permute.xlu0 0
      %600 = vperm.xlu0 %599, %v578
      %v601 = vpop.permute.xlu0 %600
      %v603 = vmul.f32 %v586, %v571
      %v604 = vmul.f32 %v591, %v572
      %v605 = vmul.f32 %v596, %v573
      %v606 = vmul.f32 %v601, %v574
      %v607 = vsel %vm579, %v571, %v603
      %v608 = vsel %vm580, %v572, %v604
      %v609 = vsel %vm581, %v573, %v605
      %v610 = vsel %vm582, %v574, %v606
      %v611 = vpack.c.bf16 %v608, %v607
      %v612 = vpack.c.bf16 %v610, %v609
      %v615 = vunpack.c.l.b16 %v611
      %v616 = vunpack.c.h.b16 %v611
      %v617 = vunpack.c.l.b16 %v612
      %v618 = vunpack.c.h.b16 %v612
      %v619 = vpack.c.b16 %v615, %v615
      %v620 = vpack.c.b16 %v616, %v616
      %v621 = vpack.c.b16 %v617, %v617
      %v622 = vpack.c.b16 %v618, %v618
      %vm627 = vcmask 519168
      %628 = vst.msk [vmem:[%s217] sm:$0xf] %vm627, %v619
      %629 = vst.msk [vmem:[%s217 + $0x4] sm:$0xf] %vm627, %v620
      %630 = vst.msk [vmem:[%s217 + $0x8] sm:$0xf] %vm627, %v621
      %631 = vst.msk [vmem:[%s217 + $0xc] sm:$0xf] %vm627, %v622
      %p632 = scmp.lt.s32.totalorder %s15, 1
      %s633 = scalar_select %p632, %s15, 1
      %s634 = smul.addr %s633, 4
      %s635 = smul.addr %s634, 4
      %s636 = scalar_lea.vmem %s4, %s635
      // Predicated region
      $region37: #{_lambda_.94} parent=35 // pred_check
        %p637 = pneg %p127
      $region38: #{_lambda_.94} parent=35 // pred_check_branch
        %639 = sbr.rel (%p637) target = $region40
      $region39: #{_lambda_.94} parent=35 // pred_region
        _
      $region40: #{_lambda_.94} parent=35 // pred_fallthru
        _
    $region36: #{_lambda_.94} parent=5 // pred_fallthru
      _
    %p640 = scmp.le.s32.totalorder 2, %s10
    // Predicated region
    $region41: #{_lambda_.94} parent=5 // pred_check
      %p641 = pneg %p640
    $region42: #{_lambda_.94} parent=5 // pred_check_branch
      %643 = sbr.rel (%p641) target = $region44
    $region43: #{_lambda_.94} parent=5 // pred_region
      %s644 = ssub.s32 %s10, 2
      // Predicated region
      $region45: #{_lambda_.94} parent=43 // pred_check
        %p645 = pneg %p133
      $region46: #{_lambda_.94} parent=43 // pred_check_branch
        %647 = sbr.rel (%p645) target = $region48
      $region47: #{_lambda_.94} parent=43 // pred_region
        %p648 = scmp.lt.s32.totalorder %s16, 1
        %s649 = scalar_select %p648, %s16, 1
        %s650 = smul.addr %s649, 4
        %s651 = smul.addr %s650, 4
        %s652 = scalar_lea.vmem %s4, %s651
      $region48: #{_lambda_.94} parent=43 // pred_fallthru
        _
    $region44: #{_lambda_.94} parent=5 // pred_fallthru
      _
  $region6: #{_lambda_.94} parent=0 // loop_footer
    %s14 = sadd.s32 1, %s10
  $region7: #{_lambda_.94} parent=0 // loop_footer_branch
    %9 = sbr.rel target = $region3
  $region8: #{_lambda_.94} parent=0 // loop_exit
    _

// kernel: _lambda_.102
$region0: #{_lambda_.102}
  #allocation0 [shape = 'u32[]', space=smem, size = 0x4, offset = 0x4, fixed_abs, tag = 'smem constant byte address 0x4 - core index']
  #allocation1 [shape = 'u32[144,128]{1,0:T(1,128)}', space=vmem, size = 0x12000, scoped, tag = 'internal scratch']
  %s0 = inlined_call_operand.vmem [shape: bf16[32,64], index: 0, kind: input, shape index: {}]
  %s1 = inlined_call_operand.vmem [shape: bf16[2,64,16], index: 1, kind: input, shape index: {}]
  %s2 = inlined_call_operand.vmem [shape: bf16[2,32,16], index: 2, kind: output, shape index: {}]
  %s3 = sld [smem:[#allocation0]]
  $region41: #{_lambda_.102} parent=0
    _
  %s5 = ssub.s32 1, %s3
  %s6 = scalar_select 0, %s5, %s3
  loop: start=0, step=1, limit=4
  $region2: #{_lambda_.102} parent=0 // loop_pre_header
    _
  $region3: #{_lambda_.102} parent=0 // loop_header
    %s8 = sphi 0, %s12
    %p9 = scmp.ge.s32.totalorder %s8, 4
    %s16 = sphi 0, %s16
    %s18 = sphi 0, %s16
    %s19 = sphi 0, %s18
    %s33 = sphi 0, %s19
    %s39 = sphi 0, %s41
    %s42 = sphi 0, %s39
    %s43 = sphi 0, %s42
    %s59 = sphi 0, %s43
    %s65 = sphi 0, %s67
    %s68 = sphi 0, %s65
    %s69 = sphi 0, %s68
    %s85 = sphi 0, %s69
  $region4: #{_lambda_.102} parent=0 // loop_header_branch
    %11 = sbr.rel (%p9) target = $region8
  $region5: #{_lambda_.102} parent=0 // loop_body
    %s13 = ssub.s32 %s8, 1
    %s14 = ssub.s32 %s8, 2
    %s15 = sadd.s32 %s8, 1
    %s17 = sadd.s32 %s16, 1
    %p20 = scmp.eq.s32.totalorder %s8, 1
    %p21 = scmp.ne.s32.totalorder %s16, %s18
    %p22 = scmp.eq.s32.totalorder %s8, 0
    %p23 = por %p21, %p22
    %p24 = scmp.ne.s32.totalorder %s16, %s18
    %p25 = scmp.eq.s32.totalorder %s13, 1
    %p26 = por %p24, %p25
    %p27 = scmp.ne.s32.totalorder %s18, %s19
    %p28 = scmp.eq.s32.totalorder %s13, 0
    %p29 = por %p27, %p28
    %p30 = scmp.ne.s32.totalorder %s18, %s19
    %p31 = scmp.eq.s32.totalorder %s14, 1
    %p32 = por %p30, %p31
    %p34 = scmp.ne.s32.totalorder %s19, %s33
    %p35 = scmp.eq.s32.totalorder %s14, 0
    %p36 = por %p34, %p35
    %s37 = ssub.s32 %s8, %s15
    %p38 = scmp.eq.s32.totalorder %s37, 0
    %s40 = sadd.s32 %s39, 1
    %s41 = scalar_select %p38, %s39, %s40
    %p44 = pneg %p38
    %p45 = scmp.eq.s32.totalorder %s8, 1
    %p46 = por %p44, %p45
    %p47 = scmp.ne.s32.totalorder %s39, %s42
    %p48 = scmp.eq.s32.totalorder %s8, 0
    %p49 = por %p47, %p48
    %p50 = scmp.ne.s32.totalorder %s39, %s42
    %p51 = scmp.eq.s32.totalorder %s13, 1
    %p52 = por %p50, %p51
    %p53 = scmp.ne.s32.totalorder %s42, %s43
    %p54 = scmp.eq.s32.totalorder %s13, 0
    %p55 = por %p53, %p54
    %p56 = scmp.ne.s32.totalorder %s42, %s43
    %p57 = scmp.eq.s32.totalorder %s14, 1
    %p58 = por %p56, %p57
    %p60 = scmp.ne.s32.totalorder %s43, %s59
    %p61 = scmp.eq.s32.totalorder %s14, 0
    %p62 = por %p60, %p61
    %s63 = ssub.s32 %s8, %s15
    %p64 = scmp.eq.s32.totalorder %s63, 0
    %s66 = sadd.s32 %s65, 1
    %s67 = scalar_select %p64, %s65, %s66
    %p70 = pneg %p64
    %p71 = scmp.eq.s32.totalorder %s8, 1
    %p72 = por %p70, %p71
    %p73 = scmp.ne.s32.totalorder %s65, %s68
    %p74 = scmp.eq.s32.totalorder %s8, 0
    %p75 = por %p73, %p74
    %p76 = scmp.ne.s32.totalorder %s65, %s68
    %p77 = scmp.eq.s32.totalorder %s13, 1
    %p78 = por %p76, %p77
    %p79 = scmp.ne.s32.totalorder %s68, %s69
    %p80 = scmp.eq.s32.totalorder %s13, 0
    %p81 = por %p79, %p80
    %p82 = scmp.ne.s32.totalorder %s68, %s69
    %p83 = scmp.eq.s32.totalorder %s14, 1
    %p84 = por %p82, %p83
    %p86 = scmp.ne.s32.totalorder %s69, %s85
    %p87 = scmp.eq.s32.totalorder %s14, 0
    %p88 = por %p86, %p87
    %p89 = scmp.le.s32.totalorder 1, %s8
    %p90 = scmp.lt.s32.totalorder %s8, 3
    %p91 = pnand %p89, %p90
    %p92 = pneg %p91
    // Predicated region
    $region9: #{_lambda_.102} parent=5 // pred_check
      _
    $region10: #{_lambda_.102} parent=5 // pred_check_branch
      %94 = sbr.rel (%p91) target = $region12
    $region11: #{_lambda_.102} parent=5 // pred_region
      %s95 = ssub.s32 %s8, 1
      // Predicated region
      $region13: #{_lambda_.102} parent=11 // pred_check
        %p96 = pneg %p29
      $region14: #{_lambda_.102} parent=11 // pred_check_branch
        %98 = sbr.rel (%p96) target = $region16
      $region15: #{_lambda_.102} parent=11 // pred_region
        _
      $region16: #{_lambda_.102} parent=11 // pred_fallthru
        _
    $region12: #{_lambda_.102} parent=5 // pred_fallthru
      _
    %p99 = scmp.lt.s32.totalorder %s8, 2
    // Predicated region
    $region17: #{_lambda_.102} parent=5 // pred_check
      %p100 = pneg %p99
    $region18: #{_lambda_.102} parent=5 // pred_check_branch
      %102 = sbr.rel (%p100) target = $region20
    $region19: #{_lambda_.102} parent=5 // pred_region
      // Predicated region
      $region21: #{_lambda_.102} parent=19 // pred_check
        %p103 = pneg %p49
      $region22: #{_lambda_.102} parent=19 // pred_check_branch
        %105 = sbr.rel (%p103) target = $region24
      $region23: #{_lambda_.102} parent=19 // pred_region
        %p106 = scmp.lt.s32.totalorder %s8, 1
        %s107 = scalar_select %p106, %s8, 1
        %s108 = smul.addr %s107, 8
        %s109 = smul.addr %s108, 4
        %s110 = scalar_lea.vmem %s1, %s109
      $region24: #{_lambda_.102} parent=19 // pred_fallthru
        _
    $region20: #{_lambda_.102} parent=5 // pred_fallthru
      _
    %p111 = scmp.le.s32.totalorder 1, %s8
    %p112 = scmp.lt.s32.totalorder %s8, 3
    %p113 = pnand %p111, %p112
    %p114 = pneg %p113
    // Predicated region
    $region25: #{_lambda_.102} parent=5 // pred_check
      _
    $region26: #{_lambda_.102} parent=5 // pred_check_branch
      %116 = sbr.rel (%p113) target = $region28
    $region27: #{_lambda_.102} parent=5 // pred_region
      %s117 = ssub.s32 %s8, 1
      %p118 = pneg %p29
      %p119 = pneg %p26
      %p120 = scmp.lt.s32.totalorder %s13, 1
      %s121 = scalar_select %p120, %s13, 1
      %s122 = smul.addr %s121, 8
      %s123 = smul.addr %s122, 4
      %s124 = scalar_lea.vmem %s1, %s123
      %p125 = pneg %p55
      %p126 = pneg %p52
      %p127 = pneg %p81
      %p128 = pneg %p78
      %p129 = scmp.lt.s32.totalorder %s13, 1
      %s130 = scalar_select %p129, %s13, 1
      %s131 = smul.addr %s130, 4
      %s132 = smul.addr %s131, 4
      %s133 = scalar_lea.vmem %s2, %s132
      %p134 = scmp.lt.s32.totalorder %s13, 1
      %s135 = scalar_select %p134, %s13, 1
      %s136 = smul.addr %s135, 8
      %s137 = smul.addr %s136, 4
      %s138 = scalar_lea.vmem %s1, %s137
      %p139 = scmp.lt.s32.totalorder %s13, 1
      %s140 = scalar_select %p139, %s13, 1
      %s141 = smul.addr %s140, 4
      %s142 = smul.addr %s141, 4
      %s143 = scalar_lea.vmem %s2, %s142
      %v145 = vld [vmem:[%s0] sm:$0xf]
      %v146 = vld [vmem:[%s0 + $0x4] sm:$0xf]
      %v147 = vld [vmem:[%s0 + $0x8] sm:$0xf]
      %v148 = vld [vmem:[%s0 + $0xc] sm:$0xf]
      %v149 = vld [vmem:[%s138] sm:$0xf]
      %v150 = vld [vmem:[%s138 + $0x4] sm:$0xf]
      %v151 = vld [vmem:[%s138 + $0x8] sm:$0xf]
      %v152 = vld [vmem:[%s138 + $0xc] sm:$0xf]
      %v153 = vld [vmem:[%s138 + $0x10] sm:$0xf]
      %v154 = vld [vmem:[%s138 + $0x14] sm:$0xf]
      %v155 = vld [vmem:[%s138 + $0x18] sm:$0xf]
      %v156 = vld [vmem:[%s138 + $0x1c] sm:$0xf]
      %v161 = vunpack.c.l.b16 %v145
      %v162 = vunpack.c.l.b16 %v146
      %v163 = vunpack.c.l.b16 %v147
      %v164 = vunpack.c.l.b16 %v148
      %v165 = vpack.c.b16 %v162, %v161
      %v166 = vpack.c.b16 %v164, %v163
      %v175 = vunpack.c.l.b16 %v149
      %v176 = vunpack.c.l.b16 %v150
      %v177 = vunpack.c.l.b16 %v151
      %v178 = vunpack.c.l.b16 %v152
      %v179 = vunpack.c.l.b16 %v153
      %v180 = vunpack.c.l.b16 %v154
      %v181 = vunpack.c.l.b16 %v155
      %v182 = vunpack.c.l.b16 %v156
      %v183 = vpack.c.b16 %v176, %v175
      %v184 = vpack.c.b16 %v178, %v177
      %v185 = vpack.c.b16 %v180, %v179
      %v186 = vpack.c.b16 %v182, %v181
      %vm191 = vcmask 523264
      %v193 = vsel %vm191, %v165, 0
      %v196 = vsel %vm191, %v166, 0
      %198 = vmatprep.subr.bf16.mxu0 0
      %199 = vmatpush1.bf16.msra.mxu0 %v183
      %200 = vmatprep.subr.bf16.mxu0 0
      %201 = vmatpush1.bf16.msra.mxu0 %v184
      %202 = vmatprep.subr.bf16.mxu0 0
      %203 = vmatpush1.bf16.msra.mxu0 %v185
      %204 = vmatprep.subr.bf16.mxu0 0
      %205 = vmatpush1.bf16.msra.mxu0 %v186
      %206 = vmatprep.subr.bf16.mxu0 0
      %207 = vmatpush1.bf16.msra.mxu0 0
      %208 = vmatprep.subr.bf16.mxu0 0
      %209 = vmatpush1.bf16.msra.mxu0 0
      %210 = vmatprep.subr.bf16.mxu0 0
      %211 = vmatpush1.bf16.msra.mxu0 0
      %212 = vmatprep.subr.bf16.mxu0 0
      %213 = vmatpush1.bf16.msra.mxu0 0
      %214 = vmatprep.subr.bf16.mxu0 0
      %215 = vmatpush1.bf16.msra.mxu0 0
      %216 = vmatprep.subr.bf16.mxu0 0
      %217 = vmatpush1.bf16.msra.mxu0 0
      %218 = vmatprep.subr.bf16.mxu0 0
      %219 = vmatpush1.bf16.msra.mxu0 0
      %220 = vmatprep.subr.bf16.mxu0 0
      %221 = vmatpush1.bf16.msra.mxu0 0
      %222 = vmatprep.subr.bf16.mxu0 0
      %223 = vmatpush1.bf16.msra.mxu0 0
      %224 = vmatprep.subr.bf16.mxu0 0
      %225 = vmatpush1.bf16.msra.mxu0 0
      %226 = vmatprep.subr.bf16.mxu0 0
      %227 = vmatpush1.bf16.msra.mxu0 0
      %228 = vmatprep.subr.bf16.mxu0 0
      %229 = vmatpush1.bf16.msra.mxu0 0
      %230 = vmatprep.mubr.bf16.mxu0 0
      %231 = vmatmul.mubr.bf16.gmra.mrb[0].mxu0 %v193
      %v232 = vpop.f32.mrb[0].mxu0
      %v233 = vadd.f32 0.0, %v232
      %v234 = vpop.f32.mrb[0].mxu0
      %v235 = vpop.f32.mrb[0].mxu0
      %v236 = vadd.f32 0.0, %v235
      %v237 = vpop.f32.mrb[0].mxu0
      %238 = vmatprep.mubr.bf16.mxu0 0
      %239 = vmatmul.mubr.bf16.gmra.mrb[0].mxu0 %v196
      %v240 = vpop.f32.mrb[0].mxu0
      %v241 = vadd.f32 0.0, %v240
      %v242 = vpop.f32.mrb[0].mxu0
      %v243 = vpop.f32.mrb[0].mxu0
      %v244 = vadd.f32 0.0, %v243
      %v245 = vpop.f32.mrb[0].mxu0
      %246 = vdwg.mxu0
      %v247 = vpack.c.bf16 %v236, %v233
      %v248 = vpack.c.bf16 %v244, %v241
      %v251 = vunpack.c.l.b16 %v247
      %v252 = vunpack.c.h.b16 %v247
      %v253 = vunpack.c.l.b16 %v248
      %v254 = vunpack.c.h.b16 %v248
      %v255 = vpack.c.b16 %v251, %v251
      %v256 = vpack.c.b16 %v252, %v252
      %v257 = vpack.c.b16 %v253, %v253
      %v258 = vpack.c.b16 %v254, %v254
      %vm263 = vcmask 125952
      %264 = vst.msk [vmem:[%s143] sm:$0xf] %vm263, %v255
      %265 = vst.msk [vmem:[%s143 + $0x4] sm:$0xf] %vm263, %v256
      %266 = vst.msk [vmem:[%s143 + $0x8] sm:$0xf] %vm263, %v257
      %267 = vst.msk [vmem:[%s143 + $0xc] sm:$0xf] %vm263, %v258
      %p268 = scmp.lt.s32.totalorder %s13, 1
      %s269 = scalar_select %p268, %s13, 1
      %s270 = smul.addr %s269, 4
      %s271 = smul.addr %s270, 4
      %s272 = scalar_lea.vmem %s2, %s271
      // Predicated region
      $region29: #{_lambda_.102} parent=27 // pred_check
        %p273 = pneg %p78
      $region30: #{_lambda_.102} parent=27 // pred_check_branch
        %275 = sbr.rel (%p273) target = $region32
      $region31: #{_lambda_.102} parent=27 // pred_region
        _
      $region32: #{_lambda_.102} parent=27 // pred_fallthru
        _
    $region28: #{_lambda_.102} parent=5 // pred_fallthru
      _
    %p276 = scmp.le.s32.totalorder 2, %s8
    // Predicated region
    $region33: #{_lambda_.102} parent=5 // pred_check
      %p277 = pneg %p276
    $region34: #{_lambda_.102} parent=5 // pred_check_branch
      %279 = sbr.rel (%p277) target = $region36
    $region35: #{_lambda_.102} parent=5 // pred_region
      %s280 = ssub.s32 %s8, 2
      // Predicated region
      $region37: #{_lambda_.102} parent=35 // pred_check
        %p281 = pneg %p84
      $region38: #{_lambda_.102} parent=35 // pred_check_branch
        %283 = sbr.rel (%p281) target = $region40
      $region39: #{_lambda_.102} parent=35 // pred_region
        %p284 = scmp.lt.s32.totalorder %s14, 1
        %s285 = scalar_select %p284, %s14, 1
        %s286 = smul.addr %s285, 4
        %s287 = smul.addr %s286, 4
        %s288 = scalar_lea.vmem %s2, %s287
      $region40: #{_lambda_.102} parent=35 // pred_fallthru
        _
    $region36: #{_lambda_.102} parent=5 // pred_fallthru
      _
  $region6: #{_lambda_.102} parent=0 // loop_footer
    %s12 = sadd.s32 1, %s8
  $region7: #{_lambda_.102} parent=0 // loop_footer_branch
    %7 = sbr.rel target = $region3
  $region8: #{_lambda_.102} parent=0 // loop_exit
    _

// kernel: _lambda_.96
$region0: #{_lambda_.96}
  #allocation0 [shape = 'u32[]', space=smem, size = 0x4, offset = 0x4, fixed_abs, tag = 'smem constant byte address 0x4 - core index']
  #allocation1 [shape = 'u32[144,128]{1,0:T(1,128)}', space=vmem, size = 0x12000, scoped, tag = 'internal scratch']
  %s0 = inlined_call_operand.vmem [shape: bf16[64,1152], index: 0, kind: input, shape index: {}]
  %s1 = inlined_call_operand.vmem [shape: bf16[2,1152,16], index: 1, kind: input, shape index: {}]
  %s2 = inlined_call_operand.vmem [shape: f32[64,1], index: 2, kind: input, shape index: {}]
  %s3 = inlined_call_operand.vmem [shape: bf16[2,64,16], index: 3, kind: output, shape index: {}]
  %s4 = sld [smem:[#allocation0]]
  $region45: #{_lambda_.96} parent=0
    _
  %s6 = ssub.s32 1, %s4
  %s7 = scalar_select 0, %s6, %s4
  loop: start=0, step=1, limit=4
  $region2: #{_lambda_.96} parent=0 // loop_pre_header
    _
  $region3: #{_lambda_.96} parent=0 // loop_header
    %s9 = sphi 0, %s13
    %p10 = scmp.ge.s32.totalorder %s9, 4
    %s17 = sphi 0, %s17
    %s19 = sphi 0, %s17
    %s20 = sphi 0, %s19
    %s34 = sphi 0, %s20
    %s40 = sphi 0, %s42
    %s43 = sphi 0, %s40
    %s44 = sphi 0, %s43
    %s60 = sphi 0, %s44
    %s64 = sphi 0, %s64
    %s66 = sphi 0, %s64
    %s67 = sphi 0, %s66
    %s81 = sphi 0, %s67
    %s87 = sphi 0, %s89
    %s90 = sphi 0, %s87
    %s91 = sphi 0, %s90
    %s107 = sphi 0, %s91
  $region4: #{_lambda_.96} parent=0 // loop_header_branch
    %12 = sbr.rel (%p10) target = $region8
  $region5: #{_lambda_.96} parent=0 // loop_body
    %s14 = ssub.s32 %s9, 1
    %s15 = ssub.s32 %s9, 2
    %s16 = sadd.s32 %s9, 1
    %s18 = sadd.s32 %s17, 1
    %p21 = scmp.eq.s32.totalorder %s9, 1
    %p22 = scmp.ne.s32.totalorder %s17, %s19
    %p23 = scmp.eq.s32.totalorder %s9, 0
    %p24 = por %p22, %p23
    %p25 = scmp.ne.s32.totalorder %s17, %s19
    %p26 = scmp.eq.s32.totalorder %s14, 1
    %p27 = por %p25, %p26
    %p28 = scmp.ne.s32.totalorder %s19, %s20
    %p29 = scmp.eq.s32.totalorder %s14, 0
    %p30 = por %p28, %p29
    %p31 = scmp.ne.s32.totalorder %s19, %s20
    %p32 = scmp.eq.s32.totalorder %s15, 1
    %p33 = por %p31, %p32
    %p35 = scmp.ne.s32.totalorder %s20, %s34
    %p36 = scmp.eq.s32.totalorder %s15, 0
    %p37 = por %p35, %p36
    %s38 = ssub.s32 %s9, %s16
    %p39 = scmp.eq.s32.totalorder %s38, 0
    %s41 = sadd.s32 %s40, 1
    %s42 = scalar_select %p39, %s40, %s41
    %p45 = pneg %p39
    %p46 = scmp.eq.s32.totalorder %s9, 1
    %p47 = por %p45, %p46
    %p48 = scmp.ne.s32.totalorder %s40, %s43
    %p49 = scmp.eq.s32.totalorder %s9, 0
    %p50 = por %p48, %p49
    %p51 = scmp.ne.s32.totalorder %s40, %s43
    %p52 = scmp.eq.s32.totalorder %s14, 1
    %p53 = por %p51, %p52
    %p54 = scmp.ne.s32.totalorder %s43, %s44
    %p55 = scmp.eq.s32.totalorder %s14, 0
    %p56 = por %p54, %p55
    %p57 = scmp.ne.s32.totalorder %s43, %s44
    %p58 = scmp.eq.s32.totalorder %s15, 1
    %p59 = por %p57, %p58
    %p61 = scmp.ne.s32.totalorder %s44, %s60
    %p62 = scmp.eq.s32.totalorder %s15, 0
    %p63 = por %p61, %p62
    %s65 = sadd.s32 %s64, 1
    %p68 = scmp.eq.s32.totalorder %s9, 1
    %p69 = scmp.ne.s32.totalorder %s64, %s66
    %p70 = scmp.eq.s32.totalorder %s9, 0
    %p71 = por %p69, %p70
    %p72 = scmp.ne.s32.totalorder %s64, %s66
    %p73 = scmp.eq.s32.totalorder %s14, 1
    %p74 = por %p72, %p73
    %p75 = scmp.ne.s32.totalorder %s66, %s67
    %p76 = scmp.eq.s32.totalorder %s14, 0
    %p77 = por %p75, %p76
    %p78 = scmp.ne.s32.totalorder %s66, %s67
    %p79 = scmp.eq.s32.totalorder %s15, 1
    %p80 = por %p78, %p79
    %p82 = scmp.ne.s32.totalorder %s67, %s81
    %p83 = scmp.eq.s32.totalorder %s15, 0
    %p84 = por %p82, %p83
    %s85 = ssub.s32 %s9, %s16
    %p86 = scmp.eq.s32.totalorder %s85, 0
    %s88 = sadd.s32 %s87, 1
    %s89 = scalar_select %p86, %s87, %s88
    %p92 = pneg %p86
    %p93 = scmp.eq.s32.totalorder %s9, 1
    %p94 = por %p92, %p93
    %p95 = scmp.ne.s32.totalorder %s87, %s90
    %p96 = scmp.eq.s32.totalorder %s9, 0
    %p97 = por %p95, %p96
    %p98 = scmp.ne.s32.totalorder %s87, %s90
    %p99 = scmp.eq.s32.totalorder %s14, 1
    %p100 = por %p98, %p99
    %p101 = scmp.ne.s32.totalorder %s90, %s91
    %p102 = scmp.eq.s32.totalorder %s14, 0
    %p103 = por %p101, %p102
    %p104 = scmp.ne.s32.totalorder %s90, %s91
    %p105 = scmp.eq.s32.totalorder %s15, 1
    %p106 = por %p104, %p105
    %p108 = scmp.ne.s32.totalorder %s91, %s107
    %p109 = scmp.eq.s32.totalorder %s15, 0
    %p110 = por %p108, %p109
    %p111 = scmp.le.s32.totalorder 1, %s9
    %p112 = scmp.lt.s32.totalorder %s9, 3
    %p113 = pnand %p111, %p112
    %p114 = pneg %p113
    // Predicated region
    $region9: #{_lambda_.96} parent=5 // pred_check
      _
    $region10: #{_lambda_.96} parent=5 // pred_check_branch
      %116 = sbr.rel (%p113) target = $region12
    $region11: #{_lambda_.96} parent=5 // pred_region
      %s117 = ssub.s32 %s9, 1
      // Predicated region
      $region13: #{_lambda_.96} parent=11 // pred_check
        %p118 = pneg %p30
      $region14: #{_lambda_.96} parent=11 // pred_check_branch
        %120 = sbr.rel (%p118) target = $region16
      $region15: #{_lambda_.96} parent=11 // pred_region
        _
      $region16: #{_lambda_.96} parent=11 // pred_fallthru
        _
      // Predicated region
      $region17: #{_lambda_.96} parent=11 // pred_check
        %p121 = pneg %p77
      $region18: #{_lambda_.96} parent=11 // pred_check_branch
        %123 = sbr.rel (%p121) target = $region20
      $region19: #{_lambda_.96} parent=11 // pred_region
        _
      $region20: #{_lambda_.96} parent=11 // pred_fallthru
        _
    $region12: #{_lambda_.96} parent=5 // pred_fallthru
      _
    %p124 = scmp.lt.s32.totalorder %s9, 2
    // Predicated region
    $region21: #{_lambda_.96} parent=5 // pred_check
      %p125 = pneg %p124
    $region22: #{_lambda_.96} parent=5 // pred_check_branch
      %127 = sbr.rel (%p125) target = $region24
    $region23: #{_lambda_.96} parent=5 // pred_region
      // Predicated region
      $region25: #{_lambda_.96} parent=23 // pred_check
        %p128 = pneg %p50
      $region26: #{_lambda_.96} parent=23 // pred_check_branch
        %130 = sbr.rel (%p128) target = $region28
      $region27: #{_lambda_.96} parent=23 // pred_region
        %p131 = scmp.lt.s32.totalorder %s9, 1
        %s132 = scalar_select %p131, %s9, 1
        %s133 = smul.addr %s132, 144
        %s134 = smul.addr %s133, 4
        %s135 = scalar_lea.vmem %s1, %s134
      $region28: #{_lambda_.96} parent=23 // pred_fallthru
        _
    $region24: #{_lambda_.96} parent=5 // pred_fallthru
      _
    %p136 = scmp.le.s32.totalorder 1, %s9
    %p137 = scmp.lt.s32.totalorder %s9, 3
    %p138 = pnand %p136, %p137
    %p139 = pneg %p138
    // Predicated region
    $region29: #{_lambda_.96} parent=5 // pred_check
      _
    $region30: #{_lambda_.96} parent=5 // pred_check_branch
      %141 = sbr.rel (%p138) target = $region32
    $region31: #{_lambda_.96} parent=5 // pred_region
      %s142 = ssub.s32 %s9, 1
      %p143 = pneg %p30
      %p144 = pneg %p27
      %p145 = scmp.lt.s32.totalorder %s14, 1
      %s146 = scalar_select %p145, %s14, 1
      %s147 = smul.addr %s146, 144
      %s148 = smul.addr %s147, 4
      %s149 = scalar_lea.vmem %s1, %s148
      %p150 = pneg %p56
      %p151 = pneg %p53
      %p152 = pneg %p77
      %p153 = pneg %p74
      %p154 = pneg %p103
      %p155 = pneg %p100
      %p156 = scmp.lt.s32.totalorder %s14, 1
      %s157 = scalar_select %p156, %s14, 1
      %s158 = smul.addr %s157, 8
      %s159 = smul.addr %s158, 4
      %s160 = scalar_lea.vmem %s3, %s159
      %p161 = scmp.lt.s32.totalorder %s14, 1
      %s162 = scalar_select %p161, %s14, 1
      %s163 = smul.addr %s162, 144
      %s164 = smul.addr %s163, 4
      %s165 = scalar_lea.vmem %s1, %s164
      %p166 = scmp.lt.s32.totalorder %s14, 1
      %s167 = scalar_select %p166, %s14, 1
      %s168 = smul.addr %s167, 8
      %s169 = smul.addr %s168, 4
      %s170 = scalar_lea.vmem %s3, %s169
      %v172 = vld [vmem:[%s0] sm:$0xff]
      %v173 = vld [vmem:[%s0 + $0x8] sm:$0xff]
      %v174 = vld [vmem:[%s0 + $0x10] sm:$0xff]
      %v175 = vld [vmem:[%s0 + $0x18] sm:$0xff]
      %v176 = vld [vmem:[%s0 + $0x20] sm:$0xf]
      %v177 = vld [vmem:[%s0 + $0x24] sm:$0xff]
      %v178 = vld [vmem:[%s0 + $0x2c] sm:$0xff]
      %v179 = vld [vmem:[%s0 + $0x34] sm:$0xff]
      %v180 = vld [vmem:[%s0 + $0x3c] sm:$0xff]
      %v181 = vld [vmem:[%s0 + $0x44] sm:$0xf]
      %v182 = vld [vmem:[%s0 + $0x48] sm:$0xff]
      %v183 = vld [vmem:[%s0 + $0x50] sm:$0xff]
      %v184 = vld [vmem:[%s0 + $0x58] sm:$0xff]
      %v185 = vld [vmem:[%s0 + $0x60] sm:$0xff]
      %v186 = vld [vmem:[%s0 + $0x68] sm:$0xf]
      %v187 = vld [vmem:[%s0 + $0x6c] sm:$0xff]
      %v188 = vld [vmem:[%s0 + $0x74] sm:$0xff]
      %v189 = vld [vmem:[%s0 + $0x7c] sm:$0xff]
      %v190 = vld [vmem:[%s0 + $0x84] sm:$0xff]
      %v191 = vld [vmem:[%s0 + $0x8c] sm:$0xf]
      %v192 = vld [vmem:[%s0 + $0x90] sm:$0xff]
      %v193 = vld [vmem:[%s0 + $0x98] sm:$0xff]
      %v194 = vld [vmem:[%s0 + $0xa0] sm:$0xff]
      %v195 = vld [vmem:[%s0 + $0xa8] sm:$0xff]
      %v196 = vld [vmem:[%s0 + $0xb0] sm:$0xf]
      %v197 = vld [vmem:[%s0 + $0xb4] sm:$0xff]
      %v198 = vld [vmem:[%s0 + $0xbc] sm:$0xff]
      %v199 = vld [vmem:[%s0 + $0xc4] sm:$0xff]
      %v200 = vld [vmem:[%s0 + $0xcc] sm:$0xff]
      %v201 = vld [vmem:[%s0 + $0xd4] sm:$0xf]
      %v202 = vld [vmem:[%s0 + $0xd8] sm:$0xff]
      %v203 = vld [vmem:[%s0 + $0xe0] sm:$0xff]
      %v204 = vld [vmem:[%s0 + $0xe8] sm:$0xff]
      %v205 = vld [vmem:[%s0 + $0xf0] sm:$0xff]
      %v206 = vld [vmem:[%s0 + $0xf8] sm:$0xf]
      %v207 = vld [vmem:[%s0 + $0xfc] sm:$0xff]
      %v208 = vld [vmem:[%s0 + $0x104] sm:$0xff]
      %v209 = vld [vmem:[%s0 + $0x10c] sm:$0xff]
      %v210 = vld [vmem:[%s0 + $0x114] sm:$0xff]
      %v211 = vld [vmem:[%s0 + $0x11c] sm:$0xf]
      %v212 = vld [vmem:[%s165] sm:$0xf]
      %v213 = vld [vmem:[%s165 + $0x4] sm:$0xf]
      %v214 = vld [vmem:[%s165 + $0x8] sm:$0xf]
      %v215 = vld [vmem:[%s165 + $0xc] sm:$0xf]
      %v216 = vld [vmem:[%s165 + $0x10] sm:$0xf]
      %v217 = vld [vmem:[%s165 + $0x14] sm:$0xf]
      %v218 = vld [vmem:[%s165 + $0x18] sm:$0xf]
      %v219 = vld [vmem:[%s165 + $0x1c] sm:$0xf]
      %v220 = vld [vmem:[%s165 + $0x20] sm:$0xf]
      %v221 = vld [vmem:[%s165 + $0x24] sm:$0xf]
      %v222 = vld [vmem:[%s165 + $0x28] sm:$0xf]
      %v223 = vld [vmem:[%s165 + $0x2c] sm:$0xf]
      %v224 = vld [vmem:[%s165 + $0x30] sm:$0xf]
      %v225 = vld [vmem:[%s165 + $0x34] sm:$0xf]
      %v226 = vld [vmem:[%s165 + $0x38] sm:$0xf]
      %v227 = vld [vmem:[%s165 + $0x3c] sm:$0xf]
      %v228 = vld [vmem:[%s165 + $0x40] sm:$0xf]
      %v229 = vld [vmem:[%s165 + $0x44] sm:$0xf]
      %v230 = vld [vmem:[%s165 + $0x48] sm:$0xf]
      %v231 = vld [vmem:[%s165 + $0x4c] sm:$0xf]
      %v232 = vld [vmem:[%s165 + $0x50] sm:$0xf]
      %v233 = vld [vmem:[%s165 + $0x54] sm:$0xf]
      %v234 = vld [vmem:[%s165 + $0x58] sm:$0xf]
      %v235 = vld [vmem:[%s165 + $0x5c] sm:$0xf]
      %v236 = vld [vmem:[%s165 + $0x60] sm:$0xf]
      %v237 = vld [vmem:[%s165 + $0x64] sm:$0xf]
      %v238 = vld [vmem:[%s165 + $0x68] sm:$0xf]
      %v239 = vld [vmem:[%s165 + $0x6c] sm:$0xf]
      %v240 = vld [vmem:[%s165 + $0x70] sm:$0xf]
      %v241 = vld [vmem:[%s165 + $0x74] sm:$0xf]
      %v242 = vld [vmem:[%s165 + $0x78] sm:$0xf]
      %v243 = vld [vmem:[%s165 + $0x7c] sm:$0xf]
      %v244 = vld [vmem:[%s165 + $0x80] sm:$0xf]
      %v245 = vld [vmem:[%s165 + $0x84] sm:$0xf]
      %v246 = vld [vmem:[%s165 + $0x88] sm:$0xf]
      %v247 = vld [vmem:[%s165 + $0x8c] sm:$0xf]
      %v248 = vld [vmem:[%s165 + $0x90] sm:$0xf]
      %v249 = vld [vmem:[%s165 + $0x94] sm:$0xf]
      %v250 = vld [vmem:[%s165 + $0x98] sm:$0xf]
      %v251 = vld [vmem:[%s165 + $0x9c] sm:$0xf]
      %v252 = vld [vmem:[%s165 + $0xa0] sm:$0xf]
      %v253 = vld [vmem:[%s165 + $0xa4] sm:$0xf]
      %v254 = vld [vmem:[%s165 + $0xa8] sm:$0xf]
      %v255 = vld [vmem:[%s165 + $0xac] sm:$0xf]
      %v256 = vld [vmem:[%s165 + $0xb0] sm:$0xf]
      %v257 = vld [vmem:[%s165 + $0xb4] sm:$0xf]
      %v258 = vld [vmem:[%s165 + $0xb8] sm:$0xf]
      %v259 = vld [vmem:[%s165 + $0xbc] sm:$0xf]
      %v260 = vld [vmem:[%s165 + $0xc0] sm:$0xf]
      %v261 = vld [vmem:[%s165 + $0xc4] sm:$0xf]
      %v262 = vld [vmem:[%s165 + $0xc8] sm:$0xf]
      %v263 = vld [vmem:[%s165 + $0xcc] sm:$0xf]
      %v264 = vld [vmem:[%s165 + $0xd0] sm:$0xf]
      %v265 = vld [vmem:[%s165 + $0xd4] sm:$0xf]
      %v266 = vld [vmem:[%s165 + $0xd8] sm:$0xf]
      %v267 = vld [vmem:[%s165 + $0xdc] sm:$0xf]
      %v268 = vld [vmem:[%s165 + $0xe0] sm:$0xf]
      %v269 = vld [vmem:[%s165 + $0xe4] sm:$0xf]
      %v270 = vld [vmem:[%s165 + $0xe8] sm:$0xf]
      %v271 = vld [vmem:[%s165 + $0xec] sm:$0xf]
      %v272 = vld [vmem:[%s165 + $0xf0] sm:$0xf]
      %v273 = vld [vmem:[%s165 + $0xf4] sm:$0xf]
      %v274 = vld [vmem:[%s165 + $0xf8] sm:$0xf]
      %v275 = vld [vmem:[%s165 + $0xfc] sm:$0xf]
      %v276 = vld [vmem:[%s165 + $0x100] sm:$0xf]
      %v277 = vld [vmem:[%s165 + $0x104] sm:$0xf]
      %v278 = vld [vmem:[%s165 + $0x108] sm:$0xf]
      %v279 = vld [vmem:[%s165 + $0x10c] sm:$0xf]
      %v280 = vld [vmem:[%s165 + $0x110] sm:$0xf]
      %v281 = vld [vmem:[%s165 + $0x114] sm:$0xf]
      %v282 = vld [vmem:[%s165 + $0x118] sm:$0xf]
      %v283 = vld [vmem:[%s165 + $0x11c] sm:$0xf]
      %v284 = vld [vmem:[%s165 + $0x120] sm:$0xf]
      %v285 = vld [vmem:[%s165 + $0x124] sm:$0xf]
      %v286 = vld [vmem:[%s165 + $0x128] sm:$0xf]
      %v287 = vld [vmem:[%s165 + $0x12c] sm:$0xf]
      %v288 = vld [vmem:[%s165 + $0x130] sm:$0xf]
      %v289 = vld [vmem:[%s165 + $0x134] sm:$0xf]
      %v290 = vld [vmem:[%s165 + $0x138] sm:$0xf]
      %v291 = vld [vmem:[%s165 + $0x13c] sm:$0xf]
      %v292 = vld [vmem:[%s165 + $0x140] sm:$0xf]
      %v293 = vld [vmem:[%s165 + $0x144] sm:$0xf]
      %v294 = vld [vmem:[%s165 + $0x148] sm:$0xf]
      %v295 = vld [vmem:[%s165 + $0x14c] sm:$0xf]
      %v296 = vld [vmem:[%s165 + $0x150] sm:$0xf]
      %v297 = vld [vmem:[%s165 + $0x154] sm:$0xf]
      %v298 = vld [vmem:[%s165 + $0x158] sm:$0xf]
      %v299 = vld [vmem:[%s165 + $0x15c] sm:$0xf]
      %v300 = vld [vmem:[%s165 + $0x160] sm:$0xf]
      %v301 = vld [vmem:[%s165 + $0x164] sm:$0xf]
      %v302 = vld [vmem:[%s165 + $0x168] sm:$0xf]
      %v303 = vld [vmem:[%s165 + $0x16c] sm:$0xf]
      %v304 = vld [vmem:[%s165 + $0x170] sm:$0xf]
      %v305 = vld [vmem:[%s165 + $0x174] sm:$0xf]
      %v306 = vld [vmem:[%s165 + $0x178] sm:$0xf]
      %v307 = vld [vmem:[%s165 + $0x17c] sm:$0xf]
      %v308 = vld [vmem:[%s165 + $0x180] sm:$0xf]
      %v309 = vld [vmem:[%s165 + $0x184] sm:$0xf]
      %v310 = vld [vmem:[%s165 + $0x188] sm:$0xf]
      %v311 = vld [vmem:[%s165 + $0x18c] sm:$0xf]
      %v312 = vld [vmem:[%s165 + $0x190] sm:$0xf]
      %v313 = vld [vmem:[%s165 + $0x194] sm:$0xf]
      %v314 = vld [vmem:[%s165 + $0x198] sm:$0xf]
      %v315 = vld [vmem:[%s165 + $0x19c] sm:$0xf]
      %v316 = vld [vmem:[%s165 + $0x1a0] sm:$0xf]
      %v317 = vld [vmem:[%s165 + $0x1a4] sm:$0xf]
      %v318 = vld [vmem:[%s165 + $0x1a8] sm:$0xf]
      %v319 = vld [vmem:[%s165 + $0x1ac] sm:$0xf]
      %v320 = vld [vmem:[%s165 + $0x1b0] sm:$0xf]
      %v321 = vld [vmem:[%s165 + $0x1b4] sm:$0xf]
      %v322 = vld [vmem:[%s165 + $0x1b8] sm:$0xf]
      %v323 = vld [vmem:[%s165 + $0x1bc] sm:$0xf]
      %v324 = vld [vmem:[%s165 + $0x1c0] sm:$0xf]
      %v325 = vld [vmem:[%s165 + $0x1c4] sm:$0xf]
      %v326 = vld [vmem:[%s165 + $0x1c8] sm:$0xf]
      %v327 = vld [vmem:[%s165 + $0x1cc] sm:$0xf]
      %v328 = vld [vmem:[%s165 + $0x1d0] sm:$0xf]
      %v329 = vld [vmem:[%s165 + $0x1d4] sm:$0xf]
      %v330 = vld [vmem:[%s165 + $0x1d8] sm:$0xf]
      %v331 = vld [vmem:[%s165 + $0x1dc] sm:$0xf]
      %v332 = vld [vmem:[%s165 + $0x1e0] sm:$0xf]
      %v333 = vld [vmem:[%s165 + $0x1e4] sm:$0xf]
      %v334 = vld [vmem:[%s165 + $0x1e8] sm:$0xf]
      %v335 = vld [vmem:[%s165 + $0x1ec] sm:$0xf]
      %v336 = vld [vmem:[%s165 + $0x1f0] sm:$0xf]
      %v337 = vld [vmem:[%s165 + $0x1f4] sm:$0xf]
      %v338 = vld [vmem:[%s165 + $0x1f8] sm:$0xf]
      %v339 = vld [vmem:[%s165 + $0x1fc] sm:$0xf]
      %v340 = vld [vmem:[%s165 + $0x200] sm:$0xf]
      %v341 = vld [vmem:[%s165 + $0x204] sm:$0xf]
      %v342 = vld [vmem:[%s165 + $0x208] sm:$0xf]
      %v343 = vld [vmem:[%s165 + $0x20c] sm:$0xf]
      %v344 = vld [vmem:[%s165 + $0x210] sm:$0xf]
      %v345 = vld [vmem:[%s165 + $0x214] sm:$0xf]
      %v346 = vld [vmem:[%s165 + $0x218] sm:$0xf]
      %v347 = vld [vmem:[%s165 + $0x21c] sm:$0xf]
      %v348 = vld [vmem:[%s165 + $0x220] sm:$0xf]
      %v349 = vld [vmem:[%s165 + $0x224] sm:$0xf]
      %v350 = vld [vmem:[%s165 + $0x228] sm:$0xf]
      %v351 = vld [vmem:[%s165 + $0x22c] sm:$0xf]
      %v352 = vld [vmem:[%s165 + $0x230] sm:$0xf]
      %v353 = vld [vmem:[%s165 + $0x234] sm:$0xf]
      %v354 = vld [vmem:[%s165 + $0x238] sm:$0xf]
      %v355 = vld [vmem:[%s165 + $0x23c] sm:$0xf]
      %v396 = vunpack.c.l.b16 %v172
      %v397 = vunpack.c.h.b16 %v172
      %v398 = vunpack.c.l.b16 %v173
      %v399 = vunpack.c.h.b16 %v173
      %v400 = vunpack.c.l.b16 %v174
      %v401 = vunpack.c.h.b16 %v174
      %v402 = vunpack.c.l.b16 %v175
      %v403 = vunpack.c.h.b16 %v175
      %v404 = vunpack.c.l.b16 %v176
      %v405 = vunpack.c.l.b16 %v177
      %v406 = vunpack.c.h.b16 %v177
      %v407 = vunpack.c.l.b16 %v178
      %v408 = vunpack.c.h.b16 %v178
      %v409 = vunpack.c.l.b16 %v179
      %v410 = vunpack.c.h.b16 %v179
      %v411 = vunpack.c.l.b16 %v180
      %v412 = vunpack.c.h.b16 %v180
      %v413 = vunpack.c.l.b16 %v181
      %v414 = vunpack.c.l.b16 %v182
      %v415 = vunpack.c.h.b16 %v182
      %v416 = vunpack.c.l.b16 %v183
      %v417 = vunpack.c.h.b16 %v183
      %v418 = vunpack.c.l.b16 %v184
      %v419 = vunpack.c.h.b16 %v184
      %v420 = vunpack.c.l.b16 %v185
      %v421 = vunpack.c.h.b16 %v185
      %v422 = vunpack.c.l.b16 %v186
      %v423 = vunpack.c.l.b16 %v187
      %v424 = vunpack.c.h.b16 %v187
      %v425 = vunpack.c.l.b16 %v188
      %v426 = vunpack.c.h.b16 %v188
      %v427 = vunpack.c.l.b16 %v189
      %v428 = vunpack.c.h.b16 %v189
      %v429 = vunpack.c.l.b16 %v190
      %v430 = vunpack.c.h.b16 %v190
      %v431 = vunpack.c.l.b16 %v191
      %v432 = vunpack.c.l.b16 %v192
      %v433 = vunpack.c.h.b16 %v192
      %v434 = vunpack.c.l.b16 %v193
      %v435 = vunpack.c.h.b16 %v193
      %v436 = vunpack.c.l.b16 %v194
      %v437 = vunpack.c.h.b16 %v194
      %v438 = vunpack.c.l.b16 %v195
      %v439 = vunpack.c.h.b16 %v195
      %v440 = vunpack.c.l.b16 %v196
      %v441 = vunpack.c.l.b16 %v197
      %v442 = vunpack.c.h.b16 %v197
      %v443 = vunpack.c.l.b16 %v198
      %v444 = vunpack.c.h.b16 %v198
      %v445 = vunpack.c.l.b16 %v199
      %v446 = vunpack.c.h.b16 %v199
      %v447 = vunpack.c.l.b16 %v200
      %v448 = vunpack.c.h.b16 %v200
      %v449 = vunpack.c.l.b16 %v201
      %v450 = vunpack.c.l.b16 %v202
      %v451 = vunpack.c.h.b16 %v202
      %v452 = vunpack.c.l.b16 %v203
      %v453 = vunpack.c.h.b16 %v203
      %v454 = vunpack.c.l.b16 %v204
      %v455 = vunpack.c.h.b16 %v204
      %v456 = vunpack.c.l.b16 %v205
      %v457 = vunpack.c.h.b16 %v205
      %v458 = vunpack.c.l.b16 %v206
      %v459 = vunpack.c.l.b16 %v207
      %v460 = vunpack.c.h.b16 %v207
      %v461 = vunpack.c.l.b16 %v208
      %v462 = vunpack.c.h.b16 %v208
      %v463 = vunpack.c.l.b16 %v209
      %v464 = vunpack.c.h.b16 %v209
      %v465 = vunpack.c.l.b16 %v210
      %v466 = vunpack.c.h.b16 %v210
      %v467 = vunpack.c.l.b16 %v211
      %v468 = vpack.c.b16 %v405, %v396
      %v469 = vpack.c.b16 %v406, %v397
      %v470 = vpack.c.b16 %v407, %v398
      %v471 = vpack.c.b16 %v408, %v399
      %v472 = vpack.c.b16 %v409, %v400
      %v473 = vpack.c.b16 %v410, %v401
      %v474 = vpack.c.b16 %v411, %v402
      %v475 = vpack.c.b16 %v412, %v403
      %v476 = vpack.c.b16 %v413, %v404
      %v477 = vpack.c.b16 %v423, %v414
      %v478 = vpack.c.b16 %v424, %v415
      %v479 = vpack.c.b16 %v425, %v416
      %v480 = vpack.c.b16 %v426, %v417
      %v481 = vpack.c.b16 %v427, %v418
      %v482 = vpack.c.b16 %v428, %v419
      %v483 = vpack.c.b16 %v429, %v420
      %v484 = vpack.c.b16 %v430, %v421
      %v485 = vpack.c.b16 %v431, %v422
      %v486 = vpack.c.b16 %v441, %v432
      %v487 = vpack.c.b16 %v442, %v433
      %v488 = vpack.c.b16 %v443, %v434
      %v489 = vpack.c.b16 %v444, %v435
      %v490 = vpack.c.b16 %v445, %v436
      %v491 = vpack.c.b16 %v446, %v437
      %v492 = vpack.c.b16 %v447, %v438
      %v493 = vpack.c.b16 %v448, %v439
      %v494 = vpack.c.b16 %v449, %v440
      %v495 = vpack.c.b16 %v459, %v450
      %v496 = vpack.c.b16 %v460, %v451
      %v497 = vpack.c.b16 %v461, %v452
      %v498 = vpack.c.b16 %v462, %v453
      %v499 = vpack.c.b16 %v463, %v454
      %v500 = vpack.c.b16 %v464, %v455
      %v501 = vpack.c.b16 %v465, %v456
      %v502 = vpack.c.b16 %v466, %v457
      %v503 = vpack.c.b16 %v467, %v458
      %v684 = vunpack.c.l.b16 %v212
      %v685 = vunpack.c.l.b16 %v213
      %v686 = vunpack.c.l.b16 %v214
      %v687 = vunpack.c.l.b16 %v215
      %v688 = vunpack.c.l.b16 %v216
      %v689 = vunpack.c.l.b16 %v217
      %v690 = vunpack.c.l.b16 %v218
      %v691 = vunpack.c.l.b16 %v219
      %v692 = vunpack.c.l.b16 %v220
      %v693 = vunpack.c.l.b16 %v221
      %v694 = vunpack.c.l.b16 %v222
      %v695 = vunpack.c.l.b16 %v223
      %v696 = vunpack.c.l.b16 %v224
      %v697 = vunpack.c.l.b16 %v225
      %v698 = vunpack.c.l.b16 %v226
      %v699 = vunpack.c.l.b16 %v227
      %v700 = vunpack.c.l.b16 %v228
      %v701 = vunpack.c.l.b16 %v229
      %v702 = vunpack.c.l.b16 %v230
      %v703 = vunpack.c.l.b16 %v231
      %v704 = vunpack.c.l.b16 %v232
      %v705 = vunpack.c.l.b16 %v233
      %v706 = vunpack.c.l.b16 %v234
      %v707 = vunpack.c.l.b16 %v235
      %v708 = vunpack.c.l.b16 %v236
      %v709 = vunpack.c.l.b16 %v237
      %v710 = vunpack.c.l.b16 %v238
      %v711 = vunpack.c.l.b16 %v239
      %v712 = vunpack.c.l.b16 %v240
      %v713 = vunpack.c.l.b16 %v241
      %v714 = vunpack.c.l.b16 %v242
      %v715 = vunpack.c.l.b16 %v243
      %v716 = vunpack.c.l.b16 %v244
      %v717 = vunpack.c.l.b16 %v245
      %v718 = vunpack.c.l.b16 %v246
      %v719 = vunpack.c.l.b16 %v247
      %v720 = vunpack.c.l.b16 %v248
      %v721 = vunpack.c.l.b16 %v249
      %v722 = vunpack.c.l.b16 %v250
      %v723 = vunpack.c.l.b16 %v251
      %v724 = vunpack.c.l.b16 %v252
      %v725 = vunpack.c.l.b16 %v253
      %v726 = vunpack.c.l.b16 %v254
      %v727 = vunpack.c.l.b16 %v255
      %v728 = vunpack.c.l.b16 %v256
      %v729 = vunpack.c.l.b16 %v257
      %v730 = vunpack.c.l.b16 %v258
      %v731 = vunpack.c.l.b16 %v259
      %v732 = vunpack.c.l.b16 %v260
      %v733 = vunpack.c.l.b16 %v261
      %v734 = vunpack.c.l.b16 %v262
      %v735 = vunpack.c.l.b16 %v263
      %v736 = vunpack.c.l.b16 %v264
      %v737 = vunpack.c.l.b16 %v265
      %v738 = vunpack.c.l.b16 %v266
      %v739 = vunpack.c.l.b16 %v267
      %v740 = vunpack.c.l.b16 %v268
      %v741 = vunpack.c.l.b16 %v269
      %v742 = vunpack.c.l.b16 %v270
      %v743 = vunpack.c.l.b16 %v271
      %v744 = vunpack.c.l.b16 %v272
      %v745 = vunpack.c.l.b16 %v273
      %v746 = vunpack.c.l.b16 %v274
      %v747 = vunpack.c.l.b16 %v275
      %v748 = vunpack.c.l.b16 %v276
      %v749 = vunpack.c.l.b16 %v277
      %v750 = vunpack.c.l.b16 %v278
      %v751 = vunpack.c.l.b16 %v279
      %v752 = vunpack.c.l.b16 %v280
      %v753 = vunpack.c.l.b16 %v281
      %v754 = vunpack.c.l.b16 %v282
      %v755 = vunpack.c.l.b16 %v283
      %v756 = vunpack.c.l.b16 %v284
      %v757 = vunpack.c.l.b16 %v285
      %v758 = vunpack.c.l.b16 %v286
      %v759 = vunpack.c.l.b16 %v287
      %v760 = vunpack.c.l.b16 %v288
      %v761 = vunpack.c.l.b16 %v289
      %v762 = vunpack.c.l.b16 %v290
      %v763 = vunpack.c.l.b16 %v291
      %v764 = vunpack.c.l.b16 %v292
      %v765 = vunpack.c.l.b16 %v293
      %v766 = vunpack.c.l.b16 %v294
      %v767 = vunpack.c.l.b16 %v295
      %v768 = vunpack.c.l.b16 %v296
      %v769 = vunpack.c.l.b16 %v297
      %v770 = vunpack.c.l.b16 %v298
      %v771 = vunpack.c.l.b16 %v299
      %v772 = vunpack.c.l.b16 %v300
      %v773 = vunpack.c.l.b16 %v301
      %v774 = vunpack.c.l.b16 %v302
      %v775 = vunpack.c.l.b16 %v303
      %v776 = vunpack.c.l.b16 %v304
      %v777 = vunpack.c.l.b16 %v305
      %v778 = vunpack.c.l.b16 %v306
      %v779 = vunpack.c.l.b16 %v307
      %v780 = vunpack.c.l.b16 %v308
      %v781 = vunpack.c.l.b16 %v309
      %v782 = vunpack.c.l.b16 %v310
      %v783 = vunpack.c.l.b16 %v311
      %v784 = vunpack.c.l.b16 %v312
      %v785 = vunpack.c.l.b16 %v313
      %v786 = vunpack.c.l.b16 %v314
      %v787 = vunpack.c.l.b16 %v315
      %v788 = vunpack.c.l.b16 %v316
      %v789 = vunpack.c.l.b16 %v317
      %v790 = vunpack.c.l.b16 %v318
      %v791 = vunpack.c.l.b16 %v319
      %v792 = vunpack.c.l.b16 %v320
      %v793 = vunpack.c.l.b16 %v321
      %v794 = vunpack.c.l.b16 %v322
      %v795 = vunpack.c.l.b16 %v323
      %v796 = vunpack.c.l.b16 %v324
      %v797 = vunpack.c.l.b16 %v325
      %v798 = vunpack.c.l.b16 %v326
      %v799 = vunpack.c.l.b16 %v327
      %v800 = vunpack.c.l.b16 %v328
      %v801 = vunpack.c.l.b16 %v329
      %v802 = vunpack.c.l.b16 %v330
      %v803 = vunpack.c.l.b16 %v331
      %v804 = vunpack.c.l.b16 %v332
      %v805 = vunpack.c.l.b16 %v333
      %v806 = vunpack.c.l.b16 %v334
      %v807 = vunpack.c.l.b16 %v335
      %v808 = vunpack.c.l.b16 %v336
      %v809 = vunpack.c.l.b16 %v337
      %v810 = vunpack.c.l.b16 %v338
      %v811 = vunpack.c.l.b16 %v339
      %v812 = vunpack.c.l.b16 %v340
      %v813 = vunpack.c.l.b16 %v341
      %v814 = vunpack.c.l.b16 %v342
      %v815 = vunpack.c.l.b16 %v343
      %v816 = vunpack.c.l.b16 %v344
      %v817 = vunpack.c.l.b16 %v345
      %v818 = vunpack.c.l.b16 %v346
      %v819 = vunpack.c.l.b16 %v347
      %v820 = vunpack.c.l.b16 %v348
      %v821 = vunpack.c.l.b16 %v349
      %v822 = vunpack.c.l.b16 %v350
      %v823 = vunpack.c.l.b16 %v351
      %v824 = vunpack.c.l.b16 %v352
      %v825 = vunpack.c.l.b16 %v353
      %v826 = vunpack.c.l.b16 %v354
      %v827 = vunpack.c.l.b16 %v355
      %v828 = vpack.c.b16 %v685, %v684
      %v829 = vpack.c.b16 %v687, %v686
      %v830 = vpack.c.b16 %v689, %v688
      %v831 = vpack.c.b16 %v691, %v690
      %v832 = vpack.c.b16 %v693, %v692
      %v833 = vpack.c.b16 %v695, %v694
      %v834 = vpack.c.b16 %v697, %v696
      %v835 = vpack.c.b16 %v699, %v698
      %v836 = vpack.c.b16 %v701, %v700
      %v837 = vpack.c.b16 %v703, %v702
      %v838 = vpack.c.b16 %v705, %v704
      %v839 = vpack.c.b16 %v707, %v706
      %v840 = vpack.c.b16 %v709, %v708
      %v841 = vpack.c.b16 %v711, %v710
      %v842 = vpack.c.b16 %v713, %v712
      %v843 = vpack.c.b16 %v715, %v714
      %v844 = vpack.c.b16 %v717, %v716
      %v845 = vpack.c.b16 %v719, %v718
      %v846 = vpack.c.b16 %v721, %v720
      %v847 = vpack.c.b16 %v723, %v722
      %v848 = vpack.c.b16 %v725, %v724
      %v849 = vpack.c.b16 %v727, %v726
      %v850 = vpack.c.b16 %v729, %v728
      %v851 = vpack.c.b16 %v731, %v730
      %v852 = vpack.c.b16 %v733, %v732
      %v853 = vpack.c.b16 %v735, %v734
      %v854 = vpack.c.b16 %v737, %v736
      %v855 = vpack.c.b16 %v739, %v738
      %v856 = vpack.c.b16 %v741, %v740
      %v857 = vpack.c.b16 %v743, %v742
      %v858 = vpack.c.b16 %v745, %v744
      %v859 = vpack.c.b16 %v747, %v746
      %v860 = vpack.c.b16 %v749, %v748
      %v861 = vpack.c.b16 %v751, %v750
      %v862 = vpack.c.b16 %v753, %v752
      %v863 = vpack.c.b16 %v755, %v754
      %v864 = vpack.c.b16 %v757, %v756
      %v865 = vpack.c.b16 %v759, %v758
      %v866 = vpack.c.b16 %v761, %v760
      %v867 = vpack.c.b16 %v763, %v762
      %v868 = vpack.c.b16 %v765, %v764
      %v869 = vpack.c.b16 %v767, %v766
      %v870 = vpack.c.b16 %v769, %v768
      %v871 = vpack.c.b16 %v771, %v770
      %v872 = vpack.c.b16 %v773, %v772
      %v873 = vpack.c.b16 %v775, %v774
      %v874 = vpack.c.b16 %v777, %v776
      %v875 = vpack.c.b16 %v779, %v778
      %v876 = vpack.c.b16 %v781, %v780
      %v877 = vpack.c.b16 %v783, %v782
      %v878 = vpack.c.b16 %v785, %v784
      %v879 = vpack.c.b16 %v787, %v786
      %v880 = vpack.c.b16 %v789, %v788
      %v881 = vpack.c.b16 %v791, %v790
      %v882 = vpack.c.b16 %v793, %v792
      %v883 = vpack.c.b16 %v795, %v794
      %v884 = vpack.c.b16 %v797, %v796
      %v885 = vpack.c.b16 %v799, %v798
      %v886 = vpack.c.b16 %v801, %v800
      %v887 = vpack.c.b16 %v803, %v802
      %v888 = vpack.c.b16 %v805, %v804
      %v889 = vpack.c.b16 %v807, %v806
      %v890 = vpack.c.b16 %v809, %v808
      %v891 = vpack.c.b16 %v811, %v810
      %v892 = vpack.c.b16 %v813, %v812
      %v893 = vpack.c.b16 %v815, %v814
      %v894 = vpack.c.b16 %v817, %v816
      %v895 = vpack.c.b16 %v819, %v818
      %v896 = vpack.c.b16 %v821, %v820
      %v897 = vpack.c.b16 %v823, %v822
      %v898 = vpack.c.b16 %v825, %v824
      %v899 = vpack.c.b16 %v827, %v826
      %972 = vmatprep.subr.bf16.mxu0 0
      %973 = vmatpush1.bf16.msra.mxu0 %v828
      %974 = vmatprep.subr.bf16.mxu0 0
      %975 = vmatpush1.bf16.msra.mxu0 %v829
      %976 = vmatprep.subr.bf16.mxu0 0
      %977 = vmatpush1.bf16.msra.mxu0 %v830
      %978 = vmatprep.subr.bf16.mxu0 0
      %979 = vmatpush1.bf16.msra.mxu0 %v831
      %980 = vmatprep.subr.bf16.mxu0 0
      %981 = vmatpush1.bf16.msra.mxu0 %v832
      %982 = vmatprep.subr.bf16.mxu0 0
      %983 = vmatpush1.bf16.msra.mxu0 %v833
      %984 = vmatprep.subr.bf16.mxu0 0
      %985 = vmatpush1.bf16.msra.mxu0 %v834
      %986 = vmatprep.subr.bf16.mxu0 0
      %987 = vmatpush1.bf16.msra.mxu0 %v835
      %988 = vmatprep.subr.bf16.mxu0 0
      %989 = vmatpush1.bf16.msra.mxu0 %v836
      %990 = vmatprep.subr.bf16.mxu0 0
      %991 = vmatpush1.bf16.msra.mxu0 %v837
      %992 = vmatprep.subr.bf16.mxu0 0
      %993 = vmatpush1.bf16.msra.mxu0 %v838
      %994 = vmatprep.subr.bf16.mxu0 0
      %995 = vmatpush1.bf16.msra.mxu0 %v839
      %996 = vmatprep.subr.bf16.mxu0 0
      %997 = vmatpush1.bf16.msra.mxu0 %v840
      %998 = vmatprep.subr.bf16.mxu0 0
      %999 = vmatpush1.bf16.msra.mxu0 %v841
      %1000 = vmatprep.subr.bf16.mxu0 0
      %1001 = vmatpush1.bf16.msra.mxu0 %v842
      %1002 = vmatprep.subr.bf16.mxu0 0
      %1003 = vmatpush1.bf16.msra.mxu0 %v843
      %1004 = vmatprep.mubr.bf16.mxu0 %v469
      %1005 = vmatmul.mubr.bf16.gmra.mrb[0].mxu0 %v468
      %v1006 = vpop.f32.mrb[0].mxu0
      %v1007 = vadd.f32 0.0, %v1006
      %v1008 = vpop.f32.mrb[0].mxu0
      %v1009 = vpop.f32.mrb[0].mxu0
      %v1010 = vadd.f32 0.0, %v1009
      %v1011 = vpop.f32.mrb[0].mxu0
      %1012 = vmatprep.mubr.bf16.mxu0 %v478
      %1013 = vmatmul.mubr.bf16.gmra.mrb[0].mxu0 %v477
      %v1014 = vpop.f32.mrb[0].mxu0
      %v1015 = vadd.f32 0.0, %v1014
      %v1016 = vpop.f32.mrb[0].mxu0
      %v1017 = vpop.f32.mrb[0].mxu0
      %v1018 = vadd.f32 0.0, %v1017
      %v1019 = vpop.f32.mrb[0].mxu0
      %1020 = vmatprep.mubr.bf16.mxu0 %v487
      %1021 = vmatmul.mubr.bf16.gmra.mrb[0].mxu0 %v486
      %v1022 = vpop.f32.mrb[0].mxu0
      %v1023 = vadd.f32 0.0, %v1022
      %v1024 = vpop.f32.mrb[0].mxu0
      %v1025 = vpop.f32.mrb[0].mxu0
      %v1026 = vadd.f32 0.0, %v1025
      %v1027 = vpop.f32.mrb[0].mxu0
      %1028 = vmatprep.mubr.bf16.mxu0 %v496
      %1029 = vmatmul.mubr.bf16.gmra.mrb[0].mxu0 %v495
      %v1030 = vpop.f32.mrb[0].mxu0
      %v1031 = vadd.f32 0.0, %v1030
      %v1032 = vpop.f32.mrb[0].mxu0
      %v1033 = vpop.f32.mrb[0].mxu0
      %v1034 = vadd.f32 0.0, %v1033
      %v1035 = vpop.f32.mrb[0].mxu0
      %1036 = vdwg.mxu0
      %1037 = vmatprep.subr.bf16.mxu0 0
      %1038 = vmatpush1.bf16.msra.mxu0 %v844
      %1039 = vmatprep.subr.bf16.mxu0 0
      %1040 = vmatpush1.bf16.msra.mxu0 %v845
      %1041 = vmatprep.subr.bf16.mxu0 0
      %1042 = vmatpush1.bf16.msra.mxu0 %v846
      %1043 = vmatprep.subr.bf16.mxu0 0
      %1044 = vmatpush1.bf16.msra.mxu0 %v847
      %1045 = vmatprep.subr.bf16.mxu0 0
      %1046 = vmatpush1.bf16.msra.mxu0 %v848
      %1047 = vmatprep.subr.bf16.mxu0 0
      %1048 = vmatpush1.bf16.msra.mxu0 %v849
      %1049 = vmatprep.subr.bf16.mxu0 0
      %1050 = vmatpush1.bf16.msra.mxu0 %v850
      %1051 = vmatprep.subr.bf16.mxu0 0
      %1052 = vmatpush1.bf16.msra.mxu0 %v851
      %1053 = vmatprep.subr.bf16.mxu0 0
      %1054 = vmatpush1.bf16.msra.mxu0 %v852
      %1055 = vmatprep.subr.bf16.mxu0 0
      %1056 = vmatpush1.bf16.msra.mxu0 %v853
      %1057 = vmatprep.subr.bf16.mxu0 0
      %1058 = vmatpush1.bf16.msra.mxu0 %v854
      %1059 = vmatprep.subr.bf16.mxu0 0
      %1060 = vmatpush1.bf16.msra.mxu0 %v855
      %1061 = vmatprep.subr.bf16.mxu0 0
      %1062 = vmatpush1.bf16.msra.mxu0 %v856
      %1063 = vmatprep.subr.bf16.mxu0 0
      %1064 = vmatpush1.bf16.msra.mxu0 %v857
      %1065 = vmatprep.subr.bf16.mxu0 0
      %1066 = vmatpush1.bf16.msra.mxu0 %v858
      %1067 = vmatprep.subr.bf16.mxu0 0
      %1068 = vmatpush1.bf16.msra.mxu0 %v859
      %1069 = vmatprep.mubr.bf16.mxu0 %v471
      %1070 = vmatmul.mubr.bf16.gmra.mrb[0].mxu0 %v470
      %v1071 = vpop.f32.mrb[0].mxu0
      %v1072 = vadd.f32 %v1007, %v1071
      %v1073 = vpop.f32.mrb[0].mxu0
      %v1074 = vpop.f32.mrb[0].mxu0
      %v1075 = vadd.f32 %v1010, %v1074
      %v1076 = vpop.f32.mrb[0].mxu0
      %1077 = vmatprep.mubr.bf16.mxu0 %v480
      %1078 = vmatmul.mubr.bf16.gmra.mrb[0].mxu0 %v479
      %v1079 = vpop.f32.mrb[0].mxu0
      %v1080 = vadd.f32 %v1015, %v1079
      %v1081 = vpop.f32.mrb[0].mxu0
      %v1082 = vpop.f32.mrb[0].mxu0
      %v1083 = vadd.f32 %v1018, %v1082
      %v1084 = vpop.f32.mrb[0].mxu0
      %1085 = vmatprep.mubr.bf16.mxu0 %v489
      %1086 = vmatmul.mubr.bf16.gmra.mrb[0].mxu0 %v488
      %v1087 = vpop.f32.mrb[0].mxu0
      %v1088 = vadd.f32 %v1023, %v1087
      %v1089 = vpop.f32.mrb[0].mxu0
      %v1090 = vpop.f32.mrb[0].mxu0
      %v1091 = vadd.f32 %v1026, %v1090
      %v1092 = vpop.f32.mrb[0].mxu0
      %1093 = vmatprep.mubr.bf16.mxu0 %v498
      %1094 = vmatmul.mubr.bf16.gmra.mrb[0].mxu0 %v497
      %v1095 = vpop.f32.mrb[0].mxu0
      %v1096 = vadd.f32 %v1031, %v1095
      %v1097 = vpop.f32.mrb[0].mxu0
      %v1098 = vpop.f32.mrb[0].mxu0
      %v1099 = vadd.f32 %v1034, %v1098
      %v1100 = vpop.f32.mrb[0].mxu0
      %1101 = vdwg.mxu0
      %1102 = vmatprep.subr.bf16.mxu0 0
      %1103 = vmatpush1.bf16.msra.mxu0 %v860
      %1104 = vmatprep.subr.bf16.mxu0 0
      %1105 = vmatpush1.bf16.msra.mxu0 %v861
      %1106 = vmatprep.subr.bf16.mxu0 0
      %1107 = vmatpush1.bf16.msra.mxu0 %v862
      %1108 = vmatprep.subr.bf16.mxu0 0
      %1109 = vmatpush1.bf16.msra.mxu0 %v863
      %1110 = vmatprep.subr.bf16.mxu0 0
      %1111 = vmatpush1.bf16.msra.mxu0 %v864
      %1112 = vmatprep.subr.bf16.mxu0 0
      %1113 = vmatpush1.bf16.msra.mxu0 %v865
      %1114 = vmatprep.subr.bf16.mxu0 0
      %1115 = vmatpush1.bf16.msra.mxu0 %v866
      %1116 = vmatprep.subr.bf16.mxu0 0
      %1117 = vmatpush1.bf16.msra.mxu0 %v867
      %1118 = vmatprep.subr.bf16.mxu0 0
      %1119 = vmatpush1.bf16.msra.mxu0 %v868
      %1120 = vmatprep.subr.bf16.mxu0 0
      %1121 = vmatpush1.bf16.msra.mxu0 %v869
      %1122 = vmatprep.subr.bf16.mxu0 0
      %1123 = vmatpush1.bf16.msra.mxu0 %v870
      %1124 = vmatprep.subr.bf16.mxu0 0
      %1125 = vmatpush1.bf16.msra.mxu0 %v871
      %1126 = vmatprep.subr.bf16.mxu0 0
      %1127 = vmatpush1.bf16.msra.mxu0 %v872
      %1128 = vmatprep.subr.bf16.mxu0 0
      %1129 = vmatpush1.bf16.msra.mxu0 %v873
      %1130 = vmatprep.subr.bf16.mxu0 0
      %1131 = vmatpush1.bf16.msra.mxu0 %v874
      %1132 = vmatprep.subr.bf16.mxu0 0
      %1133 = vmatpush1.bf16.msra.mxu0 %v875
      %1134 = vmatprep.mubr.bf16.mxu0 %v473
      %1135 = vmatmul.mubr.bf16.gmra.mrb[0].mxu0 %v472
      %v1136 = vpop.f32.mrb[0].mxu0
      %v1137 = vadd.f32 %v1072, %v1136
      %v1138 = vpop.f32.mrb[0].mxu0
      %v1139 = vpop.f32.mrb[0].mxu0
      %v1140 = vadd.f32 %v1075, %v1139
      %v1141 = vpop.f32.mrb[0].mxu0
      %1142 = vmatprep.mubr.bf16.mxu0 %v482
      %1143 = vmatmul.mubr.bf16.gmra.mrb[0].mxu0 %v481
      %v1144 = vpop.f32.mrb[0].mxu0
      %v1145 = vadd.f32 %v1080, %v1144
      %v1146 = vpop.f32.mrb[0].mxu0
      %v1147 = vpop.f32.mrb[0].mxu0
      %v1148 = vadd.f32 %v1083, %v1147
      %v1149 = vpop.f32.mrb[0].mxu0
      %1150 = vmatprep.mubr.bf16.mxu0 %v491
      %1151 = vmatmul.mubr.bf16.gmra.mrb[0].mxu0 %v490
      %v1152 = vpop.f32.mrb[0].mxu0
      %v1153 = vadd.f32 %v1088, %v1152
      %v1154 = vpop.f32.mrb[0].mxu0
      %v1155 = vpop.f32.mrb[0].mxu0
      %v1156 = vadd.f32 %v1091, %v1155
      %v1157 = vpop.f32.mrb[0].mxu0
      %1158 = vmatprep.mubr.bf16.mxu0 %v500
      %1159 = vmatmul.mubr.bf16.gmra.mrb[0].mxu0 %v499
      %v1160 = vpop.f32.mrb[0].mxu0
      %v1161 = vadd.f32 %v1096, %v1160
      %v1162 = vpop.f32.mrb[0].mxu0
      %v1163 = vpop.f32.mrb[0].mxu0
      %v1164 = vadd.f32 %v1099, %v1163
      %v1165 = vpop.f32.mrb[0].mxu0
      %1166 = vdwg.mxu0
      %1167 = vmatprep.subr.bf16.mxu0 0
      %1168 = vmatpush1.bf16.msra.mxu0 %v876
      %1169 = vmatprep.subr.bf16.mxu0 0
      %1170 = vmatpush1.bf16.msra.mxu0 %v877
      %1171 = vmatprep.subr.bf16.mxu0 0
      %1172 = vmatpush1.bf16.msra.mxu0 %v878
      %1173 = vmatprep.subr.bf16.mxu0 0
      %1174 = vmatpush1.bf16.msra.mxu0 %v879
      %1175 = vmatprep.subr.bf16.mxu0 0
      %1176 = vmatpush1.bf16.msra.mxu0 %v880
      %1177 = vmatprep.subr.bf16.mxu0 0
      %1178 = vmatpush1.bf16.msra.mxu0 %v881
      %1179 = vmatprep.subr.bf16.mxu0 0
      %1180 = vmatpush1.bf16.msra.mxu0 %v882
      %1181 = vmatprep.subr.bf16.mxu0 0
      %1182 = vmatpush1.bf16.msra.mxu0 %v883
      %1183 = vmatprep.subr.bf16.mxu0 0
      %1184 = vmatpush1.bf16.msra.mxu0 %v884
      %1185 = vmatprep.subr.bf16.mxu0 0
      %1186 = vmatpush1.bf16.msra.mxu0 %v885
      %1187 = vmatprep.subr.bf16.mxu0 0
      %1188 = vmatpush1.bf16.msra.mxu0 %v886
      %1189 = vmatprep.subr.bf16.mxu0 0
      %1190 = vmatpush1.bf16.msra.mxu0 %v887
      %1191 = vmatprep.subr.bf16.mxu0 0
      %1192 = vmatpush1.bf16.msra.mxu0 %v888
      %1193 = vmatprep.subr.bf16.mxu0 0
      %1194 = vmatpush1.bf16.msra.mxu0 %v889
      %1195 = vmatprep.subr.bf16.mxu0 0
      %1196 = vmatpush1.bf16.msra.mxu0 %v890
      %1197 = vmatprep.subr.bf16.mxu0 0
      %1198 = vmatpush1.bf16.msra.mxu0 %v891
      %1199 = vmatprep.mubr.bf16.mxu0 %v475
      %1200 = vmatmul.mubr.bf16.gmra.mrb[0].mxu0 %v474
      %v1201 = vpop.f32.mrb[0].mxu0
      %v1202 = vadd.f32 %v1137, %v1201
      %v1203 = vpop.f32.mrb[0].mxu0
      %v1204 = vpop.f32.mrb[0].mxu0
      %v1205 = vadd.f32 %v1140, %v1204
      %v1206 = vpop.f32.mrb[0].mxu0
      %1207 = vmatprep.mubr.bf16.mxu0 %v484
      %1208 = vmatmul.mubr.bf16.gmra.mrb[0].mxu0 %v483
      %v1209 = vpop.f32.mrb[0].mxu0
      %v1210 = vadd.f32 %v1145, %v1209
      %v1211 = vpop.f32.mrb[0].mxu0
      %v1212 = vpop.f32.mrb[0].mxu0
      %v1213 = vadd.f32 %v1148, %v1212
      %v1214 = vpop.f32.mrb[0].mxu0
      %1215 = vmatprep.mubr.bf16.mxu0 %v493
      %1216 = vmatmul.mubr.bf16.gmra.mrb[0].mxu0 %v492
      %v1217 = vpop.f32.mrb[0].mxu0
      %v1218 = vadd.f32 %v1153, %v1217
      %v1219 = vpop.f32.mrb[0].mxu0
      %v1220 = vpop.f32.mrb[0].mxu0
      %v1221 = vadd.f32 %v1156, %v1220
      %v1222 = vpop.f32.mrb[0].mxu0
      %1223 = vmatprep.mubr.bf16.mxu0 %v502
      %1224 = vmatmul.mubr.bf16.gmra.mrb[0].mxu0 %v501
      %v1225 = vpop.f32.mrb[0].mxu0
      %v1226 = vadd.f32 %v1161, %v1225
      %v1227 = vpop.f32.mrb[0].mxu0
      %v1228 = vpop.f32.mrb[0].mxu0
      %v1229 = vadd.f32 %v1164, %v1228
      %v1230 = vpop.f32.mrb[0].mxu0
      %1231 = vdwg.mxu0
      %1232 = vmatprep.subr.bf16.mxu0 0
      %1233 = vmatpush1.bf16.msra.mxu0 %v892
      %1234 = vmatprep.subr.bf16.mxu0 0
      %1235 = vmatpush1.bf16.msra.mxu0 %v893
      %1236 = vmatprep.subr.bf16.mxu0 0
      %1237 = vmatpush1.bf16.msra.mxu0 %v894
      %1238 = vmatprep.subr.bf16.mxu0 0
      %1239 = vmatpush1.bf16.msra.mxu0 %v895
      %1240 = vmatprep.subr.bf16.mxu0 0
      %1241 = vmatpush1.bf16.msra.mxu0 %v896
      %1242 = vmatprep.subr.bf16.mxu0 0
      %1243 = vmatpush1.bf16.msra.mxu0 %v897
      %1244 = vmatprep.subr.bf16.mxu0 0
      %1245 = vmatpush1.bf16.msra.mxu0 %v898
      %1246 = vmatprep.subr.bf16.mxu0 0
      %1247 = vmatpush1.bf16.msra.mxu0 %v899
      %1248 = vmatprep.subr.bf16.mxu0 0
      %1249 = vmatpush1.bf16.msra.mxu0 0
      %1250 = vmatprep.subr.bf16.mxu0 0
      %1251 = vmatpush1.bf16.msra.mxu0 0
      %1252 = vmatprep.subr.bf16.mxu0 0
      %1253 = vmatpush1.bf16.msra.mxu0 0
      %1254 = vmatprep.subr.bf16.mxu0 0
      %1255 = vmatpush1.bf16.msra.mxu0 0
      %1256 = vmatprep.subr.bf16.mxu0 0
      %1257 = vmatpush1.bf16.msra.mxu0 0
      %1258 = vmatprep.subr.bf16.mxu0 0
      %1259 = vmatpush1.bf16.msra.mxu0 0
      %1260 = vmatprep.subr.bf16.mxu0 0
      %1261 = vmatpush1.bf16.msra.mxu0 0
      %1262 = vmatprep.subr.bf16.mxu0 0
      %1263 = vmatpush1.bf16.msra.mxu0 0
      %1264 = vmatprep.mubr.bf16.mxu0 0
      %1265 = vmatmul.mubr.bf16.gmra.mrb[0].mxu0 %v476
      %v1266 = vpop.f32.mrb[0].mxu0
      %v1267 = vadd.f32 %v1202, %v1266
      %v1268 = vpop.f32.mrb[0].mxu0
      %v1269 = vpop.f32.mrb[0].mxu0
      %v1270 = vadd.f32 %v1205, %v1269
      %v1271 = vpop.f32.mrb[0].mxu0
      %1272 = vmatprep.mubr.bf16.mxu0 0
      %1273 = vmatmul.mubr.bf16.gmra.mrb[0].mxu0 %v485
      %v1274 = vpop.f32.mrb[0].mxu0
      %v1275 = vadd.f32 %v1210, %v1274
      %v1276 = vpop.f32.mrb[0].mxu0
      %v1277 = vpop.f32.mrb[0].mxu0
      %v1278 = vadd.f32 %v1213, %v1277
      %v1279 = vpop.f32.mrb[0].mxu0
      %1280 = vmatprep.mubr.bf16.mxu0 0
      %1281 = vmatmul.mubr.bf16.gmra.mrb[0].mxu0 %v494
      %v1282 = vpop.f32.mrb[0].mxu0
      %v1283 = vadd.f32 %v1218, %v1282
      %v1284 = vpop.f32.mrb[0].mxu0
      %v1285 = vpop.f32.mrb[0].mxu0
      %v1286 = vadd.f32 %v1221, %v1285
      %v1287 = vpop.f32.mrb[0].mxu0
      %1288 = vmatprep.mubr.bf16.mxu0 0
      %1289 = vmatmul.mubr.bf16.gmra.mrb[0].mxu0 %v503
      %v1290 = vpop.f32.mrb[0].mxu0
      %v1291 = vadd.f32 %v1226, %v1290
      %v1292 = vpop.f32.mrb[0].mxu0
      %v1293 = vpop.f32.mrb[0].mxu0
      %v1294 = vadd.f32 %v1229, %v1293
      %v1295 = vpop.f32.mrb[0].mxu0
      %1296 = vdwg.mxu0
      %vm1297 = vcmask 130048
      %v1298 = vsel %vm1297, %v1267, 0.0
      %v1299 = vsel %vm1297, %v1270, 0.0
      %v1300 = vadd.f32 %v1298, %v1299
      %v1301 = vsel %vm1297, %v1275, 0.0
      %v1302 = vadd.f32 %v1300, %v1301
      %v1303 = vsel %vm1297, %v1278, 0.0
      %v1304 = vadd.f32 %v1302, %v1303
      %v1305 = vsel %vm1297, %v1283, 0.0
      %v1306 = vadd.f32 %v1304, %v1305
      %v1307 = vsel %vm1297, %v1286, 0.0
      %v1308 = vadd.f32 %v1306, %v1307
      %v1309 = vsel %vm1297, %v1291, 0.0
      %v1310 = vadd.f32 %v1308, %v1309
      %v1311 = vsel %vm1297, %v1294, 0.0
      %v1312 = vadd.f32 %v1310, %v1311
      %1313 = vadd.xlane.f32.xlu0 %v1312
      %v1314 = vpop.xlane.xlu0 %1313
      %v1315 = vrot.slane %v1314, 4
      %v1316 = vadd.f32 %v1314, %v1315
      %v1317 = vrot.slane %v1316, 2
      %v1318 = vadd.f32 %v1316, %v1317
      %v1319 = vrot.slane %v1318, 1
      %v1320 = vadd.f32 %v1318, %v1319
      %s1321 = vtos %v1320
      %v1322 = vrcp.pop 1024.0
      %s1323 = vtos %v1322
      %s1324 = smul.f32 %s1321, %s1323
      %v1325 = vstv %s1324
      %v1326 = vsub.f32 %v1267, %v1325
      %v1327 = vsub.f32 %v1270, %v1325
      %v1328 = vsub.f32 %v1275, %v1325
      %v1329 = vsub.f32 %v1278, %v1325
      %v1330 = vsub.f32 %v1283, %v1325
      %v1331 = vsub.f32 %v1286, %v1325
      %v1332 = vsub.f32 %v1291, %v1325
      %v1333 = vsub.f32 %v1294, %v1325
      %v1334 = vmul.f32 %v1326, %v1326
      %v1335 = vmul.f32 %v1327, %v1327
      %v1336 = vmul.f32 %v1328, %v1328
      %v1337 = vmul.f32 %v1329, %v1329
      %v1338 = vmul.f32 %v1330, %v1330
      %v1339 = vmul.f32 %v1331, %v1331
      %v1340 = vmul.f32 %v1332, %v1332
      %v1341 = vmul.f32 %v1333, %v1333
      %v1342 = vsel %vm1297, %v1334, 0.0
      %v1343 = vsel %vm1297, %v1335, 0.0
      %v1344 = vadd.f32 %v1342, %v1343
      %v1345 = vsel %vm1297, %v1336, 0.0
      %v1346 = vadd.f32 %v1344, %v1345
      %v1347 = vsel %vm1297, %v1337, 0.0
      %v1348 = vadd.f32 %v1346, %v1347
      %v1349 = vsel %vm1297, %v1338, 0.0
      %v1350 = vadd.f32 %v1348, %v1349
      %v1351 = vsel %vm1297, %v1339, 0.0
      %v1352 = vadd.f32 %v1350, %v1351
      %v1353 = vsel %vm1297, %v1340, 0.0
      %v1354 = vadd.f32 %v1352, %v1353
      %v1355 = vsel %vm1297, %v1341, 0.0
      %v1356 = vadd.f32 %v1354, %v1355
      %1357 = vadd.xlane.f32.xlu0 %v1356
      %v1358 = vpop.xlane.xlu0 %1357
      %v1359 = vrot.slane %v1358, 4
      %v1360 = vadd.f32 %v1358, %v1359
      %v1361 = vrot.slane %v1360, 2
      %v1362 = vadd.f32 %v1360, %v1361
      %v1363 = vrot.slane %v1362, 1
      %v1364 = vadd.f32 %v1362, %v1363
      %s1365 = vtos %v1364
      %v1366 = vrcp.pop 1024.0
      %s1367 = vtos %v1366
      %s1368 = smul.f32 %s1365, %s1367
      %s1369 = sadd.f32 %s1368, 1e-05
      %v1370 = vstv %s1369
      %v1371 = vrsqrt.pop %v1370
      %s1372 = vtos %v1371
      %v1373 = vstv %s1372
      %v1374 = vmul.f32 %v1326, %v1373
      %v1375 = vmul.f32 %v1327, %v1373
      %v1376 = vmul.f32 %v1328, %v1373
      %v1377 = vmul.f32 %v1329, %v1373
      %v1378 = vmul.f32 %v1330, %v1373
      %v1379 = vmul.f32 %v1331, %v1373
      %v1380 = vmul.f32 %v1332, %v1373
      %v1381 = vmul.f32 %v1333, %v1373
      %v1382 = vld [vmem:[%s2] sm:$0xff]
      %v1383 = vld [vmem:[%s2 + $0x8] sm:$0xff]
      %v1384 = vld [vmem:[%s2 + $0x10] sm:$0xff]
      %v1385 = vld [vmem:[%s2 + $0x18] sm:$0xff]
      %v1386 = vld [vmem:[%s2 + $0x20] sm:$0xff]
      %v1387 = vld [vmem:[%s2 + $0x28] sm:$0xff]
      %v1388 = vld [vmem:[%s2 + $0x30] sm:$0xff]
      %v1389 = vld [vmem:[%s2 + $0x38] sm:$0xff]
      %vm1390 = vcmp.gt.f32.partialorder %v1374, 0.0
      %vm1391 = vcmp.gt.f32.partialorder %v1375, 0.0
      %vm1392 = vcmp.gt.f32.partialorder %v1376, 0.0
      %vm1393 = vcmp.gt.f32.partialorder %v1377, 0.0
      %vm1394 = vcmp.gt.f32.partialorder %v1378, 0.0
      %vm1395 = vcmp.gt.f32.partialorder %v1379, 0.0
      %vm1396 = vcmp.gt.f32.partialorder %v1380, 0.0
      %vm1397 = vcmp.gt.f32.partialorder %v1381, 0.0
      %1399 = vset.pattern.permute.xlu0 0
      %1400 = vperm.xlu0 %1399, %v1382
      %v1401 = vpop.permute.xlu0 %1400
      %1404 = vset.pattern.permute.xlu0 0
      %1405 = vperm.xlu0 %1404, %v1383
      %v1406 = vpop.permute.xlu0 %1405
      %1409 = vset.pattern.permute.xlu0 0
      %1410 = vperm.xlu0 %1409, %v1384
      %v1411 = vpop.permute.xlu0 %1410
      %1414 = vset.pattern.permute.xlu0 0
      %1415 = vperm.xlu0 %1414, %v1385
      %v1416 = vpop.permute.xlu0 %1415
      %1419 = vset.pattern.permute.xlu0 0
      %1420 = vperm.xlu0 %1419, %v1386
      %v1421 = vpop.permute.xlu0 %1420
      %1424 = vset.pattern.permute.xlu0 0
      %1425 = vperm.xlu0 %1424, %v1387
      %v1426 = vpop.permute.xlu0 %1425
      %1429 = vset.pattern.permute.xlu0 0
      %1430 = vperm.xlu0 %1429, %v1388
      %v1431 = vpop.permute.xlu0 %1430
      %1434 = vset.pattern.permute.xlu0 0
      %1435 = vperm.xlu0 %1434, %v1389
      %v1436 = vpop.permute.xlu0 %1435
      %v1438 = vmul.f32 %v1401, %v1374
      %v1439 = vmul.f32 %v1406, %v1375
      %v1440 = vmul.f32 %v1411, %v1376
      %v1441 = vmul.f32 %v1416, %v1377
      %v1442 = vmul.f32 %v1421, %v1378
      %v1443 = vmul.f32 %v1426, %v1379
      %v1444 = vmul.f32 %v1431, %v1380
      %v1445 = vmul.f32 %v1436, %v1381
      %v1446 = vsel %vm1390, %v1374, %v1438
      %v1447 = vsel %vm1391, %v1375, %v1439
      %v1448 = vsel %vm1392, %v1376, %v1440
      %v1449 = vsel %vm1393, %v1377, %v1441
      %v1450 = vsel %vm1394, %v1378, %v1442
      %v1451 = vsel %vm1395, %v1379, %v1443
      %v1452 = vsel %vm1396, %v1380, %v1444
      %v1453 = vsel %vm1397, %v1381, %v1445
      %v1454 = vpack.c.bf16 %v1447, %v1446
      %v1455 = vpack.c.bf16 %v1449, %v1448
      %v1456 = vpack.c.bf16 %v1451, %v1450
      %v1457 = vpack.c.bf16 %v1453, %v1452
      %v1462 = vunpack.c.l.b16 %v1454
      %v1463 = vunpack.c.h.b16 %v1454
      %v1464 = vunpack.c.l.b16 %v1455
      %v1465 = vunpack.c.h.b16 %v1455
      %v1466 = vunpack.c.l.b16 %v1456
      %v1467 = vunpack.c.h.b16 %v1456
      %v1468 = vunpack.c.l.b16 %v1457
      %v1469 = vunpack.c.h.b16 %v1457
      %v1470 = vpack.c.b16 %v1462, %v1462
      %v1471 = vpack.c.b16 %v1463, %v1463
      %v1472 = vpack.c.b16 %v1464, %v1464
      %v1473 = vpack.c.b16 %v1465, %v1465
      %v1474 = vpack.c.b16 %v1466, %v1466
      %v1475 = vpack.c.b16 %v1467, %v1467
      %v1476 = vpack.c.b16 %v1468, %v1468
      %v1477 = vpack.c.b16 %v1469, %v1469
      %vm1486 = vcmask 125952
      %1487 = vst.msk [vmem:[%s170] sm:$0xf] %vm1486, %v1470
      %1488 = vst.msk [vmem:[%s170 + $0x4] sm:$0xf] %vm1486, %v1471
      %1489 = vst.msk [vmem:[%s170 + $0x8] sm:$0xf] %vm1486, %v1472
      %1490 = vst.msk [vmem:[%s170 + $0xc] sm:$0xf] %vm1486, %v1473
      %1491 = vst.msk [vmem:[%s170 + $0x10] sm:$0xf] %vm1486, %v1474
      %1492 = vst.msk [vmem:[%s170 + $0x14] sm:$0xf] %vm1486, %v1475
      %1493 = vst.msk [vmem:[%s170 + $0x18] sm:$0xf] %vm1486, %v1476
      %1494 = vst.msk [vmem:[%s170 + $0x1c] sm:$0xf] %vm1486, %v1477
      %p1495 = scmp.lt.s32.totalorder %s14, 1
      %s1496 = scalar_select %p1495, %s14, 1
      %s1497 = smul.addr %s1496, 8
      %s1498 = smul.addr %s1497, 4
      %s1499 = scalar_lea.vmem %s3, %s1498
      // Predicated region
      $region33: #{_lambda_.96} parent=31 // pred_check
        %p1500 = pneg %p100
      $region34: #{_lambda_.96} parent=31 // pred_check_branch
        %1502 = sbr.rel (%p1500) target = $region36
      $region35: #{_lambda_.96} parent=31 // pred_region
        _
      $region36: #{_lambda_.96} parent=31 // pred_fallthru
        _
    $region32: #{_lambda_.96} parent=5 // pred_fallthru
      _
    %p1503 = scmp.le.s32.totalorder 2, %s9
    // Predicated region
    $region37: #{_lambda_.96} parent=5 // pred_check
      %p1504 = pneg %p1503
    $region38: #{_lambda_.96} parent=5 // pred_check_branch
      %1506 = sbr.rel (%p1504) target = $region40
    $region39: #{_lambda_.96} parent=5 // pred_region
      %s1507 = ssub.s32 %s9, 2
      // Predicated region
      $region41: #{_lambda_.96} parent=39 // pred_check
        %p1508 = pneg %p106
      $region42: #{_lambda_.96} parent=39 // pred_check_branch
        %1510 = sbr.rel (%p1508) target = $region44
      $region43: #{_lambda_.96} parent=39 // pred_region
        %p1511 = scmp.lt.s32.totalorder %s15, 1
        %s1512 = scalar_select %p1511, %s15, 1
        %s1513 = smul.addr %s1512, 8
        %s1514 = smul.addr %s1513, 4
        %s1515 = scalar_lea.vmem %s3, %s1514
      $region44: #{_lambda_.96} parent=39 // pred_fallthru
        _
    $region40: #{_lambda_.96} parent=5 // pred_fallthru
      _
  $region6: #{_lambda_.96} parent=0 // loop_footer
    %s13 = sadd.s32 1, %s9
  $region7: #{_lambda_.96} parent=0 // loop_footer_branch
    %8 = sbr.rel target = $region3
  $region8: #{_lambda_.96} parent=0 // loop_exit
    _

// kernel: _lambda_.98
$region0: #{_lambda_.98}
  #allocation0 [shape = 'u32[]', space=smem, size = 0x4, offset = 0x4, fixed_abs, tag = 'smem constant byte address 0x4 - core index']
  #allocation1 [shape = 'u32[144,128]{1,0:T(1,128)}', space=vmem, size = 0x12000, scoped, tag = 'internal scratch']
  %s0 = inlined_call_operand.vmem [shape: bf16[64,576], index: 0, kind: input, shape index: {}]
  %s1 = inlined_call_operand.vmem [shape: bf16[2,576,16], index: 1, kind: input, shape index: {}]
  %s2 = inlined_call_operand.vmem [shape: bf16[2,64,16], index: 2, kind: input, shape index: {}]
  %s3 = inlined_call_operand.vmem [shape: f32[64,1], index: 3, kind: input, shape index: {}]
  %s4 = inlined_call_operand.vmem [shape: bf16[2,64,16], index: 4, kind: output, shape index: {}]
  %s5 = sld [smem:[#allocation0]]
  $region49: #{_lambda_.98} parent=0
    _
  %s7 = ssub.s32 1, %s5
  %s8 = scalar_select 0, %s7, %s5
  loop: start=0, step=1, limit=4
  $region2: #{_lambda_.98} parent=0 // loop_pre_header
    _
  $region3: #{_lambda_.98} parent=0 // loop_header
    %s10 = sphi 0, %s14
    %p11 = scmp.ge.s32.totalorder %s10, 4
    %s18 = sphi 0, %s18
    %s20 = sphi 0, %s18
    %s21 = sphi 0, %s20
    %s35 = sphi 0, %s21
    %s41 = sphi 0, %s43
    %s44 = sphi 0, %s41
    %s45 = sphi 0, %s44
    %s61 = sphi 0, %s45
    %s67 = sphi 0, %s69
    %s70 = sphi 0, %s67
    %s71 = sphi 0, %s70
    %s87 = sphi 0, %s71
    %s91 = sphi 0, %s91
    %s93 = sphi 0, %s91
    %s94 = sphi 0, %s93
    %s108 = sphi 0, %s94
    %s114 = sphi 0, %s116
    %s117 = sphi 0, %s114
    %s118 = sphi 0, %s117
    %s134 = sphi 0, %s118
  $region4: #{_lambda_.98} parent=0 // loop_header_branch
    %13 = sbr.rel (%p11) target = $region8
  $region5: #{_lambda_.98} parent=0 // loop_body
    %s15 = ssub.s32 %s10, 1
    %s16 = ssub.s32 %s10, 2
    %s17 = sadd.s32 %s10, 1
    %s19 = sadd.s32 %s18, 1
    %p22 = scmp.eq.s32.totalorder %s10, 1
    %p23 = scmp.ne.s32.totalorder %s18, %s20
    %p24 = scmp.eq.s32.totalorder %s10, 0
    %p25 = por %p23, %p24
    %p26 = scmp.ne.s32.totalorder %s18, %s20
    %p27 = scmp.eq.s32.totalorder %s15, 1
    %p28 = por %p26, %p27
    %p29 = scmp.ne.s32.totalorder %s20, %s21
    %p30 = scmp.eq.s32.totalorder %s15, 0
    %p31 = por %p29, %p30
    %p32 = scmp.ne.s32.totalorder %s20, %s21
    %p33 = scmp.eq.s32.totalorder %s16, 1
    %p34 = por %p32, %p33
    %p36 = scmp.ne.s32.totalorder %s21, %s35
    %p37 = scmp.eq.s32.totalorder %s16, 0
    %p38 = por %p36, %p37
    %s39 = ssub.s32 %s10, %s17
    %p40 = scmp.eq.s32.totalorder %s39, 0
    %s42 = sadd.s32 %s41, 1
    %s43 = scalar_select %p40, %s41, %s42
    %p46 = pneg %p40
    %p47 = scmp.eq.s32.totalorder %s10, 1
    %p48 = por %p46, %p47
    %p49 = scmp.ne.s32.totalorder %s41, %s44
    %p50 = scmp.eq.s32.totalorder %s10, 0
    %p51 = por %p49, %p50
    %p52 = scmp.ne.s32.totalorder %s41, %s44
    %p53 = scmp.eq.s32.totalorder %s15, 1
    %p54 = por %p52, %p53
    %p55 = scmp.ne.s32.totalorder %s44, %s45
    %p56 = scmp.eq.s32.totalorder %s15, 0
    %p57 = por %p55, %p56
    %p58 = scmp.ne.s32.totalorder %s44, %s45
    %p59 = scmp.eq.s32.totalorder %s16, 1
    %p60 = por %p58, %p59
    %p62 = scmp.ne.s32.totalorder %s45, %s61
    %p63 = scmp.eq.s32.totalorder %s16, 0
    %p64 = por %p62, %p63
    %s65 = ssub.s32 %s10, %s17
    %p66 = scmp.eq.s32.totalorder %s65, 0
    %s68 = sadd.s32 %s67, 1
    %s69 = scalar_select %p66, %s67, %s68
    %p72 = pneg %p66
    %p73 = scmp.eq.s32.totalorder %s10, 1
    %p74 = por %p72, %p73
    %p75 = scmp.ne.s32.totalorder %s67, %s70
    %p76 = scmp.eq.s32.totalorder %s10, 0
    %p77 = por %p75, %p76
    %p78 = scmp.ne.s32.totalorder %s67, %s70
    %p79 = scmp.eq.s32.totalorder %s15, 1
    %p80 = por %p78, %p79
    %p81 = scmp.ne.s32.totalorder %s70, %s71
    %p82 = scmp.eq.s32.totalorder %s15, 0
    %p83 = por %p81, %p82
    %p84 = scmp.ne.s32.totalorder %s70, %s71
    %p85 = scmp.eq.s32.totalorder %s16, 1
    %p86 = por %p84, %p85
    %p88 = scmp.ne.s32.totalorder %s71, %s87
    %p89 = scmp.eq.s32.totalorder %s16, 0
    %p90 = por %p88, %p89
    %s92 = sadd.s32 %s91, 1
    %p95 = scmp.eq.s32.totalorder %s10, 1
    %p96 = scmp.ne.s32.totalorder %s91, %s93
    %p97 = scmp.eq.s32.totalorder %s10, 0
    %p98 = por %p96, %p97
    %p99 = scmp.ne.s32.totalorder %s91, %s93
    %p100 = scmp.eq.s32.totalorder %s15, 1
    %p101 = por %p99, %p100
    %p102 = scmp.ne.s32.totalorder %s93, %s94
    %p103 = scmp.eq.s32.totalorder %s15, 0
    %p104 = por %p102, %p103
    %p105 = scmp.ne.s32.totalorder %s93, %s94
    %p106 = scmp.eq.s32.totalorder %s16, 1
    %p107 = por %p105, %p106
    %p109 = scmp.ne.s32.totalorder %s94, %s108
    %p110 = scmp.eq.s32.totalorder %s16, 0
    %p111 = por %p109, %p110
    %s112 = ssub.s32 %s10, %s17
    %p113 = scmp.eq.s32.totalorder %s112, 0
    %s115 = sadd.s32 %s114, 1
    %s116 = scalar_select %p113, %s114, %s115
    %p119 = pneg %p113
    %p120 = scmp.eq.s32.totalorder %s10, 1
    %p121 = por %p119, %p120
    %p122 = scmp.ne.s32.totalorder %s114, %s117
    %p123 = scmp.eq.s32.totalorder %s10, 0
    %p124 = por %p122, %p123
    %p125 = scmp.ne.s32.totalorder %s114, %s117
    %p126 = scmp.eq.s32.totalorder %s15, 1
    %p127 = por %p125, %p126
    %p128 = scmp.ne.s32.totalorder %s117, %s118
    %p129 = scmp.eq.s32.totalorder %s15, 0
    %p130 = por %p128, %p129
    %p131 = scmp.ne.s32.totalorder %s117, %s118
    %p132 = scmp.eq.s32.totalorder %s16, 1
    %p133 = por %p131, %p132
    %p135 = scmp.ne.s32.totalorder %s118, %s134
    %p136 = scmp.eq.s32.totalorder %s16, 0
    %p137 = por %p135, %p136
    %p138 = scmp.le.s32.totalorder 1, %s10
    %p139 = scmp.lt.s32.totalorder %s10, 3
    %p140 = pnand %p138, %p139
    %p141 = pneg %p140
    // Predicated region
    $region9: #{_lambda_.98} parent=5 // pred_check
      _
    $region10: #{_lambda_.98} parent=5 // pred_check_branch
      %143 = sbr.rel (%p140) target = $region12
    $region11: #{_lambda_.98} parent=5 // pred_region
      %s144 = ssub.s32 %s10, 1
      // Predicated region
      $region13: #{_lambda_.98} parent=11 // pred_check
        %p145 = pneg %p31
      $region14: #{_lambda_.98} parent=11 // pred_check_branch
        %147 = sbr.rel (%p145) target = $region16
      $region15: #{_lambda_.98} parent=11 // pred_region
        _
      $region16: #{_lambda_.98} parent=11 // pred_fallthru
        _
      // Predicated region
      $region17: #{_lambda_.98} parent=11 // pred_check
        %p148 = pneg %p104
      $region18: #{_lambda_.98} parent=11 // pred_check_branch
        %150 = sbr.rel (%p148) target = $region20
      $region19: #{_lambda_.98} parent=11 // pred_region
        _
      $region20: #{_lambda_.98} parent=11 // pred_fallthru
        _
    $region12: #{_lambda_.98} parent=5 // pred_fallthru
      _
    %p151 = scmp.lt.s32.totalorder %s10, 2
    // Predicated region
    $region21: #{_lambda_.98} parent=5 // pred_check
      %p152 = pneg %p151
    $region22: #{_lambda_.98} parent=5 // pred_check_branch
      %154 = sbr.rel (%p152) target = $region24
    $region23: #{_lambda_.98} parent=5 // pred_region
      // Predicated region
      $region25: #{_lambda_.98} parent=23 // pred_check
        %p155 = pneg %p51
      $region26: #{_lambda_.98} parent=23 // pred_check_branch
        %157 = sbr.rel (%p155) target = $region28
      $region27: #{_lambda_.98} parent=23 // pred_region
        %p158 = scmp.lt.s32.totalorder %s10, 1
        %s159 = scalar_select %p158, %s10, 1
        %s160 = smul.addr %s159, 72
        %s161 = smul.addr %s160, 4
        %s162 = scalar_lea.vmem %s1, %s161
      $region28: #{_lambda_.98} parent=23 // pred_fallthru
        _
      // Predicated region
      $region29: #{_lambda_.98} parent=23 // pred_check
        %p163 = pneg %p77
      $region30: #{_lambda_.98} parent=23 // pred_check_branch
        %165 = sbr.rel (%p163) target = $region32
      $region31: #{_lambda_.98} parent=23 // pred_region
        %p166 = scmp.lt.s32.totalorder %s10, 1
        %s167 = scalar_select %p166, %s10, 1
        %s168 = smul.addr %s167, 8
        %s169 = smul.addr %s168, 4
        %s170 = scalar_lea.vmem %s2, %s169
      $region32: #{_lambda_.98} parent=23 // pred_fallthru
        _
    $region24: #{_lambda_.98} parent=5 // pred_fallthru
      _
    %p171 = scmp.le.s32.totalorder 1, %s10
    %p172 = scmp.lt.s32.totalorder %s10, 3
    %p173 = pnand %p171, %p172
    %p174 = pneg %p173
    // Predicated region
    $region33: #{_lambda_.98} parent=5 // pred_check
      _
    $region34: #{_lambda_.98} parent=5 // pred_check_branch
      %176 = sbr.rel (%p173) target = $region36
    $region35: #{_lambda_.98} parent=5 // pred_region
      %s177 = ssub.s32 %s10, 1
      %p178 = pneg %p31
      %p179 = pneg %p28
      %p180 = scmp.lt.s32.totalorder %s15, 1
      %s181 = scalar_select %p180, %s15, 1
      %s182 = smul.addr %s181, 72
      %s183 = smul.addr %s182, 4
      %s184 = scalar_lea.vmem %s1, %s183
      %p185 = pneg %p57
      %p186 = pneg %p54
      %p187 = scmp.lt.s32.totalorder %s15, 1
      %s188 = scalar_select %p187, %s15, 1
      %s189 = smul.addr %s188, 8
      %s190 = smul.addr %s189, 4
      %s191 = scalar_lea.vmem %s2, %s190
      %p192 = pneg %p83
      %p193 = pneg %p80
      %p194 = pneg %p104
      %p195 = pneg %p101
      %p196 = pneg %p130
      %p197 = pneg %p127
      %p198 = scmp.lt.s32.totalorder %s15, 1
      %s199 = scalar_select %p198, %s15, 1
      %s200 = smul.addr %s199, 8
      %s201 = smul.addr %s200, 4
      %s202 = scalar_lea.vmem %s4, %s201
      %p203 = scmp.lt.s32.totalorder %s15, 1
      %s204 = scalar_select %p203, %s15, 1
      %s205 = smul.addr %s204, 72
      %s206 = smul.addr %s205, 4
      %s207 = scalar_lea.vmem %s1, %s206
      %p208 = scmp.lt.s32.totalorder %s15, 1
      %s209 = scalar_select %p208, %s15, 1
      %s210 = smul.addr %s209, 8
      %s211 = smul.addr %s210, 4
      %s212 = scalar_lea.vmem %s2, %s211
      %p213 = scmp.lt.s32.totalorder %s15, 1
      %s214 = scalar_select %p213, %s15, 1
      %s215 = smul.addr %s214, 8
      %s216 = smul.addr %s215, 4
      %s217 = scalar_lea.vmem %s4, %s216
      %v219 = vld [vmem:[%s0] sm:$0xff]
      %v220 = vld [vmem:[%s0 + $0x8] sm:$0xff]
      %v221 = vld [vmem:[%s0 + $0x10] sm:$0xf]
      %v222 = vld [vmem:[%s0 + $0x14] sm:$0xff]
      %v223 = vld [vmem:[%s0 + $0x1c] sm:$0xff]
      %v224 = vld [vmem:[%s0 + $0x24] sm:$0xf]
      %v225 = vld [vmem:[%s0 + $0x28] sm:$0xff]
      %v226 = vld [vmem:[%s0 + $0x30] sm:$0xff]
      %v227 = vld [vmem:[%s0 + $0x38] sm:$0xf]
      %v228 = vld [vmem:[%s0 + $0x3c] sm:$0xff]
      %v229 = vld [vmem:[%s0 + $0x44] sm:$0xff]
      %v230 = vld [vmem:[%s0 + $0x4c] sm:$0xf]
      %v231 = vld [vmem:[%s0 + $0x50] sm:$0xff]
      %v232 = vld [vmem:[%s0 + $0x58] sm:$0xff]
      %v233 = vld [vmem:[%s0 + $0x60] sm:$0xf]
      %v234 = vld [vmem:[%s0 + $0x64] sm:$0xff]
      %v235 = vld [vmem:[%s0 + $0x6c] sm:$0xff]
      %v236 = vld [vmem:[%s0 + $0x74] sm:$0xf]
      %v237 = vld [vmem:[%s0 + $0x78] sm:$0xff]
      %v238 = vld [vmem:[%s0 + $0x80] sm:$0xff]
      %v239 = vld [vmem:[%s0 + $0x88] sm:$0xf]
      %v240 = vld [vmem:[%s0 + $0x8c] sm:$0xff]
      %v241 = vld [vmem:[%s0 + $0x94] sm:$0xff]
      %v242 = vld [vmem:[%s0 + $0x9c] sm:$0xf]
      %v243 = vld [vmem:[%s207] sm:$0xf]
      %v244 = vld [vmem:[%s207 + $0x4] sm:$0xf]
      %v245 = vld [vmem:[%s207 + $0x8] sm:$0xf]
      %v246 = vld [vmem:[%s207 + $0xc] sm:$0xf]
      %v247 = vld [vmem:[%s207 + $0x10] sm:$0xf]
      %v248 = vld [vmem:[%s207 + $0x14] sm:$0xf]
      %v249 = vld [vmem:[%s207 + $0x18] sm:$0xf]
      %v250 = vld [vmem:[%s207 + $0x1c] sm:$0xf]
      %v251 = vld [vmem:[%s207 + $0x20] sm:$0xf]
      %v252 = vld [vmem:[%s207 + $0x24] sm:$0xf]
      %v253 = vld [vmem:[%s207 + $0x28] sm:$0xf]
      %v254 = vld [vmem:[%s207 + $0x2c] sm:$0xf]
      %v255 = vld [vmem:[%s207 + $0x30] sm:$0xf]
      %v256 = vld [vmem:[%s207 + $0x34] sm:$0xf]
      %v257 = vld [vmem:[%s207 + $0x38] sm:$0xf]
      %v258 = vld [vmem:[%s207 + $0x3c] sm:$0xf]
      %v259 = vld [vmem:[%s207 + $0x40] sm:$0xf]
      %v260 = vld [vmem:[%s207 + $0x44] sm:$0xf]
      %v261 = vld [vmem:[%s207 + $0x48] sm:$0xf]
      %v262 = vld [vmem:[%s207 + $0x4c] sm:$0xf]
      %v263 = vld [vmem:[%s207 + $0x50] sm:$0xf]
      %v264 = vld [vmem:[%s207 + $0x54] sm:$0xf]
      %v265 = vld [vmem:[%s207 + $0x58] sm:$0xf]
      %v266 = vld [vmem:[%s207 + $0x5c] sm:$0xf]
      %v267 = vld [vmem:[%s207 + $0x60] sm:$0xf]
      %v268 = vld [vmem:[%s207 + $0x64] sm:$0xf]
      %v269 = vld [vmem:[%s207 + $0x68] sm:$0xf]
      %v270 = vld [vmem:[%s207 + $0x6c] sm:$0xf]
      %v271 = vld [vmem:[%s207 + $0x70] sm:$0xf]
      %v272 = vld [vmem:[%s207 + $0x74] sm:$0xf]
      %v273 = vld [vmem:[%s207 + $0x78] sm:$0xf]
      %v274 = vld [vmem:[%s207 + $0x7c] sm:$0xf]
      %v275 = vld [vmem:[%s207 + $0x80] sm:$0xf]
      %v276 = vld [vmem:[%s207 + $0x84] sm:$0xf]
      %v277 = vld [vmem:[%s207 + $0x88] sm:$0xf]
      %v278 = vld [vmem:[%s207 + $0x8c] sm:$0xf]
      %v279 = vld [vmem:[%s207 + $0x90] sm:$0xf]
      %v280 = vld [vmem:[%s207 + $0x94] sm:$0xf]
      %v281 = vld [vmem:[%s207 + $0x98] sm:$0xf]
      %v282 = vld [vmem:[%s207 + $0x9c] sm:$0xf]
      %v283 = vld [vmem:[%s207 + $0xa0] sm:$0xf]
      %v284 = vld [vmem:[%s207 + $0xa4] sm:$0xf]
      %v285 = vld [vmem:[%s207 + $0xa8] sm:$0xf]
      %v286 = vld [vmem:[%s207 + $0xac] sm:$0xf]
      %v287 = vld [vmem:[%s207 + $0xb0] sm:$0xf]
      %v288 = vld [vmem:[%s207 + $0xb4] sm:$0xf]
      %v289 = vld [vmem:[%s207 + $0xb8] sm:$0xf]
      %v290 = vld [vmem:[%s207 + $0xbc] sm:$0xf]
      %v291 = vld [vmem:[%s207 + $0xc0] sm:$0xf]
      %v292 = vld [vmem:[%s207 + $0xc4] sm:$0xf]
      %v293 = vld [vmem:[%s207 + $0xc8] sm:$0xf]
      %v294 = vld [vmem:[%s207 + $0xcc] sm:$0xf]
      %v295 = vld [vmem:[%s207 + $0xd0] sm:$0xf]
      %v296 = vld [vmem:[%s207 + $0xd4] sm:$0xf]
      %v297 = vld [vmem:[%s207 + $0xd8] sm:$0xf]
      %v298 = vld [vmem:[%s207 + $0xdc] sm:$0xf]
      %v299 = vld [vmem:[%s207 + $0xe0] sm:$0xf]
      %v300 = vld [vmem:[%s207 + $0xe4] sm:$0xf]
      %v301 = vld [vmem:[%s207 + $0xe8] sm:$0xf]
      %v302 = vld [vmem:[%s207 + $0xec] sm:$0xf]
      %v303 = vld [vmem:[%s207 + $0xf0] sm:$0xf]
      %v304 = vld [vmem:[%s207 + $0xf4] sm:$0xf]
      %v305 = vld [vmem:[%s207 + $0xf8] sm:$0xf]
      %v306 = vld [vmem:[%s207 + $0xfc] sm:$0xf]
      %v307 = vld [vmem:[%s207 + $0x100] sm:$0xf]
      %v308 = vld [vmem:[%s207 + $0x104] sm:$0xf]
      %v309 = vld [vmem:[%s207 + $0x108] sm:$0xf]
      %v310 = vld [vmem:[%s207 + $0x10c] sm:$0xf]
      %v311 = vld [vmem:[%s207 + $0x110] sm:$0xf]
      %v312 = vld [vmem:[%s207 + $0x114] sm:$0xf]
      %v313 = vld [vmem:[%s207 + $0x118] sm:$0xf]
      %v314 = vld [vmem:[%s207 + $0x11c] sm:$0xf]
      %v339 = vunpack.c.l.b16 %v219
      %v340 = vunpack.c.h.b16 %v219
      %v341 = vunpack.c.l.b16 %v220
      %v342 = vunpack.c.h.b16 %v220
      %v343 = vunpack.c.l.b16 %v221
      %v344 = vunpack.c.l.b16 %v222
      %v345 = vunpack.c.h.b16 %v222
      %v346 = vunpack.c.l.b16 %v223
      %v347 = vunpack.c.h.b16 %v223
      %v348 = vunpack.c.l.b16 %v224
      %v349 = vunpack.c.l.b16 %v225
      %v350 = vunpack.c.h.b16 %v225
      %v351 = vunpack.c.l.b16 %v226
      %v352 = vunpack.c.h.b16 %v226
      %v353 = vunpack.c.l.b16 %v227
      %v354 = vunpack.c.l.b16 %v228
      %v355 = vunpack.c.h.b16 %v228
      %v356 = vunpack.c.l.b16 %v229
      %v357 = vunpack.c.h.b16 %v229
      %v358 = vunpack.c.l.b16 %v230
      %v359 = vunpack.c.l.b16 %v231
      %v360 = vunpack.c.h.b16 %v231
      %v361 = vunpack.c.l.b16 %v232
      %v362 = vunpack.c.h.b16 %v232
      %v363 = vunpack.c.l.b16 %v233
      %v364 = vunpack.c.l.b16 %v234
      %v365 = vunpack.c.h.b16 %v234
      %v366 = vunpack.c.l.b16 %v235
      %v367 = vunpack.c.h.b16 %v235
      %v368 = vunpack.c.l.b16 %v236
      %v369 = vunpack.c.l.b16 %v237
      %v370 = vunpack.c.h.b16 %v237
      %v371 = vunpack.c.l.b16 %v238
      %v372 = vunpack.c.h.b16 %v238
      %v373 = vunpack.c.l.b16 %v239
      %v374 = vunpack.c.l.b16 %v240
      %v375 = vunpack.c.h.b16 %v240
      %v376 = vunpack.c.l.b16 %v241
      %v377 = vunpack.c.h.b16 %v241
      %v378 = vunpack.c.l.b16 %v242
      %v379 = vpack.c.b16 %v344, %v339
      %v380 = vpack.c.b16 %v345, %v340
      %v381 = vpack.c.b16 %v346, %v341
      %v382 = vpack.c.b16 %v347, %v342
      %v383 = vpack.c.b16 %v348, %v343
      %v384 = vpack.c.b16 %v354, %v349
      %v385 = vpack.c.b16 %v355, %v350
      %v386 = vpack.c.b16 %v356, %v351
      %v387 = vpack.c.b16 %v357, %v352
      %v388 = vpack.c.b16 %v358, %v353
      %v389 = vpack.c.b16 %v364, %v359
      %v390 = vpack.c.b16 %v365, %v360
      %v391 = vpack.c.b16 %v366, %v361
      %v392 = vpack.c.b16 %v367, %v362
      %v393 = vpack.c.b16 %v368, %v363
      %v394 = vpack.c.b16 %v374, %v369
      %v395 = vpack.c.b16 %v375, %v370
      %v396 = vpack.c.b16 %v376, %v371
      %v397 = vpack.c.b16 %v377, %v372
      %v398 = vpack.c.b16 %v378, %v373
      %v487 = vunpack.c.l.b16 %v243
      %v488 = vunpack.c.l.b16 %v244
      %v489 = vunpack.c.l.b16 %v245
      %v490 = vunpack.c.l.b16 %v246
      %v491 = vunpack.c.l.b16 %v247
      %v492 = vunpack.c.l.b16 %v248
      %v493 = vunpack.c.l.b16 %v249
      %v494 = vunpack.c.l.b16 %v250
      %v495 = vunpack.c.l.b16 %v251
      %v496 = vunpack.c.l.b16 %v252
      %v497 = vunpack.c.l.b16 %v253
      %v498 = vunpack.c.l.b16 %v254
      %v499 = vunpack.c.l.b16 %v255
      %v500 = vunpack.c.l.b16 %v256
      %v501 = vunpack.c.l.b16 %v257
      %v502 = vunpack.c.l.b16 %v258
      %v503 = vunpack.c.l.b16 %v259
      %v504 = vunpack.c.l.b16 %v260
      %v505 = vunpack.c.l.b16 %v261
      %v506 = vunpack.c.l.b16 %v262
      %v507 = vunpack.c.l.b16 %v263
      %v508 = vunpack.c.l.b16 %v264
      %v509 = vunpack.c.l.b16 %v265
      %v510 = vunpack.c.l.b16 %v266
      %v511 = vunpack.c.l.b16 %v267
      %v512 = vunpack.c.l.b16 %v268
      %v513 = vunpack.c.l.b16 %v269
      %v514 = vunpack.c.l.b16 %v270
      %v515 = vunpack.c.l.b16 %v271
      %v516 = vunpack.c.l.b16 %v272
      %v517 = vunpack.c.l.b16 %v273
      %v518 = vunpack.c.l.b16 %v274
      %v519 = vunpack.c.l.b16 %v275
      %v520 = vunpack.c.l.b16 %v276
      %v521 = vunpack.c.l.b16 %v277
      %v522 = vunpack.c.l.b16 %v278
      %v523 = vunpack.c.l.b16 %v279
      %v524 = vunpack.c.l.b16 %v280
      %v525 = vunpack.c.l.b16 %v281
      %v526 = vunpack.c.l.b16 %v282
      %v527 = vunpack.c.l.b16 %v283
      %v528 = vunpack.c.l.b16 %v284
      %v529 = vunpack.c.l.b16 %v285
      %v530 = vunpack.c.l.b16 %v286
      %v531 = vunpack.c.l.b16 %v287
      %v532 = vunpack.c.l.b16 %v288
      %v533 = vunpack.c.l.b16 %v289
      %v534 = vunpack.c.l.b16 %v290
      %v535 = vunpack.c.l.b16 %v291
      %v536 = vunpack.c.l.b16 %v292
      %v537 = vunpack.c.l.b16 %v293
      %v538 = vunpack.c.l.b16 %v294
      %v539 = vunpack.c.l.b16 %v295
      %v540 = vunpack.c.l.b16 %v296
      %v541 = vunpack.c.l.b16 %v297
      %v542 = vunpack.c.l.b16 %v298
      %v543 = vunpack.c.l.b16 %v299
      %v544 = vunpack.c.l.b16 %v300
      %v545 = vunpack.c.l.b16 %v301
      %v546 = vunpack.c.l.b16 %v302
      %v547 = vunpack.c.l.b16 %v303
      %v548 = vunpack.c.l.b16 %v304
      %v549 = vunpack.c.l.b16 %v305
      %v550 = vunpack.c.l.b16 %v306
      %v551 = vunpack.c.l.b16 %v307
      %v552 = vunpack.c.l.b16 %v308
      %v553 = vunpack.c.l.b16 %v309
      %v554 = vunpack.c.l.b16 %v310
      %v555 = vunpack.c.l.b16 %v311
      %v556 = vunpack.c.l.b16 %v312
      %v557 = vunpack.c.l.b16 %v313
      %v558 = vunpack.c.l.b16 %v314
      %v559 = vpack.c.b16 %v488, %v487
      %v560 = vpack.c.b16 %v490, %v489
      %v561 = vpack.c.b16 %v492, %v491
      %v562 = vpack.c.b16 %v494, %v493
      %v563 = vpack.c.b16 %v496, %v495
      %v564 = vpack.c.b16 %v498, %v497
      %v565 = vpack.c.b16 %v500, %v499
      %v566 = vpack.c.b16 %v502, %v501
      %v567 = vpack.c.b16 %v504, %v503
      %v568 = vpack.c.b16 %v506, %v505
      %v569 = vpack.c.b16 %v508, %v507
      %v570 = vpack.c.b16 %v510, %v509
      %v571 = vpack.c.b16 %v512, %v511
      %v572 = vpack.c.b16 %v514, %v513
      %v573 = vpack.c.b16 %v516, %v515
      %v574 = vpack.c.b16 %v518, %v517
      %v575 = vpack.c.b16 %v520, %v519
      %v576 = vpack.c.b16 %v522, %v521
      %v577 = vpack.c.b16 %v524, %v523
      %v578 = vpack.c.b16 %v526, %v525
      %v579 = vpack.c.b16 %v528, %v527
      %v580 = vpack.c.b16 %v530, %v529
      %v581 = vpack.c.b16 %v532, %v531
      %v582 = vpack.c.b16 %v534, %v533
      %v583 = vpack.c.b16 %v536, %v535
      %v584 = vpack.c.b16 %v538, %v537
      %v585 = vpack.c.b16 %v540, %v539
      %v586 = vpack.c.b16 %v542, %v541
      %v587 = vpack.c.b16 %v544, %v543
      %v588 = vpack.c.b16 %v546, %v545
      %v589 = vpack.c.b16 %v548, %v547
      %v590 = vpack.c.b16 %v550, %v549
      %v591 = vpack.c.b16 %v552, %v551
      %v592 = vpack.c.b16 %v554, %v553
      %v593 = vpack.c.b16 %v556, %v555
      %v594 = vpack.c.b16 %v558, %v557
      %vm631 = vcmask 523264
      %v633 = vsel %vm631, %v383, 0
      %v636 = vsel %vm631, %v388, 0
      %v639 = vsel %vm631, %v393, 0
      %v642 = vsel %vm631, %v398, 0
      %644 = vmatprep.subr.bf16.mxu0 0
      %645 = vmatpush1.bf16.msra.mxu0 %v559
      %646 = vmatprep.subr.bf16.mxu0 0
      %647 = vmatpush1.bf16.msra.mxu0 %v560
      %648 = vmatprep.subr.bf16.mxu0 0
      %649 = vmatpush1.bf16.msra.mxu0 %v561
      %650 = vmatprep.subr.bf16.mxu0 0
      %651 = vmatpush1.bf16.msra.mxu0 %v562
      %652 = vmatprep.subr.bf16.mxu0 0
      %653 = vmatpush1.bf16.msra.mxu0 %v563
      %654 = vmatprep.subr.bf16.mxu0 0
      %655 = vmatpush1.bf16.msra.mxu0 %v564
      %656 = vmatprep.subr.bf16.mxu0 0
      %657 = vmatpush1.bf16.msra.mxu0 %v565
      %658 = vmatprep.subr.bf16.mxu0 0
      %659 = vmatpush1.bf16.msra.mxu0 %v566
      %660 = vmatprep.subr.bf16.mxu0 0
      %661 = vmatpush1.bf16.msra.mxu0 %v567
      %662 = vmatprep.subr.bf16.mxu0 0
      %663 = vmatpush1.bf16.msra.mxu0 %v568
      %664 = vmatprep.subr.bf16.mxu0 0
      %665 = vmatpush1.bf16.msra.mxu0 %v569
      %666 = vmatprep.subr.bf16.mxu0 0
      %667 = vmatpush1.bf16.msra.mxu0 %v570
      %668 = vmatprep.subr.bf16.mxu0 0
      %669 = vmatpush1.bf16.msra.mxu0 %v571
      %670 = vmatprep.subr.bf16.mxu0 0
      %671 = vmatpush1.bf16.msra.mxu0 %v572
      %672 = vmatprep.subr.bf16.mxu0 0
      %673 = vmatpush1.bf16.msra.mxu0 %v573
      %674 = vmatprep.subr.bf16.mxu0 0
      %675 = vmatpush1.bf16.msra.mxu0 %v574
      %676 = vmatprep.mubr.bf16.mxu0 %v380
      %677 = vmatmul.mubr.bf16.gmra.mrb[0].mxu0 %v379
      %v678 = vpop.f32.mrb[0].mxu0
      %v679 = vadd.f32 0.0, %v678
      %v680 = vpop.f32.mrb[0].mxu0
      %v681 = vpop.f32.mrb[0].mxu0
      %v682 = vadd.f32 0.0, %v681
      %v683 = vpop.f32.mrb[0].mxu0
      %684 = vmatprep.mubr.bf16.mxu0 %v385
      %685 = vmatmul.mubr.bf16.gmra.mrb[0].mxu0 %v384
      %v686 = vpop.f32.mrb[0].mxu0
      %v687 = vadd.f32 0.0, %v686
      %v688 = vpop.f32.mrb[0].mxu0
      %v689 = vpop.f32.mrb[0].mxu0
      %v690 = vadd.f32 0.0, %v689
      %v691 = vpop.f32.mrb[0].mxu0
      %692 = vmatprep.mubr.bf16.mxu0 %v390
      %693 = vmatmul.mubr.bf16.gmra.mrb[0].mxu0 %v389
      %v694 = vpop.f32.mrb[0].mxu0
      %v695 = vadd.f32 0.0, %v694
      %v696 = vpop.f32.mrb[0].mxu0
      %v697 = vpop.f32.mrb[0].mxu0
      %v698 = vadd.f32 0.0, %v697
      %v699 = vpop.f32.mrb[0].mxu0
      %700 = vmatprep.mubr.bf16.mxu0 %v395
      %701 = vmatmul.mubr.bf16.gmra.mrb[0].mxu0 %v394
      %v702 = vpop.f32.mrb[0].mxu0
      %v703 = vadd.f32 0.0, %v702
      %v704 = vpop.f32.mrb[0].mxu0
      %v705 = vpop.f32.mrb[0].mxu0
      %v706 = vadd.f32 0.0, %v705
      %v707 = vpop.f32.mrb[0].mxu0
      %708 = vdwg.mxu0
      %709 = vmatprep.subr.bf16.mxu0 0
      %710 = vmatpush1.bf16.msra.mxu0 %v575
      %711 = vmatprep.subr.bf16.mxu0 0
      %712 = vmatpush1.bf16.msra.mxu0 %v576
      %713 = vmatprep.subr.bf16.mxu0 0
      %714 = vmatpush1.bf16.msra.mxu0 %v577
      %715 = vmatprep.subr.bf16.mxu0 0
      %716 = vmatpush1.bf16.msra.mxu0 %v578
      %717 = vmatprep.subr.bf16.mxu0 0
      %718 = vmatpush1.bf16.msra.mxu0 %v579
      %719 = vmatprep.subr.bf16.mxu0 0
      %720 = vmatpush1.bf16.msra.mxu0 %v580
      %721 = vmatprep.subr.bf16.mxu0 0
      %722 = vmatpush1.bf16.msra.mxu0 %v581
      %723 = vmatprep.subr.bf16.mxu0 0
      %724 = vmatpush1.bf16.msra.mxu0 %v582
      %725 = vmatprep.subr.bf16.mxu0 0
      %726 = vmatpush1.bf16.msra.mxu0 %v583
      %727 = vmatprep.subr.bf16.mxu0 0
      %728 = vmatpush1.bf16.msra.mxu0 %v584
      %729 = vmatprep.subr.bf16.mxu0 0
      %730 = vmatpush1.bf16.msra.mxu0 %v585
      %731 = vmatprep.subr.bf16.mxu0 0
      %732 = vmatpush1.bf16.msra.mxu0 %v586
      %733 = vmatprep.subr.bf16.mxu0 0
      %734 = vmatpush1.bf16.msra.mxu0 %v587
      %735 = vmatprep.subr.bf16.mxu0 0
      %736 = vmatpush1.bf16.msra.mxu0 %v588
      %737 = vmatprep.subr.bf16.mxu0 0
      %738 = vmatpush1.bf16.msra.mxu0 %v589
      %739 = vmatprep.subr.bf16.mxu0 0
      %740 = vmatpush1.bf16.msra.mxu0 %v590
      %741 = vmatprep.mubr.bf16.mxu0 %v382
      %742 = vmatmul.mubr.bf16.gmra.mrb[0].mxu0 %v381
      %v743 = vpop.f32.mrb[0].mxu0
      %v744 = vadd.f32 %v679, %v743
      %v745 = vpop.f32.mrb[0].mxu0
      %v746 = vpop.f32.mrb[0].mxu0
      %v747 = vadd.f32 %v682, %v746
      %v748 = vpop.f32.mrb[0].mxu0
      %749 = vmatprep.mubr.bf16.mxu0 %v387
      %750 = vmatmul.mubr.bf16.gmra.mrb[0].mxu0 %v386
      %v751 = vpop.f32.mrb[0].mxu0
      %v752 = vadd.f32 %v687, %v751
      %v753 = vpop.f32.mrb[0].mxu0
      %v754 = vpop.f32.mrb[0].mxu0
      %v755 = vadd.f32 %v690, %v754
      %v756 = vpop.f32.mrb[0].mxu0
      %757 = vmatprep.mubr.bf16.mxu0 %v392
      %758 = vmatmul.mubr.bf16.gmra.mrb[0].mxu0 %v391
      %v759 = vpop.f32.mrb[0].mxu0
      %v760 = vadd.f32 %v695, %v759
      %v761 = vpop.f32.mrb[0].mxu0
      %v762 = vpop.f32.mrb[0].mxu0
      %v763 = vadd.f32 %v698, %v762
      %v764 = vpop.f32.mrb[0].mxu0
      %765 = vmatprep.mubr.bf16.mxu0 %v397
      %766 = vmatmul.mubr.bf16.gmra.mrb[0].mxu0 %v396
      %v767 = vpop.f32.mrb[0].mxu0
      %v768 = vadd.f32 %v703, %v767
      %v769 = vpop.f32.mrb[0].mxu0
      %v770 = vpop.f32.mrb[0].mxu0
      %v771 = vadd.f32 %v706, %v770
      %v772 = vpop.f32.mrb[0].mxu0
      %773 = vdwg.mxu0
      %774 = vmatprep.subr.bf16.mxu0 0
      %775 = vmatpush1.bf16.msra.mxu0 %v591
      %776 = vmatprep.subr.bf16.mxu0 0
      %777 = vmatpush1.bf16.msra.mxu0 %v592
      %778 = vmatprep.subr.bf16.mxu0 0
      %779 = vmatpush1.bf16.msra.mxu0 %v593
      %780 = vmatprep.subr.bf16.mxu0 0
      %781 = vmatpush1.bf16.msra.mxu0 %v594
      %782 = vmatprep.subr.bf16.mxu0 0
      %783 = vmatpush1.bf16.msra.mxu0 0
      %784 = vmatprep.subr.bf16.mxu0 0
      %785 = vmatpush1.bf16.msra.mxu0 0
      %786 = vmatprep.subr.bf16.mxu0 0
      %787 = vmatpush1.bf16.msra.mxu0 0
      %788 = vmatprep.subr.bf16.mxu0 0
      %789 = vmatpush1.bf16.msra.mxu0 0
      %790 = vmatprep.subr.bf16.mxu0 0
      %791 = vmatpush1.bf16.msra.mxu0 0
      %792 = vmatprep.subr.bf16.mxu0 0
      %793 = vmatpush1.bf16.msra.mxu0 0
      %794 = vmatprep.subr.bf16.mxu0 0
      %795 = vmatpush1.bf16.msra.mxu0 0
      %796 = vmatprep.subr.bf16.mxu0 0
      %797 = vmatpush1.bf16.msra.mxu0 0
      %798 = vmatprep.subr.bf16.mxu0 0
      %799 = vmatpush1.bf16.msra.mxu0 0
      %800 = vmatprep.subr.bf16.mxu0 0
      %801 = vmatpush1.bf16.msra.mxu0 0
      %802 = vmatprep.subr.bf16.mxu0 0
      %803 = vmatpush1.bf16.msra.mxu0 0
      %804 = vmatprep.subr.bf16.mxu0 0
      %805 = vmatpush1.bf16.msra.mxu0 0
      %806 = vmatprep.mubr.bf16.mxu0 0
      %807 = vmatmul.mubr.bf16.gmra.mrb[0].mxu0 %v633
      %v808 = vpop.f32.mrb[0].mxu0
      %v809 = vadd.f32 %v744, %v808
      %v810 = vpop.f32.mrb[0].mxu0
      %v811 = vpop.f32.mrb[0].mxu0
      %v812 = vadd.f32 %v747, %v811
      %v813 = vpop.f32.mrb[0].mxu0
      %814 = vmatprep.mubr.bf16.mxu0 0
      %815 = vmatmul.mubr.bf16.gmra.mrb[0].mxu0 %v636
      %v816 = vpop.f32.mrb[0].mxu0
      %v817 = vadd.f32 %v752, %v816
      %v818 = vpop.f32.mrb[0].mxu0
      %v819 = vpop.f32.mrb[0].mxu0
      %v820 = vadd.f32 %v755, %v819
      %v821 = vpop.f32.mrb[0].mxu0
      %822 = vmatprep.mubr.bf16.mxu0 0
      %823 = vmatmul.mubr.bf16.gmra.mrb[0].mxu0 %v639
      %v824 = vpop.f32.mrb[0].mxu0
      %v825 = vadd.f32 %v760, %v824
      %v826 = vpop.f32.mrb[0].mxu0
      %v827 = vpop.f32.mrb[0].mxu0
      %v828 = vadd.f32 %v763, %v827
      %v829 = vpop.f32.mrb[0].mxu0
      %830 = vmatprep.mubr.bf16.mxu0 0
      %831 = vmatmul.mubr.bf16.gmra.mrb[0].mxu0 %v642
      %v832 = vpop.f32.mrb[0].mxu0
      %v833 = vadd.f32 %v768, %v832
      %v834 = vpop.f32.mrb[0].mxu0
      %v835 = vpop.f32.mrb[0].mxu0
      %v836 = vadd.f32 %v771, %v835
      %v837 = vpop.f32.mrb[0].mxu0
      %838 = vdwg.mxu0
      %vm839 = vcmask 130048
      %v840 = vsel %vm839, %v809, 0.0
      %v841 = vsel %vm839, %v812, 0.0
      %v842 = vadd.f32 %v840, %v841
      %v843 = vsel %vm839, %v817, 0.0
      %v844 = vadd.f32 %v842, %v843
      %v845 = vsel %vm839, %v820, 0.0
      %v846 = vadd.f32 %v844, %v845
      %v847 = vsel %vm839, %v825, 0.0
      %v848 = vadd.f32 %v846, %v847
      %v849 = vsel %vm839, %v828, 0.0
      %v850 = vadd.f32 %v848, %v849
      %v851 = vsel %vm839, %v833, 0.0
      %v852 = vadd.f32 %v850, %v851
      %v853 = vsel %vm839, %v836, 0.0
      %v854 = vadd.f32 %v852, %v853
      %855 = vadd.xlane.f32.xlu0 %v854
      %v856 = vpop.xlane.xlu0 %855
      %v857 = vrot.slane %v856, 4
      %v858 = vadd.f32 %v856, %v857
      %v859 = vrot.slane %v858, 2
      %v860 = vadd.f32 %v858, %v859
      %v861 = vrot.slane %v860, 1
      %v862 = vadd.f32 %v860, %v861
      %s863 = vtos %v862
      %v864 = vrcp.pop 1024.0
      %s865 = vtos %v864
      %s866 = smul.f32 %s863, %s865
      %v867 = vstv %s866
      %v868 = vsub.f32 %v809, %v867
      %v869 = vsub.f32 %v812, %v867
      %v870 = vsub.f32 %v817, %v867
      %v871 = vsub.f32 %v820, %v867
      %v872 = vsub.f32 %v825, %v867
      %v873 = vsub.f32 %v828, %v867
      %v874 = vsub.f32 %v833, %v867
      %v875 = vsub.f32 %v836, %v867
      %v876 = vmul.f32 %v868, %v868
      %v877 = vmul.f32 %v869, %v869
      %v878 = vmul.f32 %v870, %v870
      %v879 = vmul.f32 %v871, %v871
      %v880 = vmul.f32 %v872, %v872
      %v881 = vmul.f32 %v873, %v873
      %v882 = vmul.f32 %v874, %v874
      %v883 = vmul.f32 %v875, %v875
      %v884 = vsel %vm839, %v876, 0.0
      %v885 = vsel %vm839, %v877, 0.0
      %v886 = vadd.f32 %v884, %v885
      %v887 = vsel %vm839, %v878, 0.0
      %v888 = vadd.f32 %v886, %v887
      %v889 = vsel %vm839, %v879, 0.0
      %v890 = vadd.f32 %v888, %v889
      %v891 = vsel %vm839, %v880, 0.0
      %v892 = vadd.f32 %v890, %v891
      %v893 = vsel %vm839, %v881, 0.0
      %v894 = vadd.f32 %v892, %v893
      %v895 = vsel %vm839, %v882, 0.0
      %v896 = vadd.f32 %v894, %v895
      %v897 = vsel %vm839, %v883, 0.0
      %v898 = vadd.f32 %v896, %v897
      %899 = vadd.xlane.f32.xlu0 %v898
      %v900 = vpop.xlane.xlu0 %899
      %v901 = vrot.slane %v900, 4
      %v902 = vadd.f32 %v900, %v901
      %v903 = vrot.slane %v902, 2
      %v904 = vadd.f32 %v902, %v903
      %v905 = vrot.slane %v904, 1
      %v906 = vadd.f32 %v904, %v905
      %s907 = vtos %v906
      %v908 = vrcp.pop 1024.0
      %s909 = vtos %v908
      %s910 = smul.f32 %s907, %s909
      %s911 = sadd.f32 %s910, 1e-05
      %v912 = vstv %s911
      %v913 = vrsqrt.pop %v912
      %s914 = vtos %v913
      %v915 = vstv %s914
      %v916 = vmul.f32 %v868, %v915
      %v917 = vmul.f32 %v869, %v915
      %v918 = vmul.f32 %v870, %v915
      %v919 = vmul.f32 %v871, %v915
      %v920 = vmul.f32 %v872, %v915
      %v921 = vmul.f32 %v873, %v915
      %v922 = vmul.f32 %v874, %v915
      %v923 = vmul.f32 %v875, %v915
      %v924 = vld [vmem:[%s212] sm:$0xf]
      %v925 = vld [vmem:[%s212 + $0x4] sm:$0xf]
      %v926 = vld [vmem:[%s212 + $0x8] sm:$0xf]
      %v927 = vld [vmem:[%s212 + $0xc] sm:$0xf]
      %v928 = vld [vmem:[%s212 + $0x10] sm:$0xf]
      %v929 = vld [vmem:[%s212 + $0x14] sm:$0xf]
      %v930 = vld [vmem:[%s212 + $0x18] sm:$0xf]
      %v931 = vld [vmem:[%s212 + $0x1c] sm:$0xf]
      %v932 = vunpack.c.l.bf16 %v924
      %v933 = vunpack.c.l.bf16 %v925
      %v934 = vunpack.c.l.bf16 %v926
      %v935 = vunpack.c.l.bf16 %v927
      %v936 = vunpack.c.l.bf16 %v928
      %v937 = vunpack.c.l.bf16 %v929
      %v938 = vunpack.c.l.bf16 %v930
      %v939 = vunpack.c.l.bf16 %v931
      %v940 = vadd.f32 %v916, %v932
      %v941 = vadd.f32 %v917, %v933
      %v942 = vadd.f32 %v918, %v934
      %v943 = vadd.f32 %v919, %v935
      %v944 = vadd.f32 %v920, %v936
      %v945 = vadd.f32 %v921, %v937
      %v946 = vadd.f32 %v922, %v938
      %v947 = vadd.f32 %v923, %v939
      %v948 = vld [vmem:[%s3] sm:$0xff]
      %v949 = vld [vmem:[%s3 + $0x8] sm:$0xff]
      %v950 = vld [vmem:[%s3 + $0x10] sm:$0xff]
      %v951 = vld [vmem:[%s3 + $0x18] sm:$0xff]
      %v952 = vld [vmem:[%s3 + $0x20] sm:$0xff]
      %v953 = vld [vmem:[%s3 + $0x28] sm:$0xff]
      %v954 = vld [vmem:[%s3 + $0x30] sm:$0xff]
      %v955 = vld [vmem:[%s3 + $0x38] sm:$0xff]
      %vm956 = vcmp.gt.f32.partialorder %v940, 0.0
      %vm957 = vcmp.gt.f32.partialorder %v941, 0.0
      %vm958 = vcmp.gt.f32.partialorder %v942, 0.0
      %vm959 = vcmp.gt.f32.partialorder %v943, 0.0
      %vm960 = vcmp.gt.f32.partialorder %v944, 0.0
      %vm961 = vcmp.gt.f32.partialorder %v945, 0.0
      %vm962 = vcmp.gt.f32.partialorder %v946, 0.0
      %vm963 = vcmp.gt.f32.partialorder %v947, 0.0
      %965 = vset.pattern.permute.xlu0 0
      %966 = vperm.xlu0 %965, %v948
      %v967 = vpop.permute.xlu0 %966
      %970 = vset.pattern.permute.xlu0 0
      %971 = vperm.xlu0 %970, %v949
      %v972 = vpop.permute.xlu0 %971
      %975 = vset.pattern.permute.xlu0 0
      %976 = vperm.xlu0 %975, %v950
      %v977 = vpop.permute.xlu0 %976
      %980 = vset.pattern.permute.xlu0 0
      %981 = vperm.xlu0 %980, %v951
      %v982 = vpop.permute.xlu0 %981
      %985 = vset.pattern.permute.xlu0 0
      %986 = vperm.xlu0 %985, %v952
      %v987 = vpop.permute.xlu0 %986
      %990 = vset.pattern.permute.xlu0 0
      %991 = vperm.xlu0 %990, %v953
      %v992 = vpop.permute.xlu0 %991
      %995 = vset.pattern.permute.xlu0 0
      %996 = vperm.xlu0 %995, %v954
      %v997 = vpop.permute.xlu0 %996
      %1000 = vset.pattern.permute.xlu0 0
      %1001 = vperm.xlu0 %1000, %v955
      %v1002 = vpop.permute.xlu0 %1001
      %v1004 = vmul.f32 %v967, %v940
      %v1005 = vmul.f32 %v972, %v941
      %v1006 = vmul.f32 %v977, %v942
      %v1007 = vmul.f32 %v982, %v943
      %v1008 = vmul.f32 %v987, %v944
      %v1009 = vmul.f32 %v992, %v945
      %v1010 = vmul.f32 %v997, %v946
      %v1011 = vmul.f32 %v1002, %v947
      %v1012 = vsel %vm956, %v940, %v1004
      %v1013 = vsel %vm957, %v941, %v1005
      %v1014 = vsel %vm958, %v942, %v1006
      %v1015 = vsel %vm959, %v943, %v1007
      %v1016 = vsel %vm960, %v944, %v1008
      %v1017 = vsel %vm961, %v945, %v1009
      %v1018 = vsel %vm962, %v946, %v1010
      %v1019 = vsel %vm963, %v947, %v1011
      %v1020 = vpack.c.bf16 %v1013, %v1012
      %v1021 = vpack.c.bf16 %v1015, %v1014
      %v1022 = vpack.c.bf16 %v1017, %v1016
      %v1023 = vpack.c.bf16 %v1019, %v1018
      %v1028 = vunpack.c.l.b16 %v1020
      %v1029 = vunpack.c.h.b16 %v1020
      %v1030 = vunpack.c.l.b16 %v1021
      %v1031 = vunpack.c.h.b16 %v1021
      %v1032 = vunpack.c.l.b16 %v1022
      %v1033 = vunpack.c.h.b16 %v1022
      %v1034 = vunpack.c.l.b16 %v1023
      %v1035 = vunpack.c.h.b16 %v1023
      %v1036 = vpack.c.b16 %v1028, %v1028
      %v1037 = vpack.c.b16 %v1029, %v1029
      %v1038 = vpack.c.b16 %v1030, %v1030
      %v1039 = vpack.c.b16 %v1031, %v1031
      %v1040 = vpack.c.b16 %v1032, %v1032
      %v1041 = vpack.c.b16 %v1033, %v1033
      %v1042 = vpack.c.b16 %v1034, %v1034
      %v1043 = vpack.c.b16 %v1035, %v1035
      %vm1052 = vcmask 125952
      %1053 = vst.msk [vmem:[%s217] sm:$0xf] %vm1052, %v1036
      %1054 = vst.msk [vmem:[%s217 + $0x4] sm:$0xf] %vm1052, %v1037
      %1055 = vst.msk [vmem:[%s217 + $0x8] sm:$0xf] %vm1052, %v1038
      %1056 = vst.msk [vmem:[%s217 + $0xc] sm:$0xf] %vm1052, %v1039
      %1057 = vst.msk [vmem:[%s217 + $0x10] sm:$0xf] %vm1052, %v1040
      %1058 = vst.msk [vmem:[%s217 + $0x14] sm:$0xf] %vm1052, %v1041
      %1059 = vst.msk [vmem:[%s217 + $0x18] sm:$0xf] %vm1052, %v1042
      %1060 = vst.msk [vmem:[%s217 + $0x1c] sm:$0xf] %vm1052, %v1043
      %p1061 = scmp.lt.s32.totalorder %s15, 1
      %s1062 = scalar_select %p1061, %s15, 1
      %s1063 = smul.addr %s1062, 8
      %s1064 = smul.addr %s1063, 4
      %s1065 = scalar_lea.vmem %s4, %s1064
      // Predicated region
      $region37: #{_lambda_.98} parent=35 // pred_check
        %p1066 = pneg %p127
      $region38: #{_lambda_.98} parent=35 // pred_check_branch
        %1068 = sbr.rel (%p1066) target = $region40
      $region39: #{_lambda_.98} parent=35 // pred_region
        _
      $region40: #{_lambda_.98} parent=35 // pred_fallthru
        _
    $region36: #{_lambda_.98} parent=5 // pred_fallthru
      _
    %p1069 = scmp.le.s32.totalorder 2, %s10
    // Predicated region
    $region41: #{_lambda_.98} parent=5 // pred_check
      %p1070 = pneg %p1069
    $region42: #{_lambda_.98} parent=5 // pred_check_branch
      %1072 = sbr.rel (%p1070) target = $region44
    $region43: #{_lambda_.98} parent=5 // pred_region
      %s1073 = ssub.s32 %s10, 2
      // Predicated region
      $region45: #{_lambda_.98} parent=43 // pred_check
        %p1074 = pneg %p133
      $region46: #{_lambda_.98} parent=43 // pred_check_branch
        %1076 = sbr.rel (%p1074) target = $region48
      $region47: #{_lambda_.98} parent=43 // pred_region
        %p1077 = scmp.lt.s32.totalorder %s16, 1
        %s1078 = scalar_select %p1077, %s16, 1
        %s1079 = smul.addr %s1078, 8
        %s1080 = smul.addr %s1079, 4
        %s1081 = scalar_lea.vmem %s4, %s1080
      $region48: #{_lambda_.98} parent=43 // pred_fallthru
        _
    $region44: #{_lambda_.98} parent=5 // pred_fallthru
      _
  $region6: #{_lambda_.98} parent=0 // loop_footer
    %s14 = sadd.s32 1, %s10
  $region7: #{_lambda_.98} parent=0 // loop_footer_branch
    %9 = sbr.rel target = $region3
  $region8: #{_lambda_.98} parent=0 // loop_exit
    _

// kernel: _lambda_.106
$region0: #{_lambda_.106}
  #allocation0 [shape = 'u32[]', space=smem, size = 0x4, offset = 0x4, fixed_abs, tag = 'smem constant byte address 0x4 - core index']
  #allocation1 [shape = 'u32[144,128]{1,0:T(1,128)}', space=vmem, size = 0x12000, scoped, tag = 'internal scratch']
  %s0 = inlined_call_operand.vmem [shape: bf16[16,32], index: 0, kind: input, shape index: {}]
  %s1 = inlined_call_operand.vmem [shape: bf16[2,32,64], index: 1, kind: input, shape index: {}]
  %s2 = inlined_call_operand.vmem [shape: bf16[2,16,64], index: 2, kind: output, shape index: {}]
  %s3 = sld [smem:[#allocation0]]
  $region41: #{_lambda_.106} parent=0
    _
  %s5 = ssub.s32 1, %s3
  %s6 = scalar_select 0, %s5, %s3
  loop: start=0, step=1, limit=4
  $region2: #{_lambda_.106} parent=0 // loop_pre_header
    _
  $region3: #{_lambda_.106} parent=0 // loop_header
    %s8 = sphi 0, %s12
    %p9 = scmp.ge.s32.totalorder %s8, 4
    %s16 = sphi 0, %s16
    %s18 = sphi 0, %s16
    %s19 = sphi 0, %s18
    %s33 = sphi 0, %s19
    %s39 = sphi 0, %s41
    %s42 = sphi 0, %s39
    %s43 = sphi 0, %s42
    %s59 = sphi 0, %s43
    %s65 = sphi 0, %s67
    %s68 = sphi 0, %s65
    %s69 = sphi 0, %s68
    %s85 = sphi 0, %s69
  $region4: #{_lambda_.106} parent=0 // loop_header_branch
    %11 = sbr.rel (%p9) target = $region8
  $region5: #{_lambda_.106} parent=0 // loop_body
    %s13 = ssub.s32 %s8, 1
    %s14 = ssub.s32 %s8, 2
    %s15 = sadd.s32 %s8, 1
    %s17 = sadd.s32 %s16, 1
    %p20 = scmp.eq.s32.totalorder %s8, 1
    %p21 = scmp.ne.s32.totalorder %s16, %s18
    %p22 = scmp.eq.s32.totalorder %s8, 0
    %p23 = por %p21, %p22
    %p24 = scmp.ne.s32.totalorder %s16, %s18
    %p25 = scmp.eq.s32.totalorder %s13, 1
    %p26 = por %p24, %p25
    %p27 = scmp.ne.s32.totalorder %s18, %s19
    %p28 = scmp.eq.s32.totalorder %s13, 0
    %p29 = por %p27, %p28
    %p30 = scmp.ne.s32.totalorder %s18, %s19
    %p31 = scmp.eq.s32.totalorder %s14, 1
    %p32 = por %p30, %p31
    %p34 = scmp.ne.s32.totalorder %s19, %s33
    %p35 = scmp.eq.s32.totalorder %s14, 0
    %p36 = por %p34, %p35
    %s37 = ssub.s32 %s8, %s15
    %p38 = scmp.eq.s32.totalorder %s37, 0
    %s40 = sadd.s32 %s39, 1
    %s41 = scalar_select %p38, %s39, %s40
    %p44 = pneg %p38
    %p45 = scmp.eq.s32.totalorder %s8, 1
    %p46 = por %p44, %p45
    %p47 = scmp.ne.s32.totalorder %s39, %s42
    %p48 = scmp.eq.s32.totalorder %s8, 0
    %p49 = por %p47, %p48
    %p50 = scmp.ne.s32.totalorder %s39, %s42
    %p51 = scmp.eq.s32.totalorder %s13, 1
    %p52 = por %p50, %p51
    %p53 = scmp.ne.s32.totalorder %s42, %s43
    %p54 = scmp.eq.s32.totalorder %s13, 0
    %p55 = por %p53, %p54
    %p56 = scmp.ne.s32.totalorder %s42, %s43
    %p57 = scmp.eq.s32.totalorder %s14, 1
    %p58 = por %p56, %p57
    %p60 = scmp.ne.s32.totalorder %s43, %s59
    %p61 = scmp.eq.s32.totalorder %s14, 0
    %p62 = por %p60, %p61
    %s63 = ssub.s32 %s8, %s15
    %p64 = scmp.eq.s32.totalorder %s63, 0
    %s66 = sadd.s32 %s65, 1
    %s67 = scalar_select %p64, %s65, %s66
    %p70 = pneg %p64
    %p71 = scmp.eq.s32.totalorder %s8, 1
    %p72 = por %p70, %p71
    %p73 = scmp.ne.s32.totalorder %s65, %s68
    %p74 = scmp.eq.s32.totalorder %s8, 0
    %p75 = por %p73, %p74
    %p76 = scmp.ne.s32.totalorder %s65, %s68
    %p77 = scmp.eq.s32.totalorder %s13, 1
    %p78 = por %p76, %p77
    %p79 = scmp.ne.s32.totalorder %s68, %s69
    %p80 = scmp.eq.s32.totalorder %s13, 0
    %p81 = por %p79, %p80
    %p82 = scmp.ne.s32.totalorder %s68, %s69
    %p83 = scmp.eq.s32.totalorder %s14, 1
    %p84 = por %p82, %p83
    %p86 = scmp.ne.s32.totalorder %s69, %s85
    %p87 = scmp.eq.s32.totalorder %s14, 0
    %p88 = por %p86, %p87
    %p89 = scmp.le.s32.totalorder 1, %s8
    %p90 = scmp.lt.s32.totalorder %s8, 3
    %p91 = pnand %p89, %p90
    %p92 = pneg %p91
    // Predicated region
    $region9: #{_lambda_.106} parent=5 // pred_check
      _
    $region10: #{_lambda_.106} parent=5 // pred_check_branch
      %94 = sbr.rel (%p91) target = $region12
    $region11: #{_lambda_.106} parent=5 // pred_region
      %s95 = ssub.s32 %s8, 1
      // Predicated region
      $region13: #{_lambda_.106} parent=11 // pred_check
        %p96 = pneg %p29
      $region14: #{_lambda_.106} parent=11 // pred_check_branch
        %98 = sbr.rel (%p96) target = $region16
      $region15: #{_lambda_.106} parent=11 // pred_region
        _
      $region16: #{_lambda_.106} parent=11 // pred_fallthru
        _
    $region12: #{_lambda_.106} parent=5 // pred_fallthru
      _
    %p99 = scmp.lt.s32.totalorder %s8, 2
    // Predicated region
    $region17: #{_lambda_.106} parent=5 // pred_check
      %p100 = pneg %p99
    $region18: #{_lambda_.106} parent=5 // pred_check_branch
      %102 = sbr.rel (%p100) target = $region20
    $region19: #{_lambda_.106} parent=5 // pred_region
      // Predicated region
      $region21: #{_lambda_.106} parent=19 // pred_check
        %p103 = pneg %p49
      $region22: #{_lambda_.106} parent=19 // pred_check_branch
        %105 = sbr.rel (%p103) target = $region24
      $region23: #{_lambda_.106} parent=19 // pred_region
        %p106 = scmp.lt.s32.totalorder %s8, 1
        %s107 = scalar_select %p106, %s8, 1
        %s108 = smul.addr %s107, 4
        %s109 = smul.addr %s108, 4
        %s110 = scalar_lea.vmem %s1, %s109
      $region24: #{_lambda_.106} parent=19 // pred_fallthru
        _
    $region20: #{_lambda_.106} parent=5 // pred_fallthru
      _
    %p111 = scmp.le.s32.totalorder 1, %s8
    %p112 = scmp.lt.s32.totalorder %s8, 3
    %p113 = pnand %p111, %p112
    %p114 = pneg %p113
    // Predicated region
    $region25: #{_lambda_.106} parent=5 // pred_check
      _
    $region26: #{_lambda_.106} parent=5 // pred_check_branch
      %116 = sbr.rel (%p113) target = $region28
    $region27: #{_lambda_.106} parent=5 // pred_region
      %s117 = ssub.s32 %s8, 1
      %p118 = pneg %p29
      %p119 = pneg %p26
      %p120 = scmp.lt.s32.totalorder %s13, 1
      %s121 = scalar_select %p120, %s13, 1
      %s122 = smul.addr %s121, 4
      %s123 = smul.addr %s122, 4
      %s124 = scalar_lea.vmem %s1, %s123
      %p125 = pneg %p55
      %p126 = pneg %p52
      %p127 = pneg %p81
      %p128 = pneg %p78
      %p129 = scmp.lt.s32.totalorder %s13, 1
      %s130 = scalar_select %p129, %s13, 1
      %s131 = smul.addr %s130, 2
      %s132 = smul.addr %s131, 4
      %s133 = scalar_lea.vmem %s2, %s132
      %p134 = scmp.lt.s32.totalorder %s13, 1
      %s135 = scalar_select %p134, %s13, 1
      %s136 = smul.addr %s135, 4
      %s137 = smul.addr %s136, 4
      %s138 = scalar_lea.vmem %s1, %s137
      %p139 = scmp.lt.s32.totalorder %s13, 1
      %s140 = scalar_select %p139, %s13, 1
      %s141 = smul.addr %s140, 2
      %s142 = smul.addr %s141, 4
      %s143 = scalar_lea.vmem %s2, %s142
      %v145 = vld [vmem:[%s0] sm:$0xf]
      %v146 = vld [vmem:[%s0 + $0x4] sm:$0xf]
      %v147 = vld [vmem:[%s138] sm:$0xf]
      %v148 = vld [vmem:[%s138 + $0x4] sm:$0xf]
      %v149 = vld [vmem:[%s138 + $0x8] sm:$0xf]
      %v150 = vld [vmem:[%s138 + $0xc] sm:$0xf]
      %v153 = vunpack.c.l.b16 %v145
      %v154 = vunpack.c.l.b16 %v146
      %v155 = vpack.c.b16 %v154, %v153
      %v160 = vunpack.c.l.b16 %v147
      %v161 = vunpack.c.l.b16 %v148
      %v162 = vunpack.c.l.b16 %v149
      %v163 = vunpack.c.l.b16 %v150
      %v164 = vpack.c.b16 %v161, %v160
      %v165 = vpack.c.b16 %v163, %v162
      %vm168 = vcmask 261120
      %v170 = vsel %vm168, %v155, 0
      %172 = vmatprep.subr.bf16.mxu0 0
      %173 = vmatpush1.bf16.msra.mxu0 %v164
      %174 = vmatprep.subr.bf16.mxu0 0
      %175 = vmatpush1.bf16.msra.mxu0 %v165
      %176 = vmatprep.subr.bf16.mxu0 0
      %177 = vmatpush1.bf16.msra.mxu0 0
      %178 = vmatprep.subr.bf16.mxu0 0
      %179 = vmatpush1.bf16.msra.mxu0 0
      %180 = vmatprep.subr.bf16.mxu0 0
      %181 = vmatpush1.bf16.msra.mxu0 0
      %182 = vmatprep.subr.bf16.mxu0 0
      %183 = vmatpush1.bf16.msra.mxu0 0
      %184 = vmatprep.subr.bf16.mxu0 0
      %185 = vmatpush1.bf16.msra.mxu0 0
      %186 = vmatprep.subr.bf16.mxu0 0
      %187 = vmatpush1.bf16.msra.mxu0 0
      %188 = vmatprep.subr.bf16.mxu0 0
      %189 = vmatpush1.bf16.msra.mxu0 0
      %190 = vmatprep.subr.bf16.mxu0 0
      %191 = vmatpush1.bf16.msra.mxu0 0
      %192 = vmatprep.subr.bf16.mxu0 0
      %193 = vmatpush1.bf16.msra.mxu0 0
      %194 = vmatprep.subr.bf16.mxu0 0
      %195 = vmatpush1.bf16.msra.mxu0 0
      %196 = vmatprep.subr.bf16.mxu0 0
      %197 = vmatpush1.bf16.msra.mxu0 0
      %198 = vmatprep.subr.bf16.mxu0 0
      %199 = vmatpush1.bf16.msra.mxu0 0
      %200 = vmatprep.subr.bf16.mxu0 0
      %201 = vmatpush1.bf16.msra.mxu0 0
      %202 = vmatprep.subr.bf16.mxu0 0
      %203 = vmatpush1.bf16.msra.mxu0 0
      %204 = vmatprep.mubr.bf16.mxu0 0
      %205 = vmatmul.mubr.bf16.gmra.mrb[0].mxu0 %v170
      %v206 = vpop.f32.mrb[0].mxu0
      %v207 = vadd.f32 0.0, %v206
      %v208 = vpop.f32.mrb[0].mxu0
      %v209 = vpop.f32.mrb[0].mxu0
      %v210 = vadd.f32 0.0, %v209
      %v211 = vpop.f32.mrb[0].mxu0
      %212 = vdwg.mxu0
      %v213 = vpack.c.bf16 %v210, %v207
      %v215 = vunpack.c.l.b16 %v213
      %v216 = vunpack.c.h.b16 %v213
      %v217 = vpack.c.b16 %v215, %v215
      %v218 = vpack.c.b16 %v216, %v216
      %vm221 = vcmask 519168
      %222 = vst.msk [vmem:[%s143] sm:$0xf] %vm221, %v217
      %223 = vst.msk [vmem:[%s143 + $0x4] sm:$0xf] %vm221, %v218
      %p224 = scmp.lt.s32.totalorder %s13, 1
      %s225 = scalar_select %p224, %s13, 1
      %s226 = smul.addr %s225, 2
      %s227 = smul.addr %s226, 4
      %s228 = scalar_lea.vmem %s2, %s227
      // Predicated region
      $region29: #{_lambda_.106} parent=27 // pred_check
        %p229 = pneg %p78
      $region30: #{_lambda_.106} parent=27 // pred_check_branch
        %231 = sbr.rel (%p229) target = $region32
      $region31: #{_lambda_.106} parent=27 // pred_region
        _
      $region32: #{_lambda_.106} parent=27 // pred_fallthru
        _
    $region28: #{_lambda_.106} parent=5 // pred_fallthru
      _
    %p232 = scmp.le.s32.totalorder 2, %s8
    // Predicated region
    $region33: #{_lambda_.106} parent=5 // pred_check
      %p233 = pneg %p232
    $region34: #{_lambda_.106} parent=5 // pred_check_branch
      %235 = sbr.rel (%p233) target = $region36
    $region35: #{_lambda_.106} parent=5 // pred_region
      %s236 = ssub.s32 %s8, 2
      // Predicated region
      $region37: #{_lambda_.106} parent=35 // pred_check
        %p237 = pneg %p84
      $region38: #{_lambda_.106} parent=35 // pred_check_branch
        %239 = sbr.rel (%p237) target = $region40
      $region39: #{_lambda_.106} parent=35 // pred_region
        %p240 = scmp.lt.s32.totalorder %s14, 1
        %s241 = scalar_select %p240, %s14, 1
        %s242 = smul.addr %s241, 2
        %s243 = smul.addr %s242, 4
        %s244 = scalar_lea.vmem %s2, %s243
      $region40: #{_lambda_.106} parent=35 // pred_fallthru
        _
    $region36: #{_lambda_.106} parent=5 // pred_fallthru
      _
  $region6: #{_lambda_.106} parent=0 // loop_footer
    %s12 = sadd.s32 1, %s8
  $region7: #{_lambda_.106} parent=0 // loop_footer_branch
    %7 = sbr.rel target = $region3
  $region8: #{_lambda_.106} parent=0 // loop_exit
    _

// kernel: _lambda_.138
$region0: #{_lambda_.138}
  #allocation0 [shape = 'u32[]', space=smem, size = 0x4, offset = 0x4, fixed_abs, tag = 'smem constant byte address 0x4 - core index']
  #allocation1 [shape = 'u32[144,128]{1,0:T(1,128)}', space=vmem, size = 0x12000, scoped, tag = 'internal scratch']
  %s0 = inlined_call_operand.vmem [shape: bf16[1,144], index: 0, kind: input, shape index: {}]
  %s1 = inlined_call_operand.vmem [shape: bf16[2,144,256], index: 1, kind: input, shape index: {}]
  %s2 = inlined_call_operand.vmem [shape: bf16[2,1,256], index: 2, kind: output, shape index: {}]
  %s3 = sld [smem:[#allocation0]]
  $region41: #{_lambda_.138} parent=0
    _
  %s5 = ssub.s32 1, %s3
  %s6 = scalar_select 0, %s5, %s3
  loop: start=0, step=1, limit=4
  $region2: #{_lambda_.138} parent=0 // loop_pre_header
    _
  $region3: #{_lambda_.138} parent=0 // loop_header
    %s8 = sphi 0, %s12
    %p9 = scmp.ge.s32.totalorder %s8, 4
    %s16 = sphi 0, %s16
    %s18 = sphi 0, %s16
    %s19 = sphi 0, %s18
    %s33 = sphi 0, %s19
    %s39 = sphi 0, %s41
    %s42 = sphi 0, %s39
    %s43 = sphi 0, %s42
    %s59 = sphi 0, %s43
    %s65 = sphi 0, %s67
    %s68 = sphi 0, %s65
    %s69 = sphi 0, %s68
    %s85 = sphi 0, %s69
  $region4: #{_lambda_.138} parent=0 // loop_header_branch
    %11 = sbr.rel (%p9) target = $region8
  $region5: #{_lambda_.138} parent=0 // loop_body
    %s13 = ssub.s32 %s8, 1
    %s14 = ssub.s32 %s8, 2
    %s15 = sadd.s32 %s8, 1
    %s17 = sadd.s32 %s16, 1
    %p20 = scmp.eq.s32.totalorder %s8, 1
    %p21 = scmp.ne.s32.totalorder %s16, %s18
    %p22 = scmp.eq.s32.totalorder %s8, 0
    %p23 = por %p21, %p22
    %p24 = scmp.ne.s32.totalorder %s16, %s18
    %p25 = scmp.eq.s32.totalorder %s13, 1
    %p26 = por %p24, %p25
    %p27 = scmp.ne.s32.totalorder %s18, %s19
    %p28 = scmp.eq.s32.totalorder %s13, 0
    %p29 = por %p27, %p28
    %p30 = scmp.ne.s32.totalorder %s18, %s19
    %p31 = scmp.eq.s32.totalorder %s14, 1
    %p32 = por %p30, %p31
    %p34 = scmp.ne.s32.totalorder %s19, %s33
    %p35 = scmp.eq.s32.totalorder %s14, 0
    %p36 = por %p34, %p35
    %s37 = ssub.s32 %s8, %s15
    %p38 = scmp.eq.s32.totalorder %s37, 0
    %s40 = sadd.s32 %s39, 1
    %s41 = scalar_select %p38, %s39, %s40
    %p44 = pneg %p38
    %p45 = scmp.eq.s32.totalorder %s8, 1
    %p46 = por %p44, %p45
    %p47 = scmp.ne.s32.totalorder %s39, %s42
    %p48 = scmp.eq.s32.totalorder %s8, 0
    %p49 = por %p47, %p48
    %p50 = scmp.ne.s32.totalorder %s39, %s42
    %p51 = scmp.eq.s32.totalorder %s13, 1
    %p52 = por %p50, %p51
    %p53 = scmp.ne.s32.totalorder %s42, %s43
    %p54 = scmp.eq.s32.totalorder %s13, 0
    %p55 = por %p53, %p54
    %p56 = scmp.ne.s32.totalorder %s42, %s43
    %p57 = scmp.eq.s32.totalorder %s14, 1
    %p58 = por %p56, %p57
    %p60 = scmp.ne.s32.totalorder %s43, %s59
    %p61 = scmp.eq.s32.totalorder %s14, 0
    %p62 = por %p60, %p61
    %s63 = ssub.s32 %s8, %s15
    %p64 = scmp.eq.s32.totalorder %s63, 0
    %s66 = sadd.s32 %s65, 1
    %s67 = scalar_select %p64, %s65, %s66
    %p70 = pneg %p64
    %p71 = scmp.eq.s32.totalorder %s8, 1
    %p72 = por %p70, %p71
    %p73 = scmp.ne.s32.totalorder %s65, %s68
    %p74 = scmp.eq.s32.totalorder %s8, 0
    %p75 = por %p73, %p74
    %p76 = scmp.ne.s32.totalorder %s65, %s68
    %p77 = scmp.eq.s32.totalorder %s13, 1
    %p78 = por %p76, %p77
    %p79 = scmp.ne.s32.totalorder %s68, %s69
    %p80 = scmp.eq.s32.totalorder %s13, 0
    %p81 = por %p79, %p80
    %p82 = scmp.ne.s32.totalorder %s68, %s69
    %p83 = scmp.eq.s32.totalorder %s14, 1
    %p84 = por %p82, %p83
    %p86 = scmp.ne.s32.totalorder %s69, %s85
    %p87 = scmp.eq.s32.totalorder %s14, 0
    %p88 = por %p86, %p87
    %p89 = scmp.le.s32.totalorder 1, %s8
    %p90 = scmp.lt.s32.totalorder %s8, 3
    %p91 = pnand %p89, %p90
    %p92 = pneg %p91
    // Predicated region
    $region9: #{_lambda_.138} parent=5 // pred_check
      _
    $region10: #{_lambda_.138} parent=5 // pred_check_branch
      %94 = sbr.rel (%p91) target = $region12
    $region11: #{_lambda_.138} parent=5 // pred_region
      %s95 = ssub.s32 %s8, 1
      // Predicated region
      $region13: #{_lambda_.138} parent=11 // pred_check
        %p96 = pneg %p29
      $region14: #{_lambda_.138} parent=11 // pred_check_branch
        %98 = sbr.rel (%p96) target = $region16
      $region15: #{_lambda_.138} parent=11 // pred_region
        _
      $region16: #{_lambda_.138} parent=11 // pred_fallthru
        _
    $region12: #{_lambda_.138} parent=5 // pred_fallthru
      _
    %p99 = scmp.lt.s32.totalorder %s8, 2
    // Predicated region
    $region17: #{_lambda_.138} parent=5 // pred_check
      %p100 = pneg %p99
    $region18: #{_lambda_.138} parent=5 // pred_check_branch
      %102 = sbr.rel (%p100) target = $region20
    $region19: #{_lambda_.138} parent=5 // pred_region
      // Predicated region
      $region21: #{_lambda_.138} parent=19 // pred_check
        %p103 = pneg %p49
      $region22: #{_lambda_.138} parent=19 // pred_check_branch
        %105 = sbr.rel (%p103) target = $region24
      $region23: #{_lambda_.138} parent=19 // pred_region
        %p106 = scmp.lt.s32.totalorder %s8, 1
        %s107 = scalar_select %p106, %s8, 1
        %s108 = smul.addr %s107, 36
        %s109 = smul.addr %s108, 4
        %s110 = scalar_lea.vmem %s1, %s109
      $region24: #{_lambda_.138} parent=19 // pred_fallthru
        _
    $region20: #{_lambda_.138} parent=5 // pred_fallthru
      _
    %p111 = scmp.le.s32.totalorder 1, %s8
    %p112 = scmp.lt.s32.totalorder %s8, 3
    %p113 = pnand %p111, %p112
    %p114 = pneg %p113
    // Predicated region
    $region25: #{_lambda_.138} parent=5 // pred_check
      _
    $region26: #{_lambda_.138} parent=5 // pred_check_branch
      %116 = sbr.rel (%p113) target = $region28
    $region27: #{_lambda_.138} parent=5 // pred_region
      %s117 = ssub.s32 %s8, 1
      %p118 = pneg %p29
      %p119 = pneg %p26
      %p120 = scmp.lt.s32.totalorder %s13, 1
      %s121 = scalar_select %p120, %s13, 1
      %s122 = smul.addr %s121, 36
      %s123 = smul.addr %s122, 4
      %s124 = scalar_lea.vmem %s1, %s123
      %p125 = pneg %p55
      %p126 = pneg %p52
      %p127 = pneg %p81
      %p128 = pneg %p78
      %p129 = scmp.lt.s32.totalorder %s13, 1
      %s130 = scalar_select %p129, %s13, 1
      %s131 = smul.addr %s130, 2
      %s132 = scalar_lea.vmem %s2, %s131
      %p133 = scmp.lt.s32.totalorder %s13, 1
      %s134 = scalar_select %p133, %s13, 1
      %s135 = smul.addr %s134, 36
      %s136 = smul.addr %s135, 4
      %s137 = scalar_lea.vmem %s1, %s136
      %p138 = scmp.lt.s32.totalorder %s13, 1
      %s139 = scalar_select %p138, %s13, 1
      %s140 = smul.addr %s139, 2
      %s141 = scalar_lea.vmem %s2, %s140
      %v143 = vld [vmem:[%s0] sm:$0x3]
      %v144 = vld [vmem:[%s137] sm:$0xff]
      %v145 = vld [vmem:[%s137 + $0x8] sm:$0xff]
      %v146 = vld [vmem:[%s137 + $0x10] sm:$0xff]
      %v147 = vld [vmem:[%s137 + $0x18] sm:$0xff]
      %v148 = vld [vmem:[%s137 + $0x20] sm:$0xff]
      %v149 = vld [vmem:[%s137 + $0x28] sm:$0xff]
      %v150 = vld [vmem:[%s137 + $0x30] sm:$0xff]
      %v151 = vld [vmem:[%s137 + $0x38] sm:$0xff]
      %v152 = vld [vmem:[%s137 + $0x40] sm:$0xff]
      %v153 = vld [vmem:[%s137 + $0x48] sm:$0xff]
      %v154 = vld [vmem:[%s137 + $0x50] sm:$0xff]
      %v155 = vld [vmem:[%s137 + $0x58] sm:$0xff]
      %v156 = vld [vmem:[%s137 + $0x60] sm:$0xff]
      %v157 = vld [vmem:[%s137 + $0x68] sm:$0xff]
      %v158 = vld [vmem:[%s137 + $0x70] sm:$0xff]
      %v159 = vld [vmem:[%s137 + $0x78] sm:$0xff]
      %v160 = vld [vmem:[%s137 + $0x80] sm:$0xff]
      %v161 = vld [vmem:[%s137 + $0x88] sm:$0xff]
      %v164 = vunpack.c.l.s4 1966171168
      %v165 = vunpack.c.0.s8 %v164
      %v166 = vlaneseq
      %v167 = vshrl.u32 %v166, 7
      %v168 = vsub.s32 %v165, %v167
      %v169 = vrot.slane %v143, %v168
      %v170 = vcombine.high %v169, %v169
      %v172 = vunpack.c.l.s4 1966171168
      %v173 = vunpack.c.0.s8 %v172
      %v174 = vlaneseq
      %v175 = vshrl.u32 %v174, 7
      %v176 = vsub.s32 %v173, %v175
      %v177 = vrot.slane %v169, %v176
      %v179 = vunpack.c.l.s4 1966171168
      %v180 = vunpack.c.0.s8 %v179
      %v181 = vlaneseq
      %v182 = vshrl.u32 %v181, 7
      %v183 = vsub.s32 %v180, %v182
      %v184 = vrot.slane %v170, %v183
      %v204 = vunpack.c.l.b16 %v144
      %v205 = vunpack.c.h.b16 %v144
      %v206 = vunpack.c.l.b16 %v145
      %v207 = vunpack.c.h.b16 %v145
      %v208 = vunpack.c.l.b16 %v146
      %v209 = vunpack.c.h.b16 %v146
      %v210 = vunpack.c.l.b16 %v147
      %v211 = vunpack.c.h.b16 %v147
      %v212 = vunpack.c.l.b16 %v148
      %v213 = vunpack.c.h.b16 %v148
      %v214 = vunpack.c.l.b16 %v149
      %v215 = vunpack.c.h.b16 %v149
      %v216 = vunpack.c.l.b16 %v150
      %v217 = vunpack.c.h.b16 %v150
      %v218 = vunpack.c.l.b16 %v151
      %v219 = vunpack.c.h.b16 %v151
      %v220 = vunpack.c.l.b16 %v152
      %v221 = vunpack.c.h.b16 %v152
      %v222 = vunpack.c.l.b16 %v153
      %v223 = vunpack.c.h.b16 %v153
      %v224 = vunpack.c.l.b16 %v154
      %v225 = vunpack.c.h.b16 %v154
      %v226 = vunpack.c.l.b16 %v155
      %v227 = vunpack.c.h.b16 %v155
      %v228 = vunpack.c.l.b16 %v156
      %v229 = vunpack.c.h.b16 %v156
      %v230 = vunpack.c.l.b16 %v157
      %v231 = vunpack.c.h.b16 %v157
      %v232 = vunpack.c.l.b16 %v158
      %v233 = vunpack.c.h.b16 %v158
      %v234 = vunpack.c.l.b16 %v159
      %v235 = vunpack.c.h.b16 %v159
      %v236 = vunpack.c.l.b16 %v160
      %v237 = vunpack.c.h.b16 %v160
      %v238 = vunpack.c.l.b16 %v161
      %v239 = vunpack.c.h.b16 %v161
      %v240 = vpack.c.b16 %v206, %v204
      %v241 = vpack.c.b16 %v207, %v205
      %v242 = vpack.c.b16 %v210, %v208
      %v243 = vpack.c.b16 %v211, %v209
      %v244 = vpack.c.b16 %v214, %v212
      %v245 = vpack.c.b16 %v215, %v213
      %v246 = vpack.c.b16 %v218, %v216
      %v247 = vpack.c.b16 %v219, %v217
      %v248 = vpack.c.b16 %v222, %v220
      %v249 = vpack.c.b16 %v223, %v221
      %v250 = vpack.c.b16 %v226, %v224
      %v251 = vpack.c.b16 %v227, %v225
      %v252 = vpack.c.b16 %v230, %v228
      %v253 = vpack.c.b16 %v231, %v229
      %v254 = vpack.c.b16 %v234, %v232
      %v255 = vpack.c.b16 %v235, %v233
      %v256 = vpack.c.b16 %v238, %v236
      %v257 = vpack.c.b16 %v239, %v237
      %vm276 = vcmask 130048
      %v278 = vsel %vm276, %v184, 0
      %280 = vmatprep.subr.bf16.mxu0 %v241
      %281 = vmatpush1.bf16.msra.mxu0 %v240
      %282 = vmatprep.subr.bf16.mxu0 %v243
      %283 = vmatpush1.bf16.msra.mxu0 %v242
      %284 = vmatprep.subr.bf16.mxu0 %v245
      %285 = vmatpush1.bf16.msra.mxu0 %v244
      %286 = vmatprep.subr.bf16.mxu0 %v247
      %287 = vmatpush1.bf16.msra.mxu0 %v246
      %288 = vmatprep.subr.bf16.mxu0 %v249
      %289 = vmatpush1.bf16.msra.mxu0 %v248
      %290 = vmatprep.subr.bf16.mxu0 %v251
      %291 = vmatpush1.bf16.msra.mxu0 %v250
      %292 = vmatprep.subr.bf16.mxu0 %v253
      %293 = vmatpush1.bf16.msra.mxu0 %v252
      %294 = vmatprep.subr.bf16.mxu0 %v255
      %295 = vmatpush1.bf16.msra.mxu0 %v254
      %296 = vmatprep.subr.bf16.mxu0 %v257
      %297 = vmatpush1.bf16.msra.mxu0 %v256
      %298 = vmatprep.subr.bf16.mxu0 0
      %299 = vmatpush1.bf16.msra.mxu0 0
      %300 = vmatprep.subr.bf16.mxu0 0
      %301 = vmatpush1.bf16.msra.mxu0 0
      %302 = vmatprep.subr.bf16.mxu0 0
      %303 = vmatpush1.bf16.msra.mxu0 0
      %304 = vmatprep.subr.bf16.mxu0 0
      %305 = vmatpush1.bf16.msra.mxu0 0
      %306 = vmatprep.subr.bf16.mxu0 0
      %307 = vmatpush1.bf16.msra.mxu0 0
      %308 = vmatprep.subr.bf16.mxu0 0
      %309 = vmatpush1.bf16.msra.mxu0 0
      %310 = vmatprep.subr.bf16.mxu0 0
      %311 = vmatpush1.bf16.msra.mxu0 0
      %312 = vmatprep.mubr.bf16.mxu0 %v278
      %313 = vmatmul.mubr.bf16.gmra.mrb[0].mxu0 %v177
      %v314 = vpop.f32.mrb[0].mxu0
      %v315 = vadd.f32 0.0, %v314
      %v316 = vpop.f32.mrb[0].mxu0
      %v317 = vadd.f32 0.0, %v316
      %v318 = vpop.f32.mrb[0].mxu0
      %v319 = vpop.f32.mrb[0].mxu0
      %320 = vdwg.mxu0
      %v321 = vpack.c.bf16 %v315, %v315
      %v322 = vpack.c.bf16 %v317, %v317
      %v325 = vcombine.low %v321, %v322
      %v327 = vunpack.c.l.s4 1966171168
      %v328 = vunpack.c.0.s8 %v327
      %v329 = vlaneseq
      %v330 = vshrl.u32 %v329, 7
      %v331 = vsub.s32 %v328, %v330
      %v332 = vrot.slane %v325, %v331
      %v334 = vunpack.c.l.s4 1966171168
      %v335 = vunpack.c.0.s8 %v334
      %v336 = vlaneseq
      %v337 = vshrl.u32 %v336, 7
      %v338 = vsub.s32 %v335, %v337
      %v339 = vrot.slane %v332, %v338
      %vm341 = vcmask 1040384
      %vm342 = vsmask.f32 256
      %vm343 = vmand %vm341, %vm342
      %vm344 = vcmask 1041409
      %vm345 = vsmask.f32 1280
      %vm346 = vmand %vm344, %vm345
      %vm347 = vmor %vm346, %vm343
      %v348 = vld [vmem:[%s141] sm:$0x3]
      %v349 = vsel %vm347, %v339, %v348
      %350 = vst [vmem:[%s141] sm:$0x3] %v349
      %p351 = scmp.lt.s32.totalorder %s13, 1
      %s352 = scalar_select %p351, %s13, 1
      %s353 = smul.addr %s352, 2
      %s354 = scalar_lea.vmem %s2, %s353
      // Predicated region
      $region29: #{_lambda_.138} parent=27 // pred_check
        %p355 = pneg %p78
      $region30: #{_lambda_.138} parent=27 // pred_check_branch
        %357 = sbr.rel (%p355) target = $region32
      $region31: #{_lambda_.138} parent=27 // pred_region
        _
      $region32: #{_lambda_.138} parent=27 // pred_fallthru
        _
    $region28: #{_lambda_.138} parent=5 // pred_fallthru
      _
    %p358 = scmp.le.s32.totalorder 2, %s8
    // Predicated region
    $region33: #{_lambda_.138} parent=5 // pred_check
      %p359 = pneg %p358
    $region34: #{_lambda_.138} parent=5 // pred_check_branch
      %361 = sbr.rel (%p359) target = $region36
    $region35: #{_lambda_.138} parent=5 // pred_region
      %s362 = ssub.s32 %s8, 2
      // Predicated region
      $region37: #{_lambda_.138} parent=35 // pred_check
        %p363 = pneg %p84
      $region38: #{_lambda_.138} parent=35 // pred_check_branch
        %365 = sbr.rel (%p363) target = $region40
      $region39: #{_lambda_.138} parent=35 // pred_region
        %p366 = scmp.lt.s32.totalorder %s14, 1
        %s367 = scalar_select %p366, %s14, 1
        %s368 = smul.addr %s367, 2
        %s369 = scalar_lea.vmem %s2, %s368
      $region40: #{_lambda_.138} parent=35 // pred_fallthru
        _
    $region36: #{_lambda_.138} parent=5 // pred_fallthru
      _
  $region6: #{_lambda_.138} parent=0 // loop_footer
    %s12 = sadd.s32 1, %s8
  $region7: #{_lambda_.138} parent=0 // loop_footer_branch
    %7 = sbr.rel target = $region3
  $region8: #{_lambda_.138} parent=0 // loop_exit
    _

// kernel: _lambda_.150
$region0: #{_lambda_.150}
  #allocation0 [shape = 'u32[]', space=smem, size = 0x4, offset = 0x4, fixed_abs, tag = 'smem constant byte address 0x4 - core index']
  #allocation1 [shape = 'u32[144,128]{1,0:T(1,128)}', space=vmem, size = 0x12000, scoped, tag = 'internal scratch']
  %s0 = inlined_call_operand.vmem [shape: bf16[16,9], index: 0, kind: input, shape index: {}]
  %s1 = inlined_call_operand.vmem [shape: bf16[2,9,256], index: 1, kind: input, shape index: {}]
  %s2 = inlined_call_operand.vmem [shape: bf16[2,16,256], index: 2, kind: output, shape index: {}]
  %s3 = sld [smem:[#allocation0]]
  $region41: #{_lambda_.150} parent=0
    _
  %s5 = ssub.s32 1, %s3
  %s6 = scalar_select 0, %s5, %s3
  loop: start=0, step=1, limit=4
  $region2: #{_lambda_.150} parent=0 // loop_pre_header
    _
  $region3: #{_lambda_.150} parent=0 // loop_header
    %s8 = sphi 0, %s12
    %p9 = scmp.ge.s32.totalorder %s8, 4
    %s16 = sphi 0, %s16
    %s18 = sphi 0, %s16
    %s19 = sphi 0, %s18
    %s33 = sphi 0, %s19
    %s39 = sphi 0, %s41
    %s42 = sphi 0, %s39
    %s43 = sphi 0, %s42
    %s59 = sphi 0, %s43
    %s65 = sphi 0, %s67
    %s68 = sphi 0, %s65
    %s69 = sphi 0, %s68
    %s85 = sphi 0, %s69
  $region4: #{_lambda_.150} parent=0 // loop_header_branch
    %11 = sbr.rel (%p9) target = $region8
  $region5: #{_lambda_.150} parent=0 // loop_body
    %s13 = ssub.s32 %s8, 1
    %s14 = ssub.s32 %s8, 2
    %s15 = sadd.s32 %s8, 1
    %s17 = sadd.s32 %s16, 1
    %p20 = scmp.eq.s32.totalorder %s8, 1
    %p21 = scmp.ne.s32.totalorder %s16, %s18
    %p22 = scmp.eq.s32.totalorder %s8, 0
    %p23 = por %p21, %p22
    %p24 = scmp.ne.s32.totalorder %s16, %s18
    %p25 = scmp.eq.s32.totalorder %s13, 1
    %p26 = por %p24, %p25
    %p27 = scmp.ne.s32.totalorder %s18, %s19
    %p28 = scmp.eq.s32.totalorder %s13, 0
    %p29 = por %p27, %p28
    %p30 = scmp.ne.s32.totalorder %s18, %s19
    %p31 = scmp.eq.s32.totalorder %s14, 1
    %p32 = por %p30, %p31
    %p34 = scmp.ne.s32.totalorder %s19, %s33
    %p35 = scmp.eq.s32.totalorder %s14, 0
    %p36 = por %p34, %p35
    %s37 = ssub.s32 %s8, %s15
    %p38 = scmp.eq.s32.totalorder %s37, 0
    %s40 = sadd.s32 %s39, 1
    %s41 = scalar_select %p38, %s39, %s40
    %p44 = pneg %p38
    %p45 = scmp.eq.s32.totalorder %s8, 1
    %p46 = por %p44, %p45
    %p47 = scmp.ne.s32.totalorder %s39, %s42
    %p48 = scmp.eq.s32.totalorder %s8, 0
    %p49 = por %p47, %p48
    %p50 = scmp.ne.s32.totalorder %s39, %s42
    %p51 = scmp.eq.s32.totalorder %s13, 1
    %p52 = por %p50, %p51
    %p53 = scmp.ne.s32.totalorder %s42, %s43
    %p54 = scmp.eq.s32.totalorder %s13, 0
    %p55 = por %p53, %p54
    %p56 = scmp.ne.s32.totalorder %s42, %s43
    %p57 = scmp.eq.s32.totalorder %s14, 1
    %p58 = por %p56, %p57
    %p60 = scmp.ne.s32.totalorder %s43, %s59
    %p61 = scmp.eq.s32.totalorder %s14, 0
    %p62 = por %p60, %p61
    %s63 = ssub.s32 %s8, %s15
    %p64 = scmp.eq.s32.totalorder %s63, 0
    %s66 = sadd.s32 %s65, 1
    %s67 = scalar_select %p64, %s65, %s66
    %p70 = pneg %p64
    %p71 = scmp.eq.s32.totalorder %s8, 1
    %p72 = por %p70, %p71
    %p73 = scmp.ne.s32.totalorder %s65, %s68
    %p74 = scmp.eq.s32.totalorder %s8, 0
    %p75 = por %p73, %p74
    %p76 = scmp.ne.s32.totalorder %s65, %s68
    %p77 = scmp.eq.s32.totalorder %s13, 1
    %p78 = por %p76, %p77
    %p79 = scmp.ne.s32.totalorder %s68, %s69
    %p80 = scmp.eq.s32.totalorder %s13, 0
    %p81 = por %p79, %p80
    %p82 = scmp.ne.s32.totalorder %s68, %s69
    %p83 = scmp.eq.s32.totalorder %s14, 1
    %p84 = por %p82, %p83
    %p86 = scmp.ne.s32.totalorder %s69, %s85
    %p87 = scmp.eq.s32.totalorder %s14, 0
    %p88 = por %p86, %p87
    %p89 = scmp.le.s32.totalorder 1, %s8
    %p90 = scmp.lt.s32.totalorder %s8, 3
    %p91 = pnand %p89, %p90
    %p92 = pneg %p91
    // Predicated region
    $region9: #{_lambda_.150} parent=5 // pred_check
      _
    $region10: #{_lambda_.150} parent=5 // pred_check_branch
      %94 = sbr.rel (%p91) target = $region12
    $region11: #{_lambda_.150} parent=5 // pred_region
      %s95 = ssub.s32 %s8, 1
      // Predicated region
      $region13: #{_lambda_.150} parent=11 // pred_check
        %p96 = pneg %p29
      $region14: #{_lambda_.150} parent=11 // pred_check_branch
        %98 = sbr.rel (%p96) target = $region16
      $region15: #{_lambda_.150} parent=11 // pred_region
        _
      $region16: #{_lambda_.150} parent=11 // pred_fallthru
        _
    $region12: #{_lambda_.150} parent=5 // pred_fallthru
      _
    %p99 = scmp.lt.s32.totalorder %s8, 2
    // Predicated region
    $region17: #{_lambda_.150} parent=5 // pred_check
      %p100 = pneg %p99
    $region18: #{_lambda_.150} parent=5 // pred_check_branch
      %102 = sbr.rel (%p100) target = $region20
    $region19: #{_lambda_.150} parent=5 // pred_region
      // Predicated region
      $region21: #{_lambda_.150} parent=19 // pred_check
        %p103 = pneg %p49
      $region22: #{_lambda_.150} parent=19 // pred_check_branch
        %105 = sbr.rel (%p103) target = $region24
      $region23: #{_lambda_.150} parent=19 // pred_region
        %p106 = scmp.lt.s32.totalorder %s8, 1
        %s107 = scalar_select %p106, %s8, 1
        %s108 = smul.addr %s107, 4
        %s109 = smul.addr %s108, 4
        %s110 = scalar_lea.vmem %s1, %s109
      $region24: #{_lambda_.150} parent=19 // pred_fallthru
        _
    $region20: #{_lambda_.150} parent=5 // pred_fallthru
      _
    %p111 = scmp.le.s32.totalorder 1, %s8
    %p112 = scmp.lt.s32.totalorder %s8, 3
    %p113 = pnand %p111, %p112
    %p114 = pneg %p113
    // Predicated region
    $region25: #{_lambda_.150} parent=5 // pred_check
      _
    $region26: #{_lambda_.150} parent=5 // pred_check_branch
      %116 = sbr.rel (%p113) target = $region28
    $region27: #{_lambda_.150} parent=5 // pred_region
      %s117 = ssub.s32 %s8, 1
      %p118 = pneg %p29
      %p119 = pneg %p26
      %p120 = scmp.lt.s32.totalorder %s13, 1
      %s121 = scalar_select %p120, %s13, 1
      %s122 = smul.addr %s121, 4
      %s123 = smul.addr %s122, 4
      %s124 = scalar_lea.vmem %s1, %s123
      %p125 = pneg %p55
      %p126 = pneg %p52
      %p127 = pneg %p81
      %p128 = pneg %p78
      %p129 = scmp.lt.s32.totalorder %s13, 1
      %s130 = scalar_select %p129, %s13, 1
      %s131 = smul.addr %s130, 4
      %s132 = smul.addr %s131, 4
      %s133 = scalar_lea.vmem %s2, %s132
      %p134 = scmp.lt.s32.totalorder %s13, 1
      %s135 = scalar_select %p134, %s13, 1
      %s136 = smul.addr %s135, 4
      %s137 = smul.addr %s136, 4
      %s138 = scalar_lea.vmem %s1, %s137
      %p139 = scmp.lt.s32.totalorder %s13, 1
      %s140 = scalar_select %p139, %s13, 1
      %s141 = smul.addr %s140, 4
      %s142 = smul.addr %s141, 4
      %s143 = scalar_lea.vmem %s2, %s142
      %v145 = vld [vmem:[%s0] sm:$0xf]
      %v146 = vld [vmem:[%s0 + $0x4] sm:$0xf]
      %v147 = vld [vmem:[%s138] sm:$0xff]
      %v148 = vld [vmem:[%s138 + $0x8] sm:$0x11]
      %v151 = vunpack.c.l.b16 %v145
      %v152 = vunpack.c.l.b16 %v146
      %v153 = vpack.c.b16 %v152, %v151
      %v156 = vunpack.c.l.b16 %v147
      %v157 = vunpack.c.h.b16 %v147
      %v158 = vunpack.c.l.b16 %v148
      %v159 = vunpack.c.h.b16 %v148
      %v160 = vpack.c.b16 %v158, %v156
      %v161 = vpack.c.b16 %v159, %v157
      %vm162 = vcmask 72704
      %v164 = vsel %vm162, %v153, 0
      %vm166 = vcmask 1043456
      %vm167 = vcmask 1044480
      %v168 = vsel %vm166, 4294967295, 65535
      %v169 = vsel %vm167, %v168, 0
      %v171 = vand.u32 %v160, %v169
      %v174 = vand.u32 %v161, %v169
      %176 = vmatprep.subr.bf16.mxu0 %v174
      %177 = vmatpush1.bf16.msra.mxu0 %v171
      %178 = vmatprep.subr.bf16.mxu0 0
      %179 = vmatpush1.bf16.msra.mxu0 0
      %180 = vmatprep.subr.bf16.mxu0 0
      %181 = vmatpush1.bf16.msra.mxu0 0
      %182 = vmatprep.subr.bf16.mxu0 0
      %183 = vmatpush1.bf16.msra.mxu0 0
      %184 = vmatprep.subr.bf16.mxu0 0
      %185 = vmatpush1.bf16.msra.mxu0 0
      %186 = vmatprep.subr.bf16.mxu0 0
      %187 = vmatpush1.bf16.msra.mxu0 0
      %188 = vmatprep.subr.bf16.mxu0 0
      %189 = vmatpush1.bf16.msra.mxu0 0
      %190 = vmatprep.subr.bf16.mxu0 0
      %191 = vmatpush1.bf16.msra.mxu0 0
      %192 = vmatprep.subr.bf16.mxu0 0
      %193 = vmatpush1.bf16.msra.mxu0 0
      %194 = vmatprep.subr.bf16.mxu0 0
      %195 = vmatpush1.bf16.msra.mxu0 0
      %196 = vmatprep.subr.bf16.mxu0 0
      %197 = vmatpush1.bf16.msra.mxu0 0
      %198 = vmatprep.subr.bf16.mxu0 0
      %199 = vmatpush1.bf16.msra.mxu0 0
      %200 = vmatprep.subr.bf16.mxu0 0
      %201 = vmatpush1.bf16.msra.mxu0 0
      %202 = vmatprep.subr.bf16.mxu0 0
      %203 = vmatpush1.bf16.msra.mxu0 0
      %204 = vmatprep.subr.bf16.mxu0 0
      %205 = vmatpush1.bf16.msra.mxu0 0
      %206 = vmatprep.subr.bf16.mxu0 0
      %207 = vmatpush1.bf16.msra.mxu0 0
      %208 = vmatprep.mubr.bf16.mxu0 0
      %209 = vmatmul.mubr.bf16.gmra.mrb[0].mxu0 %v164
      %v210 = vpop.f32.mrb[0].mxu0
      %v211 = vadd.f32 0.0, %v210
      %v212 = vpop.f32.mrb[0].mxu0
      %v213 = vadd.f32 0.0, %v212
      %v214 = vpop.f32.mrb[0].mxu0
      %v215 = vadd.f32 0.0, %v214
      %v216 = vpop.f32.mrb[0].mxu0
      %v217 = vadd.f32 0.0, %v216
      %218 = vdwg.mxu0
      %v219 = vpack.c.bf16 %v215, %v211
      %v220 = vpack.c.bf16 %v217, %v213
      %v223 = vunpack.c.l.b16 %v219
      %v224 = vunpack.c.l.b16 %v220
      %v225 = vunpack.c.h.b16 %v219
      %v226 = vunpack.c.h.b16 %v220
      %v227 = vpack.c.b16 %v224, %v223
      %v228 = vpack.c.b16 %v226, %v225
      %231 = vst [vmem:[%s143] sm:$0xff] %v227
      %232 = vst [vmem:[%s143 + $0x8] sm:$0xff] %v228
      %p233 = scmp.lt.s32.totalorder %s13, 1
      %s234 = scalar_select %p233, %s13, 1
      %s235 = smul.addr %s234, 4
      %s236 = smul.addr %s235, 4
      %s237 = scalar_lea.vmem %s2, %s236
      // Predicated region
      $region29: #{_lambda_.150} parent=27 // pred_check
        %p238 = pneg %p78
      $region30: #{_lambda_.150} parent=27 // pred_check_branch
        %240 = sbr.rel (%p238) target = $region32
      $region31: #{_lambda_.150} parent=27 // pred_region
        _
      $region32: #{_lambda_.150} parent=27 // pred_fallthru
        _
    $region28: #{_lambda_.150} parent=5 // pred_fallthru
      _
    %p241 = scmp.le.s32.totalorder 2, %s8
    // Predicated region
    $region33: #{_lambda_.150} parent=5 // pred_check
      %p242 = pneg %p241
    $region34: #{_lambda_.150} parent=5 // pred_check_branch
      %244 = sbr.rel (%p242) target = $region36
    $region35: #{_lambda_.150} parent=5 // pred_region
      %s245 = ssub.s32 %s8, 2
      // Predicated region
      $region37: #{_lambda_.150} parent=35 // pred_check
        %p246 = pneg %p84
      $region38: #{_lambda_.150} parent=35 // pred_check_branch
        %248 = sbr.rel (%p246) target = $region40
      $region39: #{_lambda_.150} parent=35 // pred_region
        %p249 = scmp.lt.s32.totalorder %s14, 1
        %s250 = scalar_select %p249, %s14, 1
        %s251 = smul.addr %s250, 4
        %s252 = smul.addr %s251, 4
        %s253 = scalar_lea.vmem %s2, %s252
      $region40: #{_lambda_.150} parent=35 // pred_fallthru
        _
    $region36: #{_lambda_.150} parent=5 // pred_fallthru
      _
  $region6: #{_lambda_.150} parent=0 // loop_footer
    %s12 = sadd.s32 1, %s8
  $region7: #{_lambda_.150} parent=0 // loop_footer_branch
    %7 = sbr.rel target = $region3
  $region8: #{_lambda_.150} parent=0 // loop_exit
    _

// kernel: _lambda_.170
$region0: #{_lambda_.170}
  #allocation0 [shape = 'u32[]', space=smem, size = 0x4, offset = 0x4, fixed_abs, tag = 'smem constant byte address 0x4 - core index']
  #allocation1 [shape = 'u32[144,128]{1,0:T(1,128)}', space=vmem, size = 0x12000, scoped, tag = 'internal scratch']
  %s0 = inlined_call_operand.vmem [shape: bf16[16,144], index: 0, kind: input, shape index: {}]
  %s1 = inlined_call_operand.vmem [shape: bf16[2,144,256], index: 1, kind: input, shape index: {}]
  %s2 = inlined_call_operand.vmem [shape: f32[16,1], index: 2, kind: input, shape index: {}]
  %s3 = inlined_call_operand.vmem [shape: bf16[2,16,256], index: 3, kind: output, shape index: {}]
  %s4 = sld [smem:[#allocation0]]
  $region45: #{_lambda_.170} parent=0
    _
  %s6 = ssub.s32 1, %s4
  %s7 = scalar_select 0, %s6, %s4
  loop: start=0, step=1, limit=4
  $region2: #{_lambda_.170} parent=0 // loop_pre_header
    _
  $region3: #{_lambda_.170} parent=0 // loop_header
    %s9 = sphi 0, %s13
    %p10 = scmp.ge.s32.totalorder %s9, 4
    %s17 = sphi 0, %s17
    %s19 = sphi 0, %s17
    %s20 = sphi 0, %s19
    %s34 = sphi 0, %s20
    %s40 = sphi 0, %s42
    %s43 = sphi 0, %s40
    %s44 = sphi 0, %s43
    %s60 = sphi 0, %s44
    %s64 = sphi 0, %s64
    %s66 = sphi 0, %s64
    %s67 = sphi 0, %s66
    %s81 = sphi 0, %s67
    %s87 = sphi 0, %s89
    %s90 = sphi 0, %s87
    %s91 = sphi 0, %s90
    %s107 = sphi 0, %s91
  $region4: #{_lambda_.170} parent=0 // loop_header_branch
    %12 = sbr.rel (%p10) target = $region8
  $region5: #{_lambda_.170} parent=0 // loop_body
    %s14 = ssub.s32 %s9, 1
    %s15 = ssub.s32 %s9, 2
    %s16 = sadd.s32 %s9, 1
    %s18 = sadd.s32 %s17, 1
    %p21 = scmp.eq.s32.totalorder %s9, 1
    %p22 = scmp.ne.s32.totalorder %s17, %s19
    %p23 = scmp.eq.s32.totalorder %s9, 0
    %p24 = por %p22, %p23
    %p25 = scmp.ne.s32.totalorder %s17, %s19
    %p26 = scmp.eq.s32.totalorder %s14, 1
    %p27 = por %p25, %p26
    %p28 = scmp.ne.s32.totalorder %s19, %s20
    %p29 = scmp.eq.s32.totalorder %s14, 0
    %p30 = por %p28, %p29
    %p31 = scmp.ne.s32.totalorder %s19, %s20
    %p32 = scmp.eq.s32.totalorder %s15, 1
    %p33 = por %p31, %p32
    %p35 = scmp.ne.s32.totalorder %s20, %s34
    %p36 = scmp.eq.s32.totalorder %s15, 0
    %p37 = por %p35, %p36
    %s38 = ssub.s32 %s9, %s16
    %p39 = scmp.eq.s32.totalorder %s38, 0
    %s41 = sadd.s32 %s40, 1
    %s42 = scalar_select %p39, %s40, %s41
    %p45 = pneg %p39
    %p46 = scmp.eq.s32.totalorder %s9, 1
    %p47 = por %p45, %p46
    %p48 = scmp.ne.s32.totalorder %s40, %s43
    %p49 = scmp.eq.s32.totalorder %s9, 0
    %p50 = por %p48, %p49
    %p51 = scmp.ne.s32.totalorder %s40, %s43
    %p52 = scmp.eq.s32.totalorder %s14, 1
    %p53 = por %p51, %p52
    %p54 = scmp.ne.s32.totalorder %s43, %s44
    %p55 = scmp.eq.s32.totalorder %s14, 0
    %p56 = por %p54, %p55
    %p57 = scmp.ne.s32.totalorder %s43, %s44
    %p58 = scmp.eq.s32.totalorder %s15, 1
    %p59 = por %p57, %p58
    %p61 = scmp.ne.s32.totalorder %s44, %s60
    %p62 = scmp.eq.s32.totalorder %s15, 0
    %p63 = por %p61, %p62
    %s65 = sadd.s32 %s64, 1
    %p68 = scmp.eq.s32.totalorder %s9, 1
    %p69 = scmp.ne.s32.totalorder %s64, %s66
    %p70 = scmp.eq.s32.totalorder %s9, 0
    %p71 = por %p69, %p70
    %p72 = scmp.ne.s32.totalorder %s64, %s66
    %p73 = scmp.eq.s32.totalorder %s14, 1
    %p74 = por %p72, %p73
    %p75 = scmp.ne.s32.totalorder %s66, %s67
    %p76 = scmp.eq.s32.totalorder %s14, 0
    %p77 = por %p75, %p76
    %p78 = scmp.ne.s32.totalorder %s66, %s67
    %p79 = scmp.eq.s32.totalorder %s15, 1
    %p80 = por %p78, %p79
    %p82 = scmp.ne.s32.totalorder %s67, %s81
    %p83 = scmp.eq.s32.totalorder %s15, 0
    %p84 = por %p82, %p83
    %s85 = ssub.s32 %s9, %s16
    %p86 = scmp.eq.s32.totalorder %s85, 0
    %s88 = sadd.s32 %s87, 1
    %s89 = scalar_select %p86, %s87, %s88
    %p92 = pneg %p86
    %p93 = scmp.eq.s32.totalorder %s9, 1
    %p94 = por %p92, %p93
    %p95 = scmp.ne.s32.totalorder %s87, %s90
    %p96 = scmp.eq.s32.totalorder %s9, 0
    %p97 = por %p95, %p96
    %p98 = scmp.ne.s32.totalorder %s87, %s90
    %p99 = scmp.eq.s32.totalorder %s14, 1
    %p100 = por %p98, %p99
    %p101 = scmp.ne.s32.totalorder %s90, %s91
    %p102 = scmp.eq.s32.totalorder %s14, 0
    %p103 = por %p101, %p102
    %p104 = scmp.ne.s32.totalorder %s90, %s91
    %p105 = scmp.eq.s32.totalorder %s15, 1
    %p106 = por %p104, %p105
    %p108 = scmp.ne.s32.totalorder %s91, %s107
    %p109 = scmp.eq.s32.totalorder %s15, 0
    %p110 = por %p108, %p109
    %p111 = scmp.le.s32.totalorder 1, %s9
    %p112 = scmp.lt.s32.totalorder %s9, 3
    %p113 = pnand %p111, %p112
    %p114 = pneg %p113
    // Predicated region
    $region9: #{_lambda_.170} parent=5 // pred_check
      _
    $region10: #{_lambda_.170} parent=5 // pred_check_branch
      %116 = sbr.rel (%p113) target = $region12
    $region11: #{_lambda_.170} parent=5 // pred_region
      %s117 = ssub.s32 %s9, 1
      // Predicated region
      $region13: #{_lambda_.170} parent=11 // pred_check
        %p118 = pneg %p30
      $region14: #{_lambda_.170} parent=11 // pred_check_branch
        %120 = sbr.rel (%p118) target = $region16
      $region15: #{_lambda_.170} parent=11 // pred_region
        _
      $region16: #{_lambda_.170} parent=11 // pred_fallthru
        _
      // Predicated region
      $region17: #{_lambda_.170} parent=11 // pred_check
        %p121 = pneg %p77
      $region18: #{_lambda_.170} parent=11 // pred_check_branch
        %123 = sbr.rel (%p121) target = $region20
      $region19: #{_lambda_.170} parent=11 // pred_region
        _
      $region20: #{_lambda_.170} parent=11 // pred_fallthru
        _
    $region12: #{_lambda_.170} parent=5 // pred_fallthru
      _
    %p124 = scmp.lt.s32.totalorder %s9, 2
    // Predicated region
    $region21: #{_lambda_.170} parent=5 // pred_check
      %p125 = pneg %p124
    $region22: #{_lambda_.170} parent=5 // pred_check_branch
      %127 = sbr.rel (%p125) target = $region24
    $region23: #{_lambda_.170} parent=5 // pred_region
      // Predicated region
      $region25: #{_lambda_.170} parent=23 // pred_check
        %p128 = pneg %p50
      $region26: #{_lambda_.170} parent=23 // pred_check_branch
        %130 = sbr.rel (%p128) target = $region28
      $region27: #{_lambda_.170} parent=23 // pred_region
        %p131 = scmp.lt.s32.totalorder %s9, 1
        %s132 = scalar_select %p131, %s9, 1
        %s133 = smul.addr %s132, 36
        %s134 = smul.addr %s133, 4
        %s135 = scalar_lea.vmem %s1, %s134
      $region28: #{_lambda_.170} parent=23 // pred_fallthru
        _
    $region24: #{_lambda_.170} parent=5 // pred_fallthru
      _
    %p136 = scmp.le.s32.totalorder 1, %s9
    %p137 = scmp.lt.s32.totalorder %s9, 3
    %p138 = pnand %p136, %p137
    %p139 = pneg %p138
    // Predicated region
    $region29: #{_lambda_.170} parent=5 // pred_check
      _
    $region30: #{_lambda_.170} parent=5 // pred_check_branch
      %141 = sbr.rel (%p138) target = $region32
    $region31: #{_lambda_.170} parent=5 // pred_region
      %s142 = ssub.s32 %s9, 1
      %p143 = pneg %p30
      %p144 = pneg %p27
      %p145 = scmp.lt.s32.totalorder %s14, 1
      %s146 = scalar_select %p145, %s14, 1
      %s147 = smul.addr %s146, 36
      %s148 = smul.addr %s147, 4
      %s149 = scalar_lea.vmem %s1, %s148
      %p150 = pneg %p56
      %p151 = pneg %p53
      %p152 = pneg %p77
      %p153 = pneg %p74
      %p154 = pneg %p103
      %p155 = pneg %p100
      %p156 = scmp.lt.s32.totalorder %s14, 1
      %s157 = scalar_select %p156, %s14, 1
      %s158 = smul.addr %s157, 4
      %s159 = smul.addr %s158, 4
      %s160 = scalar_lea.vmem %s3, %s159
      %p161 = scmp.lt.s32.totalorder %s14, 1
      %s162 = scalar_select %p161, %s14, 1
      %s163 = smul.addr %s162, 36
      %s164 = smul.addr %s163, 4
      %s165 = scalar_lea.vmem %s1, %s164
      %p166 = scmp.lt.s32.totalorder %s14, 1
      %s167 = scalar_select %p166, %s14, 1
      %s168 = smul.addr %s167, 4
      %s169 = smul.addr %s168, 4
      %s170 = scalar_lea.vmem %s3, %s169
      %v172 = vld [vmem:[%s0] sm:$0xff]
      %v173 = vld [vmem:[%s0 + $0x8] sm:$0xff]
      %v174 = vld [vmem:[%s165] sm:$0xff]
      %v175 = vld [vmem:[%s165 + $0x8] sm:$0xff]
      %v176 = vld [vmem:[%s165 + $0x10] sm:$0xff]
      %v177 = vld [vmem:[%s165 + $0x18] sm:$0xff]
      %v178 = vld [vmem:[%s165 + $0x20] sm:$0xff]
      %v179 = vld [vmem:[%s165 + $0x28] sm:$0xff]
      %v180 = vld [vmem:[%s165 + $0x30] sm:$0xff]
      %v181 = vld [vmem:[%s165 + $0x38] sm:$0xff]
      %v182 = vld [vmem:[%s165 + $0x40] sm:$0xff]
      %v183 = vld [vmem:[%s165 + $0x48] sm:$0xff]
      %v184 = vld [vmem:[%s165 + $0x50] sm:$0xff]
      %v185 = vld [vmem:[%s165 + $0x58] sm:$0xff]
      %v186 = vld [vmem:[%s165 + $0x60] sm:$0xff]
      %v187 = vld [vmem:[%s165 + $0x68] sm:$0xff]
      %v188 = vld [vmem:[%s165 + $0x70] sm:$0xff]
      %v189 = vld [vmem:[%s165 + $0x78] sm:$0xff]
      %v190 = vld [vmem:[%s165 + $0x80] sm:$0xff]
      %v191 = vld [vmem:[%s165 + $0x88] sm:$0xff]
      %v194 = vunpack.c.l.b16 %v172
      %v195 = vunpack.c.h.b16 %v172
      %v196 = vunpack.c.l.b16 %v173
      %v197 = vunpack.c.h.b16 %v173
      %v198 = vpack.c.b16 %v196, %v194
      %v199 = vpack.c.b16 %v197, %v195
      %v219 = vunpack.c.l.b16 %v174
      %v220 = vunpack.c.h.b16 %v174
      %v221 = vunpack.c.l.b16 %v175
      %v222 = vunpack.c.h.b16 %v175
      %v223 = vunpack.c.l.b16 %v176
      %v224 = vunpack.c.h.b16 %v176
      %v225 = vunpack.c.l.b16 %v177
      %v226 = vunpack.c.h.b16 %v177
      %v227 = vunpack.c.l.b16 %v178
      %v228 = vunpack.c.h.b16 %v178
      %v229 = vunpack.c.l.b16 %v179
      %v230 = vunpack.c.h.b16 %v179
      %v231 = vunpack.c.l.b16 %v180
      %v232 = vunpack.c.h.b16 %v180
      %v233 = vunpack.c.l.b16 %v181
      %v234 = vunpack.c.h.b16 %v181
      %v235 = vunpack.c.l.b16 %v182
      %v236 = vunpack.c.h.b16 %v182
      %v237 = vunpack.c.l.b16 %v183
      %v238 = vunpack.c.h.b16 %v183
      %v239 = vunpack.c.l.b16 %v184
      %v240 = vunpack.c.h.b16 %v184
      %v241 = vunpack.c.l.b16 %v185
      %v242 = vunpack.c.h.b16 %v185
      %v243 = vunpack.c.l.b16 %v186
      %v244 = vunpack.c.h.b16 %v186
      %v245 = vunpack.c.l.b16 %v187
      %v246 = vunpack.c.h.b16 %v187
      %v247 = vunpack.c.l.b16 %v188
      %v248 = vunpack.c.h.b16 %v188
      %v249 = vunpack.c.l.b16 %v189
      %v250 = vunpack.c.h.b16 %v189
      %v251 = vunpack.c.l.b16 %v190
      %v252 = vunpack.c.h.b16 %v190
      %v253 = vunpack.c.l.b16 %v191
      %v254 = vunpack.c.h.b16 %v191
      %v255 = vpack.c.b16 %v221, %v219
      %v256 = vpack.c.b16 %v222, %v220
      %v257 = vpack.c.b16 %v225, %v223
      %v258 = vpack.c.b16 %v226, %v224
      %v259 = vpack.c.b16 %v229, %v227
      %v260 = vpack.c.b16 %v230, %v228
      %v261 = vpack.c.b16 %v233, %v231
      %v262 = vpack.c.b16 %v234, %v232
      %v263 = vpack.c.b16 %v237, %v235
      %v264 = vpack.c.b16 %v238, %v236
      %v265 = vpack.c.b16 %v241, %v239
      %v266 = vpack.c.b16 %v242, %v240
      %v267 = vpack.c.b16 %v245, %v243
      %v268 = vpack.c.b16 %v246, %v244
      %v269 = vpack.c.b16 %v249, %v247
      %v270 = vpack.c.b16 %v250, %v248
      %v271 = vpack.c.b16 %v253, %v251
      %v272 = vpack.c.b16 %v254, %v252
      %vm291 = vcmask 130048
      %v293 = vsel %vm291, %v199, 0
      %295 = vmatprep.subr.bf16.mxu0 %v256
      %296 = vmatpush1.bf16.msra.mxu0 %v255
      %297 = vmatprep.subr.bf16.mxu0 %v258
      %298 = vmatpush1.bf16.msra.mxu0 %v257
      %299 = vmatprep.subr.bf16.mxu0 %v260
      %300 = vmatpush1.bf16.msra.mxu0 %v259
      %301 = vmatprep.subr.bf16.mxu0 %v262
      %302 = vmatpush1.bf16.msra.mxu0 %v261
      %303 = vmatprep.subr.bf16.mxu0 %v264
      %304 = vmatpush1.bf16.msra.mxu0 %v263
      %305 = vmatprep.subr.bf16.mxu0 %v266
      %306 = vmatpush1.bf16.msra.mxu0 %v265
      %307 = vmatprep.subr.bf16.mxu0 %v268
      %308 = vmatpush1.bf16.msra.mxu0 %v267
      %309 = vmatprep.subr.bf16.mxu0 %v270
      %310 = vmatpush1.bf16.msra.mxu0 %v269
      %311 = vmatprep.subr.bf16.mxu0 %v272
      %312 = vmatpush1.bf16.msra.mxu0 %v271
      %313 = vmatprep.subr.bf16.mxu0 0
      %314 = vmatpush1.bf16.msra.mxu0 0
      %315 = vmatprep.subr.bf16.mxu0 0
      %316 = vmatpush1.bf16.msra.mxu0 0
      %317 = vmatprep.subr.bf16.mxu0 0
      %318 = vmatpush1.bf16.msra.mxu0 0
      %319 = vmatprep.subr.bf16.mxu0 0
      %320 = vmatpush1.bf16.msra.mxu0 0
      %321 = vmatprep.subr.bf16.mxu0 0
      %322 = vmatpush1.bf16.msra.mxu0 0
      %323 = vmatprep.subr.bf16.mxu0 0
      %324 = vmatpush1.bf16.msra.mxu0 0
      %325 = vmatprep.subr.bf16.mxu0 0
      %326 = vmatpush1.bf16.msra.mxu0 0
      %327 = vmatprep.mubr.bf16.mxu0 %v293
      %328 = vmatmul.mubr.bf16.gmra.mrb[0].mxu0 %v198
      %v329 = vpop.f32.mrb[0].mxu0
      %v330 = vadd.f32 0.0, %v329
      %v331 = vpop.f32.mrb[0].mxu0
      %v332 = vadd.f32 0.0, %v331
      %v333 = vpop.f32.mrb[0].mxu0
      %v334 = vadd.f32 0.0, %v333
      %v335 = vpop.f32.mrb[0].mxu0
      %v336 = vadd.f32 0.0, %v335
      %337 = vdwg.mxu0
      %v338 = vadd.f32 %v330, %v332
      %v339 = vadd.f32 %v338, %v334
      %v340 = vadd.f32 %v339, %v336
      %341 = vadd.xlane.f32.xlu0 %v340
      %v342 = vpop.xlane.xlu0 %341
      %v343 = vrot.slane %v342, 4
      %v344 = vadd.f32 %v342, %v343
      %v345 = vrot.slane %v344, 2
      %v346 = vadd.f32 %v344, %v345
      %v347 = vrot.slane %v346, 1
      %v348 = vadd.f32 %v346, %v347
      %s349 = vtos %v348
      %v350 = vrcp.pop 4096.0
      %s351 = vtos %v350
      %s352 = smul.f32 %s349, %s351
      %v353 = vstv %s352
      %v354 = vsub.f32 %v330, %v353
      %v355 = vsub.f32 %v332, %v353
      %v356 = vsub.f32 %v334, %v353
      %v357 = vsub.f32 %v336, %v353
      %v358 = vmul.f32 %v354, %v354
      %v359 = vmul.f32 %v355, %v355
      %v360 = vmul.f32 %v356, %v356
      %v361 = vmul.f32 %v357, %v357
      %v362 = vadd.f32 %v358, %v359
      %v363 = vadd.f32 %v362, %v360
      %v364 = vadd.f32 %v363, %v361
      %365 = vadd.xlane.f32.xlu0 %v364
      %v366 = vpop.xlane.xlu0 %365
      %v367 = vrot.slane %v366, 4
      %v368 = vadd.f32 %v366, %v367
      %v369 = vrot.slane %v368, 2
      %v370 = vadd.f32 %v368, %v369
      %v371 = vrot.slane %v370, 1
      %v372 = vadd.f32 %v370, %v371
      %s373 = vtos %v372
      %v374 = vrcp.pop 4096.0
      %s375 = vtos %v374
      %s376 = smul.f32 %s373, %s375
      %s377 = sadd.f32 %s376, 1e-05
      %v378 = vstv %s377
      %v379 = vrsqrt.pop %v378
      %s380 = vtos %v379
      %v381 = vstv %s380
      %v382 = vmul.f32 %v354, %v381
      %v383 = vmul.f32 %v355, %v381
      %v384 = vmul.f32 %v356, %v381
      %v385 = vmul.f32 %v357, %v381
      %v386 = vld [vmem:[%s2] sm:$0xff]
      %v387 = vld [vmem:[%s2 + $0x8] sm:$0xff]
      %vm388 = vcmp.gt.f32.partialorder %v382, 0.0
      %vm389 = vcmp.gt.f32.partialorder %v383, 0.0
      %vm390 = vcmp.gt.f32.partialorder %v384, 0.0
      %vm391 = vcmp.gt.f32.partialorder %v385, 0.0
      %393 = vset.pattern.permute.xlu0 0
      %394 = vperm.xlu0 %393, %v386
      %v395 = vpop.permute.xlu0 %394
      %398 = vset.pattern.permute.xlu0 0
      %399 = vperm.xlu0 %398, %v387
      %v400 = vpop.permute.xlu0 %399
      %v402 = vmul.f32 %v395, %v382
      %v403 = vmul.f32 %v395, %v383
      %v404 = vmul.f32 %v400, %v384
      %v405 = vmul.f32 %v400, %v385
      %v406 = vsel %vm388, %v382, %v402
      %v407 = vsel %vm389, %v383, %v403
      %v408 = vsel %vm390, %v384, %v404
      %v409 = vsel %vm391, %v385, %v405
      %v410 = vpack.c.bf16 %v408, %v406
      %v411 = vpack.c.bf16 %v409, %v407
      %v414 = vunpack.c.l.b16 %v410
      %v415 = vunpack.c.l.b16 %v411
      %v416 = vunpack.c.h.b16 %v410
      %v417 = vunpack.c.h.b16 %v411
      %v418 = vpack.c.b16 %v415, %v414
      %v419 = vpack.c.b16 %v417, %v416
      %422 = vst [vmem:[%s170] sm:$0xff] %v418
      %423 = vst [vmem:[%s170 + $0x8] sm:$0xff] %v419
      %p424 = scmp.lt.s32.totalorder %s14, 1
      %s425 = scalar_select %p424, %s14, 1
      %s426 = smul.addr %s425, 4
      %s427 = smul.addr %s426, 4
      %s428 = scalar_lea.vmem %s3, %s427
      // Predicated region
      $region33: #{_lambda_.170} parent=31 // pred_check
        %p429 = pneg %p100
      $region34: #{_lambda_.170} parent=31 // pred_check_branch
        %431 = sbr.rel (%p429) target = $region36
      $region35: #{_lambda_.170} parent=31 // pred_region
        _
      $region36: #{_lambda_.170} parent=31 // pred_fallthru
        _
    $region32: #{_lambda_.170} parent=5 // pred_fallthru
      _
    %p432 = scmp.le.s32.totalorder 2, %s9
    // Predicated region
    $region37: #{_lambda_.170} parent=5 // pred_check
      %p433 = pneg %p432
    $region38: #{_lambda_.170} parent=5 // pred_check_branch
      %435 = sbr.rel (%p433) target = $region40
    $region39: #{_lambda_.170} parent=5 // pred_region
      %s436 = ssub.s32 %s9, 2
      // Predicated region
      $region41: #{_lambda_.170} parent=39 // pred_check
        %p437 = pneg %p106
      $region42: #{_lambda_.170} parent=39 // pred_check_branch
        %439 = sbr.rel (%p437) target = $region44
      $region43: #{_lambda_.170} parent=39 // pred_region
        %p440 = scmp.lt.s32.totalorder %s15, 1
        %s441 = scalar_select %p440, %s15, 1
        %s442 = smul.addr %s441, 4
        %s443 = smul.addr %s442, 4
        %s444 = scalar_lea.vmem %s3, %s443
      $region44: #{_lambda_.170} parent=39 // pred_fallthru
        _
    $region40: #{_lambda_.170} parent=5 // pred_fallthru
      _
  $region6: #{_lambda_.170} parent=0 // loop_footer
    %s13 = sadd.s32 1, %s9
  $region7: #{_lambda_.170} parent=0 // loop_footer_branch
    %8 = sbr.rel target = $region3
  $region8: #{_lambda_.170} parent=0 // loop_exit
    _

// kernel: _lambda_.173
$region0: #{_lambda_.173}
  #allocation0 [shape = 'u32[]', space=smem, size = 0x4, offset = 0x4, fixed_abs, tag = 'smem constant byte address 0x4 - core index']
  #allocation1 [shape = 'u32[144,128]{1,0:T(1,128)}', space=vmem, size = 0x12000, scoped, tag = 'internal scratch']
  %s0 = inlined_call_operand.vmem [shape: bf16[3,144], index: 0, kind: input, shape index: {}]
  %s1 = inlined_call_operand.vmem [shape: bf16[2,144,256], index: 1, kind: input, shape index: {}]
  %s2 = inlined_call_operand.vmem [shape: bf16[2,3,256], index: 2, kind: output, shape index: {}]
  %s3 = sld [smem:[#allocation0]]
  $region41: #{_lambda_.173} parent=0
    _
  %s5 = ssub.s32 1, %s3
  %s6 = scalar_select 0, %s5, %s3
  loop: start=0, step=1, limit=4
  $region2: #{_lambda_.173} parent=0 // loop_pre_header
    _
  $region3: #{_lambda_.173} parent=0 // loop_header
    %s8 = sphi 0, %s12
    %p9 = scmp.ge.s32.totalorder %s8, 4
    %s16 = sphi 0, %s16
    %s18 = sphi 0, %s16
    %s19 = sphi 0, %s18
    %s33 = sphi 0, %s19
    %s39 = sphi 0, %s41
    %s42 = sphi 0, %s39
    %s43 = sphi 0, %s42
    %s59 = sphi 0, %s43
    %s65 = sphi 0, %s67
    %s68 = sphi 0, %s65
    %s69 = sphi 0, %s68
    %s85 = sphi 0, %s69
  $region4: #{_lambda_.173} parent=0 // loop_header_branch
    %11 = sbr.rel (%p9) target = $region8
  $region5: #{_lambda_.173} parent=0 // loop_body
    %s13 = ssub.s32 %s8, 1
    %s14 = ssub.s32 %s8, 2
    %s15 = sadd.s32 %s8, 1
    %s17 = sadd.s32 %s16, 1
    %p20 = scmp.eq.s32.totalorder %s8, 1
    %p21 = scmp.ne.s32.totalorder %s16, %s18
    %p22 = scmp.eq.s32.totalorder %s8, 0
    %p23 = por %p21, %p22
    %p24 = scmp.ne.s32.totalorder %s16, %s18
    %p25 = scmp.eq.s32.totalorder %s13, 1
    %p26 = por %p24, %p25
    %p27 = scmp.ne.s32.totalorder %s18, %s19
    %p28 = scmp.eq.s32.totalorder %s13, 0
    %p29 = por %p27, %p28
    %p30 = scmp.ne.s32.totalorder %s18, %s19
    %p31 = scmp.eq.s32.totalorder %s14, 1
    %p32 = por %p30, %p31
    %p34 = scmp.ne.s32.totalorder %s19, %s33
    %p35 = scmp.eq.s32.totalorder %s14, 0
    %p36 = por %p34, %p35
    %s37 = ssub.s32 %s8, %s15
    %p38 = scmp.eq.s32.totalorder %s37, 0
    %s40 = sadd.s32 %s39, 1
    %s41 = scalar_select %p38, %s39, %s40
    %p44 = pneg %p38
    %p45 = scmp.eq.s32.totalorder %s8, 1
    %p46 = por %p44, %p45
    %p47 = scmp.ne.s32.totalorder %s39, %s42
    %p48 = scmp.eq.s32.totalorder %s8, 0
    %p49 = por %p47, %p48
    %p50 = scmp.ne.s32.totalorder %s39, %s42
    %p51 = scmp.eq.s32.totalorder %s13, 1
    %p52 = por %p50, %p51
    %p53 = scmp.ne.s32.totalorder %s42, %s43
    %p54 = scmp.eq.s32.totalorder %s13, 0
    %p55 = por %p53, %p54
    %p56 = scmp.ne.s32.totalorder %s42, %s43
    %p57 = scmp.eq.s32.totalorder %s14, 1
    %p58 = por %p56, %p57
    %p60 = scmp.ne.s32.totalorder %s43, %s59
    %p61 = scmp.eq.s32.totalorder %s14, 0
    %p62 = por %p60, %p61
    %s63 = ssub.s32 %s8, %s15
    %p64 = scmp.eq.s32.totalorder %s63, 0
    %s66 = sadd.s32 %s65, 1
    %s67 = scalar_select %p64, %s65, %s66
    %p70 = pneg %p64
    %p71 = scmp.eq.s32.totalorder %s8, 1
    %p72 = por %p70, %p71
    %p73 = scmp.ne.s32.totalorder %s65, %s68
    %p74 = scmp.eq.s32.totalorder %s8, 0
    %p75 = por %p73, %p74
    %p76 = scmp.ne.s32.totalorder %s65, %s68
    %p77 = scmp.eq.s32.totalorder %s13, 1
    %p78 = por %p76, %p77
    %p79 = scmp.ne.s32.totalorder %s68, %s69
    %p80 = scmp.eq.s32.totalorder %s13, 0
    %p81 = por %p79, %p80
    %p82 = scmp.ne.s32.totalorder %s68, %s69
    %p83 = scmp.eq.s32.totalorder %s14, 1
    %p84 = por %p82, %p83
    %p86 = scmp.ne.s32.totalorder %s69, %s85
    %p87 = scmp.eq.s32.totalorder %s14, 0
    %p88 = por %p86, %p87
    %p89 = scmp.le.s32.totalorder 1, %s8
    %p90 = scmp.lt.s32.totalorder %s8, 3
    %p91 = pnand %p89, %p90
    %p92 = pneg %p91
    // Predicated region
    $region9: #{_lambda_.173} parent=5 // pred_check
      _
    $region10: #{_lambda_.173} parent=5 // pred_check_branch
      %94 = sbr.rel (%p91) target = $region12
    $region11: #{_lambda_.173} parent=5 // pred_region
      %s95 = ssub.s32 %s8, 1
      // Predicated region
      $region13: #{_lambda_.173} parent=11 // pred_check
        %p96 = pneg %p29
      $region14: #{_lambda_.173} parent=11 // pred_check_branch
        %98 = sbr.rel (%p96) target = $region16
      $region15: #{_lambda_.173} parent=11 // pred_region
        _
      $region16: #{_lambda_.173} parent=11 // pred_fallthru
        _
    $region12: #{_lambda_.173} parent=5 // pred_fallthru
      _
    %p99 = scmp.lt.s32.totalorder %s8, 2
    // Predicated region
    $region17: #{_lambda_.173} parent=5 // pred_check
      %p100 = pneg %p99
    $region18: #{_lambda_.173} parent=5 // pred_check_branch
      %102 = sbr.rel (%p100) target = $region20
    $region19: #{_lambda_.173} parent=5 // pred_region
      // Predicated region
      $region21: #{_lambda_.173} parent=19 // pred_check
        %p103 = pneg %p49
      $region22: #{_lambda_.173} parent=19 // pred_check_branch
        %105 = sbr.rel (%p103) target = $region24
      $region23: #{_lambda_.173} parent=19 // pred_region
        %p106 = scmp.lt.s32.totalorder %s8, 1
        %s107 = scalar_select %p106, %s8, 1
        %s108 = smul.addr %s107, 36
        %s109 = smul.addr %s108, 4
        %s110 = scalar_lea.vmem %s1, %s109
      $region24: #{_lambda_.173} parent=19 // pred_fallthru
        _
    $region20: #{_lambda_.173} parent=5 // pred_fallthru
      _
    %p111 = scmp.le.s32.totalorder 1, %s8
    %p112 = scmp.lt.s32.totalorder %s8, 3
    %p113 = pnand %p111, %p112
    %p114 = pneg %p113
    // Predicated region
    $region25: #{_lambda_.173} parent=5 // pred_check
      _
    $region26: #{_lambda_.173} parent=5 // pred_check_branch
      %116 = sbr.rel (%p113) target = $region28
    $region27: #{_lambda_.173} parent=5 // pred_region
      %s117 = ssub.s32 %s8, 1
      %p118 = pneg %p29
      %p119 = pneg %p26
      %p120 = scmp.lt.s32.totalorder %s13, 1
      %s121 = scalar_select %p120, %s13, 1
      %s122 = smul.addr %s121, 36
      %s123 = smul.addr %s122, 4
      %s124 = scalar_lea.vmem %s1, %s123
      %p125 = pneg %p55
      %p126 = pneg %p52
      %p127 = pneg %p81
      %p128 = pneg %p78
      %p129 = scmp.lt.s32.totalorder %s13, 1
      %s130 = scalar_select %p129, %s13, 1
      %s131 = smul.addr %s130, 2
      %s132 = smul.addr %s131, 2
      %s133 = scalar_lea.vmem %s2, %s132
      %p134 = scmp.lt.s32.totalorder %s13, 1
      %s135 = scalar_select %p134, %s13, 1
      %s136 = smul.addr %s135, 36
      %s137 = smul.addr %s136, 4
      %s138 = scalar_lea.vmem %s1, %s137
      %p139 = scmp.lt.s32.totalorder %s13, 1
      %s140 = scalar_select %p139, %s13, 1
      %s141 = smul.addr %s140, 2
      %s142 = smul.addr %s141, 2
      %s143 = scalar_lea.vmem %s2, %s142
      %v145 = vld [vmem:[%s0] sm:$0xf]
      %v146 = vld [vmem:[%s138] sm:$0xff]
      %v147 = vld [vmem:[%s138 + $0x8] sm:$0xff]
      %v148 = vld [vmem:[%s138 + $0x10] sm:$0xff]
      %v149 = vld [vmem:[%s138 + $0x18] sm:$0xff]
      %v150 = vld [vmem:[%s138 + $0x20] sm:$0xff]
      %v151 = vld [vmem:[%s138 + $0x28] sm:$0xff]
      %v152 = vld [vmem:[%s138 + $0x30] sm:$0xff]
      %v153 = vld [vmem:[%s138 + $0x38] sm:$0xff]
      %v154 = vld [vmem:[%s138 + $0x40] sm:$0xff]
      %v155 = vld [vmem:[%s138 + $0x48] sm:$0xff]
      %v156 = vld [vmem:[%s138 + $0x50] sm:$0xff]
      %v157 = vld [vmem:[%s138 + $0x58] sm:$0xff]
      %v158 = vld [vmem:[%s138 + $0x60] sm:$0xff]
      %v159 = vld [vmem:[%s138 + $0x68] sm:$0xff]
      %v160 = vld [vmem:[%s138 + $0x70] sm:$0xff]
      %v161 = vld [vmem:[%s138 + $0x78] sm:$0xff]
      %v162 = vld [vmem:[%s138 + $0x80] sm:$0xff]
      %v163 = vld [vmem:[%s138 + $0x88] sm:$0xff]
      %v166 = vunpack.c.l.s4 1983009808
      %v167 = vunpack.c.0.s8 %v166
      %v168 = vlaneseq
      %v169 = vshrl.u32 %v168, 7
      %v170 = vsub.s32 %v167, %v169
      %v171 = vrot.slane %v145, %v170
      %v172 = vcombine.high %v171, %v171
      %v192 = vunpack.c.l.b16 %v146
      %v193 = vunpack.c.h.b16 %v146
      %v194 = vunpack.c.l.b16 %v147
      %v195 = vunpack.c.h.b16 %v147
      %v196 = vunpack.c.l.b16 %v148
      %v197 = vunpack.c.h.b16 %v148
      %v198 = vunpack.c.l.b16 %v149
      %v199 = vunpack.c.h.b16 %v149
      %v200 = vunpack.c.l.b16 %v150
      %v201 = vunpack.c.h.b16 %v150
      %v202 = vunpack.c.l.b16 %v151
      %v203 = vunpack.c.h.b16 %v151
      %v204 = vunpack.c.l.b16 %v152
      %v205 = vunpack.c.h.b16 %v152
      %v206 = vunpack.c.l.b16 %v153
      %v207 = vunpack.c.h.b16 %v153
      %v208 = vunpack.c.l.b16 %v154
      %v209 = vunpack.c.h.b16 %v154
      %v210 = vunpack.c.l.b16 %v155
      %v211 = vunpack.c.h.b16 %v155
      %v212 = vunpack.c.l.b16 %v156
      %v213 = vunpack.c.h.b16 %v156
      %v214 = vunpack.c.l.b16 %v157
      %v215 = vunpack.c.h.b16 %v157
      %v216 = vunpack.c.l.b16 %v158
      %v217 = vunpack.c.h.b16 %v158
      %v218 = vunpack.c.l.b16 %v159
      %v219 = vunpack.c.h.b16 %v159
      %v220 = vunpack.c.l.b16 %v160
      %v221 = vunpack.c.h.b16 %v160
      %v222 = vunpack.c.l.b16 %v161
      %v223 = vunpack.c.h.b16 %v161
      %v224 = vunpack.c.l.b16 %v162
      %v225 = vunpack.c.h.b16 %v162
      %v226 = vunpack.c.l.b16 %v163
      %v227 = vunpack.c.h.b16 %v163
      %v228 = vpack.c.b16 %v194, %v192
      %v229 = vpack.c.b16 %v195, %v193
      %v230 = vpack.c.b16 %v198, %v196
      %v231 = vpack.c.b16 %v199, %v197
      %v232 = vpack.c.b16 %v202, %v200
      %v233 = vpack.c.b16 %v203, %v201
      %v234 = vpack.c.b16 %v206, %v204
      %v235 = vpack.c.b16 %v207, %v205
      %v236 = vpack.c.b16 %v210, %v208
      %v237 = vpack.c.b16 %v211, %v209
      %v238 = vpack.c.b16 %v214, %v212
      %v239 = vpack.c.b16 %v215, %v213
      %v240 = vpack.c.b16 %v218, %v216
      %v241 = vpack.c.b16 %v219, %v217
      %v242 = vpack.c.b16 %v222, %v220
      %v243 = vpack.c.b16 %v223, %v221
      %v244 = vpack.c.b16 %v226, %v224
      %v245 = vpack.c.b16 %v227, %v225
      %vm264 = vcmask 130048
      %v266 = vsel %vm264, %v172, 0
      %268 = vmatprep.subr.bf16.mxu0 %v229
      %269 = vmatpush1.bf16.msra.mxu0 %v228
      %270 = vmatprep.subr.bf16.mxu0 %v231
      %271 = vmatpush1.bf16.msra.mxu0 %v230
      %272 = vmatprep.subr.bf16.mxu0 %v233
      %273 = vmatpush1.bf16.msra.mxu0 %v232
      %274 = vmatprep.subr.bf16.mxu0 %v235
      %275 = vmatpush1.bf16.msra.mxu0 %v234
      %276 = vmatprep.subr.bf16.mxu0 %v237
      %277 = vmatpush1.bf16.msra.mxu0 %v236
      %278 = vmatprep.subr.bf16.mxu0 %v239
      %279 = vmatpush1.bf16.msra.mxu0 %v238
      %280 = vmatprep.subr.bf16.mxu0 %v241
      %281 = vmatpush1.bf16.msra.mxu0 %v240
      %282 = vmatprep.subr.bf16.mxu0 %v243
      %283 = vmatpush1.bf16.msra.mxu0 %v242
      %284 = vmatprep.subr.bf16.mxu0 %v245
      %285 = vmatpush1.bf16.msra.mxu0 %v244
      %286 = vmatprep.subr.bf16.mxu0 0
      %287 = vmatpush1.bf16.msra.mxu0 0
      %288 = vmatprep.subr.bf16.mxu0 0
      %289 = vmatpush1.bf16.msra.mxu0 0
      %290 = vmatprep.subr.bf16.mxu0 0
      %291 = vmatpush1.bf16.msra.mxu0 0
      %292 = vmatprep.subr.bf16.mxu0 0
      %293 = vmatpush1.bf16.msra.mxu0 0
      %294 = vmatprep.subr.bf16.mxu0 0
      %295 = vmatpush1.bf16.msra.mxu0 0
      %296 = vmatprep.subr.bf16.mxu0 0
      %297 = vmatpush1.bf16.msra.mxu0 0
      %298 = vmatprep.subr.bf16.mxu0 0
      %299 = vmatpush1.bf16.msra.mxu0 0
      %300 = vmatprep.mubr.bf16.mxu0 %v266
      %301 = vmatmul.mubr.bf16.gmra.mrb[0].mxu0 %v171
      %v302 = vpop.f32.mrb[0].mxu0
      %v303 = vadd.f32 0.0, %v302
      %v304 = vpop.f32.mrb[0].mxu0
      %v305 = vadd.f32 0.0, %v304
      %v306 = vpop.f32.mrb[0].mxu0
      %v307 = vpop.f32.mrb[0].mxu0
      %308 = vdwg.mxu0
      %v309 = vpack.c.bf16 %v303, %v303
      %v310 = vpack.c.bf16 %v305, %v305
      %v313 = vcombine.low %v309, %v310
      %v315 = vunpack.c.l.s4 1983009808
      %v316 = vunpack.c.0.s8 %v315
      %v317 = vlaneseq
      %v318 = vshrl.u32 %v317, 7
      %v319 = vsub.s32 %v316, %v318
      %v320 = vrot.slane %v313, %v319
      %vm322 = vcmask 1041408
      %vm323 = vsmask.f32 1280
      %vm324 = vmand %vm322, %vm323
      %vm325 = vcmask 1043458
      %vm326 = vsmask.f32 3328
      %vm327 = vmand %vm325, %vm326
      %vm328 = vmor %vm327, %vm324
      %v329 = vld [vmem:[%s143] sm:$0xf]
      %v330 = vsel %vm328, %v320, %v329
      %331 = vst [vmem:[%s143] sm:$0xf] %v330
      %p332 = scmp.lt.s32.totalorder %s13, 1
      %s333 = scalar_select %p332, %s13, 1
      %s334 = smul.addr %s333, 2
      %s335 = smul.addr %s334, 2
      %s336 = scalar_lea.vmem %s2, %s335
      // Predicated region
      $region29: #{_lambda_.173} parent=27 // pred_check
        %p337 = pneg %p78
      $region30: #{_lambda_.173} parent=27 // pred_check_branch
        %339 = sbr.rel (%p337) target = $region32
      $region31: #{_lambda_.173} parent=27 // pred_region
        _
      $region32: #{_lambda_.173} parent=27 // pred_fallthru
        _
    $region28: #{_lambda_.173} parent=5 // pred_fallthru
      _
    %p340 = scmp.le.s32.totalorder 2, %s8
    // Predicated region
    $region33: #{_lambda_.173} parent=5 // pred_check
      %p341 = pneg %p340
    $region34: #{_lambda_.173} parent=5 // pred_check_branch
      %343 = sbr.rel (%p341) target = $region36
    $region35: #{_lambda_.173} parent=5 // pred_region
      %s344 = ssub.s32 %s8, 2
      // Predicated region
      $region37: #{_lambda_.173} parent=35 // pred_check
        %p345 = pneg %p84
      $region38: #{_lambda_.173} parent=35 // pred_check_branch
        %347 = sbr.rel (%p345) target = $region40
      $region39: #{_lambda_.173} parent=35 // pred_region
        %p348 = scmp.lt.s32.totalorder %s14, 1
        %s349 = scalar_select %p348, %s14, 1
        %s350 = smul.addr %s349, 2
        %s351 = smul.addr %s350, 2
        %s352 = scalar_lea.vmem %s2, %s351
      $region40: #{_lambda_.173} parent=35 // pred_fallthru
        _
    $region36: #{_lambda_.173} parent=5 // pred_fallthru
      _
  $region6: #{_lambda_.173} parent=0 // loop_footer
    %s12 = sadd.s32 1, %s8
  $region7: #{_lambda_.173} parent=0 // loop_footer_branch
    %7 = sbr.rel target = $region3
  $region8: #{_lambda_.173} parent=0 // loop_exit
    _

</llo_original>
